<compile_context>
chip_gen: v6e
topology: v6e:2x2x1
jax: 0.10.0
libtpu: 0.0.40
codegen_flags: <defaults>
</compile_context>

<pallas_src>
import jax
import jax.numpy as jnp
from jax.experimental import pallas as pl
from jax.experimental.pallas import tpu as pltpu


def _vdsr_fused_kernel(x_ref, w_ref, b_ref, o_ref, pbuf):
    """Whole VDSR network for one image; activations never leave VMEM.

    x_ref : (1, H, W, Cin)  f32 input (Cin = 3, no HBM-side channel pad)
    w_ref : (L, 9, C, C)    bf16 weights, tap-major (ky*3+kx), (Cin, Cout)
    b_ref : (L, 1, C)       f32 biases (padded columns are zero)
    o_ref : (1, H, W, C)    f32 output: conv + residual on the first Cin
                            channels, exact zeros on the padded ones
    pbuf  : VMEM (H+2, W+2, C) bf16: resident activation + 1-px zero halo
    """
    L = w_ref.shape[0]
    _, H, W, Cin = x_ref.shape
    C = w_ref.shape[-1]

    # Zero halo ("same" padding for every layer) and interior.  The interior
    # zero is still needed because the input DMA only covers Cin of the C
    # channels; layer-0's padded weight rows are zero, but uninitialized VMEM
    # could contain NaNs.  Single small bf16 splat per image.
    pbuf[...] = jnp.zeros_like(pbuf)
    # In-kernel channel pad: drop the real channels into the interior
    # (masked lane store, replaces the old wrapper-side jnp.pad round trip).
    pbuf[1:H + 1, 1:W + 1, :Cin] = x_ref[0].astype(pbuf.dtype)

    def conv3x3(l):
        # 3x3 "same" conv of the pbuf interior + bias, f32 accumulation.
        # 9 accumulated K=C MXU dots (one per kernel tap): no per-layer
        # im2col concat temp and no (H*W, 9C) scratch.
        acc = None
        for k in range(9):
            dy, dx = divmod(k, 3)
            patch = pbuf[dy:dy + H, dx:dx + W, :].reshape(H * W, C)
            part = jnp.dot(patch, w_ref[l, k],
                           preferred_element_type=jnp.float32)
            acc = part if acc is None else acc + part
        return acc + b_ref[l]                      # (H*W, C) f32

    # 19 x (conv -> bias -> ReLU); activation stays resident in VMEM.
    @pl.loop(0, L - 1)
    def _(l):
        act = jnp.maximum(conv3x3(l), 0.0)
        pbuf[1:H + 1, 1:W + 1, :] = act.reshape(H, W, C).astype(pbuf.dtype)

    # Final conv (no ReLU) + global residual skip (f32).  Store all C
    # channels so the output write/DMA is lane-dense (64 wide) rather than a
    # 3-wide masked store; the padded channels are exactly zero and get
    # sliced off in the wrapper.
    out = conv3x3(L - 1).reshape(H, W, C)
    o_ref[0] = out.astype(o_ref.dtype)
    o_ref[0, :, :, :Cin] = (out[:, :, :Cin] + x_ref[0]).astype(o_ref.dtype)


def init_vdsr_params(key):
    """20 conv layers: 3->64, 18x (64->64), 64->3.  Deterministic synthetic init."""
    chans = [3] + [64] * 19 + [3]
    params = []
    for i in range(20):
        cin, cout = chans[i], chans[i + 1]
        key, kw, kb = jax.random.split(key, 3)
        fan_in = 9 * cin
        w = jax.random.normal(kw, (3, 3, cin, cout), jnp.float32) * (2.0 / fan_in) ** 0.5
        b = jax.random.normal(kb, (cout,), jnp.float32) * 0.01
        params.append((w, b))
    return params


def prep_vdsr_params(params, c=64):
    """Pack 20 HWIO conv layers into a (L, 9, c, c) bf16 slab + (L, 1, c) f32 bias.

    Layer 0 (Cin=3) is zero-padded on input channels, layer 19 (Cout=3) on
    output channels, so every layer runs the same per-tap (c, c) matmul and
    the padded output channels are exactly zero.
    """
    ws, bs = [], []
    for (w, b) in params:
        kh, kw, cin, cout = w.shape
        wp = jnp.zeros((kh, kw, c, c), jnp.float32).at[:, :, :cin, :cout].set(w)
        bp = jnp.zeros((c,), jnp.float32).at[:cout].set(b)
        ws.append(wp.reshape(kh * kw, c, c))
        bs.append(bp.reshape(1, c))
    w_all = jnp.stack(ws).astype(jnp.bfloat16)   # (L, 9, c, c)
    b_all = jnp.stack(bs)                        # (L, 1, c) f32
    return w_all, b_all


def vdsr_forward(x_nchw, w_all, b_all):
    """VDSR: 19x (conv3x3 + ReLU) + conv3x3 + global skip.  NCHW in / NCHW out."""
    n, cin, h, w = x_nchw.shape
    c = w_all.shape[-1]
    x = jnp.transpose(x_nchw, (0, 2, 3, 1))      # NCHW -> NHWC, 3 channels only

    out = pl.pallas_call(
        _vdsr_fused_kernel,
        out_shape=jax.ShapeDtypeStruct((n, h, w, c), x_nchw.dtype),  # lane-dense 64-ch
        grid_spec=pltpu.PrefetchScalarGridSpec(
            num_scalar_prefetch=0,
            grid=(n,),
            in_specs=[
                pl.BlockSpec((1, h, w, cin), lambda i: (i, 0, 0, 0)),
                pl.BlockSpec(w_all.shape, lambda i: (0, 0, 0, 0)),   # resident weights
                pl.BlockSpec(b_all.shape, lambda i: (0, 0, 0)),      # resident biases
            ],
            out_specs=pl.BlockSpec((1, h, w, c), lambda i: (i, 0, 0, 0)),
            scratch_shapes=[pltpu.VMEM((h + 2, w + 2, c), jnp.bfloat16)],
        ),
        compiler_params=pltpu.CompilerParams(
            dimension_semantics=("parallel",),     # batch across TCs on v7x
            vmem_limit_bytes=48 * 1024 * 1024,     # > 32 MiB default, < v7x 64 MiB phys
        ),
    )(x, w_all, b_all)

    # Padded channels [cin, c) are exactly zero -> slice them off and go back
    # to NCHW outside the kernel (lane-dense store inside, cheap XLA ops here).
    return jnp.transpose(out[..., :cin], (0, 3, 1, 2))


def vdsr_reference(x_nchw, w_all, b_all):
    """Pure-JAX reference mirroring the kernel's precision (bf16 weights and
    inter-layer activations, f32 accumulation / bias / residual)."""
    n, cin, hh, ww = x_nchw.shape
    L, _, c, _ = w_all.shape
    x = jnp.transpose(x_nchw, (0, 2, 3, 1)).astype(jnp.float32)
    act = jnp.pad(x, ((0, 0), (0, 0), (0, 0), (0, c - cin)))
    w_f32 = w_all.astype(jnp.float32).reshape(L, 3, 3, c, c)
    for l in range(L):
        act = act.astype(jnp.bfloat16).astype(jnp.float32)  # kernel keeps acts in bf16
        act = jax.lax.conv_general_dilated(
            act, w_f32[l], (1, 1), "SAME",
            dimension_numbers=("NHWC", "HWIO", "NHWC"),
            preferred_element_type=jnp.float32) + b_all[l, 0]
        if l < L - 1:
            act = jnp.maximum(act, 0.0)
    out = act[..., :cin] + x
    return jnp.transpose(out, (0, 3, 1, 2))


if __name__ == "__main__":
    key = jax.random.PRNGKey(0)
    k_x, k_p = jax.random.split(key)
    # VDSR operates on 3-channel images (PyTorch NCHW input).
    x = jax.random.normal(k_x, (2, 3, 16, 16), jnp.float32)
    params = init_vdsr_params(k_p)
    w_all, b_all = prep_vdsr_params(params)

    fwd = jax.jit(vdsr_forward)
    out = jax.block_until_ready(fwd(x, w_all, b_all))
    assert out.shape == (2, 3, 16, 16), out.shape
    assert bool(jnp.isfinite(out).all())

    # Validate against an f32-accumulation reference with matching bf16
    # weight/activation rounding (addresses the precision concern).
    ref = jax.block_until_ready(jax.jit(vdsr_reference)(x, w_all, b_all))
    err = float(jnp.max(jnp.abs(out - ref)))
    assert err < 1e-1, f"max abs error vs reference: {err}"

    print("KERNEL_OK")
</pallas_src>

<mosaic_0001>
module attributes {stable_mosaic.version = 11 : i64} {
  func.func @_vdsr_fused_kernel(%arg0: i32, %arg1: memref<1x16x16x3xf32, #tpu.memory_space<vmem>>, %arg2: memref<20x9x64x64xbf16, #tpu.memory_space<vmem>>, %arg3: memref<20x1x64xf32, #tpu.memory_space<vmem>>, %arg4: memref<1x16x16x64xf32, #tpu.memory_space<vmem>>, %arg5: memref<18x18x64xbf16, #tpu.memory_space<vmem>>) attributes {dimension_semantics = [#tpu.dimension_semantics<parallel>], iteration_bounds = array<i64: 2>, scalar_prefetch = 0 : i64, scratch_operands = 1 : i64, tpu.core_type = #tpu.core_type<tc>, window_params = [{transform_indices = @transform_0, window_bounds = array<i64: 1, 16, 16, 3>}, {pipeline_mode = #tpu.pipeline_mode<synchronous>, transform_indices = @transform_1, window_bounds = array<i64: 20, 9, 64, 64>}, {pipeline_mode = #tpu.pipeline_mode<synchronous>, transform_indices = @transform_2, window_bounds = array<i64: 20, 1, 64>}, {transform_indices = @transform_3, window_bounds = array<i64: 1, 16, 16, 64>}]} {
    %cst = arith.constant 0.000000e+00 : bf16
    %0 = vector.broadcast %cst : bf16 to vector<18x18x64xbf16>
    %c0 = arith.constant 0 : index
    %c0_0 = arith.constant 0 : index
    %c0_1 = arith.constant 0 : index
    %1 = vector.load %arg5[%c0, %c0_0, %c0_1] : memref<18x18x64xbf16, #tpu.memory_space<vmem>>, vector<18x18x64xbf16>
    tpu.vector_store %arg5[%c0, %c0_0, %c0_1], %0 {strides = array<i32>} : memref<18x18x64xbf16, #tpu.memory_space<vmem>>, vector<18x18x64xbf16>,
    %c0_2 = arith.constant 0 : index
    %c0_3 = arith.constant 0 : index
    %c0_4 = arith.constant 0 : index
    %c0_5 = arith.constant 0 : index
    %2 = vector.load %arg1[%c0_2, %c0_3, %c0_4, %c0_5] : memref<1x16x16x3xf32, #tpu.memory_space<vmem>>, vector<1x16x16x3xf32>
    %3 = vector.shape_cast %2 : vector<1x16x16x3xf32> to vector<16x16x3xf32>
    %4 = arith.truncf %3 : vector<16x16x3xf32> to vector<16x16x3xbf16>
    %c1 = arith.constant 1 : index
    %c1_6 = arith.constant 1 : index
    %c0_7 = arith.constant 0 : index
    %5 = vector.load %arg5[%c1, %c1_6, %c0_7] : memref<18x18x64xbf16, #tpu.memory_space<vmem>>, vector<16x16x3xbf16>
    tpu.vector_store %arg5[%c1, %c1_6, %c0_7], %4 {strides = array<i32>} : memref<18x18x64xbf16, #tpu.memory_space<vmem>>, vector<16x16x3xbf16>,
    %c0_i32 = arith.constant 0 : i32
    %c19_i32 = arith.constant 19 : i32
    %6 = arith.addi %c0_i32, %c19_i32 : i32
    %c1_i32 = arith.constant 1 : i32
    scf.for %arg6 = %c0_i32 to %6 step %c1_i32  : i32 {
      %c1_i32_88 = arith.constant 1 : i32
      %75 = arith.muli %arg6, %c1_i32_88 : i32
      %c0_i32_89 = arith.constant 0 : i32
      %76 = arith.addi %c0_i32_89, %75 : i32
      %c0_90 = arith.constant 0 : index
      %c0_91 = arith.constant 0 : index
      %c0_92 = arith.constant 0 : index
      %77 = vector.load %arg5[%c0_90, %c0_91, %c0_92] : memref<18x18x64xbf16, #tpu.memory_space<vmem>>, vector<16x16x64xbf16>
      %78 = vector.shape_cast %77 : vector<16x16x64xbf16> to vector<256x64xbf16>
      %79 = arith.index_cast %76 : i32 to index
      %c0_93 = arith.constant 0 : index
      %c0_94 = arith.constant 0 : index
      %c0_95 = arith.constant 0 : index
      %80 = vector.load %arg2[%79, %c0_93, %c0_94, %c0_95] : memref<20x9x64x64xbf16, #tpu.memory_space<vmem>>, vector<1x1x64x64xbf16>
      %81 = vector.shape_cast %80 : vector<1x1x64x64xbf16> to vector<64x64xbf16>
      %cst_96 = arith.constant dense<0.000000e+00> : vector<256x64xf32>
      %82 = tpu.matmul %78, %81, %cst_96 {dimension_numbers = #tpu.dot_dimension_numbers<[1], [0], [0], [1], [0, 0, 1, 1], [], []>} : vector<256x64xbf16>, vector<64x64xbf16>, vector<256x64xf32> -> vector<256x64xf32>
      %c0_97 = arith.constant 0 : index
      %c1_98 = arith.constant 1 : index
      %c0_99 = arith.constant 0 : index
      %83 = vector.load %arg5[%c0_97, %c1_98, %c0_99] : memref<18x18x64xbf16, #tpu.memory_space<vmem>>, vector<16x16x64xbf16>
      %84 = vector.shape_cast %83 : vector<16x16x64xbf16> to vector<256x64xbf16>
      %85 = arith.index_cast %76 : i32 to index
      %c1_100 = arith.constant 1 : index
      %c0_101 = arith.constant 0 : index
      %c0_102 = arith.constant 0 : index
      %86 = vector.load %arg2[%85, %c1_100, %c0_101, %c0_102] : memref<20x9x64x64xbf16, #tpu.memory_space<vmem>>, vector<1x1x64x64xbf16>
      %87 = vector.shape_cast %86 : vector<1x1x64x64xbf16> to vector<64x64xbf16>
      %cst_103 = arith.constant dense<0.000000e+00> : vector<256x64xf32>
      %88 = tpu.matmul %84, %87, %cst_103 {dimension_numbers = #tpu.dot_dimension_numbers<[1], [0], [0], [1], [0, 0, 1, 1], [], []>} : vector<256x64xbf16>, vector<64x64xbf16>, vector<256x64xf32> -> vector<256x64xf32>
      %89 = arith.addf %82, %88 : vector<256x64xf32>
      %c0_104 = arith.constant 0 : index
      %c2_105 = arith.constant 2 : index
      %c0_106 = arith.constant 0 : index
      %90 = vector.load %arg5[%c0_104, %c2_105, %c0_106] : memref<18x18x64xbf16, #tpu.memory_space<vmem>>, vector<16x16x64xbf16>
      %91 = vector.shape_cast %90 : vector<16x16x64xbf16> to vector<256x64xbf16>
      %92 = arith.index_cast %76 : i32 to index
      %c2_107 = arith.constant 2 : index
      %c0_108 = arith.constant 0 : index
      %c0_109 = arith.constant 0 : index
      %93 = vector.load %arg2[%92, %c2_107, %c0_108, %c0_109] : memref<20x9x64x64xbf16, #tpu.memory_space<vmem>>, vector<1x1x64x64xbf16>
      %94 = vector.shape_cast %93 : vector<1x1x64x64xbf16> to vector<64x64xbf16>
      %cst_110 = arith.constant dense<0.000000e+00> : vector<256x64xf32>
      %95 = tpu.matmul %91, %94, %cst_110 {dimension_numbers = #tpu.dot_dimension_numbers<[1], [0], [0], [1], [0, 0, 1, 1], [], []>} : vector<256x64xbf16>, vector<64x64xbf16>, vector<256x64xf32> -> vector<256x64xf32>
      %96 = arith.addf %89, %95 : vector<256x64xf32>
      %c1_111 = arith.constant 1 : index
      %c0_112 = arith.constant 0 : index
      %c0_113 = arith.constant 0 : index
      %97 = vector.load %arg5[%c1_111, %c0_112, %c0_113] : memref<18x18x64xbf16, #tpu.memory_space<vmem>>, vector<16x16x64xbf16>
      %98 = vector.shape_cast %97 : vector<16x16x64xbf16> to vector<256x64xbf16>
      %99 = arith.index_cast %76 : i32 to index
      %c3_114 = arith.constant 3 : index
      %c0_115 = arith.constant 0 : index
      %c0_116 = arith.constant 0 : index
      %100 = vector.load %arg2[%99, %c3_114, %c0_115, %c0_116] : memref<20x9x64x64xbf16, #tpu.memory_space<vmem>>, vector<1x1x64x64xbf16>
      %101 = vector.shape_cast %100 : vector<1x1x64x64xbf16> to vector<64x64xbf16>
      %cst_117 = arith.constant dense<0.000000e+00> : vector<256x64xf32>
      %102 = tpu.matmul %98, %101, %cst_117 {dimension_numbers = #tpu.dot_dimension_numbers<[1], [0], [0], [1], [0, 0, 1, 1], [], []>} : vector<256x64xbf16>, vector<64x64xbf16>, vector<256x64xf32> -> vector<256x64xf32>
      %103 = arith.addf %96, %102 : vector<256x64xf32>
      %c1_118 = arith.constant 1 : index
      %c1_119 = arith.constant 1 : index
      %c0_120 = arith.constant 0 : index
      %104 = vector.load %arg5[%c1_118, %c1_119, %c0_120] : memref<18x18x64xbf16, #tpu.memory_space<vmem>>, vector<16x16x64xbf16>
      %105 = vector.shape_cast %104 : vector<16x16x64xbf16> to vector<256x64xbf16>
      %106 = arith.index_cast %76 : i32 to index
      %c4_121 = arith.constant 4 : index
      %c0_122 = arith.constant 0 : index
      %c0_123 = arith.constant 0 : index
      %107 = vector.load %arg2[%106, %c4_121, %c0_122, %c0_123] : memref<20x9x64x64xbf16, #tpu.memory_space<vmem>>, vector<1x1x64x64xbf16>
      %108 = vector.shape_cast %107 : vector<1x1x64x64xbf16> to vector<64x64xbf16>
      %cst_124 = arith.constant dense<0.000000e+00> : vector<256x64xf32>
      %109 = tpu.matmul %105, %108, %cst_124 {dimension_numbers = #tpu.dot_dimension_numbers<[1], [0], [0], [1], [0, 0, 1, 1], [], []>} : vector<256x64xbf16>, vector<64x64xbf16>, vector<256x64xf32> -> vector<256x64xf32>
      %110 = arith.addf %103, %109 : vector<256x64xf32>
      %c1_125 = arith.constant 1 : index
      %c2_126 = arith.constant 2 : index
      %c0_127 = arith.constant 0 : index
      %111 = vector.load %arg5[%c1_125, %c2_126, %c0_127] : memref<18x18x64xbf16, #tpu.memory_space<vmem>>, vector<16x16x64xbf16>
      %112 = vector.shape_cast %111 : vector<16x16x64xbf16> to vector<256x64xbf16>
      %113 = arith.index_cast %76 : i32 to index
      %c5_128 = arith.constant 5 : index
      %c0_129 = arith.constant 0 : index
      %c0_130 = arith.constant 0 : index
      %114 = vector.load %arg2[%113, %c5_128, %c0_129, %c0_130] : memref<20x9x64x64xbf16, #tpu.memory_space<vmem>>, vector<1x1x64x64xbf16>
      %115 = vector.shape_cast %114 : vector<1x1x64x64xbf16> to vector<64x64xbf16>
      %cst_131 = arith.constant dense<0.000000e+00> : vector<256x64xf32>
      %116 = tpu.matmul %112, %115, %cst_131 {dimension_numbers = #tpu.dot_dimension_numbers<[1], [0], [0], [1], [0, 0, 1, 1], [], []>} : vector<256x64xbf16>, vector<64x64xbf16>, vector<256x64xf32> -> vector<256x64xf32>
      %117 = arith.addf %110, %116 : vector<256x64xf32>
      %c2_132 = arith.constant 2 : index
      %c0_133 = arith.constant 0 : index
      %c0_134 = arith.constant 0 : index
      %118 = vector.load %arg5[%c2_132, %c0_133, %c0_134] : memref<18x18x64xbf16, #tpu.memory_space<vmem>>, vector<16x16x64xbf16>
      %119 = vector.shape_cast %118 : vector<16x16x64xbf16> to vector<256x64xbf16>
      %120 = arith.index_cast %76 : i32 to index
      %c6_135 = arith.constant 6 : index
      %c0_136 = arith.constant 0 : index
      %c0_137 = arith.constant 0 : index
      %121 = vector.load %arg2[%120, %c6_135, %c0_136, %c0_137] : memref<20x9x64x64xbf16, #tpu.memory_space<vmem>>, vector<1x1x64x64xbf16>
      %122 = vector.shape_cast %121 : vector<1x1x64x64xbf16> to vector<64x64xbf16>
      %cst_138 = arith.constant dense<0.000000e+00> : vector<256x64xf32>
      %123 = tpu.matmul %119, %122, %cst_138 {dimension_numbers = #tpu.dot_dimension_numbers<[1], [0], [0], [1], [0, 0, 1, 1], [], []>} : vector<256x64xbf16>, vector<64x64xbf16>, vector<256x64xf32> -> vector<256x64xf32>
      %124 = arith.addf %117, %123 : vector<256x64xf32>
      %c2_139 = arith.constant 2 : index
      %c1_140 = arith.constant 1 : index
      %c0_141 = arith.constant 0 : index
      %125 = vector.load %arg5[%c2_139, %c1_140, %c0_141] : memref<18x18x64xbf16, #tpu.memory_space<vmem>>, vector<16x16x64xbf16>
      %126 = vector.shape_cast %125 : vector<16x16x64xbf16> to vector<256x64xbf16>
      %127 = arith.index_cast %76 : i32 to index
      %c7_142 = arith.constant 7 : index
      %c0_143 = arith.constant 0 : index
      %c0_144 = arith.constant 0 : index
      %128 = vector.load %arg2[%127, %c7_142, %c0_143, %c0_144] : memref<20x9x64x64xbf16, #tpu.memory_space<vmem>>, vector<1x1x64x64xbf16>
      %129 = vector.shape_cast %128 : vector<1x1x64x64xbf16> to vector<64x64xbf16>
      %cst_145 = arith.constant dense<0.000000e+00> : vector<256x64xf32>
      %130 = tpu.matmul %126, %129, %cst_145 {dimension_numbers = #tpu.dot_dimension_numbers<[1], [0], [0], [1], [0, 0, 1, 1], [], []>} : vector<256x64xbf16>, vector<64x64xbf16>, vector<256x64xf32> -> vector<256x64xf32>
      %131 = arith.addf %124, %130 : vector<256x64xf32>
      %c2_146 = arith.constant 2 : index
      %c2_147 = arith.constant 2 : index
      %c0_148 = arith.constant 0 : index
      %132 = vector.load %arg5[%c2_146, %c2_147, %c0_148] : memref<18x18x64xbf16, #tpu.memory_space<vmem>>, vector<16x16x64xbf16>
      %133 = vector.shape_cast %132 : vector<16x16x64xbf16> to vector<256x64xbf16>
      %134 = arith.index_cast %76 : i32 to index
      %c8_149 = arith.constant 8 : index
      %c0_150 = arith.constant 0 : index
      %c0_151 = arith.constant 0 : index
      %135 = vector.load %arg2[%134, %c8_149, %c0_150, %c0_151] : memref<20x9x64x64xbf16, #tpu.memory_space<vmem>>, vector<1x1x64x64xbf16>
      %136 = vector.shape_cast %135 : vector<1x1x64x64xbf16> to vector<64x64xbf16>
      %cst_152 = arith.constant dense<0.000000e+00> : vector<256x64xf32>
      %137 = tpu.matmul %133, %136, %cst_152 {dimension_numbers = #tpu.dot_dimension_numbers<[1], [0], [0], [1], [0, 0, 1, 1], [], []>} : vector<256x64xbf16>, vector<64x64xbf16>, vector<256x64xf32> -> vector<256x64xf32>
      %138 = arith.addf %131, %137 : vector<256x64xf32>
      %139 = arith.index_cast %76 : i32 to index
      %c0_153 = arith.constant 0 : index
      %c0_154 = arith.constant 0 : index
      %140 = vector.load %arg3[%139, %c0_153, %c0_154] : memref<20x1x64xf32, #tpu.memory_space<vmem>>, vector<1x1x64xf32>
      %141 = vector.shape_cast %140 : vector<1x1x64xf32> to vector<1x64xf32>
      %142 = vector.broadcast %141 : vector<1x64xf32> to vector<256x64xf32>
      %143 = arith.addf %138, %142 : vector<256x64xf32>
      %cst_155 = arith.constant 0.000000e+00 : f32
      %144 = vector.broadcast %cst_155 : f32 to vector<256x64xf32>
      %145 = arith.maximumf %143, %144 : vector<256x64xf32>
      %146 = vector.shape_cast %145 : vector<256x64xf32> to vector<16x16x64xf32>
      %147 = arith.truncf %146 : vector<16x16x64xf32> to vector<16x16x64xbf16>
      %c1_156 = arith.constant 1 : index
      %c1_157 = arith.constant 1 : index
      %c0_158 = arith.constant 0 : index
      %148 = vector.load %arg5[%c1_156, %c1_157, %c0_158] : memref<18x18x64xbf16, #tpu.memory_space<vmem>>, vector<16x16x64xbf16>
      tpu.vector_store %arg5[%c1_156, %c1_157, %c0_158], %147 {strides = array<i32>} : memref<18x18x64xbf16, #tpu.memory_space<vmem>>, vector<16x16x64xbf16>,
    }
    %c19_i32_8 = arith.constant 19 : i32
    %c0_9 = arith.constant 0 : index
    %c0_10 = arith.constant 0 : index
    %c0_11 = arith.constant 0 : index
    %7 = vector.load %arg5[%c0_9, %c0_10, %c0_11] : memref<18x18x64xbf16, #tpu.memory_space<vmem>>, vector<16x16x64xbf16>
    %8 = vector.shape_cast %7 : vector<16x16x64xbf16> to vector<256x64xbf16>
    %c19 = arith.constant 19 : index
    %c0_12 = arith.constant 0 : index
    %c0_13 = arith.constant 0 : index
    %c0_14 = arith.constant 0 : index
    %9 = vector.load %arg2[%c19, %c0_12, %c0_13, %c0_14] : memref<20x9x64x64xbf16, #tpu.memory_space<vmem>>, vector<1x1x64x64xbf16>
    %10 = vector.shape_cast %9 : vector<1x1x64x64xbf16> to vector<64x64xbf16>
    %cst_15 = arith.constant dense<0.000000e+00> : vector<256x64xf32>
    %11 = tpu.matmul %8, %10, %cst_15 {dimension_numbers = #tpu.dot_dimension_numbers<[1], [0], [0], [1], [0, 0, 1, 1], [], []>} : vector<256x64xbf16>, vector<64x64xbf16>, vector<256x64xf32> -> vector<256x64xf32>
    %c0_16 = arith.constant 0 : index
    %c1_17 = arith.constant 1 : index
    %c0_18 = arith.constant 0 : index
    %12 = vector.load %arg5[%c0_16, %c1_17, %c0_18] : memref<18x18x64xbf16, #tpu.memory_space<vmem>>, vector<16x16x64xbf16>
    %13 = vector.shape_cast %12 : vector<16x16x64xbf16> to vector<256x64xbf16>
    %c19_19 = arith.constant 19 : index
    %c1_20 = arith.constant 1 : index
    %c0_21 = arith.constant 0 : index
    %c0_22 = arith.constant 0 : index
    %14 = vector.load %arg2[%c19_19, %c1_20, %c0_21, %c0_22] : memref<20x9x64x64xbf16, #tpu.memory_space<vmem>>, vector<1x1x64x64xbf16>
    %15 = vector.shape_cast %14 : vector<1x1x64x64xbf16> to vector<64x64xbf16>
    %cst_23 = arith.constant dense<0.000000e+00> : vector<256x64xf32>
    %16 = tpu.matmul %13, %15, %cst_23 {dimension_numbers = #tpu.dot_dimension_numbers<[1], [0], [0], [1], [0, 0, 1, 1], [], []>} : vector<256x64xbf16>, vector<64x64xbf16>, vector<256x64xf32> -> vector<256x64xf32>
    %17 = arith.addf %11, %16 : vector<256x64xf32>
    %c0_24 = arith.constant 0 : index
    %c2 = arith.constant 2 : index
    %c0_25 = arith.constant 0 : index
    %18 = vector.load %arg5[%c0_24, %c2, %c0_25] : memref<18x18x64xbf16, #tpu.memory_space<vmem>>, vector<16x16x64xbf16>
    %19 = vector.shape_cast %18 : vector<16x16x64xbf16> to vector<256x64xbf16>
    %c19_26 = arith.constant 19 : index
    %c2_27 = arith.constant 2 : index
    %c0_28 = arith.constant 0 : index
    %c0_29 = arith.constant 0 : index
    %20 = vector.load %arg2[%c19_26, %c2_27, %c0_28, %c0_29] : memref<20x9x64x64xbf16, #tpu.memory_space<vmem>>, vector<1x1x64x64xbf16>
    %21 = vector.shape_cast %20 : vector<1x1x64x64xbf16> to vector<64x64xbf16>
    %cst_30 = arith.constant dense<0.000000e+00> : vector<256x64xf32>
    %22 = tpu.matmul %19, %21, %cst_30 {dimension_numbers = #tpu.dot_dimension_numbers<[1], [0], [0], [1], [0, 0, 1, 1], [], []>} : vector<256x64xbf16>, vector<64x64xbf16>, vector<256x64xf32> -> vector<256x64xf32>
    %23 = arith.addf %17, %22 : vector<256x64xf32>
    %c1_31 = arith.constant 1 : index
    %c0_32 = arith.constant 0 : index
    %c0_33 = arith.constant 0 : index
    %24 = vector.load %arg5[%c1_31, %c0_32, %c0_33] : memref<18x18x64xbf16, #tpu.memory_space<vmem>>, vector<16x16x64xbf16>
    %25 = vector.shape_cast %24 : vector<16x16x64xbf16> to vector<256x64xbf16>
    %c19_34 = arith.constant 19 : index
    %c3 = arith.constant 3 : index
    %c0_35 = arith.constant 0 : index
    %c0_36 = arith.constant 0 : index
    %26 = vector.load %arg2[%c19_34, %c3, %c0_35, %c0_36] : memref<20x9x64x64xbf16, #tpu.memory_space<vmem>>, vector<1x1x64x64xbf16>
    %27 = vector.shape_cast %26 : vector<1x1x64x64xbf16> to vector<64x64xbf16>
    %cst_37 = arith.constant dense<0.000000e+00> : vector<256x64xf32>
    %28 = tpu.matmul %25, %27, %cst_37 {dimension_numbers = #tpu.dot_dimension_numbers<[1], [0], [0], [1], [0, 0, 1, 1], [], []>} : vector<256x64xbf16>, vector<64x64xbf16>, vector<256x64xf32> -> vector<256x64xf32>
    %29 = arith.addf %23, %28 : vector<256x64xf32>
    %c1_38 = arith.constant 1 : index
    %c1_39 = arith.constant 1 : index
    %c0_40 = arith.constant 0 : index
    %30 = vector.load %arg5[%c1_38, %c1_39, %c0_40] : memref<18x18x64xbf16, #tpu.memory_space<vmem>>, vector<16x16x64xbf16>
    %31 = vector.shape_cast %30 : vector<16x16x64xbf16> to vector<256x64xbf16>
    %c19_41 = arith.constant 19 : index
    %c4 = arith.constant 4 : index
    %c0_42 = arith.constant 0 : index
    %c0_43 = arith.constant 0 : index
    %32 = vector.load %arg2[%c19_41, %c4, %c0_42, %c0_43] : memref<20x9x64x64xbf16, #tpu.memory_space<vmem>>, vector<1x1x64x64xbf16>
    %33 = vector.shape_cast %32 : vector<1x1x64x64xbf16> to vector<64x64xbf16>
    %cst_44 = arith.constant dense<0.000000e+00> : vector<256x64xf32>
    %34 = tpu.matmul %31, %33, %cst_44 {dimension_numbers = #tpu.dot_dimension_numbers<[1], [0], [0], [1], [0, 0, 1, 1], [], []>} : vector<256x64xbf16>, vector<64x64xbf16>, vector<256x64xf32> -> vector<256x64xf32>
    %35 = arith.addf %29, %34 : vector<256x64xf32>
    %c1_45 = arith.constant 1 : index
    %c2_46 = arith.constant 2 : index
    %c0_47 = arith.constant 0 : index
    %36 = vector.load %arg5[%c1_45, %c2_46, %c0_47] : memref<18x18x64xbf16, #tpu.memory_space<vmem>>, vector<16x16x64xbf16>
    %37 = vector.shape_cast %36 : vector<16x16x64xbf16> to vector<256x64xbf16>
    %c19_48 = arith.constant 19 : index
    %c5 = arith.constant 5 : index
    %c0_49 = arith.constant 0 : index
    %c0_50 = arith.constant 0 : index
    %38 = vector.load %arg2[%c19_48, %c5, %c0_49, %c0_50] : memref<20x9x64x64xbf16, #tpu.memory_space<vmem>>, vector<1x1x64x64xbf16>
    %39 = vector.shape_cast %38 : vector<1x1x64x64xbf16> to vector<64x64xbf16>
    %cst_51 = arith.constant dense<0.000000e+00> : vector<256x64xf32>
    %40 = tpu.matmul %37, %39, %cst_51 {dimension_numbers = #tpu.dot_dimension_numbers<[1], [0], [0], [1], [0, 0, 1, 1], [], []>} : vector<256x64xbf16>, vector<64x64xbf16>, vector<256x64xf32> -> vector<256x64xf32>
    %41 = arith.addf %35, %40 : vector<256x64xf32>
    %c2_52 = arith.constant 2 : index
    %c0_53 = arith.constant 0 : index
    %c0_54 = arith.constant 0 : index
    %42 = vector.load %arg5[%c2_52, %c0_53, %c0_54] : memref<18x18x64xbf16, #tpu.memory_space<vmem>>, vector<16x16x64xbf16>
    %43 = vector.shape_cast %42 : vector<16x16x64xbf16> to vector<256x64xbf16>
    %c19_55 = arith.constant 19 : index
    %c6 = arith.constant 6 : index
    %c0_56 = arith.constant 0 : index
    %c0_57 = arith.constant 0 : index
    %44 = vector.load %arg2[%c19_55, %c6, %c0_56, %c0_57] : memref<20x9x64x64xbf16, #tpu.memory_space<vmem>>, vector<1x1x64x64xbf16>
    %45 = vector.shape_cast %44 : vector<1x1x64x64xbf16> to vector<64x64xbf16>
    %cst_58 = arith.constant dense<0.000000e+00> : vector<256x64xf32>
    %46 = tpu.matmul %43, %45, %cst_58 {dimension_numbers = #tpu.dot_dimension_numbers<[1], [0], [0], [1], [0, 0, 1, 1], [], []>} : vector<256x64xbf16>, vector<64x64xbf16>, vector<256x64xf32> -> vector<256x64xf32>
    %47 = arith.addf %41, %46 : vector<256x64xf32>
    %c2_59 = arith.constant 2 : index
    %c1_60 = arith.constant 1 : index
    %c0_61 = arith.constant 0 : index
    %48 = vector.load %arg5[%c2_59, %c1_60, %c0_61] : memref<18x18x64xbf16, #tpu.memory_space<vmem>>, vector<16x16x64xbf16>
    %49 = vector.shape_cast %48 : vector<16x16x64xbf16> to vector<256x64xbf16>
    %c19_62 = arith.constant 19 : index
    %c7 = arith.constant 7 : index
    %c0_63 = arith.constant 0 : index
    %c0_64 = arith.constant 0 : index
    %50 = vector.load %arg2[%c19_62, %c7, %c0_63, %c0_64] : memref<20x9x64x64xbf16, #tpu.memory_space<vmem>>, vector<1x1x64x64xbf16>
    %51 = vector.shape_cast %50 : vector<1x1x64x64xbf16> to vector<64x64xbf16>
    %cst_65 = arith.constant dense<0.000000e+00> : vector<256x64xf32>
    %52 = tpu.matmul %49, %51, %cst_65 {dimension_numbers = #tpu.dot_dimension_numbers<[1], [0], [0], [1], [0, 0, 1, 1], [], []>} : vector<256x64xbf16>, vector<64x64xbf16>, vector<256x64xf32> -> vector<256x64xf32>
    %53 = arith.addf %47, %52 : vector<256x64xf32>
    %c2_66 = arith.constant 2 : index
    %c2_67 = arith.constant 2 : index
    %c0_68 = arith.constant 0 : index
    %54 = vector.load %arg5[%c2_66, %c2_67, %c0_68] : memref<18x18x64xbf16, #tpu.memory_space<vmem>>, vector<16x16x64xbf16>
    %55 = vector.shape_cast %54 : vector<16x16x64xbf16> to vector<256x64xbf16>
    %c19_69 = arith.constant 19 : index
    %c8 = arith.constant 8 : index
    %c0_70 = arith.constant 0 : index
    %c0_71 = arith.constant 0 : index
    %56 = vector.load %arg2[%c19_69, %c8, %c0_70, %c0_71] : memref<20x9x64x64xbf16, #tpu.memory_space<vmem>>, vector<1x1x64x64xbf16>
    %57 = vector.shape_cast %56 : vector<1x1x64x64xbf16> to vector<64x64xbf16>
    %cst_72 = arith.constant dense<0.000000e+00> : vector<256x64xf32>
    %58 = tpu.matmul %55, %57, %cst_72 {dimension_numbers = #tpu.dot_dimension_numbers<[1], [0], [0], [1], [0, 0, 1, 1], [], []>} : vector<256x64xbf16>, vector<64x64xbf16>, vector<256x64xf32> -> vector<256x64xf32>
    %59 = arith.addf %53, %58 : vector<256x64xf32>
    %c19_73 = arith.constant 19 : index
    %c0_74 = arith.constant 0 : index
    %c0_75 = arith.constant 0 : index
    %60 = vector.load %arg3[%c19_73, %c0_74, %c0_75] : memref<20x1x64xf32, #tpu.memory_space<vmem>>, vector<1x1x64xf32>
    %61 = vector.shape_cast %60 : vector<1x1x64xf32> to vector<1x64xf32>
    %62 = vector.broadcast %61 : vector<1x64xf32> to vector<256x64xf32>
    %63 = arith.addf %59, %62 : vector<256x64xf32>
    %64 = vector.shape_cast %63 : vector<256x64xf32> to vector<16x16x64xf32>
    %c0_76 = arith.constant 0 : index
    %c0_77 = arith.constant 0 : index
    %c0_78 = arith.constant 0 : index
    %c0_79 = arith.constant 0 : index
    %65 = vector.load %arg4[%c0_76, %c0_77, %c0_78, %c0_79] : memref<1x16x16x64xf32, #tpu.memory_space<vmem>>, vector<1x16x16x64xf32>
    %66 = vector.shape_cast %65 : vector<1x16x16x64xf32> to vector<16x16x64xf32>
    %67 = vector.shape_cast %64 : vector<16x16x64xf32> to vector<1x16x16x64xf32>
    tpu.vector_store %arg4[%c0_76, %c0_77, %c0_78, %c0_79], %67 {strides = array<i32>} : memref<1x16x16x64xf32, #tpu.memory_space<vmem>>, vector<1x16x16x64xf32>,
    %68 = vector.extract_strided_slice %64 {offsets = [0, 0, 0], sizes = [16, 16, 3], strides = [1, 1, 1]} : vector<16x16x64xf32> to vector<16x16x3xf32>
    %c0_80 = arith.constant 0 : index
    %c0_81 = arith.constant 0 : index
    %c0_82 = arith.constant 0 : index
    %c0_83 = arith.constant 0 : index
    %69 = vector.load %arg1[%c0_80, %c0_81, %c0_82, %c0_83] : memref<1x16x16x3xf32, #tpu.memory_space<vmem>>, vector<1x16x16x3xf32>
    %70 = vector.shape_cast %69 : vector<1x16x16x3xf32> to vector<16x16x3xf32>
    %71 = arith.addf %68, %70 : vector<16x16x3xf32>
    %c0_84 = arith.constant 0 : index
    %c0_85 = arith.constant 0 : index
    %c0_86 = arith.constant 0 : index
    %c0_87 = arith.constant 0 : index
    %72 = vector.load %arg4[%c0_84, %c0_85, %c0_86, %c0_87] : memref<1x16x16x64xf32, #tpu.memory_space<vmem>>, vector<1x16x16x3xf32>
    %73 = vector.shape_cast %72 : vector<1x16x16x3xf32> to vector<16x16x3xf32>
    %74 = vector.shape_cast %71 : vector<16x16x3xf32> to vector<1x16x16x3xf32>
    tpu.vector_store %arg4[%c0_84, %c0_85, %c0_86, %c0_87], %74 {strides = array<i32>} : memref<1x16x16x64xf32, #tpu.memory_space<vmem>>, vector<1x16x16x3xf32>,
    return
  }
  func.func @transform_0(%arg0: i32) -> (i32, i32, i32, i32) {
    %c0_i32 = arith.constant 0 : i32
    %c0_i32_0 = arith.constant 0 : i32
    %c0_i32_1 = arith.constant 0 : i32
    %c0_i32_2 = arith.constant 0 : i32
    return %arg0, %c0_i32, %c0_i32_0, %c0_i32_1 : i32, i32, i32, i32
  }
  func.func @transform_1(%arg0: i32) -> (i32, i32, i32, i32) {
    %c0_i32 = arith.constant 0 : i32
    %c0_i32_0 = arith.constant 0 : i32
    %c0_i32_1 = arith.constant 0 : i32
    %c0_i32_2 = arith.constant 0 : i32
    %c0_i32_3 = arith.constant 0 : i32
    return %c0_i32, %c0_i32_0, %c0_i32_1, %c0_i32_2 : i32, i32, i32, i32
  }
  func.func @transform_2(%arg0: i32) -> (i32, i32, i32) {
    %c0_i32 = arith.constant 0 : i32
    %c0_i32_0 = arith.constant 0 : i32
    %c0_i32_1 = arith.constant 0 : i32
    %c0_i32_2 = arith.constant 0 : i32
    return %c0_i32, %c0_i32_0, %c0_i32_1 : i32, i32, i32
  }
  func.func @transform_3(%arg0: i32) -> (i32, i32, i32, i32) {
    %c0_i32 = arith.constant 0 : i32
    %c0_i32_0 = arith.constant 0 : i32
    %c0_i32_1 = arith.constant 0 : i32
    %c0_i32_2 = arith.constant 0 : i32
    return %arg0, %c0_i32, %c0_i32_0, %c0_i32_1 : i32, i32, i32, i32
  }
}

</mosaic_0001>

<llo_original>
// kernel: vdsr_forward.1
$region0: #{vdsr_forward.1}
  #allocation0 [shape = 'u32[]', space=smem, size = 0x4, offset = 0x4, fixed_abs, tag = 'smem constant byte address 0x4 - core index']
  #allocation1 [shape = 'u32[144,128]{1,0:T(1,128)}', space=vmem, size = 0x12000, scoped, tag = 'internal scratch']
  #allocation2 [shape = 'bf16[18,18,64]{2,1,0:T(8,128)(2,1)}', space=vmem, size = 0x1b000, scoped, tag = 'scratch operand']
  %s0 = inlined_call_operand.vmem [shape: f32[2,16,16,3], index: 0, kind: input, shape index: {}]
  %s1 = inlined_call_operand.hbm [shape: bf16[20,9,64,64], index: 1, kind: input, shape index: {}]
  %s2 = inlined_call_operand.hbm [shape: f32[20,1,64], index: 2, kind: input, shape index: {}]
  %s3 = inlined_call_operand.vmem [shape: f32[2,16,16,64], index: 3, kind: output, shape index: {}]
  %s4 = sld [smem:[#allocation0]]
  $region60: #{vdsr_forward.1} parent=0
    _
  %s6 = ssub.s32 1, %s4
  %s7 = scalar_select 0, %s6, %s4
  $region1: #{vdsr_forward.1} parent=0
    #allocation3 [shape = 'u8[2949120]{0}', space=vmem, size = 0x2d0000, scoped, tag = 'input window, operand 1, single buffered']
    #allocation4 [shape = 's32[2]{0}', space=sflag, size = 0x8, scoped, tag = 'scoped memory for vdsr_forward.1']
    #allocation5 [shape = 'u8[10240]{0}', space=vmem, size = 0x2800, scoped, tag = 'input window, operand 2, single buffered']
    #allocation6 [shape = 's32[1]{0}', space=sflag, size = 0x4, scoped, tag = 'scoped memory for vdsr_forward.1']
    %8 = vsyncpa [#allocation4], 0
    %9 = vsyncpa [#allocation6], 0
    loop: start=0, step=1, limit=4
    $region2: #{vdsr_forward.1} parent=1 // loop_pre_header
      _
    $region3: #{vdsr_forward.1} parent=1 // loop_header
      %s11 = sphi 0, %s15
      %p12 = scmp.ge.s32.totalorder %s11, 4
      %s21 = sphi 0, %s23
      %s24 = sphi 0, %s21
      %s25 = sphi 0, %s24
      %s41 = sphi 0, %s25
      %s45 = sphi 0, %s45
      %s47 = sphi 0, %s45
      %s48 = sphi 0, %s47
      %s62 = sphi 0, %s48
      %s66 = sphi 0, %s66
      %s68 = sphi 0, %s66
      %s69 = sphi 0, %s68
      %s83 = sphi 0, %s69
      %s89 = sphi 0, %s91
      %s92 = sphi 0, %s89
      %s93 = sphi 0, %s92
      %s109 = sphi 0, %s93
    $region4: #{vdsr_forward.1} parent=1 // loop_header_branch
      %14 = sbr.rel (%p12) target = $region8
    $region5: #{vdsr_forward.1} parent=1 // loop_body
      %s16 = ssub.s32 %s11, 1
      %s17 = ssub.s32 %s11, 2
      %s18 = sadd.s32 %s11, 1
      %s19 = ssub.s32 %s11, %s18
      %p20 = scmp.eq.s32.totalorder %s19, 0
      %s22 = sadd.s32 %s21, 1
      %s23 = scalar_select %p20, %s21, %s22
      %p26 = pneg %p20
      %p27 = scmp.eq.s32.totalorder %s11, 1
      %p28 = por %p26, %p27
      %p29 = scmp.ne.s32.totalorder %s21, %s24
      %p30 = scmp.eq.s32.totalorder %s11, 0
      %p31 = por %p29, %p30
      %p32 = scmp.ne.s32.totalorder %s21, %s24
      %p33 = scmp.eq.s32.totalorder %s16, 1
      %p34 = por %p32, %p33
      %p35 = scmp.ne.s32.totalorder %s24, %s25
      %p36 = scmp.eq.s32.totalorder %s16, 0
      %p37 = por %p35, %p36
      %p38 = scmp.ne.s32.totalorder %s24, %s25
      %p39 = scmp.eq.s32.totalorder %s17, 1
      %p40 = por %p38, %p39
      %p42 = scmp.ne.s32.totalorder %s25, %s41
      %p43 = scmp.eq.s32.totalorder %s17, 0
      %p44 = por %p42, %p43
      %s46 = sadd.s32 %s45, 1
      %p49 = scmp.eq.s32.totalorder %s11, 1
      %p50 = scmp.ne.s32.totalorder %s45, %s47
      %p51 = scmp.eq.s32.totalorder %s11, 0
      %p52 = por %p50, %p51
      %p53 = scmp.ne.s32.totalorder %s45, %s47
      %p54 = scmp.eq.s32.totalorder %s16, 1
      %p55 = por %p53, %p54
      %p56 = scmp.ne.s32.totalorder %s47, %s48
      %p57 = scmp.eq.s32.totalorder %s16, 0
      %p58 = por %p56, %p57
      %p59 = scmp.ne.s32.totalorder %s47, %s48
      %p60 = scmp.eq.s32.totalorder %s17, 1
      %p61 = por %p59, %p60
      %p63 = scmp.ne.s32.totalorder %s48, %s62
      %p64 = scmp.eq.s32.totalorder %s17, 0
      %p65 = por %p63, %p64
      %s67 = sadd.s32 %s66, 1
      %p70 = scmp.eq.s32.totalorder %s11, 1
      %p71 = scmp.ne.s32.totalorder %s66, %s68
      %p72 = scmp.eq.s32.totalorder %s11, 0
      %p73 = por %p71, %p72
      %p74 = scmp.ne.s32.totalorder %s66, %s68
      %p75 = scmp.eq.s32.totalorder %s16, 1
      %p76 = por %p74, %p75
      %p77 = scmp.ne.s32.totalorder %s68, %s69
      %p78 = scmp.eq.s32.totalorder %s16, 0
      %p79 = por %p77, %p78
      %p80 = scmp.ne.s32.totalorder %s68, %s69
      %p81 = scmp.eq.s32.totalorder %s17, 1
      %p82 = por %p80, %p81
      %p84 = scmp.ne.s32.totalorder %s69, %s83
      %p85 = scmp.eq.s32.totalorder %s17, 0
      %p86 = por %p84, %p85
      %s87 = ssub.s32 %s11, %s18
      %p88 = scmp.eq.s32.totalorder %s87, 0
      %s90 = sadd.s32 %s89, 1
      %s91 = scalar_select %p88, %s89, %s90
      %p94 = pneg %p88
      %p95 = scmp.eq.s32.totalorder %s11, 1
      %p96 = por %p94, %p95
      %p97 = scmp.ne.s32.totalorder %s89, %s92
      %p98 = scmp.eq.s32.totalorder %s11, 0
      %p99 = por %p97, %p98
      %p100 = scmp.ne.s32.totalorder %s89, %s92
      %p101 = scmp.eq.s32.totalorder %s16, 1
      %p102 = por %p100, %p101
      %p103 = scmp.ne.s32.totalorder %s92, %s93
      %p104 = scmp.eq.s32.totalorder %s16, 0
      %p105 = por %p103, %p104
      %p106 = scmp.ne.s32.totalorder %s92, %s93
      %p107 = scmp.eq.s32.totalorder %s17, 1
      %p108 = por %p106, %p107
      %p110 = scmp.ne.s32.totalorder %s93, %s109
      %p111 = scmp.eq.s32.totalorder %s17, 0
      %p112 = por %p110, %p111
      %p113 = scmp.le.s32.totalorder 1, %s11
      %p114 = scmp.lt.s32.totalorder %s11, 3
      %p115 = pnand %p113, %p114
      %p116 = pneg %p115
      // Predicated region
      $region9: #{vdsr_forward.1} parent=5 // pred_check
        _
      $region10: #{vdsr_forward.1} parent=5 // pred_check_branch
        %118 = sbr.rel (%p115) target = $region12
      $region11: #{vdsr_forward.1} parent=5 // pred_region
        %s119 = ssub.s32 %s11, 1
        // Predicated region
        $region13: #{vdsr_forward.1} parent=11 // pred_check
          %p120 = pneg %p58
        $region14: #{vdsr_forward.1} parent=11 // pred_check_branch
          %122 = sbr.rel (%p120) target = $region16
        $region15: #{vdsr_forward.1} parent=11 // pred_region
          %s124 = ssub.s32 92160, 92160
          %125 = vsyncadd [#allocation4], %s124
          %s126 = sshll.u32 [#allocation3], 4
          %s127 = int_to_ptr.vmem [resolvable:$true] %s126
          %132 = dma.hbm_to_vmem [thread:$0]  %s1, 92160, %s127, [#allocation4], 64, 64, 4
        $region16: #{vdsr_forward.1} parent=11 // pred_fallthru
          _
        // Predicated region
        $region17: #{vdsr_forward.1} parent=11 // pred_check
          %p133 = pneg %p79
        $region18: #{vdsr_forward.1} parent=11 // pred_check_branch
          %135 = sbr.rel (%p133) target = $region20
        $region19: #{vdsr_forward.1} parent=11 // pred_region
          %s137 = ssub.s32 320, 320
          %138 = vsyncadd [#allocation6], %s137
          %s139 = sshll.u32 [#allocation5], 4
          %s140 = int_to_ptr.vmem [resolvable:$true] %s139
          %145 = dma.hbm_to_vmem [thread:$0]  %s2, 320, %s140, [#allocation6], 16, 16, 1
        $region20: #{vdsr_forward.1} parent=11 // pred_fallthru
          _
      $region12: #{vdsr_forward.1} parent=5 // pred_fallthru
        _
      %p146 = scmp.lt.s32.totalorder %s11, 2
      // Predicated region
      $region21: #{vdsr_forward.1} parent=5 // pred_check
        %p147 = pneg %p146
      $region22: #{vdsr_forward.1} parent=5 // pred_check_branch
        %149 = sbr.rel (%p147) target = $region24
      $region23: #{vdsr_forward.1} parent=5 // pred_region
        // Predicated region
        $region25: #{vdsr_forward.1} parent=23 // pred_check
          %p150 = pneg %p31
        $region26: #{vdsr_forward.1} parent=23 // pred_check_branch
          %152 = sbr.rel (%p150) target = $region28
        $region27: #{vdsr_forward.1} parent=23 // pred_region
          %p153 = scmp.lt.s32.totalorder %s11, 1
          %s154 = scalar_select %p153, %s11, 1
          %s155 = smul.addr %s154, 32
          %s156 = smul.addr %s155, 8
          %s157 = scalar_lea.vmem %s0, %s156
        $region28: #{vdsr_forward.1} parent=23 // pred_fallthru
          _
      $region24: #{vdsr_forward.1} parent=5 // pred_fallthru
        _
      %p158 = scmp.le.s32.totalorder 1, %s11
      %p159 = scmp.lt.s32.totalorder %s11, 3
      %p160 = pnand %p158, %p159
      %p161 = pneg %p160
      // Predicated region
      $region29: #{vdsr_forward.1} parent=5 // pred_check
        _
      $region30: #{vdsr_forward.1} parent=5 // pred_check_branch
        %163 = sbr.rel (%p160) target = $region32
      $region31: #{vdsr_forward.1} parent=5 // pred_region
        %s164 = ssub.s32 %s11, 1
        // Predicated region
        $region33: #{vdsr_forward.1} parent=31 // pred_check
          %p165 = pneg %p58
        $region34: #{vdsr_forward.1} parent=31 // pred_check_branch
          %167 = sbr.rel (%p165) target = $region36
        $region35: #{vdsr_forward.1} parent=31 // pred_region
          %168 = dma.done [#allocation4], 92160
        $region36: #{vdsr_forward.1} parent=31 // pred_fallthru
          _
        // Predicated region
        $region37: #{vdsr_forward.1} parent=31 // pred_check
          %p169 = pneg %p79
        $region38: #{vdsr_forward.1} parent=31 // pred_check_branch
          %171 = sbr.rel (%p169) target = $region40
        $region39: #{vdsr_forward.1} parent=31 // pred_region
          %172 = dma.done [#allocation6], 320
        $region40: #{vdsr_forward.1} parent=31 // pred_fallthru
          _
        %p173 = scmp.lt.s32.totalorder %s16, 1
        %s174 = scalar_select %p173, %s16, 1
        %s175 = smul.addr %s174, 32
        %s176 = smul.addr %s175, 8
        %s177 = scalar_lea.vmem %s0, %s176
        %p178 = pneg %p37
        %p179 = pneg %p34
        %p180 = pneg %p58
        %p181 = pneg %p55
        %p182 = pneg %p79
        %p183 = pneg %p76
        %p184 = pneg %p105
        %p185 = pneg %p102
        %p186 = scmp.lt.s32.totalorder %s16, 1
        %s187 = scalar_select %p186, %s16, 1
        %s188 = smul.addr %s187, 32
        %s189 = smul.addr %s188, 8
        %s190 = scalar_lea.vmem %s3, %s189
        %p191 = scmp.lt.s32.totalorder %s16, 1
        %s192 = scalar_select %p191, %s16, 1
        %s193 = smul.addr %s192, 32
        %s194 = smul.addr %s193, 8
        %s195 = scalar_lea.vmem %s0, %s194
        %p196 = scmp.lt.s32.totalorder %s16, 1
        %s197 = scalar_select %p196, %s16, 1
        %s198 = smul.addr %s197, 32
        %s199 = smul.addr %s198, 8
        %s200 = scalar_lea.vmem %s3, %s199
        %vm202 = vcmask 519168
        %203 = vst.msk [vmem:[#allocation2] sm:$0xf] %vm202, 0
        %204 = vst.msk [vmem:[#allocation2 + $0x4] sm:$0xf] %vm202, 0
        %vm205 = vcmask 516096
        %206 = vst.msk [vmem:[#allocation2 + $0x8] sm:$0x1] %vm205, 0
        %207 = vst.msk [vmem:[#allocation2 + $0xc] sm:$0xf] %vm202, 0
        %208 = vst.msk [vmem:[#allocation2 + $0x10] sm:$0xf] %vm202, 0
        %209 = vst.msk [vmem:[#allocation2 + $0x14] sm:$0x1] %vm205, 0
        %210 = vst.msk [vmem:[#allocation2 + $0x18] sm:$0xf] %vm202, 0
        %211 = vst.msk [vmem:[#allocation2 + $0x1c] sm:$0xf] %vm202, 0
        %212 = vst.msk [vmem:[#allocation2 + $0x20] sm:$0x1] %vm205, 0
        %213 = vst.msk [vmem:[#allocation2 + $0x24] sm:$0xf] %vm202, 0
        %214 = vst.msk [vmem:[#allocation2 + $0x28] sm:$0xf] %vm202, 0
        %215 = vst.msk [vmem:[#allocation2 + $0x2c] sm:$0x1] %vm205, 0
        %216 = vst.msk [vmem:[#allocation2 + $0x30] sm:$0xf] %vm202, 0
        %217 = vst.msk [vmem:[#allocation2 + $0x34] sm:$0xf] %vm202, 0
        %218 = vst.msk [vmem:[#allocation2 + $0x38] sm:$0x1] %vm205, 0
        %219 = vst.msk [vmem:[#allocation2 + $0x3c] sm:$0xf] %vm202, 0
        %220 = vst.msk [vmem:[#allocation2 + $0x40] sm:$0xf] %vm202, 0
        %221 = vst.msk [vmem:[#allocation2 + $0x44] sm:$0x1] %vm205, 0
        %222 = vst.msk [vmem:[#allocation2 + $0x48] sm:$0xf] %vm202, 0
        %223 = vst.msk [vmem:[#allocation2 + $0x4c] sm:$0xf] %vm202, 0
        %224 = vst.msk [vmem:[#allocation2 + $0x50] sm:$0x1] %vm205, 0
        %225 = vst.msk [vmem:[#allocation2 + $0x54] sm:$0xf] %vm202, 0
        %226 = vst.msk [vmem:[#allocation2 + $0x58] sm:$0xf] %vm202, 0
        %227 = vst.msk [vmem:[#allocation2 + $0x5c] sm:$0x1] %vm205, 0
        %228 = vst.msk [vmem:[#allocation2 + $0x60] sm:$0xf] %vm202, 0
        %229 = vst.msk [vmem:[#allocation2 + $0x64] sm:$0xf] %vm202, 0
        %230 = vst.msk [vmem:[#allocation2 + $0x68] sm:$0x1] %vm205, 0
        %231 = vst.msk [vmem:[#allocation2 + $0x6c] sm:$0xf] %vm202, 0
        %232 = vst.msk [vmem:[#allocation2 + $0x70] sm:$0xf] %vm202, 0
        %233 = vst.msk [vmem:[#allocation2 + $0x74] sm:$0x1] %vm205, 0
        %234 = vst.msk [vmem:[#allocation2 + $0x78] sm:$0xf] %vm202, 0
        %235 = vst.msk [vmem:[#allocation2 + $0x7c] sm:$0xf] %vm202, 0
        %236 = vst.msk [vmem:[#allocation2 + $0x80] sm:$0x1] %vm205, 0
        %237 = vst.msk [vmem:[#allocation2 + $0x84] sm:$0xf] %vm202, 0
        %238 = vst.msk [vmem:[#allocation2 + $0x88] sm:$0xf] %vm202, 0
        %239 = vst.msk [vmem:[#allocation2 + $0x8c] sm:$0x1] %vm205, 0
        %240 = vst.msk [vmem:[#allocation2 + $0x90] sm:$0xf] %vm202, 0
        %241 = vst.msk [vmem:[#allocation2 + $0x94] sm:$0xf] %vm202, 0
        %242 = vst.msk [vmem:[#allocation2 + $0x98] sm:$0x1] %vm205, 0
        %243 = vst.msk [vmem:[#allocation2 + $0x9c] sm:$0xf] %vm202, 0
        %244 = vst.msk [vmem:[#allocation2 + $0xa0] sm:$0xf] %vm202, 0
        %245 = vst.msk [vmem:[#allocation2 + $0xa4] sm:$0x1] %vm205, 0
        %246 = vst.msk [vmem:[#allocation2 + $0xa8] sm:$0xf] %vm202, 0
        %247 = vst.msk [vmem:[#allocation2 + $0xac] sm:$0xf] %vm202, 0
        %248 = vst.msk [vmem:[#allocation2 + $0xb0] sm:$0x1] %vm205, 0
        %249 = vst.msk [vmem:[#allocation2 + $0xb4] sm:$0xf] %vm202, 0
        %250 = vst.msk [vmem:[#allocation2 + $0xb8] sm:$0xf] %vm202, 0
        %251 = vst.msk [vmem:[#allocation2 + $0xbc] sm:$0x1] %vm205, 0
        %252 = vst.msk [vmem:[#allocation2 + $0xc0] sm:$0xf] %vm202, 0
        %253 = vst.msk [vmem:[#allocation2 + $0xc4] sm:$0xf] %vm202, 0
        %254 = vst.msk [vmem:[#allocation2 + $0xc8] sm:$0x1] %vm205, 0
        %255 = vst.msk [vmem:[#allocation2 + $0xcc] sm:$0xf] %vm202, 0
        %256 = vst.msk [vmem:[#allocation2 + $0xd0] sm:$0xf] %vm202, 0
        %257 = vst.msk [vmem:[#allocation2 + $0xd4] sm:$0x1] %vm205, 0
        %v258 = vld [vmem:[%s195] sm:$0xff]
        %v259 = vld [vmem:[%s195 + $0x8] sm:$0xff]
        %v260 = vld [vmem:[%s195 + $0x10] sm:$0xff]
        %v261 = vld [vmem:[%s195 + $0x18] sm:$0xff]
        %v262 = vld [vmem:[%s195 + $0x20] sm:$0xff]
        %v263 = vld [vmem:[%s195 + $0x28] sm:$0xff]
        %v264 = vld [vmem:[%s195 + $0x30] sm:$0xff]
        %v265 = vld [vmem:[%s195 + $0x38] sm:$0xff]
        %v266 = vld [vmem:[%s195 + $0x40] sm:$0xff]
        %v267 = vld [vmem:[%s195 + $0x48] sm:$0xff]
        %v268 = vld [vmem:[%s195 + $0x50] sm:$0xff]
        %v269 = vld [vmem:[%s195 + $0x58] sm:$0xff]
        %v270 = vld [vmem:[%s195 + $0x60] sm:$0xff]
        %v271 = vld [vmem:[%s195 + $0x68] sm:$0xff]
        %v272 = vld [vmem:[%s195 + $0x70] sm:$0xff]
        %v273 = vld [vmem:[%s195 + $0x78] sm:$0xff]
        %v274 = vld [vmem:[%s195 + $0x80] sm:$0xff]
        %v275 = vld [vmem:[%s195 + $0x88] sm:$0xff]
        %v276 = vld [vmem:[%s195 + $0x90] sm:$0xff]
        %v277 = vld [vmem:[%s195 + $0x98] sm:$0xff]
        %v278 = vld [vmem:[%s195 + $0xa0] sm:$0xff]
        %v279 = vld [vmem:[%s195 + $0xa8] sm:$0xff]
        %v280 = vld [vmem:[%s195 + $0xb0] sm:$0xff]
        %v281 = vld [vmem:[%s195 + $0xb8] sm:$0xff]
        %v282 = vld [vmem:[%s195 + $0xc0] sm:$0xff]
        %v283 = vld [vmem:[%s195 + $0xc8] sm:$0xff]
        %v284 = vld [vmem:[%s195 + $0xd0] sm:$0xff]
        %v285 = vld [vmem:[%s195 + $0xd8] sm:$0xff]
        %v286 = vld [vmem:[%s195 + $0xe0] sm:$0xff]
        %v287 = vld [vmem:[%s195 + $0xe8] sm:$0xff]
        %v288 = vld [vmem:[%s195 + $0xf0] sm:$0xff]
        %v289 = vld [vmem:[%s195 + $0xf8] sm:$0xff]
        %v290 = vpack.c.bf16 %v259, %v258
        %v291 = vpack.c.bf16 %v261, %v260
        %v292 = vpack.c.bf16 %v263, %v262
        %v293 = vpack.c.bf16 %v265, %v264
        %v294 = vpack.c.bf16 %v267, %v266
        %v295 = vpack.c.bf16 %v269, %v268
        %v296 = vpack.c.bf16 %v271, %v270
        %v297 = vpack.c.bf16 %v273, %v272
        %v298 = vpack.c.bf16 %v275, %v274
        %v299 = vpack.c.bf16 %v277, %v276
        %v300 = vpack.c.bf16 %v279, %v278
        %v301 = vpack.c.bf16 %v281, %v280
        %v302 = vpack.c.bf16 %v283, %v282
        %v303 = vpack.c.bf16 %v285, %v284
        %v304 = vpack.c.bf16 %v287, %v286
        %v305 = vpack.c.bf16 %v289, %v288
        %v322 = vunpack.c.l.b16 %v290
        %v323 = vunpack.c.h.b16 %v290
        %v324 = vunpack.c.l.b16 %v291
        %v325 = vunpack.c.h.b16 %v291
        %v326 = vunpack.c.l.b16 %v292
        %v327 = vunpack.c.h.b16 %v292
        %v328 = vunpack.c.l.b16 %v293
        %v329 = vunpack.c.h.b16 %v293
        %v330 = vunpack.c.l.b16 %v294
        %v331 = vunpack.c.h.b16 %v294
        %v332 = vunpack.c.l.b16 %v295
        %v333 = vunpack.c.h.b16 %v295
        %v334 = vunpack.c.l.b16 %v296
        %v335 = vunpack.c.h.b16 %v296
        %v336 = vunpack.c.l.b16 %v297
        %v337 = vunpack.c.h.b16 %v297
        %v338 = vunpack.c.l.b16 %v298
        %v339 = vunpack.c.h.b16 %v298
        %v340 = vunpack.c.l.b16 %v299
        %v341 = vunpack.c.h.b16 %v299
        %v342 = vunpack.c.l.b16 %v300
        %v343 = vunpack.c.h.b16 %v300
        %v344 = vunpack.c.l.b16 %v301
        %v345 = vunpack.c.h.b16 %v301
        %v346 = vunpack.c.l.b16 %v302
        %v347 = vunpack.c.h.b16 %v302
        %v348 = vunpack.c.l.b16 %v303
        %v349 = vunpack.c.h.b16 %v303
        %v350 = vunpack.c.l.b16 %v304
        %v351 = vunpack.c.h.b16 %v304
        %v352 = vunpack.c.l.b16 %v305
        %v353 = vunpack.c.h.b16 %v305
        %v354 = vpack.c.b16 %v322, %v322
        %v355 = vpack.c.b16 %v323, %v323
        %v356 = vpack.c.b16 %v324, %v324
        %v357 = vpack.c.b16 %v325, %v325
        %v358 = vpack.c.b16 %v326, %v326
        %v359 = vpack.c.b16 %v327, %v327
        %v360 = vpack.c.b16 %v328, %v328
        %v361 = vpack.c.b16 %v329, %v329
        %v362 = vpack.c.b16 %v330, %v330
        %v363 = vpack.c.b16 %v331, %v331
        %v364 = vpack.c.b16 %v332, %v332
        %v365 = vpack.c.b16 %v333, %v333
        %v366 = vpack.c.b16 %v334, %v334
        %v367 = vpack.c.b16 %v335, %v335
        %v368 = vpack.c.b16 %v336, %v336
        %v369 = vpack.c.b16 %v337, %v337
        %v370 = vpack.c.b16 %v338, %v338
        %v371 = vpack.c.b16 %v339, %v339
        %v372 = vpack.c.b16 %v340, %v340
        %v373 = vpack.c.b16 %v341, %v341
        %v374 = vpack.c.b16 %v342, %v342
        %v375 = vpack.c.b16 %v343, %v343
        %v376 = vpack.c.b16 %v344, %v344
        %v377 = vpack.c.b16 %v345, %v345
        %v378 = vpack.c.b16 %v346, %v346
        %v379 = vpack.c.b16 %v347, %v347
        %v380 = vpack.c.b16 %v348, %v348
        %v381 = vpack.c.b16 %v349, %v349
        %v382 = vpack.c.b16 %v350, %v350
        %v383 = vpack.c.b16 %v351, %v351
        %v384 = vpack.c.b16 %v352, %v352
        %v385 = vpack.c.b16 %v353, %v353
        %vm386 = vsmask.f32 256
        %vm387 = vsmask.f32 4368
        %vm388 = vmor %vm386, %vm387
        %v390 = vshrl.u32 %v354, 16
        %v392 = vrot.slane %v390, 7
        %v393 = vshll.u32 %v354, 16
        %v395 = vor.u32 %v392, %v393
        %v396 = vrot.slane %v392, 4
        %v398 = vshrl.u32 %v355, 16
        %v400 = vrot.slane %v398, 7
        %v401 = vshll.u32 %v355, 16
        %v403 = vor.u32 %v400, %v401
        %v404 = vsel %vm388, %v396, %v403
        %v405 = vrot.slane %v400, 4
        %v407 = vshrl.u32 %v356, 16
        %v409 = vrot.slane %v407, 7
        %v410 = vshll.u32 %v356, 16
        %v412 = vor.u32 %v409, %v410
        %v413 = vrot.slane %v409, 4
        %v415 = vshrl.u32 %v357, 16
        %v417 = vrot.slane %v415, 7
        %v418 = vshll.u32 %v357, 16
        %v420 = vor.u32 %v417, %v418
        %v421 = vsel %vm388, %v413, %v420
        %v422 = vrot.slane %v417, 4
        %v424 = vshrl.u32 %v358, 16
        %v426 = vrot.slane %v424, 7
        %v427 = vshll.u32 %v358, 16
        %v429 = vor.u32 %v426, %v427
        %v430 = vrot.slane %v426, 4
        %v432 = vshrl.u32 %v359, 16
        %v434 = vrot.slane %v432, 7
        %v435 = vshll.u32 %v359, 16
        %v437 = vor.u32 %v434, %v435
        %v438 = vsel %vm388, %v430, %v437
        %v439 = vrot.slane %v434, 4
        %v441 = vshrl.u32 %v360, 16
        %v443 = vrot.slane %v441, 7
        %v444 = vshll.u32 %v360, 16
        %v446 = vor.u32 %v443, %v444
        %v447 = vrot.slane %v443, 4
        %v449 = vshrl.u32 %v361, 16
        %v451 = vrot.slane %v449, 7
        %v452 = vshll.u32 %v361, 16
        %v454 = vor.u32 %v451, %v452
        %v455 = vsel %vm388, %v447, %v454
        %v456 = vrot.slane %v451, 4
        %v458 = vshrl.u32 %v362, 16
        %v460 = vrot.slane %v458, 7
        %v461 = vshll.u32 %v362, 16
        %v463 = vor.u32 %v460, %v461
        %v464 = vrot.slane %v460, 4
        %v466 = vshrl.u32 %v363, 16
        %v468 = vrot.slane %v466, 7
        %v469 = vshll.u32 %v363, 16
        %v471 = vor.u32 %v468, %v469
        %v472 = vsel %vm388, %v464, %v471
        %v473 = vrot.slane %v468, 4
        %v475 = vshrl.u32 %v364, 16
        %v477 = vrot.slane %v475, 7
        %v478 = vshll.u32 %v364, 16
        %v480 = vor.u32 %v477, %v478
        %v481 = vrot.slane %v477, 4
        %v483 = vshrl.u32 %v365, 16
        %v485 = vrot.slane %v483, 7
        %v486 = vshll.u32 %v365, 16
        %v488 = vor.u32 %v485, %v486
        %v489 = vsel %vm388, %v481, %v488
        %v490 = vrot.slane %v485, 4
        %v492 = vshrl.u32 %v366, 16
        %v494 = vrot.slane %v492, 7
        %v495 = vshll.u32 %v366, 16
        %v497 = vor.u32 %v494, %v495
        %v498 = vrot.slane %v494, 4
        %v500 = vshrl.u32 %v367, 16
        %v502 = vrot.slane %v500, 7
        %v503 = vshll.u32 %v367, 16
        %v505 = vor.u32 %v502, %v503
        %v506 = vsel %vm388, %v498, %v505
        %v507 = vrot.slane %v502, 4
        %v509 = vshrl.u32 %v368, 16
        %v511 = vrot.slane %v509, 7
        %v512 = vshll.u32 %v368, 16
        %v514 = vor.u32 %v511, %v512
        %v515 = vrot.slane %v511, 4
        %v517 = vshrl.u32 %v369, 16
        %v519 = vrot.slane %v517, 7
        %v520 = vshll.u32 %v369, 16
        %v522 = vor.u32 %v519, %v520
        %v523 = vsel %vm388, %v515, %v522
        %v524 = vrot.slane %v519, 4
        %v526 = vshrl.u32 %v370, 16
        %v528 = vrot.slane %v526, 7
        %v529 = vshll.u32 %v370, 16
        %v531 = vor.u32 %v528, %v529
        %v532 = vrot.slane %v528, 4
        %v534 = vshrl.u32 %v371, 16
        %v536 = vrot.slane %v534, 7
        %v537 = vshll.u32 %v371, 16
        %v539 = vor.u32 %v536, %v537
        %v540 = vsel %vm388, %v532, %v539
        %v541 = vrot.slane %v536, 4
        %v543 = vshrl.u32 %v372, 16
        %v545 = vrot.slane %v543, 7
        %v546 = vshll.u32 %v372, 16
        %v548 = vor.u32 %v545, %v546
        %v549 = vrot.slane %v545, 4
        %v551 = vshrl.u32 %v373, 16
        %v553 = vrot.slane %v551, 7
        %v554 = vshll.u32 %v373, 16
        %v556 = vor.u32 %v553, %v554
        %v557 = vsel %vm388, %v549, %v556
        %v558 = vrot.slane %v553, 4
        %v560 = vshrl.u32 %v374, 16
        %v562 = vrot.slane %v560, 7
        %v563 = vshll.u32 %v374, 16
        %v565 = vor.u32 %v562, %v563
        %v566 = vrot.slane %v562, 4
        %v568 = vshrl.u32 %v375, 16
        %v570 = vrot.slane %v568, 7
        %v571 = vshll.u32 %v375, 16
        %v573 = vor.u32 %v570, %v571
        %v574 = vsel %vm388, %v566, %v573
        %v575 = vrot.slane %v570, 4
        %v577 = vshrl.u32 %v376, 16
        %v579 = vrot.slane %v577, 7
        %v580 = vshll.u32 %v376, 16
        %v582 = vor.u32 %v579, %v580
        %v583 = vrot.slane %v579, 4
        %v585 = vshrl.u32 %v377, 16
        %v587 = vrot.slane %v585, 7
        %v588 = vshll.u32 %v377, 16
        %v590 = vor.u32 %v587, %v588
        %v591 = vsel %vm388, %v583, %v590
        %v592 = vrot.slane %v587, 4
        %v594 = vshrl.u32 %v378, 16
        %v596 = vrot.slane %v594, 7
        %v597 = vshll.u32 %v378, 16
        %v599 = vor.u32 %v596, %v597
        %v600 = vrot.slane %v596, 4
        %v602 = vshrl.u32 %v379, 16
        %v604 = vrot.slane %v602, 7
        %v605 = vshll.u32 %v379, 16
        %v607 = vor.u32 %v604, %v605
        %v608 = vsel %vm388, %v600, %v607
        %v609 = vrot.slane %v604, 4
        %v611 = vshrl.u32 %v380, 16
        %v613 = vrot.slane %v611, 7
        %v614 = vshll.u32 %v380, 16
        %v616 = vor.u32 %v613, %v614
        %v617 = vrot.slane %v613, 4
        %v619 = vshrl.u32 %v381, 16
        %v621 = vrot.slane %v619, 7
        %v622 = vshll.u32 %v381, 16
        %v624 = vor.u32 %v621, %v622
        %v625 = vsel %vm388, %v617, %v624
        %v626 = vrot.slane %v621, 4
        %v628 = vshrl.u32 %v382, 16
        %v630 = vrot.slane %v628, 7
        %v631 = vshll.u32 %v382, 16
        %v633 = vor.u32 %v630, %v631
        %v634 = vrot.slane %v630, 4
        %v636 = vshrl.u32 %v383, 16
        %v638 = vrot.slane %v636, 7
        %v639 = vshll.u32 %v383, 16
        %v641 = vor.u32 %v638, %v639
        %v642 = vsel %vm388, %v634, %v641
        %v643 = vrot.slane %v638, 4
        %v645 = vshrl.u32 %v384, 16
        %v647 = vrot.slane %v645, 7
        %v648 = vshll.u32 %v384, 16
        %v650 = vor.u32 %v647, %v648
        %v651 = vrot.slane %v647, 4
        %v653 = vshrl.u32 %v385, 16
        %v655 = vrot.slane %v653, 7
        %v656 = vshll.u32 %v385, 16
        %v658 = vor.u32 %v655, %v656
        %v659 = vsel %vm388, %v651, %v658
        %v660 = vrot.slane %v655, 4
        %s709 = scalar_lea.vmem [#allocation2], 12
        %vm710 = vcmask 19456
        %vm711 = vsmask.f32 7938
        %vm712 = vmand %vm710, %vm711
        %v713 = vld [vmem:[%s709] sm:$0xf]
        %v714 = vsel %vm712, %v395, %v713
        %715 = vst [vmem:[%s709] sm:$0xf] %v714
        %vm716 = vcmask 19456
        %717 = vst.msk [vmem:[%s709 + $0x4] sm:$0xf] %vm716, %v404
        %vm718 = vcmask 16384
        %vm719 = vmand %vm718, %vm386
        %v720 = vld [vmem:[%s709 + $0x8] sm:$0x1]
        %v721 = vsel %vm719, %v405, %v720
        %722 = vst [vmem:[%s709 + $0x8] sm:$0x1] %v721
        %v723 = vld [vmem:[%s709 + $0xc] sm:$0xf]
        %v724 = vsel %vm712, %v412, %v723
        %725 = vst [vmem:[%s709 + $0xc] sm:$0xf] %v724
        %726 = vst.msk [vmem:[%s709 + $0x10] sm:$0xf] %vm716, %v421
        %v727 = vld [vmem:[%s709 + $0x14] sm:$0x1]
        %v728 = vsel %vm719, %v422, %v727
        %729 = vst [vmem:[%s709 + $0x14] sm:$0x1] %v728
        %v730 = vld [vmem:[%s709 + $0x18] sm:$0xf]
        %v731 = vsel %vm712, %v429, %v730
        %732 = vst [vmem:[%s709 + $0x18] sm:$0xf] %v731
        %733 = vst.msk [vmem:[%s709 + $0x1c] sm:$0xf] %vm716, %v438
        %v734 = vld [vmem:[%s709 + $0x20] sm:$0x1]
        %v735 = vsel %vm719, %v439, %v734
        %736 = vst [vmem:[%s709 + $0x20] sm:$0x1] %v735
        %v737 = vld [vmem:[%s709 + $0x24] sm:$0xf]
        %v738 = vsel %vm712, %v446, %v737
        %739 = vst [vmem:[%s709 + $0x24] sm:$0xf] %v738
        %740 = vst.msk [vmem:[%s709 + $0x28] sm:$0xf] %vm716, %v455
        %v741 = vld [vmem:[%s709 + $0x2c] sm:$0x1]
        %v742 = vsel %vm719, %v456, %v741
        %743 = vst [vmem:[%s709 + $0x2c] sm:$0x1] %v742
        %v744 = vld [vmem:[%s709 + $0x30] sm:$0xf]
        %v745 = vsel %vm712, %v463, %v744
        %746 = vst [vmem:[%s709 + $0x30] sm:$0xf] %v745
        %747 = vst.msk [vmem:[%s709 + $0x34] sm:$0xf] %vm716, %v472
        %v748 = vld [vmem:[%s709 + $0x38] sm:$0x1]
        %v749 = vsel %vm719, %v473, %v748
        %750 = vst [vmem:[%s709 + $0x38] sm:$0x1] %v749
        %v751 = vld [vmem:[%s709 + $0x3c] sm:$0xf]
        %v752 = vsel %vm712, %v480, %v751
        %753 = vst [vmem:[%s709 + $0x3c] sm:$0xf] %v752
        %754 = vst.msk [vmem:[%s709 + $0x40] sm:$0xf] %vm716, %v489
        %v755 = vld [vmem:[%s709 + $0x44] sm:$0x1]
        %v756 = vsel %vm719, %v490, %v755
        %757 = vst [vmem:[%s709 + $0x44] sm:$0x1] %v756
        %v758 = vld [vmem:[%s709 + $0x48] sm:$0xf]
        %v759 = vsel %vm712, %v497, %v758
        %760 = vst [vmem:[%s709 + $0x48] sm:$0xf] %v759
        %761 = vst.msk [vmem:[%s709 + $0x4c] sm:$0xf] %vm716, %v506
        %v762 = vld [vmem:[%s709 + $0x50] sm:$0x1]
        %v763 = vsel %vm719, %v507, %v762
        %764 = vst [vmem:[%s709 + $0x50] sm:$0x1] %v763
        %v765 = vld [vmem:[%s709 + $0x54] sm:$0xf]
        %v766 = vsel %vm712, %v514, %v765
        %767 = vst [vmem:[%s709 + $0x54] sm:$0xf] %v766
        %768 = vst.msk [vmem:[%s709 + $0x58] sm:$0xf] %vm716, %v523
        %v769 = vld [vmem:[%s709 + $0x5c] sm:$0x1]
        %v770 = vsel %vm719, %v524, %v769
        %771 = vst [vmem:[%s709 + $0x5c] sm:$0x1] %v770
        %v772 = vld [vmem:[%s709 + $0x60] sm:$0xf]
        %v773 = vsel %vm712, %v531, %v772
        %774 = vst [vmem:[%s709 + $0x60] sm:$0xf] %v773
        %775 = vst.msk [vmem:[%s709 + $0x64] sm:$0xf] %vm716, %v540
        %v776 = vld [vmem:[%s709 + $0x68] sm:$0x1]
        %v777 = vsel %vm719, %v541, %v776
        %778 = vst [vmem:[%s709 + $0x68] sm:$0x1] %v777
        %v779 = vld [vmem:[%s709 + $0x6c] sm:$0xf]
        %v780 = vsel %vm712, %v548, %v779
        %781 = vst [vmem:[%s709 + $0x6c] sm:$0xf] %v780
        %782 = vst.msk [vmem:[%s709 + $0x70] sm:$0xf] %vm716, %v557
        %v783 = vld [vmem:[%s709 + $0x74] sm:$0x1]
        %v784 = vsel %vm719, %v558, %v783
        %785 = vst [vmem:[%s709 + $0x74] sm:$0x1] %v784
        %v786 = vld [vmem:[%s709 + $0x78] sm:$0xf]
        %v787 = vsel %vm712, %v565, %v786
        %788 = vst [vmem:[%s709 + $0x78] sm:$0xf] %v787
        %789 = vst.msk [vmem:[%s709 + $0x7c] sm:$0xf] %vm716, %v574
        %v790 = vld [vmem:[%s709 + $0x80] sm:$0x1]
        %v791 = vsel %vm719, %v575, %v790
        %792 = vst [vmem:[%s709 + $0x80] sm:$0x1] %v791
        %v793 = vld [vmem:[%s709 + $0x84] sm:$0xf]
        %v794 = vsel %vm712, %v582, %v793
        %795 = vst [vmem:[%s709 + $0x84] sm:$0xf] %v794
        %796 = vst.msk [vmem:[%s709 + $0x88] sm:$0xf] %vm716, %v591
        %v797 = vld [vmem:[%s709 + $0x8c] sm:$0x1]
        %v798 = vsel %vm719, %v592, %v797
        %799 = vst [vmem:[%s709 + $0x8c] sm:$0x1] %v798
        %v800 = vld [vmem:[%s709 + $0x90] sm:$0xf]
        %v801 = vsel %vm712, %v599, %v800
        %802 = vst [vmem:[%s709 + $0x90] sm:$0xf] %v801
        %803 = vst.msk [vmem:[%s709 + $0x94] sm:$0xf] %vm716, %v608
        %v804 = vld [vmem:[%s709 + $0x98] sm:$0x1]
        %v805 = vsel %vm719, %v609, %v804
        %806 = vst [vmem:[%s709 + $0x98] sm:$0x1] %v805
        %v807 = vld [vmem:[%s709 + $0x9c] sm:$0xf]
        %v808 = vsel %vm712, %v616, %v807
        %809 = vst [vmem:[%s709 + $0x9c] sm:$0xf] %v808
        %810 = vst.msk [vmem:[%s709 + $0xa0] sm:$0xf] %vm716, %v625
        %v811 = vld [vmem:[%s709 + $0xa4] sm:$0x1]
        %v812 = vsel %vm719, %v626, %v811
        %813 = vst [vmem:[%s709 + $0xa4] sm:$0x1] %v812
        %v814 = vld [vmem:[%s709 + $0xa8] sm:$0xf]
        %v815 = vsel %vm712, %v633, %v814
        %816 = vst [vmem:[%s709 + $0xa8] sm:$0xf] %v815
        %817 = vst.msk [vmem:[%s709 + $0xac] sm:$0xf] %vm716, %v642
        %v818 = vld [vmem:[%s709 + $0xb0] sm:$0x1]
        %v819 = vsel %vm719, %v643, %v818
        %820 = vst [vmem:[%s709 + $0xb0] sm:$0x1] %v819
        %v821 = vld [vmem:[%s709 + $0xb4] sm:$0xf]
        %v822 = vsel %vm712, %v650, %v821
        %823 = vst [vmem:[%s709 + $0xb4] sm:$0xf] %v822
        %824 = vst.msk [vmem:[%s709 + $0xb8] sm:$0xf] %vm716, %v659
        %v825 = vld [vmem:[%s709 + $0xbc] sm:$0x1]
        %v826 = vsel %vm719, %v660, %v825
        %827 = vst [vmem:[%s709 + $0xbc] sm:$0x1] %v826
        loop: start=0, step=1, limit=19
        $region41: #{vdsr_forward.1} parent=31 // loop_pre_header
          _
        $region42: #{vdsr_forward.1} parent=31 // loop_header
          %s829 = sphi 0, %s833
          %p830 = scmp.ge.s32.totalorder %s829, 19
        $region43: #{vdsr_forward.1} parent=31 // loop_header_branch
          %832 = sbr.rel (%p830) target = $region47
        $region44: #{vdsr_forward.1} parent=31 // loop_body
          %v834 = vld [vmem:[#allocation2] sm:$0xf]
          %v835 = vld [vmem:[#allocation2 + $0x4] sm:$0xf]
          %v836 = vld [vmem:[#allocation2 + $0xc] sm:$0xf]
          %v837 = vld [vmem:[#allocation2 + $0x10] sm:$0xf]
          %v838 = vld [vmem:[#allocation2 + $0x18] sm:$0xf]
          %v839 = vld [vmem:[#allocation2 + $0x1c] sm:$0xf]
          %v840 = vld [vmem:[#allocation2 + $0x24] sm:$0xf]
          %v841 = vld [vmem:[#allocation2 + $0x28] sm:$0xf]
          %v842 = vld [vmem:[#allocation2 + $0x30] sm:$0xf]
          %v843 = vld [vmem:[#allocation2 + $0x34] sm:$0xf]
          %v844 = vld [vmem:[#allocation2 + $0x3c] sm:$0xf]
          %v845 = vld [vmem:[#allocation2 + $0x40] sm:$0xf]
          %v846 = vld [vmem:[#allocation2 + $0x48] sm:$0xf]
          %v847 = vld [vmem:[#allocation2 + $0x4c] sm:$0xf]
          %v848 = vld [vmem:[#allocation2 + $0x54] sm:$0xf]
          %v849 = vld [vmem:[#allocation2 + $0x58] sm:$0xf]
          %v850 = vld [vmem:[#allocation2 + $0x60] sm:$0xf]
          %v851 = vld [vmem:[#allocation2 + $0x64] sm:$0xf]
          %v852 = vld [vmem:[#allocation2 + $0x6c] sm:$0xf]
          %v853 = vld [vmem:[#allocation2 + $0x70] sm:$0xf]
          %v854 = vld [vmem:[#allocation2 + $0x78] sm:$0xf]
          %v855 = vld [vmem:[#allocation2 + $0x7c] sm:$0xf]
          %v856 = vld [vmem:[#allocation2 + $0x84] sm:$0xf]
          %v857 = vld [vmem:[#allocation2 + $0x88] sm:$0xf]
          %v858 = vld [vmem:[#allocation2 + $0x90] sm:$0xf]
          %v859 = vld [vmem:[#allocation2 + $0x94] sm:$0xf]
          %v860 = vld [vmem:[#allocation2 + $0x9c] sm:$0xf]
          %v861 = vld [vmem:[#allocation2 + $0xa0] sm:$0xf]
          %v862 = vld [vmem:[#allocation2 + $0xa8] sm:$0xf]
          %v863 = vld [vmem:[#allocation2 + $0xac] sm:$0xf]
          %v864 = vld [vmem:[#allocation2 + $0xb4] sm:$0xf]
          %v865 = vld [vmem:[#allocation2 + $0xb8] sm:$0xf]
          %s866 = smul.u32 %s829, 72
          %s867 = smul.addr %s866, 4
          %s868 = scalar_lea.vmem [#allocation3], %s867
          %v869 = vld [vmem:[%s868] sm:$0xf]
          %v870 = vld [vmem:[%s868 + $0x4] sm:$0xf]
          %v871 = vld [vmem:[%s868 + $0x8] sm:$0xf]
          %v872 = vld [vmem:[%s868 + $0xc] sm:$0xf]
          %v873 = vld [vmem:[%s868 + $0x10] sm:$0xf]
          %v874 = vld [vmem:[%s868 + $0x14] sm:$0xf]
          %v875 = vld [vmem:[%s868 + $0x18] sm:$0xf]
          %v876 = vld [vmem:[%s868 + $0x1c] sm:$0xf]
          %v877 = vld [vmem:[#allocation2 + $0x8] sm:$0x1]
          %v878 = vld [vmem:[#allocation2 + $0x14] sm:$0x1]
          %v879 = vld [vmem:[#allocation2 + $0x20] sm:$0x1]
          %v880 = vld [vmem:[#allocation2 + $0x2c] sm:$0x1]
          %v881 = vld [vmem:[#allocation2 + $0x38] sm:$0x1]
          %v882 = vld [vmem:[#allocation2 + $0x44] sm:$0x1]
          %v883 = vld [vmem:[#allocation2 + $0x50] sm:$0x1]
          %v884 = vld [vmem:[#allocation2 + $0x5c] sm:$0x1]
          %v885 = vld [vmem:[#allocation2 + $0x68] sm:$0x1]
          %v886 = vld [vmem:[#allocation2 + $0x74] sm:$0x1]
          %v887 = vld [vmem:[#allocation2 + $0x80] sm:$0x1]
          %v888 = vld [vmem:[#allocation2 + $0x8c] sm:$0x1]
          %v889 = vld [vmem:[#allocation2 + $0x98] sm:$0x1]
          %v890 = vld [vmem:[#allocation2 + $0xa4] sm:$0x1]
          %v891 = vld [vmem:[#allocation2 + $0xb0] sm:$0x1]
          %v892 = vld [vmem:[#allocation2 + $0xbc] sm:$0x1]
          %vm893 = vsmask.f32 3328
          %vm894 = vsmask.f32 7440
          %vm895 = vmor %vm893, %vm894
          %v897 = vshrl.u32 %v834, 16
          %v899 = vrot.slane %v897, 4
          %v900 = vshll.u32 %v834, 16
          %v902 = vrot.slane %v900, 5
          %v903 = vor.u32 %v899, %v902
          %v904 = vrot.slane %v903, 4
          %v906 = vshll.u32 %v835, 16
          %v908 = vrot.slane %v906, 5
          %v909 = vsel %vm895, %v904, %v908
          %v910 = vshrl.u32 %v835, 16
          %v912 = vrot.slane %v910, 4
          %v913 = vor.u32 %v912, %v908
          %v914 = vrot.slane %v913, 4
          %v916 = vshll.u32 %v877, 16
          %v918 = vrot.slane %v916, 5
          %v919 = vsel %vm895, %v914, %v918
          %v921 = vshrl.u32 %v836, 16
          %v923 = vrot.slane %v921, 4
          %v924 = vshll.u32 %v836, 16
          %v926 = vrot.slane %v924, 5
          %v927 = vor.u32 %v923, %v926
          %v928 = vrot.slane %v927, 4
          %v930 = vshll.u32 %v837, 16
          %v932 = vrot.slane %v930, 5
          %v933 = vsel %vm895, %v928, %v932
          %v934 = vshrl.u32 %v837, 16
          %v936 = vrot.slane %v934, 4
          %v937 = vor.u32 %v936, %v932
          %v938 = vrot.slane %v937, 4
          %v940 = vshll.u32 %v878, 16
          %v942 = vrot.slane %v940, 5
          %v943 = vsel %vm895, %v938, %v942
          %v945 = vshrl.u32 %v838, 16
          %v947 = vrot.slane %v945, 4
          %v948 = vshll.u32 %v838, 16
          %v950 = vrot.slane %v948, 5
          %v951 = vor.u32 %v947, %v950
          %v952 = vrot.slane %v951, 4
          %v954 = vshll.u32 %v839, 16
          %v956 = vrot.slane %v954, 5
          %v957 = vsel %vm895, %v952, %v956
          %v958 = vshrl.u32 %v839, 16
          %v960 = vrot.slane %v958, 4
          %v961 = vor.u32 %v960, %v956
          %v962 = vrot.slane %v961, 4
          %v964 = vshll.u32 %v879, 16
          %v966 = vrot.slane %v964, 5
          %v967 = vsel %vm895, %v962, %v966
          %v969 = vshrl.u32 %v840, 16
          %v971 = vrot.slane %v969, 4
          %v972 = vshll.u32 %v840, 16
          %v974 = vrot.slane %v972, 5
          %v975 = vor.u32 %v971, %v974
          %v976 = vrot.slane %v975, 4
          %v978 = vshll.u32 %v841, 16
          %v980 = vrot.slane %v978, 5
          %v981 = vsel %vm895, %v976, %v980
          %v982 = vshrl.u32 %v841, 16
          %v984 = vrot.slane %v982, 4
          %v985 = vor.u32 %v984, %v980
          %v986 = vrot.slane %v985, 4
          %v988 = vshll.u32 %v880, 16
          %v990 = vrot.slane %v988, 5
          %v991 = vsel %vm895, %v986, %v990
          %v993 = vshrl.u32 %v842, 16
          %v995 = vrot.slane %v993, 4
          %v996 = vshll.u32 %v842, 16
          %v998 = vrot.slane %v996, 5
          %v999 = vor.u32 %v995, %v998
          %v1000 = vrot.slane %v999, 4
          %v1002 = vshll.u32 %v843, 16
          %v1004 = vrot.slane %v1002, 5
          %v1005 = vsel %vm895, %v1000, %v1004
          %v1006 = vshrl.u32 %v843, 16
          %v1008 = vrot.slane %v1006, 4
          %v1009 = vor.u32 %v1008, %v1004
          %v1010 = vrot.slane %v1009, 4
          %v1012 = vshll.u32 %v881, 16
          %v1014 = vrot.slane %v1012, 5
          %v1015 = vsel %vm895, %v1010, %v1014
          %v1017 = vshrl.u32 %v844, 16
          %v1019 = vrot.slane %v1017, 4
          %v1020 = vshll.u32 %v844, 16
          %v1022 = vrot.slane %v1020, 5
          %v1023 = vor.u32 %v1019, %v1022
          %v1024 = vrot.slane %v1023, 4
          %v1026 = vshll.u32 %v845, 16
          %v1028 = vrot.slane %v1026, 5
          %v1029 = vsel %vm895, %v1024, %v1028
          %v1030 = vshrl.u32 %v845, 16
          %v1032 = vrot.slane %v1030, 4
          %v1033 = vor.u32 %v1032, %v1028
          %v1034 = vrot.slane %v1033, 4
          %v1036 = vshll.u32 %v882, 16
          %v1038 = vrot.slane %v1036, 5
          %v1039 = vsel %vm895, %v1034, %v1038
          %v1041 = vshrl.u32 %v846, 16
          %v1043 = vrot.slane %v1041, 4
          %v1044 = vshll.u32 %v846, 16
          %v1046 = vrot.slane %v1044, 5
          %v1047 = vor.u32 %v1043, %v1046
          %v1048 = vrot.slane %v1047, 4
          %v1050 = vshll.u32 %v847, 16
          %v1052 = vrot.slane %v1050, 5
          %v1053 = vsel %vm895, %v1048, %v1052
          %v1054 = vshrl.u32 %v847, 16
          %v1056 = vrot.slane %v1054, 4
          %v1057 = vor.u32 %v1056, %v1052
          %v1058 = vrot.slane %v1057, 4
          %v1060 = vshll.u32 %v883, 16
          %v1062 = vrot.slane %v1060, 5
          %v1063 = vsel %vm895, %v1058, %v1062
          %v1065 = vshrl.u32 %v848, 16
          %v1067 = vrot.slane %v1065, 4
          %v1068 = vshll.u32 %v848, 16
          %v1070 = vrot.slane %v1068, 5
          %v1071 = vor.u32 %v1067, %v1070
          %v1072 = vrot.slane %v1071, 4
          %v1074 = vshll.u32 %v849, 16
          %v1076 = vrot.slane %v1074, 5
          %v1077 = vsel %vm895, %v1072, %v1076
          %v1078 = vshrl.u32 %v849, 16
          %v1080 = vrot.slane %v1078, 4
          %v1081 = vor.u32 %v1080, %v1076
          %v1082 = vrot.slane %v1081, 4
          %v1084 = vshll.u32 %v884, 16
          %v1086 = vrot.slane %v1084, 5
          %v1087 = vsel %vm895, %v1082, %v1086
          %v1089 = vshrl.u32 %v850, 16
          %v1091 = vrot.slane %v1089, 4
          %v1092 = vshll.u32 %v850, 16
          %v1094 = vrot.slane %v1092, 5
          %v1095 = vor.u32 %v1091, %v1094
          %v1096 = vrot.slane %v1095, 4
          %v1098 = vshll.u32 %v851, 16
          %v1100 = vrot.slane %v1098, 5
          %v1101 = vsel %vm895, %v1096, %v1100
          %v1102 = vshrl.u32 %v851, 16
          %v1104 = vrot.slane %v1102, 4
          %v1105 = vor.u32 %v1104, %v1100
          %v1106 = vrot.slane %v1105, 4
          %v1108 = vshll.u32 %v885, 16
          %v1110 = vrot.slane %v1108, 5
          %v1111 = vsel %vm895, %v1106, %v1110
          %v1113 = vshrl.u32 %v852, 16
          %v1115 = vrot.slane %v1113, 4
          %v1116 = vshll.u32 %v852, 16
          %v1118 = vrot.slane %v1116, 5
          %v1119 = vor.u32 %v1115, %v1118
          %v1120 = vrot.slane %v1119, 4
          %v1122 = vshll.u32 %v853, 16
          %v1124 = vrot.slane %v1122, 5
          %v1125 = vsel %vm895, %v1120, %v1124
          %v1126 = vshrl.u32 %v853, 16
          %v1128 = vrot.slane %v1126, 4
          %v1129 = vor.u32 %v1128, %v1124
          %v1130 = vrot.slane %v1129, 4
          %v1132 = vshll.u32 %v886, 16
          %v1134 = vrot.slane %v1132, 5
          %v1135 = vsel %vm895, %v1130, %v1134
          %v1137 = vshrl.u32 %v854, 16
          %v1139 = vrot.slane %v1137, 4
          %v1140 = vshll.u32 %v854, 16
          %v1142 = vrot.slane %v1140, 5
          %v1143 = vor.u32 %v1139, %v1142
          %v1144 = vrot.slane %v1143, 4
          %v1146 = vshll.u32 %v855, 16
          %v1148 = vrot.slane %v1146, 5
          %v1149 = vsel %vm895, %v1144, %v1148
          %v1150 = vshrl.u32 %v855, 16
          %v1152 = vrot.slane %v1150, 4
          %v1153 = vor.u32 %v1152, %v1148
          %v1154 = vrot.slane %v1153, 4
          %v1156 = vshll.u32 %v887, 16
          %v1158 = vrot.slane %v1156, 5
          %v1159 = vsel %vm895, %v1154, %v1158
          %v1161 = vshrl.u32 %v856, 16
          %v1163 = vrot.slane %v1161, 4
          %v1164 = vshll.u32 %v856, 16
          %v1166 = vrot.slane %v1164, 5
          %v1167 = vor.u32 %v1163, %v1166
          %v1168 = vrot.slane %v1167, 4
          %v1170 = vshll.u32 %v857, 16
          %v1172 = vrot.slane %v1170, 5
          %v1173 = vsel %vm895, %v1168, %v1172
          %v1174 = vshrl.u32 %v857, 16
          %v1176 = vrot.slane %v1174, 4
          %v1177 = vor.u32 %v1176, %v1172
          %v1178 = vrot.slane %v1177, 4
          %v1180 = vshll.u32 %v888, 16
          %v1182 = vrot.slane %v1180, 5
          %v1183 = vsel %vm895, %v1178, %v1182
          %v1185 = vshrl.u32 %v858, 16
          %v1187 = vrot.slane %v1185, 4
          %v1188 = vshll.u32 %v858, 16
          %v1190 = vrot.slane %v1188, 5
          %v1191 = vor.u32 %v1187, %v1190
          %v1192 = vrot.slane %v1191, 4
          %v1194 = vshll.u32 %v859, 16
          %v1196 = vrot.slane %v1194, 5
          %v1197 = vsel %vm895, %v1192, %v1196
          %v1198 = vshrl.u32 %v859, 16
          %v1200 = vrot.slane %v1198, 4
          %v1201 = vor.u32 %v1200, %v1196
          %v1202 = vrot.slane %v1201, 4
          %v1204 = vshll.u32 %v889, 16
          %v1206 = vrot.slane %v1204, 5
          %v1207 = vsel %vm895, %v1202, %v1206
          %v1209 = vshrl.u32 %v860, 16
          %v1211 = vrot.slane %v1209, 4
          %v1212 = vshll.u32 %v860, 16
          %v1214 = vrot.slane %v1212, 5
          %v1215 = vor.u32 %v1211, %v1214
          %v1216 = vrot.slane %v1215, 4
          %v1218 = vshll.u32 %v861, 16
          %v1220 = vrot.slane %v1218, 5
          %v1221 = vsel %vm895, %v1216, %v1220
          %v1222 = vshrl.u32 %v861, 16
          %v1224 = vrot.slane %v1222, 4
          %v1225 = vor.u32 %v1224, %v1220
          %v1226 = vrot.slane %v1225, 4
          %v1228 = vshll.u32 %v890, 16
          %v1230 = vrot.slane %v1228, 5
          %v1231 = vsel %vm895, %v1226, %v1230
          %v1233 = vshrl.u32 %v862, 16
          %v1235 = vrot.slane %v1233, 4
          %v1236 = vshll.u32 %v862, 16
          %v1238 = vrot.slane %v1236, 5
          %v1239 = vor.u32 %v1235, %v1238
          %v1240 = vrot.slane %v1239, 4
          %v1242 = vshll.u32 %v863, 16
          %v1244 = vrot.slane %v1242, 5
          %v1245 = vsel %vm895, %v1240, %v1244
          %v1246 = vshrl.u32 %v863, 16
          %v1248 = vrot.slane %v1246, 4
          %v1249 = vor.u32 %v1248, %v1244
          %v1250 = vrot.slane %v1249, 4
          %v1252 = vshll.u32 %v891, 16
          %v1254 = vrot.slane %v1252, 5
          %v1255 = vsel %vm895, %v1250, %v1254
          %v1257 = vshrl.u32 %v864, 16
          %v1259 = vrot.slane %v1257, 4
          %v1260 = vshll.u32 %v864, 16
          %v1262 = vrot.slane %v1260, 5
          %v1263 = vor.u32 %v1259, %v1262
          %v1264 = vrot.slane %v1263, 4
          %v1266 = vshll.u32 %v865, 16
          %v1268 = vrot.slane %v1266, 5
          %v1269 = vsel %vm895, %v1264, %v1268
          %v1270 = vshrl.u32 %v865, 16
          %v1272 = vrot.slane %v1270, 4
          %v1273 = vor.u32 %v1272, %v1268
          %v1274 = vrot.slane %v1273, 4
          %v1276 = vshll.u32 %v892, 16
          %v1278 = vrot.slane %v1276, 5
          %v1279 = vsel %vm895, %v1274, %v1278
          %s1280 = sadd.s32 8, %s866
          %s1281 = smul.addr %s1280, 4
          %s1282 = scalar_lea.vmem [#allocation3], %s1281
          %v1283 = vld [vmem:[%s1282] sm:$0xf]
          %v1284 = vld [vmem:[%s1282 + $0x4] sm:$0xf]
          %v1285 = vld [vmem:[%s1282 + $0x8] sm:$0xf]
          %v1286 = vld [vmem:[%s1282 + $0xc] sm:$0xf]
          %v1287 = vld [vmem:[%s1282 + $0x10] sm:$0xf]
          %v1288 = vld [vmem:[%s1282 + $0x14] sm:$0xf]
          %v1289 = vld [vmem:[%s1282 + $0x18] sm:$0xf]
          %v1290 = vld [vmem:[%s1282 + $0x1c] sm:$0xf]
          %v1291 = vunpack.c.l.b16 %v909
          %v1292 = vunpack.c.l.b16 %v919
          %v1293 = vunpack.c.l.b16 %v933
          %v1294 = vunpack.c.l.b16 %v943
          %v1295 = vunpack.c.l.b16 %v957
          %v1296 = vunpack.c.l.b16 %v967
          %v1297 = vunpack.c.l.b16 %v981
          %v1298 = vunpack.c.l.b16 %v991
          %v1299 = vunpack.c.l.b16 %v1005
          %v1300 = vunpack.c.l.b16 %v1015
          %v1301 = vunpack.c.l.b16 %v1029
          %v1302 = vunpack.c.l.b16 %v1039
          %v1303 = vunpack.c.l.b16 %v1053
          %v1304 = vunpack.c.l.b16 %v1063
          %v1305 = vunpack.c.l.b16 %v1077
          %v1306 = vunpack.c.l.b16 %v1087
          %v1307 = vunpack.c.l.b16 %v1101
          %v1308 = vunpack.c.l.b16 %v1111
          %v1309 = vunpack.c.l.b16 %v1125
          %v1310 = vunpack.c.l.b16 %v1135
          %v1311 = vunpack.c.l.b16 %v1149
          %v1312 = vunpack.c.l.b16 %v1159
          %v1313 = vunpack.c.l.b16 %v1173
          %v1314 = vunpack.c.l.b16 %v1183
          %v1315 = vunpack.c.l.b16 %v1197
          %v1316 = vunpack.c.l.b16 %v1207
          %v1317 = vunpack.c.l.b16 %v1221
          %v1318 = vunpack.c.l.b16 %v1231
          %v1319 = vunpack.c.l.b16 %v1245
          %v1320 = vunpack.c.l.b16 %v1255
          %v1321 = vunpack.c.l.b16 %v1269
          %v1322 = vunpack.c.l.b16 %v1279
          %v1323 = vpack.c.b16 %v1292, %v1291
          %v1324 = vpack.c.b16 %v1294, %v1293
          %v1325 = vpack.c.b16 %v1296, %v1295
          %v1326 = vpack.c.b16 %v1298, %v1297
          %v1327 = vpack.c.b16 %v1300, %v1299
          %v1328 = vpack.c.b16 %v1302, %v1301
          %v1329 = vpack.c.b16 %v1304, %v1303
          %v1330 = vpack.c.b16 %v1306, %v1305
          %v1331 = vpack.c.b16 %v1308, %v1307
          %v1332 = vpack.c.b16 %v1310, %v1309
          %v1333 = vpack.c.b16 %v1312, %v1311
          %v1334 = vpack.c.b16 %v1314, %v1313
          %v1335 = vpack.c.b16 %v1316, %v1315
          %v1336 = vpack.c.b16 %v1318, %v1317
          %v1337 = vpack.c.b16 %v1320, %v1319
          %v1338 = vpack.c.b16 %v1322, %v1321
          %v1347 = vunpack.c.l.b16 %v1283
          %v1348 = vunpack.c.l.b16 %v1284
          %v1349 = vunpack.c.l.b16 %v1285
          %v1350 = vunpack.c.l.b16 %v1286
          %v1351 = vunpack.c.l.b16 %v1287
          %v1352 = vunpack.c.l.b16 %v1288
          %v1353 = vunpack.c.l.b16 %v1289
          %v1354 = vunpack.c.l.b16 %v1290
          %v1355 = vpack.c.b16 %v1348, %v1347
          %v1356 = vpack.c.b16 %v1350, %v1349
          %v1357 = vpack.c.b16 %v1352, %v1351
          %v1358 = vpack.c.b16 %v1354, %v1353
          %vm1363 = vcmask 523264
          %v1365 = vsel %vm1363, %v1323, 0
          %v1368 = vsel %vm1363, %v1324, 0
          %v1371 = vsel %vm1363, %v1325, 0
          %v1374 = vsel %vm1363, %v1326, 0
          %v1377 = vsel %vm1363, %v1327, 0
          %v1380 = vsel %vm1363, %v1328, 0
          %v1383 = vsel %vm1363, %v1329, 0
          %v1386 = vsel %vm1363, %v1330, 0
          %v1389 = vsel %vm1363, %v1331, 0
          %v1392 = vsel %vm1363, %v1332, 0
          %v1395 = vsel %vm1363, %v1333, 0
          %v1398 = vsel %vm1363, %v1334, 0
          %v1401 = vsel %vm1363, %v1335, 0
          %v1404 = vsel %vm1363, %v1336, 0
          %v1407 = vsel %vm1363, %v1337, 0
          %v1410 = vsel %vm1363, %v1338, 0
          %1412 = vmatprep.subr.bf16.mxu0 0
          %1413 = vmatpush1.bf16.msra.mxu0 0
          %1414 = vmatprep.subr.bf16.mxu0 0
          %1415 = vmatpush1.bf16.msra.mxu0 0
          %1416 = vmatprep.subr.bf16.mxu0 0
          %1417 = vmatpush1.bf16.msra.mxu0 0
          %1418 = vmatprep.subr.bf16.mxu0 0
          %1419 = vmatpush1.bf16.msra.mxu0 0
          %1420 = vmatprep.subr.bf16.mxu0 0
          %1421 = vmatpush1.bf16.msra.mxu0 %v1358
          %1422 = vmatprep.subr.bf16.mxu0 0
          %1423 = vmatpush1.bf16.msra.mxu0 %v1357
          %1424 = vmatprep.subr.bf16.mxu0 0
          %1425 = vmatpush1.bf16.msra.mxu0 %v1356
          %1426 = vmatprep.subr.bf16.mxu0 0
          %1427 = vmatpush1.bf16.msra.mxu0 %v1355
          %1428 = vmatprep.subr.bf16.mxu0 0
          %1429 = vmatpush2.bf16.msra.mxu0 0
          %1430 = vmatprep.subr.bf16.mxu0 0
          %1431 = vmatpush2.bf16.msra.mxu0 0
          %1432 = vmatprep.subr.bf16.mxu0 0
          %1433 = vmatpush2.bf16.msra.mxu0 0
          %1434 = vmatprep.subr.bf16.mxu0 0
          %1435 = vmatpush2.bf16.msra.mxu0 0
          %1436 = vmatprep.subr.bf16.mxu0 0
          %1437 = vmatpush2.bf16.msra.mxu0 0
          %1438 = vmatprep.subr.bf16.mxu0 0
          %1439 = vmatpush2.bf16.msra.mxu0 0
          %1440 = vmatprep.subr.bf16.mxu0 0
          %1441 = vmatpush2.bf16.msra.mxu0 0
          %1442 = vmatprep.subr.bf16.mxu0 0
          %1443 = vmatpush2.bf16.msra.mxu0 0
          %1444 = vmatprep.mubr.bf16.mxu0 0
          %1445 = vmatmul.mubr.bf16.gmra.mxu0 %v1365
          %v1446 = vpop.f32.mrf.mxu0
          %v1447 = vadd.f32 0.0, %v1446
          %v1448 = vpop.f32.mrf.mxu0
          %v1449 = vpop.f32.mrf.mxu0
          %v1450 = vadd.f32 0.0, %v1449
          %v1451 = vpop.f32.mrf.mxu0
          %1452 = vmatprep.mubr.bf16.mxu0 0
          %1453 = vmatmul.mubr.bf16.gmra.mxu0 %v1368
          %v1454 = vpop.f32.mrf.mxu0
          %v1455 = vadd.f32 0.0, %v1454
          %v1456 = vpop.f32.mrf.mxu0
          %v1457 = vpop.f32.mrf.mxu0
          %v1458 = vadd.f32 0.0, %v1457
          %v1459 = vpop.f32.mrf.mxu0
          %1460 = vmatprep.mubr.bf16.mxu0 0
          %1461 = vmatmul.mubr.bf16.gmra.mxu0 %v1371
          %v1462 = vpop.f32.mrf.mxu0
          %v1463 = vadd.f32 0.0, %v1462
          %v1464 = vpop.f32.mrf.mxu0
          %v1465 = vpop.f32.mrf.mxu0
          %v1466 = vadd.f32 0.0, %v1465
          %v1467 = vpop.f32.mrf.mxu0
          %1468 = vmatprep.mubr.bf16.mxu0 0
          %1469 = vmatmul.mubr.bf16.gmra.mxu0 %v1374
          %v1470 = vpop.f32.mrf.mxu0
          %v1471 = vadd.f32 0.0, %v1470
          %v1472 = vpop.f32.mrf.mxu0
          %v1473 = vpop.f32.mrf.mxu0
          %v1474 = vadd.f32 0.0, %v1473
          %v1475 = vpop.f32.mrf.mxu0
          %1476 = vmatprep.mubr.bf16.mxu0 0
          %1477 = vmatmul.mubr.bf16.gmra.mxu0 %v1377
          %v1478 = vpop.f32.mrf.mxu0
          %v1479 = vadd.f32 0.0, %v1478
          %v1480 = vpop.f32.mrf.mxu0
          %v1481 = vpop.f32.mrf.mxu0
          %v1482 = vadd.f32 0.0, %v1481
          %v1483 = vpop.f32.mrf.mxu0
          %1484 = vmatprep.mubr.bf16.mxu0 0
          %1485 = vmatmul.mubr.bf16.gmra.mxu0 %v1380
          %v1486 = vpop.f32.mrf.mxu0
          %v1487 = vadd.f32 0.0, %v1486
          %v1488 = vpop.f32.mrf.mxu0
          %v1489 = vpop.f32.mrf.mxu0
          %v1490 = vadd.f32 0.0, %v1489
          %v1491 = vpop.f32.mrf.mxu0
          %1492 = vmatprep.mubr.bf16.mxu0 0
          %1493 = vmatmul.mubr.bf16.gmra.mxu0 %v1383
          %v1494 = vpop.f32.mrf.mxu0
          %v1495 = vadd.f32 0.0, %v1494
          %v1496 = vpop.f32.mrf.mxu0
          %v1497 = vpop.f32.mrf.mxu0
          %v1498 = vadd.f32 0.0, %v1497
          %v1499 = vpop.f32.mrf.mxu0
          %1500 = vmatprep.mubr.bf16.mxu0 0
          %1501 = vmatmul.mubr.bf16.gmra.mxu0 %v1386
          %v1502 = vpop.f32.mrf.mxu0
          %v1503 = vadd.f32 0.0, %v1502
          %v1504 = vpop.f32.mrf.mxu0
          %v1505 = vpop.f32.mrf.mxu0
          %v1506 = vadd.f32 0.0, %v1505
          %v1507 = vpop.f32.mrf.mxu0
          %1508 = vmatprep.mubr.bf16.mxu0 0
          %1509 = vmatmul.mubr.bf16.gmra.mxu0 %v1389
          %v1510 = vpop.f32.mrf.mxu0
          %v1511 = vadd.f32 0.0, %v1510
          %v1512 = vpop.f32.mrf.mxu0
          %v1513 = vpop.f32.mrf.mxu0
          %v1514 = vadd.f32 0.0, %v1513
          %v1515 = vpop.f32.mrf.mxu0
          %1516 = vmatprep.mubr.bf16.mxu0 0
          %1517 = vmatmul.mubr.bf16.gmra.mxu0 %v1392
          %v1518 = vpop.f32.mrf.mxu0
          %v1519 = vadd.f32 0.0, %v1518
          %v1520 = vpop.f32.mrf.mxu0
          %v1521 = vpop.f32.mrf.mxu0
          %v1522 = vadd.f32 0.0, %v1521
          %v1523 = vpop.f32.mrf.mxu0
          %1524 = vmatprep.mubr.bf16.mxu0 0
          %1525 = vmatmul.mubr.bf16.gmra.mxu0 %v1395
          %v1526 = vpop.f32.mrf.mxu0
          %v1527 = vadd.f32 0.0, %v1526
          %v1528 = vpop.f32.mrf.mxu0
          %v1529 = vpop.f32.mrf.mxu0
          %v1530 = vadd.f32 0.0, %v1529
          %v1531 = vpop.f32.mrf.mxu0
          %1532 = vmatprep.mubr.bf16.mxu0 0
          %1533 = vmatmul.mubr.bf16.gmra.mxu0 %v1398
          %v1534 = vpop.f32.mrf.mxu0
          %v1535 = vadd.f32 0.0, %v1534
          %v1536 = vpop.f32.mrf.mxu0
          %v1537 = vpop.f32.mrf.mxu0
          %v1538 = vadd.f32 0.0, %v1537
          %v1539 = vpop.f32.mrf.mxu0
          %1540 = vmatprep.mubr.bf16.mxu0 0
          %1541 = vmatmul.mubr.bf16.gmra.mxu0 %v1401
          %v1542 = vpop.f32.mrf.mxu0
          %v1543 = vadd.f32 0.0, %v1542
          %v1544 = vpop.f32.mrf.mxu0
          %v1545 = vpop.f32.mrf.mxu0
          %v1546 = vadd.f32 0.0, %v1545
          %v1547 = vpop.f32.mrf.mxu0
          %1548 = vmatprep.mubr.bf16.mxu0 0
          %1549 = vmatmul.mubr.bf16.gmra.mxu0 %v1404
          %v1550 = vpop.f32.mrf.mxu0
          %v1551 = vadd.f32 0.0, %v1550
          %v1552 = vpop.f32.mrf.mxu0
          %v1553 = vpop.f32.mrf.mxu0
          %v1554 = vadd.f32 0.0, %v1553
          %v1555 = vpop.f32.mrf.mxu0
          %1556 = vmatprep.mubr.bf16.mxu0 0
          %1557 = vmatmul.mubr.bf16.gmra.mxu0 %v1407
          %v1558 = vpop.f32.mrf.mxu0
          %v1559 = vadd.f32 0.0, %v1558
          %v1560 = vpop.f32.mrf.mxu0
          %v1561 = vpop.f32.mrf.mxu0
          %v1562 = vadd.f32 0.0, %v1561
          %v1563 = vpop.f32.mrf.mxu0
          %1564 = vmatprep.mubr.bf16.mxu0 0
          %1565 = vmatmul.mubr.bf16.gmra.mxu0 %v1410
          %v1566 = vpop.f32.mrf.mxu0
          %v1567 = vadd.f32 0.0, %v1566
          %v1568 = vpop.f32.mrf.mxu0
          %v1569 = vpop.f32.mrf.mxu0
          %v1570 = vadd.f32 0.0, %v1569
          %v1571 = vpop.f32.mrf.mxu0
          %1572 = vdwg.mxu0
          %v1605 = vunpack.c.l.b16 %v834
          %v1606 = vunpack.c.l.b16 %v835
          %v1607 = vunpack.c.l.b16 %v836
          %v1608 = vunpack.c.l.b16 %v837
          %v1609 = vunpack.c.l.b16 %v838
          %v1610 = vunpack.c.l.b16 %v839
          %v1611 = vunpack.c.l.b16 %v840
          %v1612 = vunpack.c.l.b16 %v841
          %v1613 = vunpack.c.l.b16 %v842
          %v1614 = vunpack.c.l.b16 %v843
          %v1615 = vunpack.c.l.b16 %v844
          %v1616 = vunpack.c.l.b16 %v845
          %v1617 = vunpack.c.l.b16 %v846
          %v1618 = vunpack.c.l.b16 %v847
          %v1619 = vunpack.c.l.b16 %v848
          %v1620 = vunpack.c.l.b16 %v849
          %v1621 = vunpack.c.l.b16 %v850
          %v1622 = vunpack.c.l.b16 %v851
          %v1623 = vunpack.c.l.b16 %v852
          %v1624 = vunpack.c.l.b16 %v853
          %v1625 = vunpack.c.l.b16 %v854
          %v1626 = vunpack.c.l.b16 %v855
          %v1627 = vunpack.c.l.b16 %v856
          %v1628 = vunpack.c.l.b16 %v857
          %v1629 = vunpack.c.l.b16 %v858
          %v1630 = vunpack.c.l.b16 %v859
          %v1631 = vunpack.c.l.b16 %v860
          %v1632 = vunpack.c.l.b16 %v861
          %v1633 = vunpack.c.l.b16 %v862
          %v1634 = vunpack.c.l.b16 %v863
          %v1635 = vunpack.c.l.b16 %v864
          %v1636 = vunpack.c.l.b16 %v865
          %v1637 = vpack.c.b16 %v1606, %v1605
          %v1638 = vpack.c.b16 %v1608, %v1607
          %v1639 = vpack.c.b16 %v1610, %v1609
          %v1640 = vpack.c.b16 %v1612, %v1611
          %v1641 = vpack.c.b16 %v1614, %v1613
          %v1642 = vpack.c.b16 %v1616, %v1615
          %v1643 = vpack.c.b16 %v1618, %v1617
          %v1644 = vpack.c.b16 %v1620, %v1619
          %v1645 = vpack.c.b16 %v1622, %v1621
          %v1646 = vpack.c.b16 %v1624, %v1623
          %v1647 = vpack.c.b16 %v1626, %v1625
          %v1648 = vpack.c.b16 %v1628, %v1627
          %v1649 = vpack.c.b16 %v1630, %v1629
          %v1650 = vpack.c.b16 %v1632, %v1631
          %v1651 = vpack.c.b16 %v1634, %v1633
          %v1652 = vpack.c.b16 %v1636, %v1635
          %v1661 = vunpack.c.l.b16 %v869
          %v1662 = vunpack.c.l.b16 %v870
          %v1663 = vunpack.c.l.b16 %v871
          %v1664 = vunpack.c.l.b16 %v872
          %v1665 = vunpack.c.l.b16 %v873
          %v1666 = vunpack.c.l.b16 %v874
          %v1667 = vunpack.c.l.b16 %v875
          %v1668 = vunpack.c.l.b16 %v876
          %v1669 = vpack.c.b16 %v1662, %v1661
          %v1670 = vpack.c.b16 %v1664, %v1663
          %v1671 = vpack.c.b16 %v1666, %v1665
          %v1672 = vpack.c.b16 %v1668, %v1667
          %v1678 = vsel %vm1363, %v1637, 0
          %v1681 = vsel %vm1363, %v1638, 0
          %v1684 = vsel %vm1363, %v1639, 0
          %v1687 = vsel %vm1363, %v1640, 0
          %v1690 = vsel %vm1363, %v1641, 0
          %v1693 = vsel %vm1363, %v1642, 0
          %v1696 = vsel %vm1363, %v1643, 0
          %v1699 = vsel %vm1363, %v1644, 0
          %v1702 = vsel %vm1363, %v1645, 0
          %v1705 = vsel %vm1363, %v1646, 0
          %v1708 = vsel %vm1363, %v1647, 0
          %v1711 = vsel %vm1363, %v1648, 0
          %v1714 = vsel %vm1363, %v1649, 0
          %v1717 = vsel %vm1363, %v1650, 0
          %v1720 = vsel %vm1363, %v1651, 0
          %v1723 = vsel %vm1363, %v1652, 0
          %1725 = vmatprep.subr.bf16.mxu0 0
          %1726 = vmatpush1.bf16.msra.mxu0 0
          %1727 = vmatprep.subr.bf16.mxu0 0
          %1728 = vmatpush1.bf16.msra.mxu0 0
          %1729 = vmatprep.subr.bf16.mxu0 0
          %1730 = vmatpush1.bf16.msra.mxu0 0
          %1731 = vmatprep.subr.bf16.mxu0 0
          %1732 = vmatpush1.bf16.msra.mxu0 0
          %1733 = vmatprep.subr.bf16.mxu0 0
          %1734 = vmatpush1.bf16.msra.mxu0 %v1672
          %1735 = vmatprep.subr.bf16.mxu0 0
          %1736 = vmatpush1.bf16.msra.mxu0 %v1671
          %1737 = vmatprep.subr.bf16.mxu0 0
          %1738 = vmatpush1.bf16.msra.mxu0 %v1670
          %1739 = vmatprep.subr.bf16.mxu0 0
          %1740 = vmatpush1.bf16.msra.mxu0 %v1669
          %1741 = vmatprep.subr.bf16.mxu0 0
          %1742 = vmatpush2.bf16.msra.mxu0 0
          %1743 = vmatprep.subr.bf16.mxu0 0
          %1744 = vmatpush2.bf16.msra.mxu0 0
          %1745 = vmatprep.subr.bf16.mxu0 0
          %1746 = vmatpush2.bf16.msra.mxu0 0
          %1747 = vmatprep.subr.bf16.mxu0 0
          %1748 = vmatpush2.bf16.msra.mxu0 0
          %1749 = vmatprep.subr.bf16.mxu0 0
          %1750 = vmatpush2.bf16.msra.mxu0 0
          %1751 = vmatprep.subr.bf16.mxu0 0
          %1752 = vmatpush2.bf16.msra.mxu0 0
          %1753 = vmatprep.subr.bf16.mxu0 0
          %1754 = vmatpush2.bf16.msra.mxu0 0
          %1755 = vmatprep.subr.bf16.mxu0 0
          %1756 = vmatpush2.bf16.msra.mxu0 0
          %1757 = vmatprep.mubr.bf16.mxu0 0
          %1758 = vmatmul.mubr.bf16.gmra.mxu0 %v1678
          %v1759 = vpop.f32.mrf.mxu0
          %v1760 = vadd.f32 %v1447, %v1759
          %v1761 = vpop.f32.mrf.mxu0
          %v1762 = vpop.f32.mrf.mxu0
          %v1763 = vadd.f32 %v1450, %v1762
          %v1764 = vpop.f32.mrf.mxu0
          %1765 = vmatprep.mubr.bf16.mxu0 0
          %1766 = vmatmul.mubr.bf16.gmra.mxu0 %v1681
          %v1767 = vpop.f32.mrf.mxu0
          %v1768 = vadd.f32 %v1455, %v1767
          %v1769 = vpop.f32.mrf.mxu0
          %v1770 = vpop.f32.mrf.mxu0
          %v1771 = vadd.f32 %v1458, %v1770
          %v1772 = vpop.f32.mrf.mxu0
          %1773 = vmatprep.mubr.bf16.mxu0 0
          %1774 = vmatmul.mubr.bf16.gmra.mxu0 %v1684
          %v1775 = vpop.f32.mrf.mxu0
          %v1776 = vadd.f32 %v1463, %v1775
          %v1777 = vpop.f32.mrf.mxu0
          %v1778 = vpop.f32.mrf.mxu0
          %v1779 = vadd.f32 %v1466, %v1778
          %v1780 = vpop.f32.mrf.mxu0
          %1781 = vmatprep.mubr.bf16.mxu0 0
          %1782 = vmatmul.mubr.bf16.gmra.mxu0 %v1687
          %v1783 = vpop.f32.mrf.mxu0
          %v1784 = vadd.f32 %v1471, %v1783
          %v1785 = vpop.f32.mrf.mxu0
          %v1786 = vpop.f32.mrf.mxu0
          %v1787 = vadd.f32 %v1474, %v1786
          %v1788 = vpop.f32.mrf.mxu0
          %1789 = vmatprep.mubr.bf16.mxu0 0
          %1790 = vmatmul.mubr.bf16.gmra.mxu0 %v1690
          %v1791 = vpop.f32.mrf.mxu0
          %v1792 = vadd.f32 %v1479, %v1791
          %v1793 = vpop.f32.mrf.mxu0
          %v1794 = vpop.f32.mrf.mxu0
          %v1795 = vadd.f32 %v1482, %v1794
          %v1796 = vpop.f32.mrf.mxu0
          %1797 = vmatprep.mubr.bf16.mxu0 0
          %1798 = vmatmul.mubr.bf16.gmra.mxu0 %v1693
          %v1799 = vpop.f32.mrf.mxu0
          %v1800 = vadd.f32 %v1487, %v1799
          %v1801 = vpop.f32.mrf.mxu0
          %v1802 = vpop.f32.mrf.mxu0
          %v1803 = vadd.f32 %v1490, %v1802
          %v1804 = vpop.f32.mrf.mxu0
          %1805 = vmatprep.mubr.bf16.mxu0 0
          %1806 = vmatmul.mubr.bf16.gmra.mxu0 %v1696
          %v1807 = vpop.f32.mrf.mxu0
          %v1808 = vadd.f32 %v1495, %v1807
          %v1809 = vpop.f32.mrf.mxu0
          %v1810 = vpop.f32.mrf.mxu0
          %v1811 = vadd.f32 %v1498, %v1810
          %v1812 = vpop.f32.mrf.mxu0
          %1813 = vmatprep.mubr.bf16.mxu0 0
          %1814 = vmatmul.mubr.bf16.gmra.mxu0 %v1699
          %v1815 = vpop.f32.mrf.mxu0
          %v1816 = vadd.f32 %v1503, %v1815
          %v1817 = vpop.f32.mrf.mxu0
          %v1818 = vpop.f32.mrf.mxu0
          %v1819 = vadd.f32 %v1506, %v1818
          %v1820 = vpop.f32.mrf.mxu0
          %1821 = vmatprep.mubr.bf16.mxu0 0
          %1822 = vmatmul.mubr.bf16.gmra.mxu0 %v1702
          %v1823 = vpop.f32.mrf.mxu0
          %v1824 = vadd.f32 %v1511, %v1823
          %v1825 = vpop.f32.mrf.mxu0
          %v1826 = vpop.f32.mrf.mxu0
          %v1827 = vadd.f32 %v1514, %v1826
          %v1828 = vpop.f32.mrf.mxu0
          %1829 = vmatprep.mubr.bf16.mxu0 0
          %1830 = vmatmul.mubr.bf16.gmra.mxu0 %v1705
          %v1831 = vpop.f32.mrf.mxu0
          %v1832 = vadd.f32 %v1519, %v1831
          %v1833 = vpop.f32.mrf.mxu0
          %v1834 = vpop.f32.mrf.mxu0
          %v1835 = vadd.f32 %v1522, %v1834
          %v1836 = vpop.f32.mrf.mxu0
          %1837 = vmatprep.mubr.bf16.mxu0 0
          %1838 = vmatmul.mubr.bf16.gmra.mxu0 %v1708
          %v1839 = vpop.f32.mrf.mxu0
          %v1840 = vadd.f32 %v1527, %v1839
          %v1841 = vpop.f32.mrf.mxu0
          %v1842 = vpop.f32.mrf.mxu0
          %v1843 = vadd.f32 %v1530, %v1842
          %v1844 = vpop.f32.mrf.mxu0
          %1845 = vmatprep.mubr.bf16.mxu0 0
          %1846 = vmatmul.mubr.bf16.gmra.mxu0 %v1711
          %v1847 = vpop.f32.mrf.mxu0
          %v1848 = vadd.f32 %v1535, %v1847
          %v1849 = vpop.f32.mrf.mxu0
          %v1850 = vpop.f32.mrf.mxu0
          %v1851 = vadd.f32 %v1538, %v1850
          %v1852 = vpop.f32.mrf.mxu0
          %1853 = vmatprep.mubr.bf16.mxu0 0
          %1854 = vmatmul.mubr.bf16.gmra.mxu0 %v1714
          %v1855 = vpop.f32.mrf.mxu0
          %v1856 = vadd.f32 %v1543, %v1855
          %v1857 = vpop.f32.mrf.mxu0
          %v1858 = vpop.f32.mrf.mxu0
          %v1859 = vadd.f32 %v1546, %v1858
          %v1860 = vpop.f32.mrf.mxu0
          %1861 = vmatprep.mubr.bf16.mxu0 0
          %1862 = vmatmul.mubr.bf16.gmra.mxu0 %v1717
          %v1863 = vpop.f32.mrf.mxu0
          %v1864 = vadd.f32 %v1551, %v1863
          %v1865 = vpop.f32.mrf.mxu0
          %v1866 = vpop.f32.mrf.mxu0
          %v1867 = vadd.f32 %v1554, %v1866
          %v1868 = vpop.f32.mrf.mxu0
          %1869 = vmatprep.mubr.bf16.mxu0 0
          %1870 = vmatmul.mubr.bf16.gmra.mxu0 %v1720
          %v1871 = vpop.f32.mrf.mxu0
          %v1872 = vadd.f32 %v1559, %v1871
          %v1873 = vpop.f32.mrf.mxu0
          %v1874 = vpop.f32.mrf.mxu0
          %v1875 = vadd.f32 %v1562, %v1874
          %v1876 = vpop.f32.mrf.mxu0
          %1877 = vmatprep.mubr.bf16.mxu0 0
          %1878 = vmatmul.mubr.bf16.gmra.mxu0 %v1723
          %v1879 = vpop.f32.mrf.mxu0
          %v1880 = vadd.f32 %v1567, %v1879
          %v1881 = vpop.f32.mrf.mxu0
          %v1882 = vpop.f32.mrf.mxu0
          %v1883 = vadd.f32 %v1570, %v1882
          %v1884 = vpop.f32.mrf.mxu0
          %1885 = vdwg.mxu0
          %v1886 = vld [vmem:[#allocation2] sm:$0xe]
          %v1887 = vld [vmem:[#allocation2 + $0xc] sm:$0xe]
          %v1888 = vld [vmem:[#allocation2 + $0x18] sm:$0xe]
          %v1889 = vld [vmem:[#allocation2 + $0x24] sm:$0xe]
          %v1890 = vld [vmem:[#allocation2 + $0x30] sm:$0xe]
          %v1891 = vld [vmem:[#allocation2 + $0x3c] sm:$0xe]
          %v1892 = vld [vmem:[#allocation2 + $0x48] sm:$0xe]
          %v1893 = vld [vmem:[#allocation2 + $0x54] sm:$0xe]
          %v1894 = vld [vmem:[#allocation2 + $0x60] sm:$0xe]
          %v1895 = vld [vmem:[#allocation2 + $0x6c] sm:$0xe]
          %v1896 = vld [vmem:[#allocation2 + $0x78] sm:$0xe]
          %v1897 = vld [vmem:[#allocation2 + $0x84] sm:$0xe]
          %v1898 = vld [vmem:[#allocation2 + $0x90] sm:$0xe]
          %v1899 = vld [vmem:[#allocation2 + $0x9c] sm:$0xe]
          %v1900 = vld [vmem:[#allocation2 + $0xa8] sm:$0xe]
          %v1901 = vld [vmem:[#allocation2 + $0xb4] sm:$0xe]
          %vm1934 = vcmask 1042432
          %vm1935 = vcmask 1046532
          %vm1936 = vmor %vm1934, %vm1935
          %v1937 = vrot.slane %v1886, 5
          %v1938 = vrot.slane %v1937, 4
          %v1939 = vrot.slane %v835, 5
          %v1940 = vsel %vm1936, %v1938, %v1939
          %v1941 = vrot.slane %v1939, 4
          %v1942 = vrot.slane %v877, 5
          %v1943 = vsel %vm1936, %v1941, %v1942
          %v1944 = vrot.slane %v1887, 5
          %v1945 = vrot.slane %v1944, 4
          %v1946 = vrot.slane %v837, 5
          %v1947 = vsel %vm1936, %v1945, %v1946
          %v1948 = vrot.slane %v1946, 4
          %v1949 = vrot.slane %v878, 5
          %v1950 = vsel %vm1936, %v1948, %v1949
          %v1951 = vrot.slane %v1888, 5
          %v1952 = vrot.slane %v1951, 4
          %v1953 = vrot.slane %v839, 5
          %v1954 = vsel %vm1936, %v1952, %v1953
          %v1955 = vrot.slane %v1953, 4
          %v1956 = vrot.slane %v879, 5
          %v1957 = vsel %vm1936, %v1955, %v1956
          %v1958 = vrot.slane %v1889, 5
          %v1959 = vrot.slane %v1958, 4
          %v1960 = vrot.slane %v841, 5
          %v1961 = vsel %vm1936, %v1959, %v1960
          %v1962 = vrot.slane %v1960, 4
          %v1963 = vrot.slane %v880, 5
          %v1964 = vsel %vm1936, %v1962, %v1963
          %v1965 = vrot.slane %v1890, 5
          %v1966 = vrot.slane %v1965, 4
          %v1967 = vrot.slane %v843, 5
          %v1968 = vsel %vm1936, %v1966, %v1967
          %v1969 = vrot.slane %v1967, 4
          %v1970 = vrot.slane %v881, 5
          %v1971 = vsel %vm1936, %v1969, %v1970
          %v1972 = vrot.slane %v1891, 5
          %v1973 = vrot.slane %v1972, 4
          %v1974 = vrot.slane %v845, 5
          %v1975 = vsel %vm1936, %v1973, %v1974
          %v1976 = vrot.slane %v1974, 4
          %v1977 = vrot.slane %v882, 5
          %v1978 = vsel %vm1936, %v1976, %v1977
          %v1979 = vrot.slane %v1892, 5
          %v1980 = vrot.slane %v1979, 4
          %v1981 = vrot.slane %v847, 5
          %v1982 = vsel %vm1936, %v1980, %v1981
          %v1983 = vrot.slane %v1981, 4
          %v1984 = vrot.slane %v883, 5
          %v1985 = vsel %vm1936, %v1983, %v1984
          %v1986 = vrot.slane %v1893, 5
          %v1987 = vrot.slane %v1986, 4
          %v1988 = vrot.slane %v849, 5
          %v1989 = vsel %vm1936, %v1987, %v1988
          %v1990 = vrot.slane %v1988, 4
          %v1991 = vrot.slane %v884, 5
          %v1992 = vsel %vm1936, %v1990, %v1991
          %v1993 = vrot.slane %v1894, 5
          %v1994 = vrot.slane %v1993, 4
          %v1995 = vrot.slane %v851, 5
          %v1996 = vsel %vm1936, %v1994, %v1995
          %v1997 = vrot.slane %v1995, 4
          %v1998 = vrot.slane %v885, 5
          %v1999 = vsel %vm1936, %v1997, %v1998
          %v2000 = vrot.slane %v1895, 5
          %v2001 = vrot.slane %v2000, 4
          %v2002 = vrot.slane %v853, 5
          %v2003 = vsel %vm1936, %v2001, %v2002
          %v2004 = vrot.slane %v2002, 4
          %v2005 = vrot.slane %v886, 5
          %v2006 = vsel %vm1936, %v2004, %v2005
          %v2007 = vrot.slane %v1896, 5
          %v2008 = vrot.slane %v2007, 4
          %v2009 = vrot.slane %v855, 5
          %v2010 = vsel %vm1936, %v2008, %v2009
          %v2011 = vrot.slane %v2009, 4
          %v2012 = vrot.slane %v887, 5
          %v2013 = vsel %vm1936, %v2011, %v2012
          %v2014 = vrot.slane %v1897, 5
          %v2015 = vrot.slane %v2014, 4
          %v2016 = vrot.slane %v857, 5
          %v2017 = vsel %vm1936, %v2015, %v2016
          %v2018 = vrot.slane %v2016, 4
          %v2019 = vrot.slane %v888, 5
          %v2020 = vsel %vm1936, %v2018, %v2019
          %v2021 = vrot.slane %v1898, 5
          %v2022 = vrot.slane %v2021, 4
          %v2023 = vrot.slane %v859, 5
          %v2024 = vsel %vm1936, %v2022, %v2023
          %v2025 = vrot.slane %v2023, 4
          %v2026 = vrot.slane %v889, 5
          %v2027 = vsel %vm1936, %v2025, %v2026
          %v2028 = vrot.slane %v1899, 5
          %v2029 = vrot.slane %v2028, 4
          %v2030 = vrot.slane %v861, 5
          %v2031 = vsel %vm1936, %v2029, %v2030
          %v2032 = vrot.slane %v2030, 4
          %v2033 = vrot.slane %v890, 5
          %v2034 = vsel %vm1936, %v2032, %v2033
          %v2035 = vrot.slane %v1900, 5
          %v2036 = vrot.slane %v2035, 4
          %v2037 = vrot.slane %v863, 5
          %v2038 = vsel %vm1936, %v2036, %v2037
          %v2039 = vrot.slane %v2037, 4
          %v2040 = vrot.slane %v891, 5
          %v2041 = vsel %vm1936, %v2039, %v2040
          %v2042 = vrot.slane %v1901, 5
          %v2043 = vrot.slane %v2042, 4
          %v2044 = vrot.slane %v865, 5
          %v2045 = vsel %vm1936, %v2043, %v2044
          %v2046 = vrot.slane %v2044, 4
          %v2047 = vrot.slane %v892, 5
          %v2048 = vsel %vm1936, %v2046, %v2047
          %s2049 = sadd.s32 16, %s866
          %s2050 = smul.addr %s2049, 4
          %s2051 = scalar_lea.vmem [#allocation3], %s2050
          %v2052 = vld [vmem:[%s2051] sm:$0xf]
          %v2053 = vld [vmem:[%s2051 + $0x4] sm:$0xf]
          %v2054 = vld [vmem:[%s2051 + $0x8] sm:$0xf]
          %v2055 = vld [vmem:[%s2051 + $0xc] sm:$0xf]
          %v2056 = vld [vmem:[%s2051 + $0x10] sm:$0xf]
          %v2057 = vld [vmem:[%s2051 + $0x14] sm:$0xf]
          %v2058 = vld [vmem:[%s2051 + $0x18] sm:$0xf]
          %v2059 = vld [vmem:[%s2051 + $0x1c] sm:$0xf]
          %v2060 = vunpack.c.l.b16 %v1940
          %v2061 = vunpack.c.l.b16 %v1943
          %v2062 = vunpack.c.l.b16 %v1947
          %v2063 = vunpack.c.l.b16 %v1950
          %v2064 = vunpack.c.l.b16 %v1954
          %v2065 = vunpack.c.l.b16 %v1957
          %v2066 = vunpack.c.l.b16 %v1961
          %v2067 = vunpack.c.l.b16 %v1964
          %v2068 = vunpack.c.l.b16 %v1968
          %v2069 = vunpack.c.l.b16 %v1971
          %v2070 = vunpack.c.l.b16 %v1975
          %v2071 = vunpack.c.l.b16 %v1978
          %v2072 = vunpack.c.l.b16 %v1982
          %v2073 = vunpack.c.l.b16 %v1985
          %v2074 = vunpack.c.l.b16 %v1989
          %v2075 = vunpack.c.l.b16 %v1992
          %v2076 = vunpack.c.l.b16 %v1996
          %v2077 = vunpack.c.l.b16 %v1999
          %v2078 = vunpack.c.l.b16 %v2003
          %v2079 = vunpack.c.l.b16 %v2006
          %v2080 = vunpack.c.l.b16 %v2010
          %v2081 = vunpack.c.l.b16 %v2013
          %v2082 = vunpack.c.l.b16 %v2017
          %v2083 = vunpack.c.l.b16 %v2020
          %v2084 = vunpack.c.l.b16 %v2024
          %v2085 = vunpack.c.l.b16 %v2027
          %v2086 = vunpack.c.l.b16 %v2031
          %v2087 = vunpack.c.l.b16 %v2034
          %v2088 = vunpack.c.l.b16 %v2038
          %v2089 = vunpack.c.l.b16 %v2041
          %v2090 = vunpack.c.l.b16 %v2045
          %v2091 = vunpack.c.l.b16 %v2048
          %v2092 = vpack.c.b16 %v2061, %v2060
          %v2093 = vpack.c.b16 %v2063, %v2062
          %v2094 = vpack.c.b16 %v2065, %v2064
          %v2095 = vpack.c.b16 %v2067, %v2066
          %v2096 = vpack.c.b16 %v2069, %v2068
          %v2097 = vpack.c.b16 %v2071, %v2070
          %v2098 = vpack.c.b16 %v2073, %v2072
          %v2099 = vpack.c.b16 %v2075, %v2074
          %v2100 = vpack.c.b16 %v2077, %v2076
          %v2101 = vpack.c.b16 %v2079, %v2078
          %v2102 = vpack.c.b16 %v2081, %v2080
          %v2103 = vpack.c.b16 %v2083, %v2082
          %v2104 = vpack.c.b16 %v2085, %v2084
          %v2105 = vpack.c.b16 %v2087, %v2086
          %v2106 = vpack.c.b16 %v2089, %v2088
          %v2107 = vpack.c.b16 %v2091, %v2090
          %v2116 = vunpack.c.l.b16 %v2052
          %v2117 = vunpack.c.l.b16 %v2053
          %v2118 = vunpack.c.l.b16 %v2054
          %v2119 = vunpack.c.l.b16 %v2055
          %v2120 = vunpack.c.l.b16 %v2056
          %v2121 = vunpack.c.l.b16 %v2057
          %v2122 = vunpack.c.l.b16 %v2058
          %v2123 = vunpack.c.l.b16 %v2059
          %v2124 = vpack.c.b16 %v2117, %v2116
          %v2125 = vpack.c.b16 %v2119, %v2118
          %v2126 = vpack.c.b16 %v2121, %v2120
          %v2127 = vpack.c.b16 %v2123, %v2122
          %v2133 = vsel %vm1363, %v2092, 0
          %v2136 = vsel %vm1363, %v2093, 0
          %v2139 = vsel %vm1363, %v2094, 0
          %v2142 = vsel %vm1363, %v2095, 0
          %v2145 = vsel %vm1363, %v2096, 0
          %v2148 = vsel %vm1363, %v2097, 0
          %v2151 = vsel %vm1363, %v2098, 0
          %v2154 = vsel %vm1363, %v2099, 0
          %v2157 = vsel %vm1363, %v2100, 0
          %v2160 = vsel %vm1363, %v2101, 0
          %v2163 = vsel %vm1363, %v2102, 0
          %v2166 = vsel %vm1363, %v2103, 0
          %v2169 = vsel %vm1363, %v2104, 0
          %v2172 = vsel %vm1363, %v2105, 0
          %v2175 = vsel %vm1363, %v2106, 0
          %v2178 = vsel %vm1363, %v2107, 0
          %2180 = vmatprep.subr.bf16.mxu0 0
          %2181 = vmatpush1.bf16.msra.mxu0 0
          %2182 = vmatprep.subr.bf16.mxu0 0
          %2183 = vmatpush1.bf16.msra.mxu0 0
          %2184 = vmatprep.subr.bf16.mxu0 0
          %2185 = vmatpush1.bf16.msra.mxu0 0
          %2186 = vmatprep.subr.bf16.mxu0 0
          %2187 = vmatpush1.bf16.msra.mxu0 0
          %2188 = vmatprep.subr.bf16.mxu0 0
          %2189 = vmatpush1.bf16.msra.mxu0 %v2127
          %2190 = vmatprep.subr.bf16.mxu0 0
          %2191 = vmatpush1.bf16.msra.mxu0 %v2126
          %2192 = vmatprep.subr.bf16.mxu0 0
          %2193 = vmatpush1.bf16.msra.mxu0 %v2125
          %2194 = vmatprep.subr.bf16.mxu0 0
          %2195 = vmatpush1.bf16.msra.mxu0 %v2124
          %2196 = vmatprep.subr.bf16.mxu0 0
          %2197 = vmatpush2.bf16.msra.mxu0 0
          %2198 = vmatprep.subr.bf16.mxu0 0
          %2199 = vmatpush2.bf16.msra.mxu0 0
          %2200 = vmatprep.subr.bf16.mxu0 0
          %2201 = vmatpush2.bf16.msra.mxu0 0
          %2202 = vmatprep.subr.bf16.mxu0 0
          %2203 = vmatpush2.bf16.msra.mxu0 0
          %2204 = vmatprep.subr.bf16.mxu0 0
          %2205 = vmatpush2.bf16.msra.mxu0 0
          %2206 = vmatprep.subr.bf16.mxu0 0
          %2207 = vmatpush2.bf16.msra.mxu0 0
          %2208 = vmatprep.subr.bf16.mxu0 0
          %2209 = vmatpush2.bf16.msra.mxu0 0
          %2210 = vmatprep.subr.bf16.mxu0 0
          %2211 = vmatpush2.bf16.msra.mxu0 0
          %2212 = vmatprep.mubr.bf16.mxu0 0
          %2213 = vmatmul.mubr.bf16.gmra.mxu0 %v2133
          %v2214 = vpop.f32.mrf.mxu0
          %v2215 = vadd.f32 0.0, %v2214
          %v2216 = vpop.f32.mrf.mxu0
          %v2217 = vpop.f32.mrf.mxu0
          %v2218 = vadd.f32 0.0, %v2217
          %v2219 = vpop.f32.mrf.mxu0
          %2220 = vmatprep.mubr.bf16.mxu0 0
          %2221 = vmatmul.mubr.bf16.gmra.mxu0 %v2136
          %v2222 = vpop.f32.mrf.mxu0
          %v2223 = vadd.f32 0.0, %v2222
          %v2224 = vpop.f32.mrf.mxu0
          %v2225 = vpop.f32.mrf.mxu0
          %v2226 = vadd.f32 0.0, %v2225
          %v2227 = vpop.f32.mrf.mxu0
          %2228 = vmatprep.mubr.bf16.mxu0 0
          %2229 = vmatmul.mubr.bf16.gmra.mxu0 %v2139
          %v2230 = vpop.f32.mrf.mxu0
          %v2231 = vadd.f32 0.0, %v2230
          %v2232 = vpop.f32.mrf.mxu0
          %v2233 = vpop.f32.mrf.mxu0
          %v2234 = vadd.f32 0.0, %v2233
          %v2235 = vpop.f32.mrf.mxu0
          %2236 = vmatprep.mubr.bf16.mxu0 0
          %2237 = vmatmul.mubr.bf16.gmra.mxu0 %v2142
          %v2238 = vpop.f32.mrf.mxu0
          %v2239 = vadd.f32 0.0, %v2238
          %v2240 = vpop.f32.mrf.mxu0
          %v2241 = vpop.f32.mrf.mxu0
          %v2242 = vadd.f32 0.0, %v2241
          %v2243 = vpop.f32.mrf.mxu0
          %2244 = vmatprep.mubr.bf16.mxu0 0
          %2245 = vmatmul.mubr.bf16.gmra.mxu0 %v2145
          %v2246 = vpop.f32.mrf.mxu0
          %v2247 = vadd.f32 0.0, %v2246
          %v2248 = vpop.f32.mrf.mxu0
          %v2249 = vpop.f32.mrf.mxu0
          %v2250 = vadd.f32 0.0, %v2249
          %v2251 = vpop.f32.mrf.mxu0
          %2252 = vmatprep.mubr.bf16.mxu0 0
          %2253 = vmatmul.mubr.bf16.gmra.mxu0 %v2148
          %v2254 = vpop.f32.mrf.mxu0
          %v2255 = vadd.f32 0.0, %v2254
          %v2256 = vpop.f32.mrf.mxu0
          %v2257 = vpop.f32.mrf.mxu0
          %v2258 = vadd.f32 0.0, %v2257
          %v2259 = vpop.f32.mrf.mxu0
          %2260 = vmatprep.mubr.bf16.mxu0 0
          %2261 = vmatmul.mubr.bf16.gmra.mxu0 %v2151
          %v2262 = vpop.f32.mrf.mxu0
          %v2263 = vadd.f32 0.0, %v2262
          %v2264 = vpop.f32.mrf.mxu0
          %v2265 = vpop.f32.mrf.mxu0
          %v2266 = vadd.f32 0.0, %v2265
          %v2267 = vpop.f32.mrf.mxu0
          %2268 = vmatprep.mubr.bf16.mxu0 0
          %2269 = vmatmul.mubr.bf16.gmra.mxu0 %v2154
          %v2270 = vpop.f32.mrf.mxu0
          %v2271 = vadd.f32 0.0, %v2270
          %v2272 = vpop.f32.mrf.mxu0
          %v2273 = vpop.f32.mrf.mxu0
          %v2274 = vadd.f32 0.0, %v2273
          %v2275 = vpop.f32.mrf.mxu0
          %2276 = vmatprep.mubr.bf16.mxu0 0
          %2277 = vmatmul.mubr.bf16.gmra.mxu0 %v2157
          %v2278 = vpop.f32.mrf.mxu0
          %v2279 = vadd.f32 0.0, %v2278
          %v2280 = vpop.f32.mrf.mxu0
          %v2281 = vpop.f32.mrf.mxu0
          %v2282 = vadd.f32 0.0, %v2281
          %v2283 = vpop.f32.mrf.mxu0
          %2284 = vmatprep.mubr.bf16.mxu0 0
          %2285 = vmatmul.mubr.bf16.gmra.mxu0 %v2160
          %v2286 = vpop.f32.mrf.mxu0
          %v2287 = vadd.f32 0.0, %v2286
          %v2288 = vpop.f32.mrf.mxu0
          %v2289 = vpop.f32.mrf.mxu0
          %v2290 = vadd.f32 0.0, %v2289
          %v2291 = vpop.f32.mrf.mxu0
          %2292 = vmatprep.mubr.bf16.mxu0 0
          %2293 = vmatmul.mubr.bf16.gmra.mxu0 %v2163
          %v2294 = vpop.f32.mrf.mxu0
          %v2295 = vadd.f32 0.0, %v2294
          %v2296 = vpop.f32.mrf.mxu0
          %v2297 = vpop.f32.mrf.mxu0
          %v2298 = vadd.f32 0.0, %v2297
          %v2299 = vpop.f32.mrf.mxu0
          %2300 = vmatprep.mubr.bf16.mxu0 0
          %2301 = vmatmul.mubr.bf16.gmra.mxu0 %v2166
          %v2302 = vpop.f32.mrf.mxu0
          %v2303 = vadd.f32 0.0, %v2302
          %v2304 = vpop.f32.mrf.mxu0
          %v2305 = vpop.f32.mrf.mxu0
          %v2306 = vadd.f32 0.0, %v2305
          %v2307 = vpop.f32.mrf.mxu0
          %2308 = vmatprep.mubr.bf16.mxu0 0
          %2309 = vmatmul.mubr.bf16.gmra.mxu0 %v2169
          %v2310 = vpop.f32.mrf.mxu0
          %v2311 = vadd.f32 0.0, %v2310
          %v2312 = vpop.f32.mrf.mxu0
          %v2313 = vpop.f32.mrf.mxu0
          %v2314 = vadd.f32 0.0, %v2313
          %v2315 = vpop.f32.mrf.mxu0
          %2316 = vmatprep.mubr.bf16.mxu0 0
          %2317 = vmatmul.mubr.bf16.gmra.mxu0 %v2172
          %v2318 = vpop.f32.mrf.mxu0
          %v2319 = vadd.f32 0.0, %v2318
          %v2320 = vpop.f32.mrf.mxu0
          %v2321 = vpop.f32.mrf.mxu0
          %v2322 = vadd.f32 0.0, %v2321
          %v2323 = vpop.f32.mrf.mxu0
          %2324 = vmatprep.mubr.bf16.mxu0 0
          %2325 = vmatmul.mubr.bf16.gmra.mxu0 %v2175
          %v2326 = vpop.f32.mrf.mxu0
          %v2327 = vadd.f32 0.0, %v2326
          %v2328 = vpop.f32.mrf.mxu0
          %v2329 = vpop.f32.mrf.mxu0
          %v2330 = vadd.f32 0.0, %v2329
          %v2331 = vpop.f32.mrf.mxu0
          %2332 = vmatprep.mubr.bf16.mxu0 0
          %2333 = vmatmul.mubr.bf16.gmra.mxu0 %v2178
          %v2334 = vpop.f32.mrf.mxu0
          %v2335 = vadd.f32 0.0, %v2334
          %v2336 = vpop.f32.mrf.mxu0
          %v2337 = vpop.f32.mrf.mxu0
          %v2338 = vadd.f32 0.0, %v2337
          %v2339 = vpop.f32.mrf.mxu0
          %2340 = vdwg.mxu0
          %v2341 = vadd.f32 %v1760, %v2215
          %v2342 = vadd.f32 %v1763, %v2218
          %v2343 = vadd.f32 %v1768, %v2223
          %v2344 = vadd.f32 %v1771, %v2226
          %v2345 = vadd.f32 %v1776, %v2231
          %v2346 = vadd.f32 %v1779, %v2234
          %v2347 = vadd.f32 %v1784, %v2239
          %v2348 = vadd.f32 %v1787, %v2242
          %v2349 = vadd.f32 %v1792, %v2247
          %v2350 = vadd.f32 %v1795, %v2250
          %v2351 = vadd.f32 %v1800, %v2255
          %v2352 = vadd.f32 %v1803, %v2258
          %v2353 = vadd.f32 %v1808, %v2263
          %v2354 = vadd.f32 %v1811, %v2266
          %v2355 = vadd.f32 %v1816, %v2271
          %v2356 = vadd.f32 %v1819, %v2274
          %v2357 = vadd.f32 %v1824, %v2279
          %v2358 = vadd.f32 %v1827, %v2282
          %v2359 = vadd.f32 %v1832, %v2287
          %v2360 = vadd.f32 %v1835, %v2290
          %v2361 = vadd.f32 %v1840, %v2295
          %v2362 = vadd.f32 %v1843, %v2298
          %v2363 = vadd.f32 %v1848, %v2303
          %v2364 = vadd.f32 %v1851, %v2306
          %v2365 = vadd.f32 %v1856, %v2311
          %v2366 = vadd.f32 %v1859, %v2314
          %v2367 = vadd.f32 %v1864, %v2319
          %v2368 = vadd.f32 %v1867, %v2322
          %v2369 = vadd.f32 %v1872, %v2327
          %v2370 = vadd.f32 %v1875, %v2330
          %v2371 = vadd.f32 %v1880, %v2335
          %v2372 = vadd.f32 %v1883, %v2338
          %v2373 = vld [vmem:[%s709] sm:$0xf]
          %v2374 = vld [vmem:[%s709 + $0x4] sm:$0xf]
          %v2375 = vld [vmem:[%s709 + $0xc] sm:$0xf]
          %v2376 = vld [vmem:[%s709 + $0x10] sm:$0xf]
          %v2377 = vld [vmem:[%s709 + $0x18] sm:$0xf]
          %v2378 = vld [vmem:[%s709 + $0x1c] sm:$0xf]
          %v2379 = vld [vmem:[%s709 + $0x24] sm:$0xf]
          %v2380 = vld [vmem:[%s709 + $0x28] sm:$0xf]
          %v2381 = vld [vmem:[%s709 + $0x30] sm:$0xf]
          %v2382 = vld [vmem:[%s709 + $0x34] sm:$0xf]
          %v2383 = vld [vmem:[%s709 + $0x3c] sm:$0xf]
          %v2384 = vld [vmem:[%s709 + $0x40] sm:$0xf]
          %v2385 = vld [vmem:[%s709 + $0x48] sm:$0xf]
          %v2386 = vld [vmem:[%s709 + $0x4c] sm:$0xf]
          %v2387 = vld [vmem:[%s709 + $0x54] sm:$0xf]
          %v2388 = vld [vmem:[%s709 + $0x58] sm:$0xf]
          %v2389 = vld [vmem:[%s709 + $0x60] sm:$0xf]
          %v2390 = vld [vmem:[%s709 + $0x64] sm:$0xf]
          %v2391 = vld [vmem:[%s709 + $0x6c] sm:$0xf]
          %v2392 = vld [vmem:[%s709 + $0x70] sm:$0xf]
          %v2393 = vld [vmem:[%s709 + $0x78] sm:$0xf]
          %v2394 = vld [vmem:[%s709 + $0x7c] sm:$0xf]
          %v2395 = vld [vmem:[%s709 + $0x84] sm:$0xf]
          %v2396 = vld [vmem:[%s709 + $0x88] sm:$0xf]
          %v2397 = vld [vmem:[%s709 + $0x90] sm:$0xf]
          %v2398 = vld [vmem:[%s709 + $0x94] sm:$0xf]
          %v2399 = vld [vmem:[%s709 + $0x9c] sm:$0xf]
          %v2400 = vld [vmem:[%s709 + $0xa0] sm:$0xf]
          %v2401 = vld [vmem:[%s709 + $0xa8] sm:$0xf]
          %v2402 = vld [vmem:[%s709 + $0xac] sm:$0xf]
          %v2403 = vld [vmem:[%s709 + $0xb4] sm:$0xf]
          %v2404 = vld [vmem:[%s709 + $0xb8] sm:$0xf]
          %s2405 = sadd.s32 24, %s866
          %s2406 = smul.addr %s2405, 4
          %s2407 = scalar_lea.vmem [#allocation3], %s2406
          %v2408 = vld [vmem:[%s2407] sm:$0xf]
          %v2409 = vld [vmem:[%s2407 + $0x4] sm:$0xf]
          %v2410 = vld [vmem:[%s2407 + $0x8] sm:$0xf]
          %v2411 = vld [vmem:[%s2407 + $0xc] sm:$0xf]
          %v2412 = vld [vmem:[%s2407 + $0x10] sm:$0xf]
          %v2413 = vld [vmem:[%s2407 + $0x14] sm:$0xf]
          %v2414 = vld [vmem:[%s2407 + $0x18] sm:$0xf]
          %v2415 = vld [vmem:[%s2407 + $0x1c] sm:$0xf]
          %v2448 = vunpack.c.l.b16 %v2373
          %v2449 = vunpack.c.l.b16 %v2374
          %v2450 = vunpack.c.l.b16 %v2375
          %v2451 = vunpack.c.l.b16 %v2376
          %v2452 = vunpack.c.l.b16 %v2377
          %v2453 = vunpack.c.l.b16 %v2378
          %v2454 = vunpack.c.l.b16 %v2379
          %v2455 = vunpack.c.l.b16 %v2380
          %v2456 = vunpack.c.l.b16 %v2381
          %v2457 = vunpack.c.l.b16 %v2382
          %v2458 = vunpack.c.l.b16 %v2383
          %v2459 = vunpack.c.l.b16 %v2384
          %v2460 = vunpack.c.l.b16 %v2385
          %v2461 = vunpack.c.l.b16 %v2386
          %v2462 = vunpack.c.l.b16 %v2387
          %v2463 = vunpack.c.l.b16 %v2388
          %v2464 = vunpack.c.l.b16 %v2389
          %v2465 = vunpack.c.l.b16 %v2390
          %v2466 = vunpack.c.l.b16 %v2391
          %v2467 = vunpack.c.l.b16 %v2392
          %v2468 = vunpack.c.l.b16 %v2393
          %v2469 = vunpack.c.l.b16 %v2394
          %v2470 = vunpack.c.l.b16 %v2395
          %v2471 = vunpack.c.l.b16 %v2396
          %v2472 = vunpack.c.l.b16 %v2397
          %v2473 = vunpack.c.l.b16 %v2398
          %v2474 = vunpack.c.l.b16 %v2399
          %v2475 = vunpack.c.l.b16 %v2400
          %v2476 = vunpack.c.l.b16 %v2401
          %v2477 = vunpack.c.l.b16 %v2402
          %v2478 = vunpack.c.l.b16 %v2403
          %v2479 = vunpack.c.l.b16 %v2404
          %v2480 = vpack.c.b16 %v2449, %v2448
          %v2481 = vpack.c.b16 %v2451, %v2450
          %v2482 = vpack.c.b16 %v2453, %v2452
          %v2483 = vpack.c.b16 %v2455, %v2454
          %v2484 = vpack.c.b16 %v2457, %v2456
          %v2485 = vpack.c.b16 %v2459, %v2458
          %v2486 = vpack.c.b16 %v2461, %v2460
          %v2487 = vpack.c.b16 %v2463, %v2462
          %v2488 = vpack.c.b16 %v2465, %v2464
          %v2489 = vpack.c.b16 %v2467, %v2466
          %v2490 = vpack.c.b16 %v2469, %v2468
          %v2491 = vpack.c.b16 %v2471, %v2470
          %v2492 = vpack.c.b16 %v2473, %v2472
          %v2493 = vpack.c.b16 %v2475, %v2474
          %v2494 = vpack.c.b16 %v2477, %v2476
          %v2495 = vpack.c.b16 %v2479, %v2478
          %v2504 = vunpack.c.l.b16 %v2408
          %v2505 = vunpack.c.l.b16 %v2409
          %v2506 = vunpack.c.l.b16 %v2410
          %v2507 = vunpack.c.l.b16 %v2411
          %v2508 = vunpack.c.l.b16 %v2412
          %v2509 = vunpack.c.l.b16 %v2413
          %v2510 = vunpack.c.l.b16 %v2414
          %v2511 = vunpack.c.l.b16 %v2415
          %v2512 = vpack.c.b16 %v2505, %v2504
          %v2513 = vpack.c.b16 %v2507, %v2506
          %v2514 = vpack.c.b16 %v2509, %v2508
          %v2515 = vpack.c.b16 %v2511, %v2510
          %v2521 = vsel %vm1363, %v2480, 0
          %v2524 = vsel %vm1363, %v2481, 0
          %v2527 = vsel %vm1363, %v2482, 0
          %v2530 = vsel %vm1363, %v2483, 0
          %v2533 = vsel %vm1363, %v2484, 0
          %v2536 = vsel %vm1363, %v2485, 0
          %v2539 = vsel %vm1363, %v2486, 0
          %v2542 = vsel %vm1363, %v2487, 0
          %v2545 = vsel %vm1363, %v2488, 0
          %v2548 = vsel %vm1363, %v2489, 0
          %v2551 = vsel %vm1363, %v2490, 0
          %v2554 = vsel %vm1363, %v2491, 0
          %v2557 = vsel %vm1363, %v2492, 0
          %v2560 = vsel %vm1363, %v2493, 0
          %v2563 = vsel %vm1363, %v2494, 0
          %v2566 = vsel %vm1363, %v2495, 0
          %2568 = vmatprep.subr.bf16.mxu0 0
          %2569 = vmatpush1.bf16.msra.mxu0 0
          %2570 = vmatprep.subr.bf16.mxu0 0
          %2571 = vmatpush1.bf16.msra.mxu0 0
          %2572 = vmatprep.subr.bf16.mxu0 0
          %2573 = vmatpush1.bf16.msra.mxu0 0
          %2574 = vmatprep.subr.bf16.mxu0 0
          %2575 = vmatpush1.bf16.msra.mxu0 0
          %2576 = vmatprep.subr.bf16.mxu0 0
          %2577 = vmatpush1.bf16.msra.mxu0 %v2515
          %2578 = vmatprep.subr.bf16.mxu0 0
          %2579 = vmatpush1.bf16.msra.mxu0 %v2514
          %2580 = vmatprep.subr.bf16.mxu0 0
          %2581 = vmatpush1.bf16.msra.mxu0 %v2513
          %2582 = vmatprep.subr.bf16.mxu0 0
          %2583 = vmatpush1.bf16.msra.mxu0 %v2512
          %2584 = vmatprep.subr.bf16.mxu0 0
          %2585 = vmatpush2.bf16.msra.mxu0 0
          %2586 = vmatprep.subr.bf16.mxu0 0
          %2587 = vmatpush2.bf16.msra.mxu0 0
          %2588 = vmatprep.subr.bf16.mxu0 0
          %2589 = vmatpush2.bf16.msra.mxu0 0
          %2590 = vmatprep.subr.bf16.mxu0 0
          %2591 = vmatpush2.bf16.msra.mxu0 0
          %2592 = vmatprep.subr.bf16.mxu0 0
          %2593 = vmatpush2.bf16.msra.mxu0 0
          %2594 = vmatprep.subr.bf16.mxu0 0
          %2595 = vmatpush2.bf16.msra.mxu0 0
          %2596 = vmatprep.subr.bf16.mxu0 0
          %2597 = vmatpush2.bf16.msra.mxu0 0
          %2598 = vmatprep.subr.bf16.mxu0 0
          %2599 = vmatpush2.bf16.msra.mxu0 0
          %2600 = vmatprep.mubr.bf16.mxu0 0
          %2601 = vmatmul.mubr.bf16.gmra.mxu0 %v2521
          %v2602 = vpop.f32.mrf.mxu0
          %v2603 = vadd.f32 0.0, %v2602
          %v2604 = vpop.f32.mrf.mxu0
          %v2605 = vpop.f32.mrf.mxu0
          %v2606 = vadd.f32 0.0, %v2605
          %v2607 = vpop.f32.mrf.mxu0
          %2608 = vmatprep.mubr.bf16.mxu0 0
          %2609 = vmatmul.mubr.bf16.gmra.mxu0 %v2524
          %v2610 = vpop.f32.mrf.mxu0
          %v2611 = vadd.f32 0.0, %v2610
          %v2612 = vpop.f32.mrf.mxu0
          %v2613 = vpop.f32.mrf.mxu0
          %v2614 = vadd.f32 0.0, %v2613
          %v2615 = vpop.f32.mrf.mxu0
          %2616 = vmatprep.mubr.bf16.mxu0 0
          %2617 = vmatmul.mubr.bf16.gmra.mxu0 %v2527
          %v2618 = vpop.f32.mrf.mxu0
          %v2619 = vadd.f32 0.0, %v2618
          %v2620 = vpop.f32.mrf.mxu0
          %v2621 = vpop.f32.mrf.mxu0
          %v2622 = vadd.f32 0.0, %v2621
          %v2623 = vpop.f32.mrf.mxu0
          %2624 = vmatprep.mubr.bf16.mxu0 0
          %2625 = vmatmul.mubr.bf16.gmra.mxu0 %v2530
          %v2626 = vpop.f32.mrf.mxu0
          %v2627 = vadd.f32 0.0, %v2626
          %v2628 = vpop.f32.mrf.mxu0
          %v2629 = vpop.f32.mrf.mxu0
          %v2630 = vadd.f32 0.0, %v2629
          %v2631 = vpop.f32.mrf.mxu0
          %2632 = vmatprep.mubr.bf16.mxu0 0
          %2633 = vmatmul.mubr.bf16.gmra.mxu0 %v2533
          %v2634 = vpop.f32.mrf.mxu0
          %v2635 = vadd.f32 0.0, %v2634
          %v2636 = vpop.f32.mrf.mxu0
          %v2637 = vpop.f32.mrf.mxu0
          %v2638 = vadd.f32 0.0, %v2637
          %v2639 = vpop.f32.mrf.mxu0
          %2640 = vmatprep.mubr.bf16.mxu0 0
          %2641 = vmatmul.mubr.bf16.gmra.mxu0 %v2536
          %v2642 = vpop.f32.mrf.mxu0
          %v2643 = vadd.f32 0.0, %v2642
          %v2644 = vpop.f32.mrf.mxu0
          %v2645 = vpop.f32.mrf.mxu0
          %v2646 = vadd.f32 0.0, %v2645
          %v2647 = vpop.f32.mrf.mxu0
          %2648 = vmatprep.mubr.bf16.mxu0 0
          %2649 = vmatmul.mubr.bf16.gmra.mxu0 %v2539
          %v2650 = vpop.f32.mrf.mxu0
          %v2651 = vadd.f32 0.0, %v2650
          %v2652 = vpop.f32.mrf.mxu0
          %v2653 = vpop.f32.mrf.mxu0
          %v2654 = vadd.f32 0.0, %v2653
          %v2655 = vpop.f32.mrf.mxu0
          %2656 = vmatprep.mubr.bf16.mxu0 0
          %2657 = vmatmul.mubr.bf16.gmra.mxu0 %v2542
          %v2658 = vpop.f32.mrf.mxu0
          %v2659 = vadd.f32 0.0, %v2658
          %v2660 = vpop.f32.mrf.mxu0
          %v2661 = vpop.f32.mrf.mxu0
          %v2662 = vadd.f32 0.0, %v2661
          %v2663 = vpop.f32.mrf.mxu0
          %2664 = vmatprep.mubr.bf16.mxu0 0
          %2665 = vmatmul.mubr.bf16.gmra.mxu0 %v2545
          %v2666 = vpop.f32.mrf.mxu0
          %v2667 = vadd.f32 0.0, %v2666
          %v2668 = vpop.f32.mrf.mxu0
          %v2669 = vpop.f32.mrf.mxu0
          %v2670 = vadd.f32 0.0, %v2669
          %v2671 = vpop.f32.mrf.mxu0
          %2672 = vmatprep.mubr.bf16.mxu0 0
          %2673 = vmatmul.mubr.bf16.gmra.mxu0 %v2548
          %v2674 = vpop.f32.mrf.mxu0
          %v2675 = vadd.f32 0.0, %v2674
          %v2676 = vpop.f32.mrf.mxu0
          %v2677 = vpop.f32.mrf.mxu0
          %v2678 = vadd.f32 0.0, %v2677
          %v2679 = vpop.f32.mrf.mxu0
          %2680 = vmatprep.mubr.bf16.mxu0 0
          %2681 = vmatmul.mubr.bf16.gmra.mxu0 %v2551
          %v2682 = vpop.f32.mrf.mxu0
          %v2683 = vadd.f32 0.0, %v2682
          %v2684 = vpop.f32.mrf.mxu0
          %v2685 = vpop.f32.mrf.mxu0
          %v2686 = vadd.f32 0.0, %v2685
          %v2687 = vpop.f32.mrf.mxu0
          %2688 = vmatprep.mubr.bf16.mxu0 0
          %2689 = vmatmul.mubr.bf16.gmra.mxu0 %v2554
          %v2690 = vpop.f32.mrf.mxu0
          %v2691 = vadd.f32 0.0, %v2690
          %v2692 = vpop.f32.mrf.mxu0
          %v2693 = vpop.f32.mrf.mxu0
          %v2694 = vadd.f32 0.0, %v2693
          %v2695 = vpop.f32.mrf.mxu0
          %2696 = vmatprep.mubr.bf16.mxu0 0
          %2697 = vmatmul.mubr.bf16.gmra.mxu0 %v2557
          %v2698 = vpop.f32.mrf.mxu0
          %v2699 = vadd.f32 0.0, %v2698
          %v2700 = vpop.f32.mrf.mxu0
          %v2701 = vpop.f32.mrf.mxu0
          %v2702 = vadd.f32 0.0, %v2701
          %v2703 = vpop.f32.mrf.mxu0
          %2704 = vmatprep.mubr.bf16.mxu0 0
          %2705 = vmatmul.mubr.bf16.gmra.mxu0 %v2560
          %v2706 = vpop.f32.mrf.mxu0
          %v2707 = vadd.f32 0.0, %v2706
          %v2708 = vpop.f32.mrf.mxu0
          %v2709 = vpop.f32.mrf.mxu0
          %v2710 = vadd.f32 0.0, %v2709
          %v2711 = vpop.f32.mrf.mxu0
          %2712 = vmatprep.mubr.bf16.mxu0 0
          %2713 = vmatmul.mubr.bf16.gmra.mxu0 %v2563
          %v2714 = vpop.f32.mrf.mxu0
          %v2715 = vadd.f32 0.0, %v2714
          %v2716 = vpop.f32.mrf.mxu0
          %v2717 = vpop.f32.mrf.mxu0
          %v2718 = vadd.f32 0.0, %v2717
          %v2719 = vpop.f32.mrf.mxu0
          %2720 = vmatprep.mubr.bf16.mxu0 0
          %2721 = vmatmul.mubr.bf16.gmra.mxu0 %v2566
          %v2722 = vpop.f32.mrf.mxu0
          %v2723 = vadd.f32 0.0, %v2722
          %v2724 = vpop.f32.mrf.mxu0
          %v2725 = vpop.f32.mrf.mxu0
          %v2726 = vadd.f32 0.0, %v2725
          %v2727 = vpop.f32.mrf.mxu0
          %2728 = vdwg.mxu0
          %v2729 = vadd.f32 %v2341, %v2603
          %v2730 = vadd.f32 %v2342, %v2606
          %v2731 = vadd.f32 %v2343, %v2611
          %v2732 = vadd.f32 %v2344, %v2614
          %v2733 = vadd.f32 %v2345, %v2619
          %v2734 = vadd.f32 %v2346, %v2622
          %v2735 = vadd.f32 %v2347, %v2627
          %v2736 = vadd.f32 %v2348, %v2630
          %v2737 = vadd.f32 %v2349, %v2635
          %v2738 = vadd.f32 %v2350, %v2638
          %v2739 = vadd.f32 %v2351, %v2643
          %v2740 = vadd.f32 %v2352, %v2646
          %v2741 = vadd.f32 %v2353, %v2651
          %v2742 = vadd.f32 %v2354, %v2654
          %v2743 = vadd.f32 %v2355, %v2659
          %v2744 = vadd.f32 %v2356, %v2662
          %v2745 = vadd.f32 %v2357, %v2667
          %v2746 = vadd.f32 %v2358, %v2670
          %v2747 = vadd.f32 %v2359, %v2675
          %v2748 = vadd.f32 %v2360, %v2678
          %v2749 = vadd.f32 %v2361, %v2683
          %v2750 = vadd.f32 %v2362, %v2686
          %v2751 = vadd.f32 %v2363, %v2691
          %v2752 = vadd.f32 %v2364, %v2694
          %v2753 = vadd.f32 %v2365, %v2699
          %v2754 = vadd.f32 %v2366, %v2702
          %v2755 = vadd.f32 %v2367, %v2707
          %v2756 = vadd.f32 %v2368, %v2710
          %v2757 = vadd.f32 %v2369, %v2715
          %v2758 = vadd.f32 %v2370, %v2718
          %v2759 = vadd.f32 %v2371, %v2723
          %v2760 = vadd.f32 %v2372, %v2726
          %v2761 = vld [vmem:[%s709] sm:$0xf]
          %v2762 = vld [vmem:[%s709 + $0x4] sm:$0xf]
          %v2763 = vld [vmem:[%s709 + $0x8] sm:$0x1]
          %v2764 = vld [vmem:[%s709 + $0xc] sm:$0xf]
          %v2765 = vld [vmem:[%s709 + $0x10] sm:$0xf]
          %v2766 = vld [vmem:[%s709 + $0x14] sm:$0x1]
          %v2767 = vld [vmem:[%s709 + $0x18] sm:$0xf]
          %v2768 = vld [vmem:[%s709 + $0x1c] sm:$0xf]
          %v2769 = vld [vmem:[%s709 + $0x20] sm:$0x1]
          %v2770 = vld [vmem:[%s709 + $0x24] sm:$0xf]
          %v2771 = vld [vmem:[%s709 + $0x28] sm:$0xf]
          %v2772 = vld [vmem:[%s709 + $0x2c] sm:$0x1]
          %v2773 = vld [vmem:[%s709 + $0x30] sm:$0xf]
          %v2774 = vld [vmem:[%s709 + $0x34] sm:$0xf]
          %v2775 = vld [vmem:[%s709 + $0x38] sm:$0x1]
          %v2776 = vld [vmem:[%s709 + $0x3c] sm:$0xf]
          %v2777 = vld [vmem:[%s709 + $0x40] sm:$0xf]
          %v2778 = vld [vmem:[%s709 + $0x44] sm:$0x1]
          %v2779 = vld [vmem:[%s709 + $0x48] sm:$0xf]
          %v2780 = vld [vmem:[%s709 + $0x4c] sm:$0xf]
          %v2781 = vld [vmem:[%s709 + $0x50] sm:$0x1]
          %v2782 = vld [vmem:[%s709 + $0x54] sm:$0xf]
          %v2783 = vld [vmem:[%s709 + $0x58] sm:$0xf]
          %v2784 = vld [vmem:[%s709 + $0x5c] sm:$0x1]
          %v2785 = vld [vmem:[%s709 + $0x60] sm:$0xf]
          %v2786 = vld [vmem:[%s709 + $0x64] sm:$0xf]
          %v2787 = vld [vmem:[%s709 + $0x68] sm:$0x1]
          %v2788 = vld [vmem:[%s709 + $0x6c] sm:$0xf]
          %v2789 = vld [vmem:[%s709 + $0x70] sm:$0xf]
          %v2790 = vld [vmem:[%s709 + $0x74] sm:$0x1]
          %v2791 = vld [vmem:[%s709 + $0x78] sm:$0xf]
          %v2792 = vld [vmem:[%s709 + $0x7c] sm:$0xf]
          %v2793 = vld [vmem:[%s709 + $0x80] sm:$0x1]
          %v2794 = vld [vmem:[%s709 + $0x84] sm:$0xf]
          %v2795 = vld [vmem:[%s709 + $0x88] sm:$0xf]
          %v2796 = vld [vmem:[%s709 + $0x8c] sm:$0x1]
          %v2797 = vld [vmem:[%s709 + $0x90] sm:$0xf]
          %v2798 = vld [vmem:[%s709 + $0x94] sm:$0xf]
          %v2799 = vld [vmem:[%s709 + $0x98] sm:$0x1]
          %v2800 = vld [vmem:[%s709 + $0x9c] sm:$0xf]
          %v2801 = vld [vmem:[%s709 + $0xa0] sm:$0xf]
          %v2802 = vld [vmem:[%s709 + $0xa4] sm:$0x1]
          %v2803 = vld [vmem:[%s709 + $0xa8] sm:$0xf]
          %v2804 = vld [vmem:[%s709 + $0xac] sm:$0xf]
          %v2805 = vld [vmem:[%s709 + $0xb0] sm:$0x1]
          %v2806 = vld [vmem:[%s709 + $0xb4] sm:$0xf]
          %v2807 = vld [vmem:[%s709 + $0xb8] sm:$0xf]
          %v2808 = vld [vmem:[%s709 + $0xbc] sm:$0x1]
          %v2810 = vshrl.u32 %v2761, 16
          %v2812 = vrot.slane %v2810, 4
          %v2813 = vshll.u32 %v2761, 16
          %v2815 = vrot.slane %v2813, 5
          %v2816 = vor.u32 %v2812, %v2815
          %v2817 = vrot.slane %v2816, 4
          %v2819 = vshll.u32 %v2762, 16
          %v2821 = vrot.slane %v2819, 5
          %v2822 = vsel %vm895, %v2817, %v2821
          %v2823 = vshrl.u32 %v2762, 16
          %v2825 = vrot.slane %v2823, 4
          %v2826 = vor.u32 %v2825, %v2821
          %v2827 = vrot.slane %v2826, 4
          %v2829 = vshll.u32 %v2763, 16
          %v2831 = vrot.slane %v2829, 5
          %v2832 = vsel %vm895, %v2827, %v2831
          %v2834 = vshrl.u32 %v2764, 16
          %v2836 = vrot.slane %v2834, 4
          %v2837 = vshll.u32 %v2764, 16
          %v2839 = vrot.slane %v2837, 5
          %v2840 = vor.u32 %v2836, %v2839
          %v2841 = vrot.slane %v2840, 4
          %v2843 = vshll.u32 %v2765, 16
          %v2845 = vrot.slane %v2843, 5
          %v2846 = vsel %vm895, %v2841, %v2845
          %v2847 = vshrl.u32 %v2765, 16
          %v2849 = vrot.slane %v2847, 4
          %v2850 = vor.u32 %v2849, %v2845
          %v2851 = vrot.slane %v2850, 4
          %v2853 = vshll.u32 %v2766, 16
          %v2855 = vrot.slane %v2853, 5
          %v2856 = vsel %vm895, %v2851, %v2855
          %v2858 = vshrl.u32 %v2767, 16
          %v2860 = vrot.slane %v2858, 4
          %v2861 = vshll.u32 %v2767, 16
          %v2863 = vrot.slane %v2861, 5
          %v2864 = vor.u32 %v2860, %v2863
          %v2865 = vrot.slane %v2864, 4
          %v2867 = vshll.u32 %v2768, 16
          %v2869 = vrot.slane %v2867, 5
          %v2870 = vsel %vm895, %v2865, %v2869
          %v2871 = vshrl.u32 %v2768, 16
          %v2873 = vrot.slane %v2871, 4
          %v2874 = vor.u32 %v2873, %v2869
          %v2875 = vrot.slane %v2874, 4
          %v2877 = vshll.u32 %v2769, 16
          %v2879 = vrot.slane %v2877, 5
          %v2880 = vsel %vm895, %v2875, %v2879
          %v2882 = vshrl.u32 %v2770, 16
          %v2884 = vrot.slane %v2882, 4
          %v2885 = vshll.u32 %v2770, 16
          %v2887 = vrot.slane %v2885, 5
          %v2888 = vor.u32 %v2884, %v2887
          %v2889 = vrot.slane %v2888, 4
          %v2891 = vshll.u32 %v2771, 16
          %v2893 = vrot.slane %v2891, 5
          %v2894 = vsel %vm895, %v2889, %v2893
          %v2895 = vshrl.u32 %v2771, 16
          %v2897 = vrot.slane %v2895, 4
          %v2898 = vor.u32 %v2897, %v2893
          %v2899 = vrot.slane %v2898, 4
          %v2901 = vshll.u32 %v2772, 16
          %v2903 = vrot.slane %v2901, 5
          %v2904 = vsel %vm895, %v2899, %v2903
          %v2906 = vshrl.u32 %v2773, 16
          %v2908 = vrot.slane %v2906, 4
          %v2909 = vshll.u32 %v2773, 16
          %v2911 = vrot.slane %v2909, 5
          %v2912 = vor.u32 %v2908, %v2911
          %v2913 = vrot.slane %v2912, 4
          %v2915 = vshll.u32 %v2774, 16
          %v2917 = vrot.slane %v2915, 5
          %v2918 = vsel %vm895, %v2913, %v2917
          %v2919 = vshrl.u32 %v2774, 16
          %v2921 = vrot.slane %v2919, 4
          %v2922 = vor.u32 %v2921, %v2917
          %v2923 = vrot.slane %v2922, 4
          %v2925 = vshll.u32 %v2775, 16
          %v2927 = vrot.slane %v2925, 5
          %v2928 = vsel %vm895, %v2923, %v2927
          %v2930 = vshrl.u32 %v2776, 16
          %v2932 = vrot.slane %v2930, 4
          %v2933 = vshll.u32 %v2776, 16
          %v2935 = vrot.slane %v2933, 5
          %v2936 = vor.u32 %v2932, %v2935
          %v2937 = vrot.slane %v2936, 4
          %v2939 = vshll.u32 %v2777, 16
          %v2941 = vrot.slane %v2939, 5
          %v2942 = vsel %vm895, %v2937, %v2941
          %v2943 = vshrl.u32 %v2777, 16
          %v2945 = vrot.slane %v2943, 4
          %v2946 = vor.u32 %v2945, %v2941
          %v2947 = vrot.slane %v2946, 4
          %v2949 = vshll.u32 %v2778, 16
          %v2951 = vrot.slane %v2949, 5
          %v2952 = vsel %vm895, %v2947, %v2951
          %v2954 = vshrl.u32 %v2779, 16
          %v2956 = vrot.slane %v2954, 4
          %v2957 = vshll.u32 %v2779, 16
          %v2959 = vrot.slane %v2957, 5
          %v2960 = vor.u32 %v2956, %v2959
          %v2961 = vrot.slane %v2960, 4
          %v2963 = vshll.u32 %v2780, 16
          %v2965 = vrot.slane %v2963, 5
          %v2966 = vsel %vm895, %v2961, %v2965
          %v2967 = vshrl.u32 %v2780, 16
          %v2969 = vrot.slane %v2967, 4
          %v2970 = vor.u32 %v2969, %v2965
          %v2971 = vrot.slane %v2970, 4
          %v2973 = vshll.u32 %v2781, 16
          %v2975 = vrot.slane %v2973, 5
          %v2976 = vsel %vm895, %v2971, %v2975
          %v2978 = vshrl.u32 %v2782, 16
          %v2980 = vrot.slane %v2978, 4
          %v2981 = vshll.u32 %v2782, 16
          %v2983 = vrot.slane %v2981, 5
          %v2984 = vor.u32 %v2980, %v2983
          %v2985 = vrot.slane %v2984, 4
          %v2987 = vshll.u32 %v2783, 16
          %v2989 = vrot.slane %v2987, 5
          %v2990 = vsel %vm895, %v2985, %v2989
          %v2991 = vshrl.u32 %v2783, 16
          %v2993 = vrot.slane %v2991, 4
          %v2994 = vor.u32 %v2993, %v2989
          %v2995 = vrot.slane %v2994, 4
          %v2997 = vshll.u32 %v2784, 16
          %v2999 = vrot.slane %v2997, 5
          %v3000 = vsel %vm895, %v2995, %v2999
          %v3002 = vshrl.u32 %v2785, 16
          %v3004 = vrot.slane %v3002, 4
          %v3005 = vshll.u32 %v2785, 16
          %v3007 = vrot.slane %v3005, 5
          %v3008 = vor.u32 %v3004, %v3007
          %v3009 = vrot.slane %v3008, 4
          %v3011 = vshll.u32 %v2786, 16
          %v3013 = vrot.slane %v3011, 5
          %v3014 = vsel %vm895, %v3009, %v3013
          %v3015 = vshrl.u32 %v2786, 16
          %v3017 = vrot.slane %v3015, 4
          %v3018 = vor.u32 %v3017, %v3013
          %v3019 = vrot.slane %v3018, 4
          %v3021 = vshll.u32 %v2787, 16
          %v3023 = vrot.slane %v3021, 5
          %v3024 = vsel %vm895, %v3019, %v3023
          %v3026 = vshrl.u32 %v2788, 16
          %v3028 = vrot.slane %v3026, 4
          %v3029 = vshll.u32 %v2788, 16
          %v3031 = vrot.slane %v3029, 5
          %v3032 = vor.u32 %v3028, %v3031
          %v3033 = vrot.slane %v3032, 4
          %v3035 = vshll.u32 %v2789, 16
          %v3037 = vrot.slane %v3035, 5
          %v3038 = vsel %vm895, %v3033, %v3037
          %v3039 = vshrl.u32 %v2789, 16
          %v3041 = vrot.slane %v3039, 4
          %v3042 = vor.u32 %v3041, %v3037
          %v3043 = vrot.slane %v3042, 4
          %v3045 = vshll.u32 %v2790, 16
          %v3047 = vrot.slane %v3045, 5
          %v3048 = vsel %vm895, %v3043, %v3047
          %v3050 = vshrl.u32 %v2791, 16
          %v3052 = vrot.slane %v3050, 4
          %v3053 = vshll.u32 %v2791, 16
          %v3055 = vrot.slane %v3053, 5
          %v3056 = vor.u32 %v3052, %v3055
          %v3057 = vrot.slane %v3056, 4
          %v3059 = vshll.u32 %v2792, 16
          %v3061 = vrot.slane %v3059, 5
          %v3062 = vsel %vm895, %v3057, %v3061
          %v3063 = vshrl.u32 %v2792, 16
          %v3065 = vrot.slane %v3063, 4
          %v3066 = vor.u32 %v3065, %v3061
          %v3067 = vrot.slane %v3066, 4
          %v3069 = vshll.u32 %v2793, 16
          %v3071 = vrot.slane %v3069, 5
          %v3072 = vsel %vm895, %v3067, %v3071
          %v3074 = vshrl.u32 %v2794, 16
          %v3076 = vrot.slane %v3074, 4
          %v3077 = vshll.u32 %v2794, 16
          %v3079 = vrot.slane %v3077, 5
          %v3080 = vor.u32 %v3076, %v3079
          %v3081 = vrot.slane %v3080, 4
          %v3083 = vshll.u32 %v2795, 16
          %v3085 = vrot.slane %v3083, 5
          %v3086 = vsel %vm895, %v3081, %v3085
          %v3087 = vshrl.u32 %v2795, 16
          %v3089 = vrot.slane %v3087, 4
          %v3090 = vor.u32 %v3089, %v3085
          %v3091 = vrot.slane %v3090, 4
          %v3093 = vshll.u32 %v2796, 16
          %v3095 = vrot.slane %v3093, 5
          %v3096 = vsel %vm895, %v3091, %v3095
          %v3098 = vshrl.u32 %v2797, 16
          %v3100 = vrot.slane %v3098, 4
          %v3101 = vshll.u32 %v2797, 16
          %v3103 = vrot.slane %v3101, 5
          %v3104 = vor.u32 %v3100, %v3103
          %v3105 = vrot.slane %v3104, 4
          %v3107 = vshll.u32 %v2798, 16
          %v3109 = vrot.slane %v3107, 5
          %v3110 = vsel %vm895, %v3105, %v3109
          %v3111 = vshrl.u32 %v2798, 16
          %v3113 = vrot.slane %v3111, 4
          %v3114 = vor.u32 %v3113, %v3109
          %v3115 = vrot.slane %v3114, 4
          %v3117 = vshll.u32 %v2799, 16
          %v3119 = vrot.slane %v3117, 5
          %v3120 = vsel %vm895, %v3115, %v3119
          %v3122 = vshrl.u32 %v2800, 16
          %v3124 = vrot.slane %v3122, 4
          %v3125 = vshll.u32 %v2800, 16
          %v3127 = vrot.slane %v3125, 5
          %v3128 = vor.u32 %v3124, %v3127
          %v3129 = vrot.slane %v3128, 4
          %v3131 = vshll.u32 %v2801, 16
          %v3133 = vrot.slane %v3131, 5
          %v3134 = vsel %vm895, %v3129, %v3133
          %v3135 = vshrl.u32 %v2801, 16
          %v3137 = vrot.slane %v3135, 4
          %v3138 = vor.u32 %v3137, %v3133
          %v3139 = vrot.slane %v3138, 4
          %v3141 = vshll.u32 %v2802, 16
          %v3143 = vrot.slane %v3141, 5
          %v3144 = vsel %vm895, %v3139, %v3143
          %v3146 = vshrl.u32 %v2803, 16
          %v3148 = vrot.slane %v3146, 4
          %v3149 = vshll.u32 %v2803, 16
          %v3151 = vrot.slane %v3149, 5
          %v3152 = vor.u32 %v3148, %v3151
          %v3153 = vrot.slane %v3152, 4
          %v3155 = vshll.u32 %v2804, 16
          %v3157 = vrot.slane %v3155, 5
          %v3158 = vsel %vm895, %v3153, %v3157
          %v3159 = vshrl.u32 %v2804, 16
          %v3161 = vrot.slane %v3159, 4
          %v3162 = vor.u32 %v3161, %v3157
          %v3163 = vrot.slane %v3162, 4
          %v3165 = vshll.u32 %v2805, 16
          %v3167 = vrot.slane %v3165, 5
          %v3168 = vsel %vm895, %v3163, %v3167
          %v3170 = vshrl.u32 %v2806, 16
          %v3172 = vrot.slane %v3170, 4
          %v3173 = vshll.u32 %v2806, 16
          %v3175 = vrot.slane %v3173, 5
          %v3176 = vor.u32 %v3172, %v3175
          %v3177 = vrot.slane %v3176, 4
          %v3179 = vshll.u32 %v2807, 16
          %v3181 = vrot.slane %v3179, 5
          %v3182 = vsel %vm895, %v3177, %v3181
          %v3183 = vshrl.u32 %v2807, 16
          %v3185 = vrot.slane %v3183, 4
          %v3186 = vor.u32 %v3185, %v3181
          %v3187 = vrot.slane %v3186, 4
          %v3189 = vshll.u32 %v2808, 16
          %v3191 = vrot.slane %v3189, 5
          %v3192 = vsel %vm895, %v3187, %v3191
          %s3193 = sadd.s32 32, %s866
          %s3194 = smul.addr %s3193, 4
          %s3195 = scalar_lea.vmem [#allocation3], %s3194
          %v3196 = vld [vmem:[%s3195] sm:$0xf]
          %v3197 = vld [vmem:[%s3195 + $0x4] sm:$0xf]
          %v3198 = vld [vmem:[%s3195 + $0x8] sm:$0xf]
          %v3199 = vld [vmem:[%s3195 + $0xc] sm:$0xf]
          %v3200 = vld [vmem:[%s3195 + $0x10] sm:$0xf]
          %v3201 = vld [vmem:[%s3195 + $0x14] sm:$0xf]
          %v3202 = vld [vmem:[%s3195 + $0x18] sm:$0xf]
          %v3203 = vld [vmem:[%s3195 + $0x1c] sm:$0xf]
          %v3204 = vunpack.c.l.b16 %v2822
          %v3205 = vunpack.c.l.b16 %v2832
          %v3206 = vunpack.c.l.b16 %v2846
          %v3207 = vunpack.c.l.b16 %v2856
          %v3208 = vunpack.c.l.b16 %v2870
          %v3209 = vunpack.c.l.b16 %v2880
          %v3210 = vunpack.c.l.b16 %v2894
          %v3211 = vunpack.c.l.b16 %v2904
          %v3212 = vunpack.c.l.b16 %v2918
          %v3213 = vunpack.c.l.b16 %v2928
          %v3214 = vunpack.c.l.b16 %v2942
          %v3215 = vunpack.c.l.b16 %v2952
          %v3216 = vunpack.c.l.b16 %v2966
          %v3217 = vunpack.c.l.b16 %v2976
          %v3218 = vunpack.c.l.b16 %v2990
          %v3219 = vunpack.c.l.b16 %v3000
          %v3220 = vunpack.c.l.b16 %v3014
          %v3221 = vunpack.c.l.b16 %v3024
          %v3222 = vunpack.c.l.b16 %v3038
          %v3223 = vunpack.c.l.b16 %v3048
          %v3224 = vunpack.c.l.b16 %v3062
          %v3225 = vunpack.c.l.b16 %v3072
          %v3226 = vunpack.c.l.b16 %v3086
          %v3227 = vunpack.c.l.b16 %v3096
          %v3228 = vunpack.c.l.b16 %v3110
          %v3229 = vunpack.c.l.b16 %v3120
          %v3230 = vunpack.c.l.b16 %v3134
          %v3231 = vunpack.c.l.b16 %v3144
          %v3232 = vunpack.c.l.b16 %v3158
          %v3233 = vunpack.c.l.b16 %v3168
          %v3234 = vunpack.c.l.b16 %v3182
          %v3235 = vunpack.c.l.b16 %v3192
          %v3236 = vpack.c.b16 %v3205, %v3204
          %v3237 = vpack.c.b16 %v3207, %v3206
          %v3238 = vpack.c.b16 %v3209, %v3208
          %v3239 = vpack.c.b16 %v3211, %v3210
          %v3240 = vpack.c.b16 %v3213, %v3212
          %v3241 = vpack.c.b16 %v3215, %v3214
          %v3242 = vpack.c.b16 %v3217, %v3216
          %v3243 = vpack.c.b16 %v3219, %v3218
          %v3244 = vpack.c.b16 %v3221, %v3220
          %v3245 = vpack.c.b16 %v3223, %v3222
          %v3246 = vpack.c.b16 %v3225, %v3224
          %v3247 = vpack.c.b16 %v3227, %v3226
          %v3248 = vpack.c.b16 %v3229, %v3228
          %v3249 = vpack.c.b16 %v3231, %v3230
          %v3250 = vpack.c.b16 %v3233, %v3232
          %v3251 = vpack.c.b16 %v3235, %v3234
          %v3260 = vunpack.c.l.b16 %v3196
          %v3261 = vunpack.c.l.b16 %v3197
          %v3262 = vunpack.c.l.b16 %v3198
          %v3263 = vunpack.c.l.b16 %v3199
          %v3264 = vunpack.c.l.b16 %v3200
          %v3265 = vunpack.c.l.b16 %v3201
          %v3266 = vunpack.c.l.b16 %v3202
          %v3267 = vunpack.c.l.b16 %v3203
          %v3268 = vpack.c.b16 %v3261, %v3260
          %v3269 = vpack.c.b16 %v3263, %v3262
          %v3270 = vpack.c.b16 %v3265, %v3264
          %v3271 = vpack.c.b16 %v3267, %v3266
          %v3277 = vsel %vm1363, %v3236, 0
          %v3280 = vsel %vm1363, %v3237, 0
          %v3283 = vsel %vm1363, %v3238, 0
          %v3286 = vsel %vm1363, %v3239, 0
          %v3289 = vsel %vm1363, %v3240, 0
          %v3292 = vsel %vm1363, %v3241, 0
          %v3295 = vsel %vm1363, %v3242, 0
          %v3298 = vsel %vm1363, %v3243, 0
          %v3301 = vsel %vm1363, %v3244, 0
          %v3304 = vsel %vm1363, %v3245, 0
          %v3307 = vsel %vm1363, %v3246, 0
          %v3310 = vsel %vm1363, %v3247, 0
          %v3313 = vsel %vm1363, %v3248, 0
          %v3316 = vsel %vm1363, %v3249, 0
          %v3319 = vsel %vm1363, %v3250, 0
          %v3322 = vsel %vm1363, %v3251, 0
          %3324 = vmatprep.subr.bf16.mxu0 0
          %3325 = vmatpush1.bf16.msra.mxu0 0
          %3326 = vmatprep.subr.bf16.mxu0 0
          %3327 = vmatpush1.bf16.msra.mxu0 0
          %3328 = vmatprep.subr.bf16.mxu0 0
          %3329 = vmatpush1.bf16.msra.mxu0 0
          %3330 = vmatprep.subr.bf16.mxu0 0
          %3331 = vmatpush1.bf16.msra.mxu0 0
          %3332 = vmatprep.subr.bf16.mxu0 0
          %3333 = vmatpush1.bf16.msra.mxu0 %v3271
          %3334 = vmatprep.subr.bf16.mxu0 0
          %3335 = vmatpush1.bf16.msra.mxu0 %v3270
          %3336 = vmatprep.subr.bf16.mxu0 0
          %3337 = vmatpush1.bf16.msra.mxu0 %v3269
          %3338 = vmatprep.subr.bf16.mxu0 0
          %3339 = vmatpush1.bf16.msra.mxu0 %v3268
          %3340 = vmatprep.subr.bf16.mxu0 0
          %3341 = vmatpush2.bf16.msra.mxu0 0
          %3342 = vmatprep.subr.bf16.mxu0 0
          %3343 = vmatpush2.bf16.msra.mxu0 0
          %3344 = vmatprep.subr.bf16.mxu0 0
          %3345 = vmatpush2.bf16.msra.mxu0 0
          %3346 = vmatprep.subr.bf16.mxu0 0
          %3347 = vmatpush2.bf16.msra.mxu0 0
          %3348 = vmatprep.subr.bf16.mxu0 0
          %3349 = vmatpush2.bf16.msra.mxu0 0
          %3350 = vmatprep.subr.bf16.mxu0 0
          %3351 = vmatpush2.bf16.msra.mxu0 0
          %3352 = vmatprep.subr.bf16.mxu0 0
          %3353 = vmatpush2.bf16.msra.mxu0 0
          %3354 = vmatprep.subr.bf16.mxu0 0
          %3355 = vmatpush2.bf16.msra.mxu0 0
          %3356 = vmatprep.mubr.bf16.mxu0 0
          %3357 = vmatmul.mubr.bf16.gmra.mxu0 %v3277
          %v3358 = vpop.f32.mrf.mxu0
          %v3359 = vadd.f32 0.0, %v3358
          %v3360 = vpop.f32.mrf.mxu0
          %v3361 = vpop.f32.mrf.mxu0
          %v3362 = vadd.f32 0.0, %v3361
          %v3363 = vpop.f32.mrf.mxu0
          %3364 = vmatprep.mubr.bf16.mxu0 0
          %3365 = vmatmul.mubr.bf16.gmra.mxu0 %v3280
          %v3366 = vpop.f32.mrf.mxu0
          %v3367 = vadd.f32 0.0, %v3366
          %v3368 = vpop.f32.mrf.mxu0
          %v3369 = vpop.f32.mrf.mxu0
          %v3370 = vadd.f32 0.0, %v3369
          %v3371 = vpop.f32.mrf.mxu0
          %3372 = vmatprep.mubr.bf16.mxu0 0
          %3373 = vmatmul.mubr.bf16.gmra.mxu0 %v3283
          %v3374 = vpop.f32.mrf.mxu0
          %v3375 = vadd.f32 0.0, %v3374
          %v3376 = vpop.f32.mrf.mxu0
          %v3377 = vpop.f32.mrf.mxu0
          %v3378 = vadd.f32 0.0, %v3377
          %v3379 = vpop.f32.mrf.mxu0
          %3380 = vmatprep.mubr.bf16.mxu0 0
          %3381 = vmatmul.mubr.bf16.gmra.mxu0 %v3286
          %v3382 = vpop.f32.mrf.mxu0
          %v3383 = vadd.f32 0.0, %v3382
          %v3384 = vpop.f32.mrf.mxu0
          %v3385 = vpop.f32.mrf.mxu0
          %v3386 = vadd.f32 0.0, %v3385
          %v3387 = vpop.f32.mrf.mxu0
          %3388 = vmatprep.mubr.bf16.mxu0 0
          %3389 = vmatmul.mubr.bf16.gmra.mxu0 %v3289
          %v3390 = vpop.f32.mrf.mxu0
          %v3391 = vadd.f32 0.0, %v3390
          %v3392 = vpop.f32.mrf.mxu0
          %v3393 = vpop.f32.mrf.mxu0
          %v3394 = vadd.f32 0.0, %v3393
          %v3395 = vpop.f32.mrf.mxu0
          %3396 = vmatprep.mubr.bf16.mxu0 0
          %3397 = vmatmul.mubr.bf16.gmra.mxu0 %v3292
          %v3398 = vpop.f32.mrf.mxu0
          %v3399 = vadd.f32 0.0, %v3398
          %v3400 = vpop.f32.mrf.mxu0
          %v3401 = vpop.f32.mrf.mxu0
          %v3402 = vadd.f32 0.0, %v3401
          %v3403 = vpop.f32.mrf.mxu0
          %3404 = vmatprep.mubr.bf16.mxu0 0
          %3405 = vmatmul.mubr.bf16.gmra.mxu0 %v3295
          %v3406 = vpop.f32.mrf.mxu0
          %v3407 = vadd.f32 0.0, %v3406
          %v3408 = vpop.f32.mrf.mxu0
          %v3409 = vpop.f32.mrf.mxu0
          %v3410 = vadd.f32 0.0, %v3409
          %v3411 = vpop.f32.mrf.mxu0
          %3412 = vmatprep.mubr.bf16.mxu0 0
          %3413 = vmatmul.mubr.bf16.gmra.mxu0 %v3298
          %v3414 = vpop.f32.mrf.mxu0
          %v3415 = vadd.f32 0.0, %v3414
          %v3416 = vpop.f32.mrf.mxu0
          %v3417 = vpop.f32.mrf.mxu0
          %v3418 = vadd.f32 0.0, %v3417
          %v3419 = vpop.f32.mrf.mxu0
          %3420 = vmatprep.mubr.bf16.mxu0 0
          %3421 = vmatmul.mubr.bf16.gmra.mxu0 %v3301
          %v3422 = vpop.f32.mrf.mxu0
          %v3423 = vadd.f32 0.0, %v3422
          %v3424 = vpop.f32.mrf.mxu0
          %v3425 = vpop.f32.mrf.mxu0
          %v3426 = vadd.f32 0.0, %v3425
          %v3427 = vpop.f32.mrf.mxu0
          %3428 = vmatprep.mubr.bf16.mxu0 0
          %3429 = vmatmul.mubr.bf16.gmra.mxu0 %v3304
          %v3430 = vpop.f32.mrf.mxu0
          %v3431 = vadd.f32 0.0, %v3430
          %v3432 = vpop.f32.mrf.mxu0
          %v3433 = vpop.f32.mrf.mxu0
          %v3434 = vadd.f32 0.0, %v3433
          %v3435 = vpop.f32.mrf.mxu0
          %3436 = vmatprep.mubr.bf16.mxu0 0
          %3437 = vmatmul.mubr.bf16.gmra.mxu0 %v3307
          %v3438 = vpop.f32.mrf.mxu0
          %v3439 = vadd.f32 0.0, %v3438
          %v3440 = vpop.f32.mrf.mxu0
          %v3441 = vpop.f32.mrf.mxu0
          %v3442 = vadd.f32 0.0, %v3441
          %v3443 = vpop.f32.mrf.mxu0
          %3444 = vmatprep.mubr.bf16.mxu0 0
          %3445 = vmatmul.mubr.bf16.gmra.mxu0 %v3310
          %v3446 = vpop.f32.mrf.mxu0
          %v3447 = vadd.f32 0.0, %v3446
          %v3448 = vpop.f32.mrf.mxu0
          %v3449 = vpop.f32.mrf.mxu0
          %v3450 = vadd.f32 0.0, %v3449
          %v3451 = vpop.f32.mrf.mxu0
          %3452 = vmatprep.mubr.bf16.mxu0 0
          %3453 = vmatmul.mubr.bf16.gmra.mxu0 %v3313
          %v3454 = vpop.f32.mrf.mxu0
          %v3455 = vadd.f32 0.0, %v3454
          %v3456 = vpop.f32.mrf.mxu0
          %v3457 = vpop.f32.mrf.mxu0
          %v3458 = vadd.f32 0.0, %v3457
          %v3459 = vpop.f32.mrf.mxu0
          %3460 = vmatprep.mubr.bf16.mxu0 0
          %3461 = vmatmul.mubr.bf16.gmra.mxu0 %v3316
          %v3462 = vpop.f32.mrf.mxu0
          %v3463 = vadd.f32 0.0, %v3462
          %v3464 = vpop.f32.mrf.mxu0
          %v3465 = vpop.f32.mrf.mxu0
          %v3466 = vadd.f32 0.0, %v3465
          %v3467 = vpop.f32.mrf.mxu0
          %3468 = vmatprep.mubr.bf16.mxu0 0
          %3469 = vmatmul.mubr.bf16.gmra.mxu0 %v3319
          %v3470 = vpop.f32.mrf.mxu0
          %v3471 = vadd.f32 0.0, %v3470
          %v3472 = vpop.f32.mrf.mxu0
          %v3473 = vpop.f32.mrf.mxu0
          %v3474 = vadd.f32 0.0, %v3473
          %v3475 = vpop.f32.mrf.mxu0
          %3476 = vmatprep.mubr.bf16.mxu0 0
          %3477 = vmatmul.mubr.bf16.gmra.mxu0 %v3322
          %v3478 = vpop.f32.mrf.mxu0
          %v3479 = vadd.f32 0.0, %v3478
          %v3480 = vpop.f32.mrf.mxu0
          %v3481 = vpop.f32.mrf.mxu0
          %v3482 = vadd.f32 0.0, %v3481
          %v3483 = vpop.f32.mrf.mxu0
          %3484 = vdwg.mxu0
          %v3485 = vadd.f32 %v2729, %v3359
          %v3486 = vadd.f32 %v2730, %v3362
          %v3487 = vadd.f32 %v2731, %v3367
          %v3488 = vadd.f32 %v2732, %v3370
          %v3489 = vadd.f32 %v2733, %v3375
          %v3490 = vadd.f32 %v2734, %v3378
          %v3491 = vadd.f32 %v2735, %v3383
          %v3492 = vadd.f32 %v2736, %v3386
          %v3493 = vadd.f32 %v2737, %v3391
          %v3494 = vadd.f32 %v2738, %v3394
          %v3495 = vadd.f32 %v2739, %v3399
          %v3496 = vadd.f32 %v2740, %v3402
          %v3497 = vadd.f32 %v2741, %v3407
          %v3498 = vadd.f32 %v2742, %v3410
          %v3499 = vadd.f32 %v2743, %v3415
          %v3500 = vadd.f32 %v2744, %v3418
          %v3501 = vadd.f32 %v2745, %v3423
          %v3502 = vadd.f32 %v2746, %v3426
          %v3503 = vadd.f32 %v2747, %v3431
          %v3504 = vadd.f32 %v2748, %v3434
          %v3505 = vadd.f32 %v2749, %v3439
          %v3506 = vadd.f32 %v2750, %v3442
          %v3507 = vadd.f32 %v2751, %v3447
          %v3508 = vadd.f32 %v2752, %v3450
          %v3509 = vadd.f32 %v2753, %v3455
          %v3510 = vadd.f32 %v2754, %v3458
          %v3511 = vadd.f32 %v2755, %v3463
          %v3512 = vadd.f32 %v2756, %v3466
          %v3513 = vadd.f32 %v2757, %v3471
          %v3514 = vadd.f32 %v2758, %v3474
          %v3515 = vadd.f32 %v2759, %v3479
          %v3516 = vadd.f32 %v2760, %v3482
          %v3517 = vld [vmem:[%s709] sm:$0xe]
          %v3518 = vld [vmem:[%s709 + $0xc] sm:$0xe]
          %v3519 = vld [vmem:[%s709 + $0x18] sm:$0xe]
          %v3520 = vld [vmem:[%s709 + $0x24] sm:$0xe]
          %v3521 = vld [vmem:[%s709 + $0x30] sm:$0xe]
          %v3522 = vld [vmem:[%s709 + $0x3c] sm:$0xe]
          %v3523 = vld [vmem:[%s709 + $0x48] sm:$0xe]
          %v3524 = vld [vmem:[%s709 + $0x54] sm:$0xe]
          %v3525 = vld [vmem:[%s709 + $0x60] sm:$0xe]
          %v3526 = vld [vmem:[%s709 + $0x6c] sm:$0xe]
          %v3527 = vld [vmem:[%s709 + $0x78] sm:$0xe]
          %v3528 = vld [vmem:[%s709 + $0x84] sm:$0xe]
          %v3529 = vld [vmem:[%s709 + $0x90] sm:$0xe]
          %v3530 = vld [vmem:[%s709 + $0x9c] sm:$0xe]
          %v3531 = vld [vmem:[%s709 + $0xa8] sm:$0xe]
          %v3532 = vld [vmem:[%s709 + $0xb4] sm:$0xe]
          %v3581 = vrot.slane %v3517, 5
          %v3582 = vrot.slane %v3581, 4
          %v3583 = vrot.slane %v2762, 5
          %v3584 = vsel %vm1936, %v3582, %v3583
          %v3585 = vrot.slane %v3583, 4
          %v3586 = vrot.slane %v2763, 5
          %v3587 = vsel %vm1936, %v3585, %v3586
          %v3588 = vrot.slane %v3518, 5
          %v3589 = vrot.slane %v3588, 4
          %v3590 = vrot.slane %v2765, 5
          %v3591 = vsel %vm1936, %v3589, %v3590
          %v3592 = vrot.slane %v3590, 4
          %v3593 = vrot.slane %v2766, 5
          %v3594 = vsel %vm1936, %v3592, %v3593
          %v3595 = vrot.slane %v3519, 5
          %v3596 = vrot.slane %v3595, 4
          %v3597 = vrot.slane %v2768, 5
          %v3598 = vsel %vm1936, %v3596, %v3597
          %v3599 = vrot.slane %v3597, 4
          %v3600 = vrot.slane %v2769, 5
          %v3601 = vsel %vm1936, %v3599, %v3600
          %v3602 = vrot.slane %v3520, 5
          %v3603 = vrot.slane %v3602, 4
          %v3604 = vrot.slane %v2771, 5
          %v3605 = vsel %vm1936, %v3603, %v3604
          %v3606 = vrot.slane %v3604, 4
          %v3607 = vrot.slane %v2772, 5
          %v3608 = vsel %vm1936, %v3606, %v3607
          %v3609 = vrot.slane %v3521, 5
          %v3610 = vrot.slane %v3609, 4
          %v3611 = vrot.slane %v2774, 5
          %v3612 = vsel %vm1936, %v3610, %v3611
          %v3613 = vrot.slane %v3611, 4
          %v3614 = vrot.slane %v2775, 5
          %v3615 = vsel %vm1936, %v3613, %v3614
          %v3616 = vrot.slane %v3522, 5
          %v3617 = vrot.slane %v3616, 4
          %v3618 = vrot.slane %v2777, 5
          %v3619 = vsel %vm1936, %v3617, %v3618
          %v3620 = vrot.slane %v3618, 4
          %v3621 = vrot.slane %v2778, 5
          %v3622 = vsel %vm1936, %v3620, %v3621
          %v3623 = vrot.slane %v3523, 5
          %v3624 = vrot.slane %v3623, 4
          %v3625 = vrot.slane %v2780, 5
          %v3626 = vsel %vm1936, %v3624, %v3625
          %v3627 = vrot.slane %v3625, 4
          %v3628 = vrot.slane %v2781, 5
          %v3629 = vsel %vm1936, %v3627, %v3628
          %v3630 = vrot.slane %v3524, 5
          %v3631 = vrot.slane %v3630, 4
          %v3632 = vrot.slane %v2783, 5
          %v3633 = vsel %vm1936, %v3631, %v3632
          %v3634 = vrot.slane %v3632, 4
          %v3635 = vrot.slane %v2784, 5
          %v3636 = vsel %vm1936, %v3634, %v3635
          %v3637 = vrot.slane %v3525, 5
          %v3638 = vrot.slane %v3637, 4
          %v3639 = vrot.slane %v2786, 5
          %v3640 = vsel %vm1936, %v3638, %v3639
          %v3641 = vrot.slane %v3639, 4
          %v3642 = vrot.slane %v2787, 5
          %v3643 = vsel %vm1936, %v3641, %v3642
          %v3644 = vrot.slane %v3526, 5
          %v3645 = vrot.slane %v3644, 4
          %v3646 = vrot.slane %v2789, 5
          %v3647 = vsel %vm1936, %v3645, %v3646
          %v3648 = vrot.slane %v3646, 4
          %v3649 = vrot.slane %v2790, 5
          %v3650 = vsel %vm1936, %v3648, %v3649
          %v3651 = vrot.slane %v3527, 5
          %v3652 = vrot.slane %v3651, 4
          %v3653 = vrot.slane %v2792, 5
          %v3654 = vsel %vm1936, %v3652, %v3653
          %v3655 = vrot.slane %v3653, 4
          %v3656 = vrot.slane %v2793, 5
          %v3657 = vsel %vm1936, %v3655, %v3656
          %v3658 = vrot.slane %v3528, 5
          %v3659 = vrot.slane %v3658, 4
          %v3660 = vrot.slane %v2795, 5
          %v3661 = vsel %vm1936, %v3659, %v3660
          %v3662 = vrot.slane %v3660, 4
          %v3663 = vrot.slane %v2796, 5
          %v3664 = vsel %vm1936, %v3662, %v3663
          %v3665 = vrot.slane %v3529, 5
          %v3666 = vrot.slane %v3665, 4
          %v3667 = vrot.slane %v2798, 5
          %v3668 = vsel %vm1936, %v3666, %v3667
          %v3669 = vrot.slane %v3667, 4
          %v3670 = vrot.slane %v2799, 5
          %v3671 = vsel %vm1936, %v3669, %v3670
          %v3672 = vrot.slane %v3530, 5
          %v3673 = vrot.slane %v3672, 4
          %v3674 = vrot.slane %v2801, 5
          %v3675 = vsel %vm1936, %v3673, %v3674
          %v3676 = vrot.slane %v3674, 4
          %v3677 = vrot.slane %v2802, 5
          %v3678 = vsel %vm1936, %v3676, %v3677
          %v3679 = vrot.slane %v3531, 5
          %v3680 = vrot.slane %v3679, 4
          %v3681 = vrot.slane %v2804, 5
          %v3682 = vsel %vm1936, %v3680, %v3681
          %v3683 = vrot.slane %v3681, 4
          %v3684 = vrot.slane %v2805, 5
          %v3685 = vsel %vm1936, %v3683, %v3684
          %v3686 = vrot.slane %v3532, 5
          %v3687 = vrot.slane %v3686, 4
          %v3688 = vrot.slane %v2807, 5
          %v3689 = vsel %vm1936, %v3687, %v3688
          %v3690 = vrot.slane %v3688, 4
          %v3691 = vrot.slane %v2808, 5
          %v3692 = vsel %vm1936, %v3690, %v3691
          %s3693 = sadd.s32 40, %s866
          %s3694 = smul.addr %s3693, 4
          %s3695 = scalar_lea.vmem [#allocation3], %s3694
          %v3696 = vld [vmem:[%s3695] sm:$0xf]
          %v3697 = vld [vmem:[%s3695 + $0x4] sm:$0xf]
          %v3698 = vld [vmem:[%s3695 + $0x8] sm:$0xf]
          %v3699 = vld [vmem:[%s3695 + $0xc] sm:$0xf]
          %v3700 = vld [vmem:[%s3695 + $0x10] sm:$0xf]
          %v3701 = vld [vmem:[%s3695 + $0x14] sm:$0xf]
          %v3702 = vld [vmem:[%s3695 + $0x18] sm:$0xf]
          %v3703 = vld [vmem:[%s3695 + $0x1c] sm:$0xf]
          %v3704 = vunpack.c.l.b16 %v3584
          %v3705 = vunpack.c.l.b16 %v3587
          %v3706 = vunpack.c.l.b16 %v3591
          %v3707 = vunpack.c.l.b16 %v3594
          %v3708 = vunpack.c.l.b16 %v3598
          %v3709 = vunpack.c.l.b16 %v3601
          %v3710 = vunpack.c.l.b16 %v3605
          %v3711 = vunpack.c.l.b16 %v3608
          %v3712 = vunpack.c.l.b16 %v3612
          %v3713 = vunpack.c.l.b16 %v3615
          %v3714 = vunpack.c.l.b16 %v3619
          %v3715 = vunpack.c.l.b16 %v3622
          %v3716 = vunpack.c.l.b16 %v3626
          %v3717 = vunpack.c.l.b16 %v3629
          %v3718 = vunpack.c.l.b16 %v3633
          %v3719 = vunpack.c.l.b16 %v3636
          %v3720 = vunpack.c.l.b16 %v3640
          %v3721 = vunpack.c.l.b16 %v3643
          %v3722 = vunpack.c.l.b16 %v3647
          %v3723 = vunpack.c.l.b16 %v3650
          %v3724 = vunpack.c.l.b16 %v3654
          %v3725 = vunpack.c.l.b16 %v3657
          %v3726 = vunpack.c.l.b16 %v3661
          %v3727 = vunpack.c.l.b16 %v3664
          %v3728 = vunpack.c.l.b16 %v3668
          %v3729 = vunpack.c.l.b16 %v3671
          %v3730 = vunpack.c.l.b16 %v3675
          %v3731 = vunpack.c.l.b16 %v3678
          %v3732 = vunpack.c.l.b16 %v3682
          %v3733 = vunpack.c.l.b16 %v3685
          %v3734 = vunpack.c.l.b16 %v3689
          %v3735 = vunpack.c.l.b16 %v3692
          %v3736 = vpack.c.b16 %v3705, %v3704
          %v3737 = vpack.c.b16 %v3707, %v3706
          %v3738 = vpack.c.b16 %v3709, %v3708
          %v3739 = vpack.c.b16 %v3711, %v3710
          %v3740 = vpack.c.b16 %v3713, %v3712
          %v3741 = vpack.c.b16 %v3715, %v3714
          %v3742 = vpack.c.b16 %v3717, %v3716
          %v3743 = vpack.c.b16 %v3719, %v3718
          %v3744 = vpack.c.b16 %v3721, %v3720
          %v3745 = vpack.c.b16 %v3723, %v3722
          %v3746 = vpack.c.b16 %v3725, %v3724
          %v3747 = vpack.c.b16 %v3727, %v3726
          %v3748 = vpack.c.b16 %v3729, %v3728
          %v3749 = vpack.c.b16 %v3731, %v3730
          %v3750 = vpack.c.b16 %v3733, %v3732
          %v3751 = vpack.c.b16 %v3735, %v3734
          %v3760 = vunpack.c.l.b16 %v3696
          %v3761 = vunpack.c.l.b16 %v3697
          %v3762 = vunpack.c.l.b16 %v3698
          %v3763 = vunpack.c.l.b16 %v3699
          %v3764 = vunpack.c.l.b16 %v3700
          %v3765 = vunpack.c.l.b16 %v3701
          %v3766 = vunpack.c.l.b16 %v3702
          %v3767 = vunpack.c.l.b16 %v3703
          %v3768 = vpack.c.b16 %v3761, %v3760
          %v3769 = vpack.c.b16 %v3763, %v3762
          %v3770 = vpack.c.b16 %v3765, %v3764
          %v3771 = vpack.c.b16 %v3767, %v3766
          %v3777 = vsel %vm1363, %v3736, 0
          %v3780 = vsel %vm1363, %v3737, 0
          %v3783 = vsel %vm1363, %v3738, 0
          %v3786 = vsel %vm1363, %v3739, 0
          %v3789 = vsel %vm1363, %v3740, 0
          %v3792 = vsel %vm1363, %v3741, 0
          %v3795 = vsel %vm1363, %v3742, 0
          %v3798 = vsel %vm1363, %v3743, 0
          %v3801 = vsel %vm1363, %v3744, 0
          %v3804 = vsel %vm1363, %v3745, 0
          %v3807 = vsel %vm1363, %v3746, 0
          %v3810 = vsel %vm1363, %v3747, 0
          %v3813 = vsel %vm1363, %v3748, 0
          %v3816 = vsel %vm1363, %v3749, 0
          %v3819 = vsel %vm1363, %v3750, 0
          %v3822 = vsel %vm1363, %v3751, 0
          %3824 = vmatprep.subr.bf16.mxu0 0
          %3825 = vmatpush1.bf16.msra.mxu0 0
          %3826 = vmatprep.subr.bf16.mxu0 0
          %3827 = vmatpush1.bf16.msra.mxu0 0
          %3828 = vmatprep.subr.bf16.mxu0 0
          %3829 = vmatpush1.bf16.msra.mxu0 0
          %3830 = vmatprep.subr.bf16.mxu0 0
          %3831 = vmatpush1.bf16.msra.mxu0 0
          %3832 = vmatprep.subr.bf16.mxu0 0
          %3833 = vmatpush1.bf16.msra.mxu0 %v3771
          %3834 = vmatprep.subr.bf16.mxu0 0
          %3835 = vmatpush1.bf16.msra.mxu0 %v3770
          %3836 = vmatprep.subr.bf16.mxu0 0
          %3837 = vmatpush1.bf16.msra.mxu0 %v3769
          %3838 = vmatprep.subr.bf16.mxu0 0
          %3839 = vmatpush1.bf16.msra.mxu0 %v3768
          %3840 = vmatprep.subr.bf16.mxu0 0
          %3841 = vmatpush2.bf16.msra.mxu0 0
          %3842 = vmatprep.subr.bf16.mxu0 0
          %3843 = vmatpush2.bf16.msra.mxu0 0
          %3844 = vmatprep.subr.bf16.mxu0 0
          %3845 = vmatpush2.bf16.msra.mxu0 0
          %3846 = vmatprep.subr.bf16.mxu0 0
          %3847 = vmatpush2.bf16.msra.mxu0 0
          %3848 = vmatprep.subr.bf16.mxu0 0
          %3849 = vmatpush2.bf16.msra.mxu0 0
          %3850 = vmatprep.subr.bf16.mxu0 0
          %3851 = vmatpush2.bf16.msra.mxu0 0
          %3852 = vmatprep.subr.bf16.mxu0 0
          %3853 = vmatpush2.bf16.msra.mxu0 0
          %3854 = vmatprep.subr.bf16.mxu0 0
          %3855 = vmatpush2.bf16.msra.mxu0 0
          %3856 = vmatprep.mubr.bf16.mxu0 0
          %3857 = vmatmul.mubr.bf16.gmra.mxu0 %v3777
          %v3858 = vpop.f32.mrf.mxu0
          %v3859 = vadd.f32 0.0, %v3858
          %v3860 = vpop.f32.mrf.mxu0
          %v3861 = vpop.f32.mrf.mxu0
          %v3862 = vadd.f32 0.0, %v3861
          %v3863 = vpop.f32.mrf.mxu0
          %3864 = vmatprep.mubr.bf16.mxu0 0
          %3865 = vmatmul.mubr.bf16.gmra.mxu0 %v3780
          %v3866 = vpop.f32.mrf.mxu0
          %v3867 = vadd.f32 0.0, %v3866
          %v3868 = vpop.f32.mrf.mxu0
          %v3869 = vpop.f32.mrf.mxu0
          %v3870 = vadd.f32 0.0, %v3869
          %v3871 = vpop.f32.mrf.mxu0
          %3872 = vmatprep.mubr.bf16.mxu0 0
          %3873 = vmatmul.mubr.bf16.gmra.mxu0 %v3783
          %v3874 = vpop.f32.mrf.mxu0
          %v3875 = vadd.f32 0.0, %v3874
          %v3876 = vpop.f32.mrf.mxu0
          %v3877 = vpop.f32.mrf.mxu0
          %v3878 = vadd.f32 0.0, %v3877
          %v3879 = vpop.f32.mrf.mxu0
          %3880 = vmatprep.mubr.bf16.mxu0 0
          %3881 = vmatmul.mubr.bf16.gmra.mxu0 %v3786
          %v3882 = vpop.f32.mrf.mxu0
          %v3883 = vadd.f32 0.0, %v3882
          %v3884 = vpop.f32.mrf.mxu0
          %v3885 = vpop.f32.mrf.mxu0
          %v3886 = vadd.f32 0.0, %v3885
          %v3887 = vpop.f32.mrf.mxu0
          %3888 = vmatprep.mubr.bf16.mxu0 0
          %3889 = vmatmul.mubr.bf16.gmra.mxu0 %v3789
          %v3890 = vpop.f32.mrf.mxu0
          %v3891 = vadd.f32 0.0, %v3890
          %v3892 = vpop.f32.mrf.mxu0
          %v3893 = vpop.f32.mrf.mxu0
          %v3894 = vadd.f32 0.0, %v3893
          %v3895 = vpop.f32.mrf.mxu0
          %3896 = vmatprep.mubr.bf16.mxu0 0
          %3897 = vmatmul.mubr.bf16.gmra.mxu0 %v3792
          %v3898 = vpop.f32.mrf.mxu0
          %v3899 = vadd.f32 0.0, %v3898
          %v3900 = vpop.f32.mrf.mxu0
          %v3901 = vpop.f32.mrf.mxu0
          %v3902 = vadd.f32 0.0, %v3901
          %v3903 = vpop.f32.mrf.mxu0
          %3904 = vmatprep.mubr.bf16.mxu0 0
          %3905 = vmatmul.mubr.bf16.gmra.mxu0 %v3795
          %v3906 = vpop.f32.mrf.mxu0
          %v3907 = vadd.f32 0.0, %v3906
          %v3908 = vpop.f32.mrf.mxu0
          %v3909 = vpop.f32.mrf.mxu0
          %v3910 = vadd.f32 0.0, %v3909
          %v3911 = vpop.f32.mrf.mxu0
          %3912 = vmatprep.mubr.bf16.mxu0 0
          %3913 = vmatmul.mubr.bf16.gmra.mxu0 %v3798
          %v3914 = vpop.f32.mrf.mxu0
          %v3915 = vadd.f32 0.0, %v3914
          %v3916 = vpop.f32.mrf.mxu0
          %v3917 = vpop.f32.mrf.mxu0
          %v3918 = vadd.f32 0.0, %v3917
          %v3919 = vpop.f32.mrf.mxu0
          %3920 = vmatprep.mubr.bf16.mxu0 0
          %3921 = vmatmul.mubr.bf16.gmra.mxu0 %v3801
          %v3922 = vpop.f32.mrf.mxu0
          %v3923 = vadd.f32 0.0, %v3922
          %v3924 = vpop.f32.mrf.mxu0
          %v3925 = vpop.f32.mrf.mxu0
          %v3926 = vadd.f32 0.0, %v3925
          %v3927 = vpop.f32.mrf.mxu0
          %3928 = vmatprep.mubr.bf16.mxu0 0
          %3929 = vmatmul.mubr.bf16.gmra.mxu0 %v3804
          %v3930 = vpop.f32.mrf.mxu0
          %v3931 = vadd.f32 0.0, %v3930
          %v3932 = vpop.f32.mrf.mxu0
          %v3933 = vpop.f32.mrf.mxu0
          %v3934 = vadd.f32 0.0, %v3933
          %v3935 = vpop.f32.mrf.mxu0
          %3936 = vmatprep.mubr.bf16.mxu0 0
          %3937 = vmatmul.mubr.bf16.gmra.mxu0 %v3807
          %v3938 = vpop.f32.mrf.mxu0
          %v3939 = vadd.f32 0.0, %v3938
          %v3940 = vpop.f32.mrf.mxu0
          %v3941 = vpop.f32.mrf.mxu0
          %v3942 = vadd.f32 0.0, %v3941
          %v3943 = vpop.f32.mrf.mxu0
          %3944 = vmatprep.mubr.bf16.mxu0 0
          %3945 = vmatmul.mubr.bf16.gmra.mxu0 %v3810
          %v3946 = vpop.f32.mrf.mxu0
          %v3947 = vadd.f32 0.0, %v3946
          %v3948 = vpop.f32.mrf.mxu0
          %v3949 = vpop.f32.mrf.mxu0
          %v3950 = vadd.f32 0.0, %v3949
          %v3951 = vpop.f32.mrf.mxu0
          %3952 = vmatprep.mubr.bf16.mxu0 0
          %3953 = vmatmul.mubr.bf16.gmra.mxu0 %v3813
          %v3954 = vpop.f32.mrf.mxu0
          %v3955 = vadd.f32 0.0, %v3954
          %v3956 = vpop.f32.mrf.mxu0
          %v3957 = vpop.f32.mrf.mxu0
          %v3958 = vadd.f32 0.0, %v3957
          %v3959 = vpop.f32.mrf.mxu0
          %3960 = vmatprep.mubr.bf16.mxu0 0
          %3961 = vmatmul.mubr.bf16.gmra.mxu0 %v3816
          %v3962 = vpop.f32.mrf.mxu0
          %v3963 = vadd.f32 0.0, %v3962
          %v3964 = vpop.f32.mrf.mxu0
          %v3965 = vpop.f32.mrf.mxu0
          %v3966 = vadd.f32 0.0, %v3965
          %v3967 = vpop.f32.mrf.mxu0
          %3968 = vmatprep.mubr.bf16.mxu0 0
          %3969 = vmatmul.mubr.bf16.gmra.mxu0 %v3819
          %v3970 = vpop.f32.mrf.mxu0
          %v3971 = vadd.f32 0.0, %v3970
          %v3972 = vpop.f32.mrf.mxu0
          %v3973 = vpop.f32.mrf.mxu0
          %v3974 = vadd.f32 0.0, %v3973
          %v3975 = vpop.f32.mrf.mxu0
          %3976 = vmatprep.mubr.bf16.mxu0 0
          %3977 = vmatmul.mubr.bf16.gmra.mxu0 %v3822
          %v3978 = vpop.f32.mrf.mxu0
          %v3979 = vadd.f32 0.0, %v3978
          %v3980 = vpop.f32.mrf.mxu0
          %v3981 = vpop.f32.mrf.mxu0
          %v3982 = vadd.f32 0.0, %v3981
          %v3983 = vpop.f32.mrf.mxu0
          %3984 = vdwg.mxu0
          %v3985 = vadd.f32 %v3485, %v3859
          %v3986 = vadd.f32 %v3486, %v3862
          %v3987 = vadd.f32 %v3487, %v3867
          %v3988 = vadd.f32 %v3488, %v3870
          %v3989 = vadd.f32 %v3489, %v3875
          %v3990 = vadd.f32 %v3490, %v3878
          %v3991 = vadd.f32 %v3491, %v3883
          %v3992 = vadd.f32 %v3492, %v3886
          %v3993 = vadd.f32 %v3493, %v3891
          %v3994 = vadd.f32 %v3494, %v3894
          %v3995 = vadd.f32 %v3495, %v3899
          %v3996 = vadd.f32 %v3496, %v3902
          %v3997 = vadd.f32 %v3497, %v3907
          %v3998 = vadd.f32 %v3498, %v3910
          %v3999 = vadd.f32 %v3499, %v3915
          %v4000 = vadd.f32 %v3500, %v3918
          %v4001 = vadd.f32 %v3501, %v3923
          %v4002 = vadd.f32 %v3502, %v3926
          %v4003 = vadd.f32 %v3503, %v3931
          %v4004 = vadd.f32 %v3504, %v3934
          %v4005 = vadd.f32 %v3505, %v3939
          %v4006 = vadd.f32 %v3506, %v3942
          %v4007 = vadd.f32 %v3507, %v3947
          %v4008 = vadd.f32 %v3508, %v3950
          %v4009 = vadd.f32 %v3509, %v3955
          %v4010 = vadd.f32 %v3510, %v3958
          %v4011 = vadd.f32 %v3511, %v3963
          %v4012 = vadd.f32 %v3512, %v3966
          %v4013 = vadd.f32 %v3513, %v3971
          %v4014 = vadd.f32 %v3514, %v3974
          %v4015 = vadd.f32 %v3515, %v3979
          %v4016 = vadd.f32 %v3516, %v3982
          %s4017 = scalar_lea.vmem [#allocation2], 24
          %v4018 = vld [vmem:[%s4017] sm:$0xf]
          %v4019 = vld [vmem:[%s4017 + $0x4] sm:$0xf]
          %v4020 = vld [vmem:[%s4017 + $0xc] sm:$0xf]
          %v4021 = vld [vmem:[%s4017 + $0x10] sm:$0xf]
          %v4022 = vld [vmem:[%s4017 + $0x18] sm:$0xf]
          %v4023 = vld [vmem:[%s4017 + $0x1c] sm:$0xf]
          %v4024 = vld [vmem:[%s4017 + $0x24] sm:$0xf]
          %v4025 = vld [vmem:[%s4017 + $0x28] sm:$0xf]
          %v4026 = vld [vmem:[%s4017 + $0x30] sm:$0xf]
          %v4027 = vld [vmem:[%s4017 + $0x34] sm:$0xf]
          %v4028 = vld [vmem:[%s4017 + $0x3c] sm:$0xf]
          %v4029 = vld [vmem:[%s4017 + $0x40] sm:$0xf]
          %v4030 = vld [vmem:[%s4017 + $0x48] sm:$0xf]
          %v4031 = vld [vmem:[%s4017 + $0x4c] sm:$0xf]
          %v4032 = vld [vmem:[%s4017 + $0x54] sm:$0xf]
          %v4033 = vld [vmem:[%s4017 + $0x58] sm:$0xf]
          %v4034 = vld [vmem:[%s4017 + $0x60] sm:$0xf]
          %v4035 = vld [vmem:[%s4017 + $0x64] sm:$0xf]
          %v4036 = vld [vmem:[%s4017 + $0x6c] sm:$0xf]
          %v4037 = vld [vmem:[%s4017 + $0x70] sm:$0xf]
          %v4038 = vld [vmem:[%s4017 + $0x78] sm:$0xf]
          %v4039 = vld [vmem:[%s4017 + $0x7c] sm:$0xf]
          %v4040 = vld [vmem:[%s4017 + $0x84] sm:$0xf]
          %v4041 = vld [vmem:[%s4017 + $0x88] sm:$0xf]
          %v4042 = vld [vmem:[%s4017 + $0x90] sm:$0xf]
          %v4043 = vld [vmem:[%s4017 + $0x94] sm:$0xf]
          %v4044 = vld [vmem:[%s4017 + $0x9c] sm:$0xf]
          %v4045 = vld [vmem:[%s4017 + $0xa0] sm:$0xf]
          %v4046 = vld [vmem:[%s4017 + $0xa8] sm:$0xf]
          %v4047 = vld [vmem:[%s4017 + $0xac] sm:$0xf]
          %v4048 = vld [vmem:[%s4017 + $0xb4] sm:$0xf]
          %v4049 = vld [vmem:[%s4017 + $0xb8] sm:$0xf]
          %s4050 = sadd.s32 48, %s866
          %s4051 = smul.addr %s4050, 4
          %s4052 = scalar_lea.vmem [#allocation3], %s4051
          %v4053 = vld [vmem:[%s4052] sm:$0xf]
          %v4054 = vld [vmem:[%s4052 + $0x4] sm:$0xf]
          %v4055 = vld [vmem:[%s4052 + $0x8] sm:$0xf]
          %v4056 = vld [vmem:[%s4052 + $0xc] sm:$0xf]
          %v4057 = vld [vmem:[%s4052 + $0x10] sm:$0xf]
          %v4058 = vld [vmem:[%s4052 + $0x14] sm:$0xf]
          %v4059 = vld [vmem:[%s4052 + $0x18] sm:$0xf]
          %v4060 = vld [vmem:[%s4052 + $0x1c] sm:$0xf]
          %v4093 = vunpack.c.l.b16 %v4018
          %v4094 = vunpack.c.l.b16 %v4019
          %v4095 = vunpack.c.l.b16 %v4020
          %v4096 = vunpack.c.l.b16 %v4021
          %v4097 = vunpack.c.l.b16 %v4022
          %v4098 = vunpack.c.l.b16 %v4023
          %v4099 = vunpack.c.l.b16 %v4024
          %v4100 = vunpack.c.l.b16 %v4025
          %v4101 = vunpack.c.l.b16 %v4026
          %v4102 = vunpack.c.l.b16 %v4027
          %v4103 = vunpack.c.l.b16 %v4028
          %v4104 = vunpack.c.l.b16 %v4029
          %v4105 = vunpack.c.l.b16 %v4030
          %v4106 = vunpack.c.l.b16 %v4031
          %v4107 = vunpack.c.l.b16 %v4032
          %v4108 = vunpack.c.l.b16 %v4033
          %v4109 = vunpack.c.l.b16 %v4034
          %v4110 = vunpack.c.l.b16 %v4035
          %v4111 = vunpack.c.l.b16 %v4036
          %v4112 = vunpack.c.l.b16 %v4037
          %v4113 = vunpack.c.l.b16 %v4038
          %v4114 = vunpack.c.l.b16 %v4039
          %v4115 = vunpack.c.l.b16 %v4040
          %v4116 = vunpack.c.l.b16 %v4041
          %v4117 = vunpack.c.l.b16 %v4042
          %v4118 = vunpack.c.l.b16 %v4043
          %v4119 = vunpack.c.l.b16 %v4044
          %v4120 = vunpack.c.l.b16 %v4045
          %v4121 = vunpack.c.l.b16 %v4046
          %v4122 = vunpack.c.l.b16 %v4047
          %v4123 = vunpack.c.l.b16 %v4048
          %v4124 = vunpack.c.l.b16 %v4049
          %v4125 = vpack.c.b16 %v4094, %v4093
          %v4126 = vpack.c.b16 %v4096, %v4095
          %v4127 = vpack.c.b16 %v4098, %v4097
          %v4128 = vpack.c.b16 %v4100, %v4099
          %v4129 = vpack.c.b16 %v4102, %v4101
          %v4130 = vpack.c.b16 %v4104, %v4103
          %v4131 = vpack.c.b16 %v4106, %v4105
          %v4132 = vpack.c.b16 %v4108, %v4107
          %v4133 = vpack.c.b16 %v4110, %v4109
          %v4134 = vpack.c.b16 %v4112, %v4111
          %v4135 = vpack.c.b16 %v4114, %v4113
          %v4136 = vpack.c.b16 %v4116, %v4115
          %v4137 = vpack.c.b16 %v4118, %v4117
          %v4138 = vpack.c.b16 %v4120, %v4119
          %v4139 = vpack.c.b16 %v4122, %v4121
          %v4140 = vpack.c.b16 %v4124, %v4123
          %v4149 = vunpack.c.l.b16 %v4053
          %v4150 = vunpack.c.l.b16 %v4054
          %v4151 = vunpack.c.l.b16 %v4055
          %v4152 = vunpack.c.l.b16 %v4056
          %v4153 = vunpack.c.l.b16 %v4057
          %v4154 = vunpack.c.l.b16 %v4058
          %v4155 = vunpack.c.l.b16 %v4059
          %v4156 = vunpack.c.l.b16 %v4060
          %v4157 = vpack.c.b16 %v4150, %v4149
          %v4158 = vpack.c.b16 %v4152, %v4151
          %v4159 = vpack.c.b16 %v4154, %v4153
          %v4160 = vpack.c.b16 %v4156, %v4155
          %v4166 = vsel %vm1363, %v4125, 0
          %v4169 = vsel %vm1363, %v4126, 0
          %v4172 = vsel %vm1363, %v4127, 0
          %v4175 = vsel %vm1363, %v4128, 0
          %v4178 = vsel %vm1363, %v4129, 0
          %v4181 = vsel %vm1363, %v4130, 0
          %v4184 = vsel %vm1363, %v4131, 0
          %v4187 = vsel %vm1363, %v4132, 0
          %v4190 = vsel %vm1363, %v4133, 0
          %v4193 = vsel %vm1363, %v4134, 0
          %v4196 = vsel %vm1363, %v4135, 0
          %v4199 = vsel %vm1363, %v4136, 0
          %v4202 = vsel %vm1363, %v4137, 0
          %v4205 = vsel %vm1363, %v4138, 0
          %v4208 = vsel %vm1363, %v4139, 0
          %v4211 = vsel %vm1363, %v4140, 0
          %4213 = vmatprep.subr.bf16.mxu0 0
          %4214 = vmatpush1.bf16.msra.mxu0 0
          %4215 = vmatprep.subr.bf16.mxu0 0
          %4216 = vmatpush1.bf16.msra.mxu0 0
          %4217 = vmatprep.subr.bf16.mxu0 0
          %4218 = vmatpush1.bf16.msra.mxu0 0
          %4219 = vmatprep.subr.bf16.mxu0 0
          %4220 = vmatpush1.bf16.msra.mxu0 0
          %4221 = vmatprep.subr.bf16.mxu0 0
          %4222 = vmatpush1.bf16.msra.mxu0 %v4160
          %4223 = vmatprep.subr.bf16.mxu0 0
          %4224 = vmatpush1.bf16.msra.mxu0 %v4159
          %4225 = vmatprep.subr.bf16.mxu0 0
          %4226 = vmatpush1.bf16.msra.mxu0 %v4158
          %4227 = vmatprep.subr.bf16.mxu0 0
          %4228 = vmatpush1.bf16.msra.mxu0 %v4157
          %4229 = vmatprep.subr.bf16.mxu0 0
          %4230 = vmatpush2.bf16.msra.mxu0 0
          %4231 = vmatprep.subr.bf16.mxu0 0
          %4232 = vmatpush2.bf16.msra.mxu0 0
          %4233 = vmatprep.subr.bf16.mxu0 0
          %4234 = vmatpush2.bf16.msra.mxu0 0
          %4235 = vmatprep.subr.bf16.mxu0 0
          %4236 = vmatpush2.bf16.msra.mxu0 0
          %4237 = vmatprep.subr.bf16.mxu0 0
          %4238 = vmatpush2.bf16.msra.mxu0 0
          %4239 = vmatprep.subr.bf16.mxu0 0
          %4240 = vmatpush2.bf16.msra.mxu0 0
          %4241 = vmatprep.subr.bf16.mxu0 0
          %4242 = vmatpush2.bf16.msra.mxu0 0
          %4243 = vmatprep.subr.bf16.mxu0 0
          %4244 = vmatpush2.bf16.msra.mxu0 0
          %4245 = vmatprep.mubr.bf16.mxu0 0
          %4246 = vmatmul.mubr.bf16.gmra.mxu0 %v4166
          %v4247 = vpop.f32.mrf.mxu0
          %v4248 = vadd.f32 0.0, %v4247
          %v4249 = vpop.f32.mrf.mxu0
          %v4250 = vpop.f32.mrf.mxu0
          %v4251 = vadd.f32 0.0, %v4250
          %v4252 = vpop.f32.mrf.mxu0
          %4253 = vmatprep.mubr.bf16.mxu0 0
          %4254 = vmatmul.mubr.bf16.gmra.mxu0 %v4169
          %v4255 = vpop.f32.mrf.mxu0
          %v4256 = vadd.f32 0.0, %v4255
          %v4257 = vpop.f32.mrf.mxu0
          %v4258 = vpop.f32.mrf.mxu0
          %v4259 = vadd.f32 0.0, %v4258
          %v4260 = vpop.f32.mrf.mxu0
          %4261 = vmatprep.mubr.bf16.mxu0 0
          %4262 = vmatmul.mubr.bf16.gmra.mxu0 %v4172
          %v4263 = vpop.f32.mrf.mxu0
          %v4264 = vadd.f32 0.0, %v4263
          %v4265 = vpop.f32.mrf.mxu0
          %v4266 = vpop.f32.mrf.mxu0
          %v4267 = vadd.f32 0.0, %v4266
          %v4268 = vpop.f32.mrf.mxu0
          %4269 = vmatprep.mubr.bf16.mxu0 0
          %4270 = vmatmul.mubr.bf16.gmra.mxu0 %v4175
          %v4271 = vpop.f32.mrf.mxu0
          %v4272 = vadd.f32 0.0, %v4271
          %v4273 = vpop.f32.mrf.mxu0
          %v4274 = vpop.f32.mrf.mxu0
          %v4275 = vadd.f32 0.0, %v4274
          %v4276 = vpop.f32.mrf.mxu0
          %4277 = vmatprep.mubr.bf16.mxu0 0
          %4278 = vmatmul.mubr.bf16.gmra.mxu0 %v4178
          %v4279 = vpop.f32.mrf.mxu0
          %v4280 = vadd.f32 0.0, %v4279
          %v4281 = vpop.f32.mrf.mxu0
          %v4282 = vpop.f32.mrf.mxu0
          %v4283 = vadd.f32 0.0, %v4282
          %v4284 = vpop.f32.mrf.mxu0
          %4285 = vmatprep.mubr.bf16.mxu0 0
          %4286 = vmatmul.mubr.bf16.gmra.mxu0 %v4181
          %v4287 = vpop.f32.mrf.mxu0
          %v4288 = vadd.f32 0.0, %v4287
          %v4289 = vpop.f32.mrf.mxu0
          %v4290 = vpop.f32.mrf.mxu0
          %v4291 = vadd.f32 0.0, %v4290
          %v4292 = vpop.f32.mrf.mxu0
          %4293 = vmatprep.mubr.bf16.mxu0 0
          %4294 = vmatmul.mubr.bf16.gmra.mxu0 %v4184
          %v4295 = vpop.f32.mrf.mxu0
          %v4296 = vadd.f32 0.0, %v4295
          %v4297 = vpop.f32.mrf.mxu0
          %v4298 = vpop.f32.mrf.mxu0
          %v4299 = vadd.f32 0.0, %v4298
          %v4300 = vpop.f32.mrf.mxu0
          %4301 = vmatprep.mubr.bf16.mxu0 0
          %4302 = vmatmul.mubr.bf16.gmra.mxu0 %v4187
          %v4303 = vpop.f32.mrf.mxu0
          %v4304 = vadd.f32 0.0, %v4303
          %v4305 = vpop.f32.mrf.mxu0
          %v4306 = vpop.f32.mrf.mxu0
          %v4307 = vadd.f32 0.0, %v4306
          %v4308 = vpop.f32.mrf.mxu0
          %4309 = vmatprep.mubr.bf16.mxu0 0
          %4310 = vmatmul.mubr.bf16.gmra.mxu0 %v4190
          %v4311 = vpop.f32.mrf.mxu0
          %v4312 = vadd.f32 0.0, %v4311
          %v4313 = vpop.f32.mrf.mxu0
          %v4314 = vpop.f32.mrf.mxu0
          %v4315 = vadd.f32 0.0, %v4314
          %v4316 = vpop.f32.mrf.mxu0
          %4317 = vmatprep.mubr.bf16.mxu0 0
          %4318 = vmatmul.mubr.bf16.gmra.mxu0 %v4193
          %v4319 = vpop.f32.mrf.mxu0
          %v4320 = vadd.f32 0.0, %v4319
          %v4321 = vpop.f32.mrf.mxu0
          %v4322 = vpop.f32.mrf.mxu0
          %v4323 = vadd.f32 0.0, %v4322
          %v4324 = vpop.f32.mrf.mxu0
          %4325 = vmatprep.mubr.bf16.mxu0 0
          %4326 = vmatmul.mubr.bf16.gmra.mxu0 %v4196
          %v4327 = vpop.f32.mrf.mxu0
          %v4328 = vadd.f32 0.0, %v4327
          %v4329 = vpop.f32.mrf.mxu0
          %v4330 = vpop.f32.mrf.mxu0
          %v4331 = vadd.f32 0.0, %v4330
          %v4332 = vpop.f32.mrf.mxu0
          %4333 = vmatprep.mubr.bf16.mxu0 0
          %4334 = vmatmul.mubr.bf16.gmra.mxu0 %v4199
          %v4335 = vpop.f32.mrf.mxu0
          %v4336 = vadd.f32 0.0, %v4335
          %v4337 = vpop.f32.mrf.mxu0
          %v4338 = vpop.f32.mrf.mxu0
          %v4339 = vadd.f32 0.0, %v4338
          %v4340 = vpop.f32.mrf.mxu0
          %4341 = vmatprep.mubr.bf16.mxu0 0
          %4342 = vmatmul.mubr.bf16.gmra.mxu0 %v4202
          %v4343 = vpop.f32.mrf.mxu0
          %v4344 = vadd.f32 0.0, %v4343
          %v4345 = vpop.f32.mrf.mxu0
          %v4346 = vpop.f32.mrf.mxu0
          %v4347 = vadd.f32 0.0, %v4346
          %v4348 = vpop.f32.mrf.mxu0
          %4349 = vmatprep.mubr.bf16.mxu0 0
          %4350 = vmatmul.mubr.bf16.gmra.mxu0 %v4205
          %v4351 = vpop.f32.mrf.mxu0
          %v4352 = vadd.f32 0.0, %v4351
          %v4353 = vpop.f32.mrf.mxu0
          %v4354 = vpop.f32.mrf.mxu0
          %v4355 = vadd.f32 0.0, %v4354
          %v4356 = vpop.f32.mrf.mxu0
          %4357 = vmatprep.mubr.bf16.mxu0 0
          %4358 = vmatmul.mubr.bf16.gmra.mxu0 %v4208
          %v4359 = vpop.f32.mrf.mxu0
          %v4360 = vadd.f32 0.0, %v4359
          %v4361 = vpop.f32.mrf.mxu0
          %v4362 = vpop.f32.mrf.mxu0
          %v4363 = vadd.f32 0.0, %v4362
          %v4364 = vpop.f32.mrf.mxu0
          %4365 = vmatprep.mubr.bf16.mxu0 0
          %4366 = vmatmul.mubr.bf16.gmra.mxu0 %v4211
          %v4367 = vpop.f32.mrf.mxu0
          %v4368 = vadd.f32 0.0, %v4367
          %v4369 = vpop.f32.mrf.mxu0
          %v4370 = vpop.f32.mrf.mxu0
          %v4371 = vadd.f32 0.0, %v4370
          %v4372 = vpop.f32.mrf.mxu0
          %4373 = vdwg.mxu0
          %v4374 = vadd.f32 %v3985, %v4248
          %v4375 = vadd.f32 %v3986, %v4251
          %v4376 = vadd.f32 %v3987, %v4256
          %v4377 = vadd.f32 %v3988, %v4259
          %v4378 = vadd.f32 %v3989, %v4264
          %v4379 = vadd.f32 %v3990, %v4267
          %v4380 = vadd.f32 %v3991, %v4272
          %v4381 = vadd.f32 %v3992, %v4275
          %v4382 = vadd.f32 %v3993, %v4280
          %v4383 = vadd.f32 %v3994, %v4283
          %v4384 = vadd.f32 %v3995, %v4288
          %v4385 = vadd.f32 %v3996, %v4291
          %v4386 = vadd.f32 %v3997, %v4296
          %v4387 = vadd.f32 %v3998, %v4299
          %v4388 = vadd.f32 %v3999, %v4304
          %v4389 = vadd.f32 %v4000, %v4307
          %v4390 = vadd.f32 %v4001, %v4312
          %v4391 = vadd.f32 %v4002, %v4315
          %v4392 = vadd.f32 %v4003, %v4320
          %v4393 = vadd.f32 %v4004, %v4323
          %v4394 = vadd.f32 %v4005, %v4328
          %v4395 = vadd.f32 %v4006, %v4331
          %v4396 = vadd.f32 %v4007, %v4336
          %v4397 = vadd.f32 %v4008, %v4339
          %v4398 = vadd.f32 %v4009, %v4344
          %v4399 = vadd.f32 %v4010, %v4347
          %v4400 = vadd.f32 %v4011, %v4352
          %v4401 = vadd.f32 %v4012, %v4355
          %v4402 = vadd.f32 %v4013, %v4360
          %v4403 = vadd.f32 %v4014, %v4363
          %v4404 = vadd.f32 %v4015, %v4368
          %v4405 = vadd.f32 %v4016, %v4371
          %v4406 = vld [vmem:[%s4017] sm:$0xf]
          %v4407 = vld [vmem:[%s4017 + $0x4] sm:$0xf]
          %v4408 = vld [vmem:[%s4017 + $0x8] sm:$0x1]
          %v4409 = vld [vmem:[%s4017 + $0xc] sm:$0xf]
          %v4410 = vld [vmem:[%s4017 + $0x10] sm:$0xf]
          %v4411 = vld [vmem:[%s4017 + $0x14] sm:$0x1]
          %v4412 = vld [vmem:[%s4017 + $0x18] sm:$0xf]
          %v4413 = vld [vmem:[%s4017 + $0x1c] sm:$0xf]
          %v4414 = vld [vmem:[%s4017 + $0x20] sm:$0x1]
          %v4415 = vld [vmem:[%s4017 + $0x24] sm:$0xf]
          %v4416 = vld [vmem:[%s4017 + $0x28] sm:$0xf]
          %v4417 = vld [vmem:[%s4017 + $0x2c] sm:$0x1]
          %v4418 = vld [vmem:[%s4017 + $0x30] sm:$0xf]
          %v4419 = vld [vmem:[%s4017 + $0x34] sm:$0xf]
          %v4420 = vld [vmem:[%s4017 + $0x38] sm:$0x1]
          %v4421 = vld [vmem:[%s4017 + $0x3c] sm:$0xf]
          %v4422 = vld [vmem:[%s4017 + $0x40] sm:$0xf]
          %v4423 = vld [vmem:[%s4017 + $0x44] sm:$0x1]
          %v4424 = vld [vmem:[%s4017 + $0x48] sm:$0xf]
          %v4425 = vld [vmem:[%s4017 + $0x4c] sm:$0xf]
          %v4426 = vld [vmem:[%s4017 + $0x50] sm:$0x1]
          %v4427 = vld [vmem:[%s4017 + $0x54] sm:$0xf]
          %v4428 = vld [vmem:[%s4017 + $0x58] sm:$0xf]
          %v4429 = vld [vmem:[%s4017 + $0x5c] sm:$0x1]
          %v4430 = vld [vmem:[%s4017 + $0x60] sm:$0xf]
          %v4431 = vld [vmem:[%s4017 + $0x64] sm:$0xf]
          %v4432 = vld [vmem:[%s4017 + $0x68] sm:$0x1]
          %v4433 = vld [vmem:[%s4017 + $0x6c] sm:$0xf]
          %v4434 = vld [vmem:[%s4017 + $0x70] sm:$0xf]
          %v4435 = vld [vmem:[%s4017 + $0x74] sm:$0x1]
          %v4436 = vld [vmem:[%s4017 + $0x78] sm:$0xf]
          %v4437 = vld [vmem:[%s4017 + $0x7c] sm:$0xf]
          %v4438 = vld [vmem:[%s4017 + $0x80] sm:$0x1]
          %v4439 = vld [vmem:[%s4017 + $0x84] sm:$0xf]
          %v4440 = vld [vmem:[%s4017 + $0x88] sm:$0xf]
          %v4441 = vld [vmem:[%s4017 + $0x8c] sm:$0x1]
          %v4442 = vld [vmem:[%s4017 + $0x90] sm:$0xf]
          %v4443 = vld [vmem:[%s4017 + $0x94] sm:$0xf]
          %v4444 = vld [vmem:[%s4017 + $0x98] sm:$0x1]
          %v4445 = vld [vmem:[%s4017 + $0x9c] sm:$0xf]
          %v4446 = vld [vmem:[%s4017 + $0xa0] sm:$0xf]
          %v4447 = vld [vmem:[%s4017 + $0xa4] sm:$0x1]
          %v4448 = vld [vmem:[%s4017 + $0xa8] sm:$0xf]
          %v4449 = vld [vmem:[%s4017 + $0xac] sm:$0xf]
          %v4450 = vld [vmem:[%s4017 + $0xb0] sm:$0x1]
          %v4451 = vld [vmem:[%s4017 + $0xb4] sm:$0xf]
          %v4452 = vld [vmem:[%s4017 + $0xb8] sm:$0xf]
          %v4453 = vld [vmem:[%s4017 + $0xbc] sm:$0x1]
          %v4455 = vshrl.u32 %v4406, 16
          %v4457 = vrot.slane %v4455, 4
          %v4458 = vshll.u32 %v4406, 16
          %v4460 = vrot.slane %v4458, 5
          %v4461 = vor.u32 %v4457, %v4460
          %v4462 = vrot.slane %v4461, 4
          %v4464 = vshll.u32 %v4407, 16
          %v4466 = vrot.slane %v4464, 5
          %v4467 = vsel %vm895, %v4462, %v4466
          %v4468 = vshrl.u32 %v4407, 16
          %v4470 = vrot.slane %v4468, 4
          %v4471 = vor.u32 %v4470, %v4466
          %v4472 = vrot.slane %v4471, 4
          %v4474 = vshll.u32 %v4408, 16
          %v4476 = vrot.slane %v4474, 5
          %v4477 = vsel %vm895, %v4472, %v4476
          %v4479 = vshrl.u32 %v4409, 16
          %v4481 = vrot.slane %v4479, 4
          %v4482 = vshll.u32 %v4409, 16
          %v4484 = vrot.slane %v4482, 5
          %v4485 = vor.u32 %v4481, %v4484
          %v4486 = vrot.slane %v4485, 4
          %v4488 = vshll.u32 %v4410, 16
          %v4490 = vrot.slane %v4488, 5
          %v4491 = vsel %vm895, %v4486, %v4490
          %v4492 = vshrl.u32 %v4410, 16
          %v4494 = vrot.slane %v4492, 4
          %v4495 = vor.u32 %v4494, %v4490
          %v4496 = vrot.slane %v4495, 4
          %v4498 = vshll.u32 %v4411, 16
          %v4500 = vrot.slane %v4498, 5
          %v4501 = vsel %vm895, %v4496, %v4500
          %v4503 = vshrl.u32 %v4412, 16
          %v4505 = vrot.slane %v4503, 4
          %v4506 = vshll.u32 %v4412, 16
          %v4508 = vrot.slane %v4506, 5
          %v4509 = vor.u32 %v4505, %v4508
          %v4510 = vrot.slane %v4509, 4
          %v4512 = vshll.u32 %v4413, 16
          %v4514 = vrot.slane %v4512, 5
          %v4515 = vsel %vm895, %v4510, %v4514
          %v4516 = vshrl.u32 %v4413, 16
          %v4518 = vrot.slane %v4516, 4
          %v4519 = vor.u32 %v4518, %v4514
          %v4520 = vrot.slane %v4519, 4
          %v4522 = vshll.u32 %v4414, 16
          %v4524 = vrot.slane %v4522, 5
          %v4525 = vsel %vm895, %v4520, %v4524
          %v4527 = vshrl.u32 %v4415, 16
          %v4529 = vrot.slane %v4527, 4
          %v4530 = vshll.u32 %v4415, 16
          %v4532 = vrot.slane %v4530, 5
          %v4533 = vor.u32 %v4529, %v4532
          %v4534 = vrot.slane %v4533, 4
          %v4536 = vshll.u32 %v4416, 16
          %v4538 = vrot.slane %v4536, 5
          %v4539 = vsel %vm895, %v4534, %v4538
          %v4540 = vshrl.u32 %v4416, 16
          %v4542 = vrot.slane %v4540, 4
          %v4543 = vor.u32 %v4542, %v4538
          %v4544 = vrot.slane %v4543, 4
          %v4546 = vshll.u32 %v4417, 16
          %v4548 = vrot.slane %v4546, 5
          %v4549 = vsel %vm895, %v4544, %v4548
          %v4551 = vshrl.u32 %v4418, 16
          %v4553 = vrot.slane %v4551, 4
          %v4554 = vshll.u32 %v4418, 16
          %v4556 = vrot.slane %v4554, 5
          %v4557 = vor.u32 %v4553, %v4556
          %v4558 = vrot.slane %v4557, 4
          %v4560 = vshll.u32 %v4419, 16
          %v4562 = vrot.slane %v4560, 5
          %v4563 = vsel %vm895, %v4558, %v4562
          %v4564 = vshrl.u32 %v4419, 16
          %v4566 = vrot.slane %v4564, 4
          %v4567 = vor.u32 %v4566, %v4562
          %v4568 = vrot.slane %v4567, 4
          %v4570 = vshll.u32 %v4420, 16
          %v4572 = vrot.slane %v4570, 5
          %v4573 = vsel %vm895, %v4568, %v4572
          %v4575 = vshrl.u32 %v4421, 16
          %v4577 = vrot.slane %v4575, 4
          %v4578 = vshll.u32 %v4421, 16
          %v4580 = vrot.slane %v4578, 5
          %v4581 = vor.u32 %v4577, %v4580
          %v4582 = vrot.slane %v4581, 4
          %v4584 = vshll.u32 %v4422, 16
          %v4586 = vrot.slane %v4584, 5
          %v4587 = vsel %vm895, %v4582, %v4586
          %v4588 = vshrl.u32 %v4422, 16
          %v4590 = vrot.slane %v4588, 4
          %v4591 = vor.u32 %v4590, %v4586
          %v4592 = vrot.slane %v4591, 4
          %v4594 = vshll.u32 %v4423, 16
          %v4596 = vrot.slane %v4594, 5
          %v4597 = vsel %vm895, %v4592, %v4596
          %v4599 = vshrl.u32 %v4424, 16
          %v4601 = vrot.slane %v4599, 4
          %v4602 = vshll.u32 %v4424, 16
          %v4604 = vrot.slane %v4602, 5
          %v4605 = vor.u32 %v4601, %v4604
          %v4606 = vrot.slane %v4605, 4
          %v4608 = vshll.u32 %v4425, 16
          %v4610 = vrot.slane %v4608, 5
          %v4611 = vsel %vm895, %v4606, %v4610
          %v4612 = vshrl.u32 %v4425, 16
          %v4614 = vrot.slane %v4612, 4
          %v4615 = vor.u32 %v4614, %v4610
          %v4616 = vrot.slane %v4615, 4
          %v4618 = vshll.u32 %v4426, 16
          %v4620 = vrot.slane %v4618, 5
          %v4621 = vsel %vm895, %v4616, %v4620
          %v4623 = vshrl.u32 %v4427, 16
          %v4625 = vrot.slane %v4623, 4
          %v4626 = vshll.u32 %v4427, 16
          %v4628 = vrot.slane %v4626, 5
          %v4629 = vor.u32 %v4625, %v4628
          %v4630 = vrot.slane %v4629, 4
          %v4632 = vshll.u32 %v4428, 16
          %v4634 = vrot.slane %v4632, 5
          %v4635 = vsel %vm895, %v4630, %v4634
          %v4636 = vshrl.u32 %v4428, 16
          %v4638 = vrot.slane %v4636, 4
          %v4639 = vor.u32 %v4638, %v4634
          %v4640 = vrot.slane %v4639, 4
          %v4642 = vshll.u32 %v4429, 16
          %v4644 = vrot.slane %v4642, 5
          %v4645 = vsel %vm895, %v4640, %v4644
          %v4647 = vshrl.u32 %v4430, 16
          %v4649 = vrot.slane %v4647, 4
          %v4650 = vshll.u32 %v4430, 16
          %v4652 = vrot.slane %v4650, 5
          %v4653 = vor.u32 %v4649, %v4652
          %v4654 = vrot.slane %v4653, 4
          %v4656 = vshll.u32 %v4431, 16
          %v4658 = vrot.slane %v4656, 5
          %v4659 = vsel %vm895, %v4654, %v4658
          %v4660 = vshrl.u32 %v4431, 16
          %v4662 = vrot.slane %v4660, 4
          %v4663 = vor.u32 %v4662, %v4658
          %v4664 = vrot.slane %v4663, 4
          %v4666 = vshll.u32 %v4432, 16
          %v4668 = vrot.slane %v4666, 5
          %v4669 = vsel %vm895, %v4664, %v4668
          %v4671 = vshrl.u32 %v4433, 16
          %v4673 = vrot.slane %v4671, 4
          %v4674 = vshll.u32 %v4433, 16
          %v4676 = vrot.slane %v4674, 5
          %v4677 = vor.u32 %v4673, %v4676
          %v4678 = vrot.slane %v4677, 4
          %v4680 = vshll.u32 %v4434, 16
          %v4682 = vrot.slane %v4680, 5
          %v4683 = vsel %vm895, %v4678, %v4682
          %v4684 = vshrl.u32 %v4434, 16
          %v4686 = vrot.slane %v4684, 4
          %v4687 = vor.u32 %v4686, %v4682
          %v4688 = vrot.slane %v4687, 4
          %v4690 = vshll.u32 %v4435, 16
          %v4692 = vrot.slane %v4690, 5
          %v4693 = vsel %vm895, %v4688, %v4692
          %v4695 = vshrl.u32 %v4436, 16
          %v4697 = vrot.slane %v4695, 4
          %v4698 = vshll.u32 %v4436, 16
          %v4700 = vrot.slane %v4698, 5
          %v4701 = vor.u32 %v4697, %v4700
          %v4702 = vrot.slane %v4701, 4
          %v4704 = vshll.u32 %v4437, 16
          %v4706 = vrot.slane %v4704, 5
          %v4707 = vsel %vm895, %v4702, %v4706
          %v4708 = vshrl.u32 %v4437, 16
          %v4710 = vrot.slane %v4708, 4
          %v4711 = vor.u32 %v4710, %v4706
          %v4712 = vrot.slane %v4711, 4
          %v4714 = vshll.u32 %v4438, 16
          %v4716 = vrot.slane %v4714, 5
          %v4717 = vsel %vm895, %v4712, %v4716
          %v4719 = vshrl.u32 %v4439, 16
          %v4721 = vrot.slane %v4719, 4
          %v4722 = vshll.u32 %v4439, 16
          %v4724 = vrot.slane %v4722, 5
          %v4725 = vor.u32 %v4721, %v4724
          %v4726 = vrot.slane %v4725, 4
          %v4728 = vshll.u32 %v4440, 16
          %v4730 = vrot.slane %v4728, 5
          %v4731 = vsel %vm895, %v4726, %v4730
          %v4732 = vshrl.u32 %v4440, 16
          %v4734 = vrot.slane %v4732, 4
          %v4735 = vor.u32 %v4734, %v4730
          %v4736 = vrot.slane %v4735, 4
          %v4738 = vshll.u32 %v4441, 16
          %v4740 = vrot.slane %v4738, 5
          %v4741 = vsel %vm895, %v4736, %v4740
          %v4743 = vshrl.u32 %v4442, 16
          %v4745 = vrot.slane %v4743, 4
          %v4746 = vshll.u32 %v4442, 16
          %v4748 = vrot.slane %v4746, 5
          %v4749 = vor.u32 %v4745, %v4748
          %v4750 = vrot.slane %v4749, 4
          %v4752 = vshll.u32 %v4443, 16
          %v4754 = vrot.slane %v4752, 5
          %v4755 = vsel %vm895, %v4750, %v4754
          %v4756 = vshrl.u32 %v4443, 16
          %v4758 = vrot.slane %v4756, 4
          %v4759 = vor.u32 %v4758, %v4754
          %v4760 = vrot.slane %v4759, 4
          %v4762 = vshll.u32 %v4444, 16
          %v4764 = vrot.slane %v4762, 5
          %v4765 = vsel %vm895, %v4760, %v4764
          %v4767 = vshrl.u32 %v4445, 16
          %v4769 = vrot.slane %v4767, 4
          %v4770 = vshll.u32 %v4445, 16
          %v4772 = vrot.slane %v4770, 5
          %v4773 = vor.u32 %v4769, %v4772
          %v4774 = vrot.slane %v4773, 4
          %v4776 = vshll.u32 %v4446, 16
          %v4778 = vrot.slane %v4776, 5
          %v4779 = vsel %vm895, %v4774, %v4778
          %v4780 = vshrl.u32 %v4446, 16
          %v4782 = vrot.slane %v4780, 4
          %v4783 = vor.u32 %v4782, %v4778
          %v4784 = vrot.slane %v4783, 4
          %v4786 = vshll.u32 %v4447, 16
          %v4788 = vrot.slane %v4786, 5
          %v4789 = vsel %vm895, %v4784, %v4788
          %v4791 = vshrl.u32 %v4448, 16
          %v4793 = vrot.slane %v4791, 4
          %v4794 = vshll.u32 %v4448, 16
          %v4796 = vrot.slane %v4794, 5
          %v4797 = vor.u32 %v4793, %v4796
          %v4798 = vrot.slane %v4797, 4
          %v4800 = vshll.u32 %v4449, 16
          %v4802 = vrot.slane %v4800, 5
          %v4803 = vsel %vm895, %v4798, %v4802
          %v4804 = vshrl.u32 %v4449, 16
          %v4806 = vrot.slane %v4804, 4
          %v4807 = vor.u32 %v4806, %v4802
          %v4808 = vrot.slane %v4807, 4
          %v4810 = vshll.u32 %v4450, 16
          %v4812 = vrot.slane %v4810, 5
          %v4813 = vsel %vm895, %v4808, %v4812
          %v4815 = vshrl.u32 %v4451, 16
          %v4817 = vrot.slane %v4815, 4
          %v4818 = vshll.u32 %v4451, 16
          %v4820 = vrot.slane %v4818, 5
          %v4821 = vor.u32 %v4817, %v4820
          %v4822 = vrot.slane %v4821, 4
          %v4824 = vshll.u32 %v4452, 16
          %v4826 = vrot.slane %v4824, 5
          %v4827 = vsel %vm895, %v4822, %v4826
          %v4828 = vshrl.u32 %v4452, 16
          %v4830 = vrot.slane %v4828, 4
          %v4831 = vor.u32 %v4830, %v4826
          %v4832 = vrot.slane %v4831, 4
          %v4834 = vshll.u32 %v4453, 16
          %v4836 = vrot.slane %v4834, 5
          %v4837 = vsel %vm895, %v4832, %v4836
          %s4838 = sadd.s32 56, %s866
          %s4839 = smul.addr %s4838, 4
          %s4840 = scalar_lea.vmem [#allocation3], %s4839
          %v4841 = vld [vmem:[%s4840] sm:$0xf]
          %v4842 = vld [vmem:[%s4840 + $0x4] sm:$0xf]
          %v4843 = vld [vmem:[%s4840 + $0x8] sm:$0xf]
          %v4844 = vld [vmem:[%s4840 + $0xc] sm:$0xf]
          %v4845 = vld [vmem:[%s4840 + $0x10] sm:$0xf]
          %v4846 = vld [vmem:[%s4840 + $0x14] sm:$0xf]
          %v4847 = vld [vmem:[%s4840 + $0x18] sm:$0xf]
          %v4848 = vld [vmem:[%s4840 + $0x1c] sm:$0xf]
          %v4849 = vunpack.c.l.b16 %v4467
          %v4850 = vunpack.c.l.b16 %v4477
          %v4851 = vunpack.c.l.b16 %v4491
          %v4852 = vunpack.c.l.b16 %v4501
          %v4853 = vunpack.c.l.b16 %v4515
          %v4854 = vunpack.c.l.b16 %v4525
          %v4855 = vunpack.c.l.b16 %v4539
          %v4856 = vunpack.c.l.b16 %v4549
          %v4857 = vunpack.c.l.b16 %v4563
          %v4858 = vunpack.c.l.b16 %v4573
          %v4859 = vunpack.c.l.b16 %v4587
          %v4860 = vunpack.c.l.b16 %v4597
          %v4861 = vunpack.c.l.b16 %v4611
          %v4862 = vunpack.c.l.b16 %v4621
          %v4863 = vunpack.c.l.b16 %v4635
          %v4864 = vunpack.c.l.b16 %v4645
          %v4865 = vunpack.c.l.b16 %v4659
          %v4866 = vunpack.c.l.b16 %v4669
          %v4867 = vunpack.c.l.b16 %v4683
          %v4868 = vunpack.c.l.b16 %v4693
          %v4869 = vunpack.c.l.b16 %v4707
          %v4870 = vunpack.c.l.b16 %v4717
          %v4871 = vunpack.c.l.b16 %v4731
          %v4872 = vunpack.c.l.b16 %v4741
          %v4873 = vunpack.c.l.b16 %v4755
          %v4874 = vunpack.c.l.b16 %v4765
          %v4875 = vunpack.c.l.b16 %v4779
          %v4876 = vunpack.c.l.b16 %v4789
          %v4877 = vunpack.c.l.b16 %v4803
          %v4878 = vunpack.c.l.b16 %v4813
          %v4879 = vunpack.c.l.b16 %v4827
          %v4880 = vunpack.c.l.b16 %v4837
          %v4881 = vpack.c.b16 %v4850, %v4849
          %v4882 = vpack.c.b16 %v4852, %v4851
          %v4883 = vpack.c.b16 %v4854, %v4853
          %v4884 = vpack.c.b16 %v4856, %v4855
          %v4885 = vpack.c.b16 %v4858, %v4857
          %v4886 = vpack.c.b16 %v4860, %v4859
          %v4887 = vpack.c.b16 %v4862, %v4861
          %v4888 = vpack.c.b16 %v4864, %v4863
          %v4889 = vpack.c.b16 %v4866, %v4865
          %v4890 = vpack.c.b16 %v4868, %v4867
          %v4891 = vpack.c.b16 %v4870, %v4869
          %v4892 = vpack.c.b16 %v4872, %v4871
          %v4893 = vpack.c.b16 %v4874, %v4873
          %v4894 = vpack.c.b16 %v4876, %v4875
          %v4895 = vpack.c.b16 %v4878, %v4877
          %v4896 = vpack.c.b16 %v4880, %v4879
          %v4905 = vunpack.c.l.b16 %v4841
          %v4906 = vunpack.c.l.b16 %v4842
          %v4907 = vunpack.c.l.b16 %v4843
          %v4908 = vunpack.c.l.b16 %v4844
          %v4909 = vunpack.c.l.b16 %v4845
          %v4910 = vunpack.c.l.b16 %v4846
          %v4911 = vunpack.c.l.b16 %v4847
          %v4912 = vunpack.c.l.b16 %v4848
          %v4913 = vpack.c.b16 %v4906, %v4905
          %v4914 = vpack.c.b16 %v4908, %v4907
          %v4915 = vpack.c.b16 %v4910, %v4909
          %v4916 = vpack.c.b16 %v4912, %v4911
          %v4922 = vsel %vm1363, %v4881, 0
          %v4925 = vsel %vm1363, %v4882, 0
          %v4928 = vsel %vm1363, %v4883, 0
          %v4931 = vsel %vm1363, %v4884, 0
          %v4934 = vsel %vm1363, %v4885, 0
          %v4937 = vsel %vm1363, %v4886, 0
          %v4940 = vsel %vm1363, %v4887, 0
          %v4943 = vsel %vm1363, %v4888, 0
          %v4946 = vsel %vm1363, %v4889, 0
          %v4949 = vsel %vm1363, %v4890, 0
          %v4952 = vsel %vm1363, %v4891, 0
          %v4955 = vsel %vm1363, %v4892, 0
          %v4958 = vsel %vm1363, %v4893, 0
          %v4961 = vsel %vm1363, %v4894, 0
          %v4964 = vsel %vm1363, %v4895, 0
          %v4967 = vsel %vm1363, %v4896, 0
          %4969 = vmatprep.subr.bf16.mxu0 0
          %4970 = vmatpush1.bf16.msra.mxu0 0
          %4971 = vmatprep.subr.bf16.mxu0 0
          %4972 = vmatpush1.bf16.msra.mxu0 0
          %4973 = vmatprep.subr.bf16.mxu0 0
          %4974 = vmatpush1.bf16.msra.mxu0 0
          %4975 = vmatprep.subr.bf16.mxu0 0
          %4976 = vmatpush1.bf16.msra.mxu0 0
          %4977 = vmatprep.subr.bf16.mxu0 0
          %4978 = vmatpush1.bf16.msra.mxu0 %v4916
          %4979 = vmatprep.subr.bf16.mxu0 0
          %4980 = vmatpush1.bf16.msra.mxu0 %v4915
          %4981 = vmatprep.subr.bf16.mxu0 0
          %4982 = vmatpush1.bf16.msra.mxu0 %v4914
          %4983 = vmatprep.subr.bf16.mxu0 0
          %4984 = vmatpush1.bf16.msra.mxu0 %v4913
          %4985 = vmatprep.subr.bf16.mxu0 0
          %4986 = vmatpush2.bf16.msra.mxu0 0
          %4987 = vmatprep.subr.bf16.mxu0 0
          %4988 = vmatpush2.bf16.msra.mxu0 0
          %4989 = vmatprep.subr.bf16.mxu0 0
          %4990 = vmatpush2.bf16.msra.mxu0 0
          %4991 = vmatprep.subr.bf16.mxu0 0
          %4992 = vmatpush2.bf16.msra.mxu0 0
          %4993 = vmatprep.subr.bf16.mxu0 0
          %4994 = vmatpush2.bf16.msra.mxu0 0
          %4995 = vmatprep.subr.bf16.mxu0 0
          %4996 = vmatpush2.bf16.msra.mxu0 0
          %4997 = vmatprep.subr.bf16.mxu0 0
          %4998 = vmatpush2.bf16.msra.mxu0 0
          %4999 = vmatprep.subr.bf16.mxu0 0
          %5000 = vmatpush2.bf16.msra.mxu0 0
          %5001 = vmatprep.mubr.bf16.mxu0 0
          %5002 = vmatmul.mubr.bf16.gmra.mxu0 %v4922
          %v5003 = vpop.f32.mrf.mxu0
          %v5004 = vadd.f32 0.0, %v5003
          %v5005 = vpop.f32.mrf.mxu0
          %v5006 = vpop.f32.mrf.mxu0
          %v5007 = vadd.f32 0.0, %v5006
          %v5008 = vpop.f32.mrf.mxu0
          %5009 = vmatprep.mubr.bf16.mxu0 0
          %5010 = vmatmul.mubr.bf16.gmra.mxu0 %v4925
          %v5011 = vpop.f32.mrf.mxu0
          %v5012 = vadd.f32 0.0, %v5011
          %v5013 = vpop.f32.mrf.mxu0
          %v5014 = vpop.f32.mrf.mxu0
          %v5015 = vadd.f32 0.0, %v5014
          %v5016 = vpop.f32.mrf.mxu0
          %5017 = vmatprep.mubr.bf16.mxu0 0
          %5018 = vmatmul.mubr.bf16.gmra.mxu0 %v4928
          %v5019 = vpop.f32.mrf.mxu0
          %v5020 = vadd.f32 0.0, %v5019
          %v5021 = vpop.f32.mrf.mxu0
          %v5022 = vpop.f32.mrf.mxu0
          %v5023 = vadd.f32 0.0, %v5022
          %v5024 = vpop.f32.mrf.mxu0
          %5025 = vmatprep.mubr.bf16.mxu0 0
          %5026 = vmatmul.mubr.bf16.gmra.mxu0 %v4931
          %v5027 = vpop.f32.mrf.mxu0
          %v5028 = vadd.f32 0.0, %v5027
          %v5029 = vpop.f32.mrf.mxu0
          %v5030 = vpop.f32.mrf.mxu0
          %v5031 = vadd.f32 0.0, %v5030
          %v5032 = vpop.f32.mrf.mxu0
          %5033 = vmatprep.mubr.bf16.mxu0 0
          %5034 = vmatmul.mubr.bf16.gmra.mxu0 %v4934
          %v5035 = vpop.f32.mrf.mxu0
          %v5036 = vadd.f32 0.0, %v5035
          %v5037 = vpop.f32.mrf.mxu0
          %v5038 = vpop.f32.mrf.mxu0
          %v5039 = vadd.f32 0.0, %v5038
          %v5040 = vpop.f32.mrf.mxu0
          %5041 = vmatprep.mubr.bf16.mxu0 0
          %5042 = vmatmul.mubr.bf16.gmra.mxu0 %v4937
          %v5043 = vpop.f32.mrf.mxu0
          %v5044 = vadd.f32 0.0, %v5043
          %v5045 = vpop.f32.mrf.mxu0
          %v5046 = vpop.f32.mrf.mxu0
          %v5047 = vadd.f32 0.0, %v5046
          %v5048 = vpop.f32.mrf.mxu0
          %5049 = vmatprep.mubr.bf16.mxu0 0
          %5050 = vmatmul.mubr.bf16.gmra.mxu0 %v4940
          %v5051 = vpop.f32.mrf.mxu0
          %v5052 = vadd.f32 0.0, %v5051
          %v5053 = vpop.f32.mrf.mxu0
          %v5054 = vpop.f32.mrf.mxu0
          %v5055 = vadd.f32 0.0, %v5054
          %v5056 = vpop.f32.mrf.mxu0
          %5057 = vmatprep.mubr.bf16.mxu0 0
          %5058 = vmatmul.mubr.bf16.gmra.mxu0 %v4943
          %v5059 = vpop.f32.mrf.mxu0
          %v5060 = vadd.f32 0.0, %v5059
          %v5061 = vpop.f32.mrf.mxu0
          %v5062 = vpop.f32.mrf.mxu0
          %v5063 = vadd.f32 0.0, %v5062
          %v5064 = vpop.f32.mrf.mxu0
          %5065 = vmatprep.mubr.bf16.mxu0 0
          %5066 = vmatmul.mubr.bf16.gmra.mxu0 %v4946
          %v5067 = vpop.f32.mrf.mxu0
          %v5068 = vadd.f32 0.0, %v5067
          %v5069 = vpop.f32.mrf.mxu0
          %v5070 = vpop.f32.mrf.mxu0
          %v5071 = vadd.f32 0.0, %v5070
          %v5072 = vpop.f32.mrf.mxu0
          %5073 = vmatprep.mubr.bf16.mxu0 0
          %5074 = vmatmul.mubr.bf16.gmra.mxu0 %v4949
          %v5075 = vpop.f32.mrf.mxu0
          %v5076 = vadd.f32 0.0, %v5075
          %v5077 = vpop.f32.mrf.mxu0
          %v5078 = vpop.f32.mrf.mxu0
          %v5079 = vadd.f32 0.0, %v5078
          %v5080 = vpop.f32.mrf.mxu0
          %5081 = vmatprep.mubr.bf16.mxu0 0
          %5082 = vmatmul.mubr.bf16.gmra.mxu0 %v4952
          %v5083 = vpop.f32.mrf.mxu0
          %v5084 = vadd.f32 0.0, %v5083
          %v5085 = vpop.f32.mrf.mxu0
          %v5086 = vpop.f32.mrf.mxu0
          %v5087 = vadd.f32 0.0, %v5086
          %v5088 = vpop.f32.mrf.mxu0
          %5089 = vmatprep.mubr.bf16.mxu0 0
          %5090 = vmatmul.mubr.bf16.gmra.mxu0 %v4955
          %v5091 = vpop.f32.mrf.mxu0
          %v5092 = vadd.f32 0.0, %v5091
          %v5093 = vpop.f32.mrf.mxu0
          %v5094 = vpop.f32.mrf.mxu0
          %v5095 = vadd.f32 0.0, %v5094
          %v5096 = vpop.f32.mrf.mxu0
          %5097 = vmatprep.mubr.bf16.mxu0 0
          %5098 = vmatmul.mubr.bf16.gmra.mxu0 %v4958
          %v5099 = vpop.f32.mrf.mxu0
          %v5100 = vadd.f32 0.0, %v5099
          %v5101 = vpop.f32.mrf.mxu0
          %v5102 = vpop.f32.mrf.mxu0
          %v5103 = vadd.f32 0.0, %v5102
          %v5104 = vpop.f32.mrf.mxu0
          %5105 = vmatprep.mubr.bf16.mxu0 0
          %5106 = vmatmul.mubr.bf16.gmra.mxu0 %v4961
          %v5107 = vpop.f32.mrf.mxu0
          %v5108 = vadd.f32 0.0, %v5107
          %v5109 = vpop.f32.mrf.mxu0
          %v5110 = vpop.f32.mrf.mxu0
          %v5111 = vadd.f32 0.0, %v5110
          %v5112 = vpop.f32.mrf.mxu0
          %5113 = vmatprep.mubr.bf16.mxu0 0
          %5114 = vmatmul.mubr.bf16.gmra.mxu0 %v4964
          %v5115 = vpop.f32.mrf.mxu0
          %v5116 = vadd.f32 0.0, %v5115
          %v5117 = vpop.f32.mrf.mxu0
          %v5118 = vpop.f32.mrf.mxu0
          %v5119 = vadd.f32 0.0, %v5118
          %v5120 = vpop.f32.mrf.mxu0
          %5121 = vmatprep.mubr.bf16.mxu0 0
          %5122 = vmatmul.mubr.bf16.gmra.mxu0 %v4967
          %v5123 = vpop.f32.mrf.mxu0
          %v5124 = vadd.f32 0.0, %v5123
          %v5125 = vpop.f32.mrf.mxu0
          %v5126 = vpop.f32.mrf.mxu0
          %v5127 = vadd.f32 0.0, %v5126
          %v5128 = vpop.f32.mrf.mxu0
          %5129 = vdwg.mxu0
          %v5130 = vadd.f32 %v4374, %v5004
          %v5131 = vadd.f32 %v4375, %v5007
          %v5132 = vadd.f32 %v4376, %v5012
          %v5133 = vadd.f32 %v4377, %v5015
          %v5134 = vadd.f32 %v4378, %v5020
          %v5135 = vadd.f32 %v4379, %v5023
          %v5136 = vadd.f32 %v4380, %v5028
          %v5137 = vadd.f32 %v4381, %v5031
          %v5138 = vadd.f32 %v4382, %v5036
          %v5139 = vadd.f32 %v4383, %v5039
          %v5140 = vadd.f32 %v4384, %v5044
          %v5141 = vadd.f32 %v4385, %v5047
          %v5142 = vadd.f32 %v4386, %v5052
          %v5143 = vadd.f32 %v4387, %v5055
          %v5144 = vadd.f32 %v4388, %v5060
          %v5145 = vadd.f32 %v4389, %v5063
          %v5146 = vadd.f32 %v4390, %v5068
          %v5147 = vadd.f32 %v4391, %v5071
          %v5148 = vadd.f32 %v4392, %v5076
          %v5149 = vadd.f32 %v4393, %v5079
          %v5150 = vadd.f32 %v4394, %v5084
          %v5151 = vadd.f32 %v4395, %v5087
          %v5152 = vadd.f32 %v4396, %v5092
          %v5153 = vadd.f32 %v4397, %v5095
          %v5154 = vadd.f32 %v4398, %v5100
          %v5155 = vadd.f32 %v4399, %v5103
          %v5156 = vadd.f32 %v4400, %v5108
          %v5157 = vadd.f32 %v4401, %v5111
          %v5158 = vadd.f32 %v4402, %v5116
          %v5159 = vadd.f32 %v4403, %v5119
          %v5160 = vadd.f32 %v4404, %v5124
          %v5161 = vadd.f32 %v4405, %v5127
          %v5162 = vld [vmem:[%s4017] sm:$0xe]
          %v5163 = vld [vmem:[%s4017 + $0xc] sm:$0xe]
          %v5164 = vld [vmem:[%s4017 + $0x18] sm:$0xe]
          %v5165 = vld [vmem:[%s4017 + $0x24] sm:$0xe]
          %v5166 = vld [vmem:[%s4017 + $0x30] sm:$0xe]
          %v5167 = vld [vmem:[%s4017 + $0x3c] sm:$0xe]
          %v5168 = vld [vmem:[%s4017 + $0x48] sm:$0xe]
          %v5169 = vld [vmem:[%s4017 + $0x54] sm:$0xe]
          %v5170 = vld [vmem:[%s4017 + $0x60] sm:$0xe]
          %v5171 = vld [vmem:[%s4017 + $0x6c] sm:$0xe]
          %v5172 = vld [vmem:[%s4017 + $0x78] sm:$0xe]
          %v5173 = vld [vmem:[%s4017 + $0x84] sm:$0xe]
          %v5174 = vld [vmem:[%s4017 + $0x90] sm:$0xe]
          %v5175 = vld [vmem:[%s4017 + $0x9c] sm:$0xe]
          %v5176 = vld [vmem:[%s4017 + $0xa8] sm:$0xe]
          %v5177 = vld [vmem:[%s4017 + $0xb4] sm:$0xe]
          %v5226 = vrot.slane %v5162, 5
          %v5227 = vrot.slane %v5226, 4
          %v5228 = vrot.slane %v4407, 5
          %v5229 = vsel %vm1936, %v5227, %v5228
          %v5230 = vrot.slane %v5228, 4
          %v5231 = vrot.slane %v4408, 5
          %v5232 = vsel %vm1936, %v5230, %v5231
          %v5233 = vrot.slane %v5163, 5
          %v5234 = vrot.slane %v5233, 4
          %v5235 = vrot.slane %v4410, 5
          %v5236 = vsel %vm1936, %v5234, %v5235
          %v5237 = vrot.slane %v5235, 4
          %v5238 = vrot.slane %v4411, 5
          %v5239 = vsel %vm1936, %v5237, %v5238
          %v5240 = vrot.slane %v5164, 5
          %v5241 = vrot.slane %v5240, 4
          %v5242 = vrot.slane %v4413, 5
          %v5243 = vsel %vm1936, %v5241, %v5242
          %v5244 = vrot.slane %v5242, 4
          %v5245 = vrot.slane %v4414, 5
          %v5246 = vsel %vm1936, %v5244, %v5245
          %v5247 = vrot.slane %v5165, 5
          %v5248 = vrot.slane %v5247, 4
          %v5249 = vrot.slane %v4416, 5
          %v5250 = vsel %vm1936, %v5248, %v5249
          %v5251 = vrot.slane %v5249, 4
          %v5252 = vrot.slane %v4417, 5
          %v5253 = vsel %vm1936, %v5251, %v5252
          %v5254 = vrot.slane %v5166, 5
          %v5255 = vrot.slane %v5254, 4
          %v5256 = vrot.slane %v4419, 5
          %v5257 = vsel %vm1936, %v5255, %v5256
          %v5258 = vrot.slane %v5256, 4
          %v5259 = vrot.slane %v4420, 5
          %v5260 = vsel %vm1936, %v5258, %v5259
          %v5261 = vrot.slane %v5167, 5
          %v5262 = vrot.slane %v5261, 4
          %v5263 = vrot.slane %v4422, 5
          %v5264 = vsel %vm1936, %v5262, %v5263
          %v5265 = vrot.slane %v5263, 4
          %v5266 = vrot.slane %v4423, 5
          %v5267 = vsel %vm1936, %v5265, %v5266
          %v5268 = vrot.slane %v5168, 5
          %v5269 = vrot.slane %v5268, 4
          %v5270 = vrot.slane %v4425, 5
          %v5271 = vsel %vm1936, %v5269, %v5270
          %v5272 = vrot.slane %v5270, 4
          %v5273 = vrot.slane %v4426, 5
          %v5274 = vsel %vm1936, %v5272, %v5273
          %v5275 = vrot.slane %v5169, 5
          %v5276 = vrot.slane %v5275, 4
          %v5277 = vrot.slane %v4428, 5
          %v5278 = vsel %vm1936, %v5276, %v5277
          %v5279 = vrot.slane %v5277, 4
          %v5280 = vrot.slane %v4429, 5
          %v5281 = vsel %vm1936, %v5279, %v5280
          %v5282 = vrot.slane %v5170, 5
          %v5283 = vrot.slane %v5282, 4
          %v5284 = vrot.slane %v4431, 5
          %v5285 = vsel %vm1936, %v5283, %v5284
          %v5286 = vrot.slane %v5284, 4
          %v5287 = vrot.slane %v4432, 5
          %v5288 = vsel %vm1936, %v5286, %v5287
          %v5289 = vrot.slane %v5171, 5
          %v5290 = vrot.slane %v5289, 4
          %v5291 = vrot.slane %v4434, 5
          %v5292 = vsel %vm1936, %v5290, %v5291
          %v5293 = vrot.slane %v5291, 4
          %v5294 = vrot.slane %v4435, 5
          %v5295 = vsel %vm1936, %v5293, %v5294
          %v5296 = vrot.slane %v5172, 5
          %v5297 = vrot.slane %v5296, 4
          %v5298 = vrot.slane %v4437, 5
          %v5299 = vsel %vm1936, %v5297, %v5298
          %v5300 = vrot.slane %v5298, 4
          %v5301 = vrot.slane %v4438, 5
          %v5302 = vsel %vm1936, %v5300, %v5301
          %v5303 = vrot.slane %v5173, 5
          %v5304 = vrot.slane %v5303, 4
          %v5305 = vrot.slane %v4440, 5
          %v5306 = vsel %vm1936, %v5304, %v5305
          %v5307 = vrot.slane %v5305, 4
          %v5308 = vrot.slane %v4441, 5
          %v5309 = vsel %vm1936, %v5307, %v5308
          %v5310 = vrot.slane %v5174, 5
          %v5311 = vrot.slane %v5310, 4
          %v5312 = vrot.slane %v4443, 5
          %v5313 = vsel %vm1936, %v5311, %v5312
          %v5314 = vrot.slane %v5312, 4
          %v5315 = vrot.slane %v4444, 5
          %v5316 = vsel %vm1936, %v5314, %v5315
          %v5317 = vrot.slane %v5175, 5
          %v5318 = vrot.slane %v5317, 4
          %v5319 = vrot.slane %v4446, 5
          %v5320 = vsel %vm1936, %v5318, %v5319
          %v5321 = vrot.slane %v5319, 4
          %v5322 = vrot.slane %v4447, 5
          %v5323 = vsel %vm1936, %v5321, %v5322
          %v5324 = vrot.slane %v5176, 5
          %v5325 = vrot.slane %v5324, 4
          %v5326 = vrot.slane %v4449, 5
          %v5327 = vsel %vm1936, %v5325, %v5326
          %v5328 = vrot.slane %v5326, 4
          %v5329 = vrot.slane %v4450, 5
          %v5330 = vsel %vm1936, %v5328, %v5329
          %v5331 = vrot.slane %v5177, 5
          %v5332 = vrot.slane %v5331, 4
          %v5333 = vrot.slane %v4452, 5
          %v5334 = vsel %vm1936, %v5332, %v5333
          %v5335 = vrot.slane %v5333, 4
          %v5336 = vrot.slane %v4453, 5
          %v5337 = vsel %vm1936, %v5335, %v5336
          %s5338 = sadd.s32 64, %s866
          %s5339 = smul.addr %s5338, 4
          %s5340 = scalar_lea.vmem [#allocation3], %s5339
          %v5341 = vld [vmem:[%s5340] sm:$0xf]
          %v5342 = vld [vmem:[%s5340 + $0x4] sm:$0xf]
          %v5343 = vld [vmem:[%s5340 + $0x8] sm:$0xf]
          %v5344 = vld [vmem:[%s5340 + $0xc] sm:$0xf]
          %v5345 = vld [vmem:[%s5340 + $0x10] sm:$0xf]
          %v5346 = vld [vmem:[%s5340 + $0x14] sm:$0xf]
          %v5347 = vld [vmem:[%s5340 + $0x18] sm:$0xf]
          %v5348 = vld [vmem:[%s5340 + $0x1c] sm:$0xf]
          %v5349 = vunpack.c.l.b16 %v5229
          %v5350 = vunpack.c.l.b16 %v5232
          %v5351 = vunpack.c.l.b16 %v5236
          %v5352 = vunpack.c.l.b16 %v5239
          %v5353 = vunpack.c.l.b16 %v5243
          %v5354 = vunpack.c.l.b16 %v5246
          %v5355 = vunpack.c.l.b16 %v5250
          %v5356 = vunpack.c.l.b16 %v5253
          %v5357 = vunpack.c.l.b16 %v5257
          %v5358 = vunpack.c.l.b16 %v5260
          %v5359 = vunpack.c.l.b16 %v5264
          %v5360 = vunpack.c.l.b16 %v5267
          %v5361 = vunpack.c.l.b16 %v5271
          %v5362 = vunpack.c.l.b16 %v5274
          %v5363 = vunpack.c.l.b16 %v5278
          %v5364 = vunpack.c.l.b16 %v5281
          %v5365 = vunpack.c.l.b16 %v5285
          %v5366 = vunpack.c.l.b16 %v5288
          %v5367 = vunpack.c.l.b16 %v5292
          %v5368 = vunpack.c.l.b16 %v5295
          %v5369 = vunpack.c.l.b16 %v5299
          %v5370 = vunpack.c.l.b16 %v5302
          %v5371 = vunpack.c.l.b16 %v5306
          %v5372 = vunpack.c.l.b16 %v5309
          %v5373 = vunpack.c.l.b16 %v5313
          %v5374 = vunpack.c.l.b16 %v5316
          %v5375 = vunpack.c.l.b16 %v5320
          %v5376 = vunpack.c.l.b16 %v5323
          %v5377 = vunpack.c.l.b16 %v5327
          %v5378 = vunpack.c.l.b16 %v5330
          %v5379 = vunpack.c.l.b16 %v5334
          %v5380 = vunpack.c.l.b16 %v5337
          %v5381 = vpack.c.b16 %v5350, %v5349
          %v5382 = vpack.c.b16 %v5352, %v5351
          %v5383 = vpack.c.b16 %v5354, %v5353
          %v5384 = vpack.c.b16 %v5356, %v5355
          %v5385 = vpack.c.b16 %v5358, %v5357
          %v5386 = vpack.c.b16 %v5360, %v5359
          %v5387 = vpack.c.b16 %v5362, %v5361
          %v5388 = vpack.c.b16 %v5364, %v5363
          %v5389 = vpack.c.b16 %v5366, %v5365
          %v5390 = vpack.c.b16 %v5368, %v5367
          %v5391 = vpack.c.b16 %v5370, %v5369
          %v5392 = vpack.c.b16 %v5372, %v5371
          %v5393 = vpack.c.b16 %v5374, %v5373
          %v5394 = vpack.c.b16 %v5376, %v5375
          %v5395 = vpack.c.b16 %v5378, %v5377
          %v5396 = vpack.c.b16 %v5380, %v5379
          %v5405 = vunpack.c.l.b16 %v5341
          %v5406 = vunpack.c.l.b16 %v5342
          %v5407 = vunpack.c.l.b16 %v5343
          %v5408 = vunpack.c.l.b16 %v5344
          %v5409 = vunpack.c.l.b16 %v5345
          %v5410 = vunpack.c.l.b16 %v5346
          %v5411 = vunpack.c.l.b16 %v5347
          %v5412 = vunpack.c.l.b16 %v5348
          %v5413 = vpack.c.b16 %v5406, %v5405
          %v5414 = vpack.c.b16 %v5408, %v5407
          %v5415 = vpack.c.b16 %v5410, %v5409
          %v5416 = vpack.c.b16 %v5412, %v5411
          %v5422 = vsel %vm1363, %v5381, 0
          %v5425 = vsel %vm1363, %v5382, 0
          %v5428 = vsel %vm1363, %v5383, 0
          %v5431 = vsel %vm1363, %v5384, 0
          %v5434 = vsel %vm1363, %v5385, 0
          %v5437 = vsel %vm1363, %v5386, 0
          %v5440 = vsel %vm1363, %v5387, 0
          %v5443 = vsel %vm1363, %v5388, 0
          %v5446 = vsel %vm1363, %v5389, 0
          %v5449 = vsel %vm1363, %v5390, 0
          %v5452 = vsel %vm1363, %v5391, 0
          %v5455 = vsel %vm1363, %v5392, 0
          %v5458 = vsel %vm1363, %v5393, 0
          %v5461 = vsel %vm1363, %v5394, 0
          %v5464 = vsel %vm1363, %v5395, 0
          %v5467 = vsel %vm1363, %v5396, 0
          %5469 = vmatprep.subr.bf16.mxu0 0
          %5470 = vmatpush1.bf16.msra.mxu0 0
          %5471 = vmatprep.subr.bf16.mxu0 0
          %5472 = vmatpush1.bf16.msra.mxu0 0
          %5473 = vmatprep.subr.bf16.mxu0 0
          %5474 = vmatpush1.bf16.msra.mxu0 0
          %5475 = vmatprep.subr.bf16.mxu0 0
          %5476 = vmatpush1.bf16.msra.mxu0 0
          %5477 = vmatprep.subr.bf16.mxu0 0
          %5478 = vmatpush1.bf16.msra.mxu0 %v5416
          %5479 = vmatprep.subr.bf16.mxu0 0
          %5480 = vmatpush1.bf16.msra.mxu0 %v5415
          %5481 = vmatprep.subr.bf16.mxu0 0
          %5482 = vmatpush1.bf16.msra.mxu0 %v5414
          %5483 = vmatprep.subr.bf16.mxu0 0
          %5484 = vmatpush1.bf16.msra.mxu0 %v5413
          %5485 = vmatprep.subr.bf16.mxu0 0
          %5486 = vmatpush2.bf16.msra.mxu0 0
          %5487 = vmatprep.subr.bf16.mxu0 0
          %5488 = vmatpush2.bf16.msra.mxu0 0
          %5489 = vmatprep.subr.bf16.mxu0 0
          %5490 = vmatpush2.bf16.msra.mxu0 0
          %5491 = vmatprep.subr.bf16.mxu0 0
          %5492 = vmatpush2.bf16.msra.mxu0 0
          %5493 = vmatprep.subr.bf16.mxu0 0
          %5494 = vmatpush2.bf16.msra.mxu0 0
          %5495 = vmatprep.subr.bf16.mxu0 0
          %5496 = vmatpush2.bf16.msra.mxu0 0
          %5497 = vmatprep.subr.bf16.mxu0 0
          %5498 = vmatpush2.bf16.msra.mxu0 0
          %5499 = vmatprep.subr.bf16.mxu0 0
          %5500 = vmatpush2.bf16.msra.mxu0 0
          %5501 = vmatprep.mubr.bf16.mxu0 0
          %5502 = vmatmul.mubr.bf16.gmra.mxu0 %v5422
          %v5503 = vpop.f32.mrf.mxu0
          %v5504 = vadd.f32 0.0, %v5503
          %v5505 = vpop.f32.mrf.mxu0
          %v5506 = vpop.f32.mrf.mxu0
          %v5507 = vadd.f32 0.0, %v5506
          %v5508 = vpop.f32.mrf.mxu0
          %5509 = vmatprep.mubr.bf16.mxu0 0
          %5510 = vmatmul.mubr.bf16.gmra.mxu0 %v5425
          %v5511 = vpop.f32.mrf.mxu0
          %v5512 = vadd.f32 0.0, %v5511
          %v5513 = vpop.f32.mrf.mxu0
          %v5514 = vpop.f32.mrf.mxu0
          %v5515 = vadd.f32 0.0, %v5514
          %v5516 = vpop.f32.mrf.mxu0
          %5517 = vmatprep.mubr.bf16.mxu0 0
          %5518 = vmatmul.mubr.bf16.gmra.mxu0 %v5428
          %v5519 = vpop.f32.mrf.mxu0
          %v5520 = vadd.f32 0.0, %v5519
          %v5521 = vpop.f32.mrf.mxu0
          %v5522 = vpop.f32.mrf.mxu0
          %v5523 = vadd.f32 0.0, %v5522
          %v5524 = vpop.f32.mrf.mxu0
          %5525 = vmatprep.mubr.bf16.mxu0 0
          %5526 = vmatmul.mubr.bf16.gmra.mxu0 %v5431
          %v5527 = vpop.f32.mrf.mxu0
          %v5528 = vadd.f32 0.0, %v5527
          %v5529 = vpop.f32.mrf.mxu0
          %v5530 = vpop.f32.mrf.mxu0
          %v5531 = vadd.f32 0.0, %v5530
          %v5532 = vpop.f32.mrf.mxu0
          %5533 = vmatprep.mubr.bf16.mxu0 0
          %5534 = vmatmul.mubr.bf16.gmra.mxu0 %v5434
          %v5535 = vpop.f32.mrf.mxu0
          %v5536 = vadd.f32 0.0, %v5535
          %v5537 = vpop.f32.mrf.mxu0
          %v5538 = vpop.f32.mrf.mxu0
          %v5539 = vadd.f32 0.0, %v5538
          %v5540 = vpop.f32.mrf.mxu0
          %5541 = vmatprep.mubr.bf16.mxu0 0
          %5542 = vmatmul.mubr.bf16.gmra.mxu0 %v5437
          %v5543 = vpop.f32.mrf.mxu0
          %v5544 = vadd.f32 0.0, %v5543
          %v5545 = vpop.f32.mrf.mxu0
          %v5546 = vpop.f32.mrf.mxu0
          %v5547 = vadd.f32 0.0, %v5546
          %v5548 = vpop.f32.mrf.mxu0
          %5549 = vmatprep.mubr.bf16.mxu0 0
          %5550 = vmatmul.mubr.bf16.gmra.mxu0 %v5440
          %v5551 = vpop.f32.mrf.mxu0
          %v5552 = vadd.f32 0.0, %v5551
          %v5553 = vpop.f32.mrf.mxu0
          %v5554 = vpop.f32.mrf.mxu0
          %v5555 = vadd.f32 0.0, %v5554
          %v5556 = vpop.f32.mrf.mxu0
          %5557 = vmatprep.mubr.bf16.mxu0 0
          %5558 = vmatmul.mubr.bf16.gmra.mxu0 %v5443
          %v5559 = vpop.f32.mrf.mxu0
          %v5560 = vadd.f32 0.0, %v5559
          %v5561 = vpop.f32.mrf.mxu0
          %v5562 = vpop.f32.mrf.mxu0
          %v5563 = vadd.f32 0.0, %v5562
          %v5564 = vpop.f32.mrf.mxu0
          %5565 = vmatprep.mubr.bf16.mxu0 0
          %5566 = vmatmul.mubr.bf16.gmra.mxu0 %v5446
          %v5567 = vpop.f32.mrf.mxu0
          %v5568 = vadd.f32 0.0, %v5567
          %v5569 = vpop.f32.mrf.mxu0
          %v5570 = vpop.f32.mrf.mxu0
          %v5571 = vadd.f32 0.0, %v5570
          %v5572 = vpop.f32.mrf.mxu0
          %5573 = vmatprep.mubr.bf16.mxu0 0
          %5574 = vmatmul.mubr.bf16.gmra.mxu0 %v5449
          %v5575 = vpop.f32.mrf.mxu0
          %v5576 = vadd.f32 0.0, %v5575
          %v5577 = vpop.f32.mrf.mxu0
          %v5578 = vpop.f32.mrf.mxu0
          %v5579 = vadd.f32 0.0, %v5578
          %v5580 = vpop.f32.mrf.mxu0
          %5581 = vmatprep.mubr.bf16.mxu0 0
          %5582 = vmatmul.mubr.bf16.gmra.mxu0 %v5452
          %v5583 = vpop.f32.mrf.mxu0
          %v5584 = vadd.f32 0.0, %v5583
          %v5585 = vpop.f32.mrf.mxu0
          %v5586 = vpop.f32.mrf.mxu0
          %v5587 = vadd.f32 0.0, %v5586
          %v5588 = vpop.f32.mrf.mxu0
          %5589 = vmatprep.mubr.bf16.mxu0 0
          %5590 = vmatmul.mubr.bf16.gmra.mxu0 %v5455
          %v5591 = vpop.f32.mrf.mxu0
          %v5592 = vadd.f32 0.0, %v5591
          %v5593 = vpop.f32.mrf.mxu0
          %v5594 = vpop.f32.mrf.mxu0
          %v5595 = vadd.f32 0.0, %v5594
          %v5596 = vpop.f32.mrf.mxu0
          %5597 = vmatprep.mubr.bf16.mxu0 0
          %5598 = vmatmul.mubr.bf16.gmra.mxu0 %v5458
          %v5599 = vpop.f32.mrf.mxu0
          %v5600 = vadd.f32 0.0, %v5599
          %v5601 = vpop.f32.mrf.mxu0
          %v5602 = vpop.f32.mrf.mxu0
          %v5603 = vadd.f32 0.0, %v5602
          %v5604 = vpop.f32.mrf.mxu0
          %5605 = vmatprep.mubr.bf16.mxu0 0
          %5606 = vmatmul.mubr.bf16.gmra.mxu0 %v5461
          %v5607 = vpop.f32.mrf.mxu0
          %v5608 = vadd.f32 0.0, %v5607
          %v5609 = vpop.f32.mrf.mxu0
          %v5610 = vpop.f32.mrf.mxu0
          %v5611 = vadd.f32 0.0, %v5610
          %v5612 = vpop.f32.mrf.mxu0
          %5613 = vmatprep.mubr.bf16.mxu0 0
          %5614 = vmatmul.mubr.bf16.gmra.mxu0 %v5464
          %v5615 = vpop.f32.mrf.mxu0
          %v5616 = vadd.f32 0.0, %v5615
          %v5617 = vpop.f32.mrf.mxu0
          %v5618 = vpop.f32.mrf.mxu0
          %v5619 = vadd.f32 0.0, %v5618
          %v5620 = vpop.f32.mrf.mxu0
          %5621 = vmatprep.mubr.bf16.mxu0 0
          %5622 = vmatmul.mubr.bf16.gmra.mxu0 %v5467
          %v5623 = vpop.f32.mrf.mxu0
          %v5624 = vadd.f32 0.0, %v5623
          %v5625 = vpop.f32.mrf.mxu0
          %v5626 = vpop.f32.mrf.mxu0
          %v5627 = vadd.f32 0.0, %v5626
          %v5628 = vpop.f32.mrf.mxu0
          %5629 = vdwg.mxu0
          %v5630 = vadd.f32 %v5130, %v5504
          %v5631 = vadd.f32 %v5131, %v5507
          %v5632 = vadd.f32 %v5132, %v5512
          %v5633 = vadd.f32 %v5133, %v5515
          %v5634 = vadd.f32 %v5134, %v5520
          %v5635 = vadd.f32 %v5135, %v5523
          %v5636 = vadd.f32 %v5136, %v5528
          %v5637 = vadd.f32 %v5137, %v5531
          %v5638 = vadd.f32 %v5138, %v5536
          %v5639 = vadd.f32 %v5139, %v5539
          %v5640 = vadd.f32 %v5140, %v5544
          %v5641 = vadd.f32 %v5141, %v5547
          %v5642 = vadd.f32 %v5142, %v5552
          %v5643 = vadd.f32 %v5143, %v5555
          %v5644 = vadd.f32 %v5144, %v5560
          %v5645 = vadd.f32 %v5145, %v5563
          %v5646 = vadd.f32 %v5146, %v5568
          %v5647 = vadd.f32 %v5147, %v5571
          %v5648 = vadd.f32 %v5148, %v5576
          %v5649 = vadd.f32 %v5149, %v5579
          %v5650 = vadd.f32 %v5150, %v5584
          %v5651 = vadd.f32 %v5151, %v5587
          %v5652 = vadd.f32 %v5152, %v5592
          %v5653 = vadd.f32 %v5153, %v5595
          %v5654 = vadd.f32 %v5154, %v5600
          %v5655 = vadd.f32 %v5155, %v5603
          %v5656 = vadd.f32 %v5156, %v5608
          %v5657 = vadd.f32 %v5157, %v5611
          %v5658 = vadd.f32 %v5158, %v5616
          %v5659 = vadd.f32 %v5159, %v5619
          %v5660 = vadd.f32 %v5160, %v5624
          %v5661 = vadd.f32 %v5161, %v5627
          %s5662 = scalar_lea.vmem [#allocation5], %s829
          %v5663 = vld [vmem:[%s5662] sm:$0x1]
          %v5665 = vlaneseq
          %v5666 = vshrl.u32 %v5665, 7
          %v5667 = vsub.s32 0, %v5666
          %v5668 = vrot.slane %v5663, %v5667
          %v5670 = vadd.f32 %v5630, %v5668
          %v5671 = vadd.f32 %v5631, %v5668
          %v5672 = vadd.f32 %v5632, %v5668
          %v5673 = vadd.f32 %v5633, %v5668
          %v5674 = vadd.f32 %v5634, %v5668
          %v5675 = vadd.f32 %v5635, %v5668
          %v5676 = vadd.f32 %v5636, %v5668
          %v5677 = vadd.f32 %v5637, %v5668
          %v5678 = vadd.f32 %v5638, %v5668
          %v5679 = vadd.f32 %v5639, %v5668
          %v5680 = vadd.f32 %v5640, %v5668
          %v5681 = vadd.f32 %v5641, %v5668
          %v5682 = vadd.f32 %v5642, %v5668
          %v5683 = vadd.f32 %v5643, %v5668
          %v5684 = vadd.f32 %v5644, %v5668
          %v5685 = vadd.f32 %v5645, %v5668
          %v5686 = vadd.f32 %v5646, %v5668
          %v5687 = vadd.f32 %v5647, %v5668
          %v5688 = vadd.f32 %v5648, %v5668
          %v5689 = vadd.f32 %v5649, %v5668
          %v5690 = vadd.f32 %v5650, %v5668
          %v5691 = vadd.f32 %v5651, %v5668
          %v5692 = vadd.f32 %v5652, %v5668
          %v5693 = vadd.f32 %v5653, %v5668
          %v5694 = vadd.f32 %v5654, %v5668
          %v5695 = vadd.f32 %v5655, %v5668
          %v5696 = vadd.f32 %v5656, %v5668
          %v5697 = vadd.f32 %v5657, %v5668
          %v5698 = vadd.f32 %v5658, %v5668
          %v5699 = vadd.f32 %v5659, %v5668
          %v5700 = vadd.f32 %v5660, %v5668
          %v5701 = vadd.f32 %v5661, %v5668
          %v5702 = vmax.f32 %v5670, 0.0
          %v5703 = vmax.f32 %v5671, 0.0
          %v5704 = vmax.f32 %v5672, 0.0
          %v5705 = vmax.f32 %v5673, 0.0
          %v5706 = vmax.f32 %v5674, 0.0
          %v5707 = vmax.f32 %v5675, 0.0
          %v5708 = vmax.f32 %v5676, 0.0
          %v5709 = vmax.f32 %v5677, 0.0
          %v5710 = vmax.f32 %v5678, 0.0
          %v5711 = vmax.f32 %v5679, 0.0
          %v5712 = vmax.f32 %v5680, 0.0
          %v5713 = vmax.f32 %v5681, 0.0
          %v5714 = vmax.f32 %v5682, 0.0
          %v5715 = vmax.f32 %v5683, 0.0
          %v5716 = vmax.f32 %v5684, 0.0
          %v5717 = vmax.f32 %v5685, 0.0
          %v5718 = vmax.f32 %v5686, 0.0
          %v5719 = vmax.f32 %v5687, 0.0
          %v5720 = vmax.f32 %v5688, 0.0
          %v5721 = vmax.f32 %v5689, 0.0
          %v5722 = vmax.f32 %v5690, 0.0
          %v5723 = vmax.f32 %v5691, 0.0
          %v5724 = vmax.f32 %v5692, 0.0
          %v5725 = vmax.f32 %v5693, 0.0
          %v5726 = vmax.f32 %v5694, 0.0
          %v5727 = vmax.f32 %v5695, 0.0
          %v5728 = vmax.f32 %v5696, 0.0
          %v5729 = vmax.f32 %v5697, 0.0
          %v5730 = vmax.f32 %v5698, 0.0
          %v5731 = vmax.f32 %v5699, 0.0
          %v5732 = vmax.f32 %v5700, 0.0
          %v5733 = vmax.f32 %v5701, 0.0
          %v5734 = vpack.c.bf16 %v5703, %v5702
          %v5735 = vpack.c.bf16 %v5705, %v5704
          %v5736 = vpack.c.bf16 %v5707, %v5706
          %v5737 = vpack.c.bf16 %v5709, %v5708
          %v5738 = vpack.c.bf16 %v5711, %v5710
          %v5739 = vpack.c.bf16 %v5713, %v5712
          %v5740 = vpack.c.bf16 %v5715, %v5714
          %v5741 = vpack.c.bf16 %v5717, %v5716
          %v5742 = vpack.c.bf16 %v5719, %v5718
          %v5743 = vpack.c.bf16 %v5721, %v5720
          %v5744 = vpack.c.bf16 %v5723, %v5722
          %v5745 = vpack.c.bf16 %v5725, %v5724
          %v5746 = vpack.c.bf16 %v5727, %v5726
          %v5747 = vpack.c.bf16 %v5729, %v5728
          %v5748 = vpack.c.bf16 %v5731, %v5730
          %v5749 = vpack.c.bf16 %v5733, %v5732
          %v5766 = vunpack.c.l.b16 %v5734
          %v5767 = vunpack.c.h.b16 %v5734
          %v5768 = vunpack.c.l.b16 %v5735
          %v5769 = vunpack.c.h.b16 %v5735
          %v5770 = vunpack.c.l.b16 %v5736
          %v5771 = vunpack.c.h.b16 %v5736
          %v5772 = vunpack.c.l.b16 %v5737
          %v5773 = vunpack.c.h.b16 %v5737
          %v5774 = vunpack.c.l.b16 %v5738
          %v5775 = vunpack.c.h.b16 %v5738
          %v5776 = vunpack.c.l.b16 %v5739
          %v5777 = vunpack.c.h.b16 %v5739
          %v5778 = vunpack.c.l.b16 %v5740
          %v5779 = vunpack.c.h.b16 %v5740
          %v5780 = vunpack.c.l.b16 %v5741
          %v5781 = vunpack.c.h.b16 %v5741
          %v5782 = vunpack.c.l.b16 %v5742
          %v5783 = vunpack.c.h.b16 %v5742
          %v5784 = vunpack.c.l.b16 %v5743
          %v5785 = vunpack.c.h.b16 %v5743
          %v5786 = vunpack.c.l.b16 %v5744
          %v5787 = vunpack.c.h.b16 %v5744
          %v5788 = vunpack.c.l.b16 %v5745
          %v5789 = vunpack.c.h.b16 %v5745
          %v5790 = vunpack.c.l.b16 %v5746
          %v5791 = vunpack.c.h.b16 %v5746
          %v5792 = vunpack.c.l.b16 %v5747
          %v5793 = vunpack.c.h.b16 %v5747
          %v5794 = vunpack.c.l.b16 %v5748
          %v5795 = vunpack.c.h.b16 %v5748
          %v5796 = vunpack.c.l.b16 %v5749
          %v5797 = vunpack.c.h.b16 %v5749
          %v5798 = vpack.c.b16 %v5766, %v5766
          %v5799 = vpack.c.b16 %v5767, %v5767
          %v5800 = vpack.c.b16 %v5768, %v5768
          %v5801 = vpack.c.b16 %v5769, %v5769
          %v5802 = vpack.c.b16 %v5770, %v5770
          %v5803 = vpack.c.b16 %v5771, %v5771
          %v5804 = vpack.c.b16 %v5772, %v5772
          %v5805 = vpack.c.b16 %v5773, %v5773
          %v5806 = vpack.c.b16 %v5774, %v5774
          %v5807 = vpack.c.b16 %v5775, %v5775
          %v5808 = vpack.c.b16 %v5776, %v5776
          %v5809 = vpack.c.b16 %v5777, %v5777
          %v5810 = vpack.c.b16 %v5778, %v5778
          %v5811 = vpack.c.b16 %v5779, %v5779
          %v5812 = vpack.c.b16 %v5780, %v5780
          %v5813 = vpack.c.b16 %v5781, %v5781
          %v5814 = vpack.c.b16 %v5782, %v5782
          %v5815 = vpack.c.b16 %v5783, %v5783
          %v5816 = vpack.c.b16 %v5784, %v5784
          %v5817 = vpack.c.b16 %v5785, %v5785
          %v5818 = vpack.c.b16 %v5786, %v5786
          %v5819 = vpack.c.b16 %v5787, %v5787
          %v5820 = vpack.c.b16 %v5788, %v5788
          %v5821 = vpack.c.b16 %v5789, %v5789
          %v5822 = vpack.c.b16 %v5790, %v5790
          %v5823 = vpack.c.b16 %v5791, %v5791
          %v5824 = vpack.c.b16 %v5792, %v5792
          %v5825 = vpack.c.b16 %v5793, %v5793
          %v5826 = vpack.c.b16 %v5794, %v5794
          %v5827 = vpack.c.b16 %v5795, %v5795
          %v5828 = vpack.c.b16 %v5796, %v5796
          %v5829 = vpack.c.b16 %v5797, %v5797
          %v5831 = vshrl.u32 %v5798, 16
          %v5833 = vrot.slane %v5831, 7
          %v5834 = vshll.u32 %v5798, 16
          %v5836 = vor.u32 %v5833, %v5834
          %v5837 = vrot.slane %v5833, 4
          %v5839 = vshrl.u32 %v5799, 16
          %v5841 = vrot.slane %v5839, 7
          %v5842 = vshll.u32 %v5799, 16
          %v5844 = vor.u32 %v5841, %v5842
          %v5845 = vsel %vm388, %v5837, %v5844
          %v5846 = vrot.slane %v5841, 4
          %v5848 = vshrl.u32 %v5800, 16
          %v5850 = vrot.slane %v5848, 7
          %v5851 = vshll.u32 %v5800, 16
          %v5853 = vor.u32 %v5850, %v5851
          %v5854 = vrot.slane %v5850, 4
          %v5856 = vshrl.u32 %v5801, 16
          %v5858 = vrot.slane %v5856, 7
          %v5859 = vshll.u32 %v5801, 16
          %v5861 = vor.u32 %v5858, %v5859
          %v5862 = vsel %vm388, %v5854, %v5861
          %v5863 = vrot.slane %v5858, 4
          %v5865 = vshrl.u32 %v5802, 16
          %v5867 = vrot.slane %v5865, 7
          %v5868 = vshll.u32 %v5802, 16
          %v5870 = vor.u32 %v5867, %v5868
          %v5871 = vrot.slane %v5867, 4
          %v5873 = vshrl.u32 %v5803, 16
          %v5875 = vrot.slane %v5873, 7
          %v5876 = vshll.u32 %v5803, 16
          %v5878 = vor.u32 %v5875, %v5876
          %v5879 = vsel %vm388, %v5871, %v5878
          %v5880 = vrot.slane %v5875, 4
          %v5882 = vshrl.u32 %v5804, 16
          %v5884 = vrot.slane %v5882, 7
          %v5885 = vshll.u32 %v5804, 16
          %v5887 = vor.u32 %v5884, %v5885
          %v5888 = vrot.slane %v5884, 4
          %v5890 = vshrl.u32 %v5805, 16
          %v5892 = vrot.slane %v5890, 7
          %v5893 = vshll.u32 %v5805, 16
          %v5895 = vor.u32 %v5892, %v5893
          %v5896 = vsel %vm388, %v5888, %v5895
          %v5897 = vrot.slane %v5892, 4
          %v5899 = vshrl.u32 %v5806, 16
          %v5901 = vrot.slane %v5899, 7
          %v5902 = vshll.u32 %v5806, 16
          %v5904 = vor.u32 %v5901, %v5902
          %v5905 = vrot.slane %v5901, 4
          %v5907 = vshrl.u32 %v5807, 16
          %v5909 = vrot.slane %v5907, 7
          %v5910 = vshll.u32 %v5807, 16
          %v5912 = vor.u32 %v5909, %v5910
          %v5913 = vsel %vm388, %v5905, %v5912
          %v5914 = vrot.slane %v5909, 4
          %v5916 = vshrl.u32 %v5808, 16
          %v5918 = vrot.slane %v5916, 7
          %v5919 = vshll.u32 %v5808, 16
          %v5921 = vor.u32 %v5918, %v5919
          %v5922 = vrot.slane %v5918, 4
          %v5924 = vshrl.u32 %v5809, 16
          %v5926 = vrot.slane %v5924, 7
          %v5927 = vshll.u32 %v5809, 16
          %v5929 = vor.u32 %v5926, %v5927
          %v5930 = vsel %vm388, %v5922, %v5929
          %v5931 = vrot.slane %v5926, 4
          %v5933 = vshrl.u32 %v5810, 16
          %v5935 = vrot.slane %v5933, 7
          %v5936 = vshll.u32 %v5810, 16
          %v5938 = vor.u32 %v5935, %v5936
          %v5939 = vrot.slane %v5935, 4
          %v5941 = vshrl.u32 %v5811, 16
          %v5943 = vrot.slane %v5941, 7
          %v5944 = vshll.u32 %v5811, 16
          %v5946 = vor.u32 %v5943, %v5944
          %v5947 = vsel %vm388, %v5939, %v5946
          %v5948 = vrot.slane %v5943, 4
          %v5950 = vshrl.u32 %v5812, 16
          %v5952 = vrot.slane %v5950, 7
          %v5953 = vshll.u32 %v5812, 16
          %v5955 = vor.u32 %v5952, %v5953
          %v5956 = vrot.slane %v5952, 4
          %v5958 = vshrl.u32 %v5813, 16
          %v5960 = vrot.slane %v5958, 7
          %v5961 = vshll.u32 %v5813, 16
          %v5963 = vor.u32 %v5960, %v5961
          %v5964 = vsel %vm388, %v5956, %v5963
          %v5965 = vrot.slane %v5960, 4
          %v5967 = vshrl.u32 %v5814, 16
          %v5969 = vrot.slane %v5967, 7
          %v5970 = vshll.u32 %v5814, 16
          %v5972 = vor.u32 %v5969, %v5970
          %v5973 = vrot.slane %v5969, 4
          %v5975 = vshrl.u32 %v5815, 16
          %v5977 = vrot.slane %v5975, 7
          %v5978 = vshll.u32 %v5815, 16
          %v5980 = vor.u32 %v5977, %v5978
          %v5981 = vsel %vm388, %v5973, %v5980
          %v5982 = vrot.slane %v5977, 4
          %v5984 = vshrl.u32 %v5816, 16
          %v5986 = vrot.slane %v5984, 7
          %v5987 = vshll.u32 %v5816, 16
          %v5989 = vor.u32 %v5986, %v5987
          %v5990 = vrot.slane %v5986, 4
          %v5992 = vshrl.u32 %v5817, 16
          %v5994 = vrot.slane %v5992, 7
          %v5995 = vshll.u32 %v5817, 16
          %v5997 = vor.u32 %v5994, %v5995
          %v5998 = vsel %vm388, %v5990, %v5997
          %v5999 = vrot.slane %v5994, 4
          %v6001 = vshrl.u32 %v5818, 16
          %v6003 = vrot.slane %v6001, 7
          %v6004 = vshll.u32 %v5818, 16
          %v6006 = vor.u32 %v6003, %v6004
          %v6007 = vrot.slane %v6003, 4
          %v6009 = vshrl.u32 %v5819, 16
          %v6011 = vrot.slane %v6009, 7
          %v6012 = vshll.u32 %v5819, 16
          %v6014 = vor.u32 %v6011, %v6012
          %v6015 = vsel %vm388, %v6007, %v6014
          %v6016 = vrot.slane %v6011, 4
          %v6018 = vshrl.u32 %v5820, 16
          %v6020 = vrot.slane %v6018, 7
          %v6021 = vshll.u32 %v5820, 16
          %v6023 = vor.u32 %v6020, %v6021
          %v6024 = vrot.slane %v6020, 4
          %v6026 = vshrl.u32 %v5821, 16
          %v6028 = vrot.slane %v6026, 7
          %v6029 = vshll.u32 %v5821, 16
          %v6031 = vor.u32 %v6028, %v6029
          %v6032 = vsel %vm388, %v6024, %v6031
          %v6033 = vrot.slane %v6028, 4
          %v6035 = vshrl.u32 %v5822, 16
          %v6037 = vrot.slane %v6035, 7
          %v6038 = vshll.u32 %v5822, 16
          %v6040 = vor.u32 %v6037, %v6038
          %v6041 = vrot.slane %v6037, 4
          %v6043 = vshrl.u32 %v5823, 16
          %v6045 = vrot.slane %v6043, 7
          %v6046 = vshll.u32 %v5823, 16
          %v6048 = vor.u32 %v6045, %v6046
          %v6049 = vsel %vm388, %v6041, %v6048
          %v6050 = vrot.slane %v6045, 4
          %v6052 = vshrl.u32 %v5824, 16
          %v6054 = vrot.slane %v6052, 7
          %v6055 = vshll.u32 %v5824, 16
          %v6057 = vor.u32 %v6054, %v6055
          %v6058 = vrot.slane %v6054, 4
          %v6060 = vshrl.u32 %v5825, 16
          %v6062 = vrot.slane %v6060, 7
          %v6063 = vshll.u32 %v5825, 16
          %v6065 = vor.u32 %v6062, %v6063
          %v6066 = vsel %vm388, %v6058, %v6065
          %v6067 = vrot.slane %v6062, 4
          %v6069 = vshrl.u32 %v5826, 16
          %v6071 = vrot.slane %v6069, 7
          %v6072 = vshll.u32 %v5826, 16
          %v6074 = vor.u32 %v6071, %v6072
          %v6075 = vrot.slane %v6071, 4
          %v6077 = vshrl.u32 %v5827, 16
          %v6079 = vrot.slane %v6077, 7
          %v6080 = vshll.u32 %v5827, 16
          %v6082 = vor.u32 %v6079, %v6080
          %v6083 = vsel %vm388, %v6075, %v6082
          %v6084 = vrot.slane %v6079, 4
          %v6086 = vshrl.u32 %v5828, 16
          %v6088 = vrot.slane %v6086, 7
          %v6089 = vshll.u32 %v5828, 16
          %v6091 = vor.u32 %v6088, %v6089
          %v6092 = vrot.slane %v6088, 4
          %v6094 = vshrl.u32 %v5829, 16
          %v6096 = vrot.slane %v6094, 7
          %v6097 = vshll.u32 %v5829, 16
          %v6099 = vor.u32 %v6096, %v6097
          %v6100 = vsel %vm388, %v6092, %v6099
          %v6101 = vrot.slane %v6096, 4
          %vm6150 = vcmask 519168
          %vm6151 = vmand %vm6150, %vm711
          %v6152 = vsel %vm6151, %v5836, %v2761
          %6153 = vst [vmem:[%s709] sm:$0xf] %v6152
          %6154 = vst.msk [vmem:[%s709 + $0x4] sm:$0xf] %vm202, %v5845
          %vm6155 = vcmask 516096
          %vm6156 = vmand %vm6155, %vm386
          %v6157 = vld [vmem:[%s709 + $0x8] sm:$0x1]
          %v6158 = vsel %vm6156, %v5846, %v6157
          %6159 = vst [vmem:[%s709 + $0x8] sm:$0x1] %v6158
          %v6160 = vld [vmem:[%s709 + $0xc] sm:$0xf]
          %v6161 = vsel %vm6151, %v5853, %v6160
          %6162 = vst [vmem:[%s709 + $0xc] sm:$0xf] %v6161
          %6163 = vst.msk [vmem:[%s709 + $0x10] sm:$0xf] %vm202, %v5862
          %v6164 = vld [vmem:[%s709 + $0x14] sm:$0x1]
          %v6165 = vsel %vm6156, %v5863, %v6164
          %6166 = vst [vmem:[%s709 + $0x14] sm:$0x1] %v6165
          %v6167 = vld [vmem:[%s709 + $0x18] sm:$0xf]
          %v6168 = vsel %vm6151, %v5870, %v6167
          %6169 = vst [vmem:[%s709 + $0x18] sm:$0xf] %v6168
          %6170 = vst.msk [vmem:[%s709 + $0x1c] sm:$0xf] %vm202, %v5879
          %v6171 = vld [vmem:[%s709 + $0x20] sm:$0x1]
          %v6172 = vsel %vm6156, %v5880, %v6171
          %6173 = vst [vmem:[%s709 + $0x20] sm:$0x1] %v6172
          %v6174 = vld [vmem:[%s709 + $0x24] sm:$0xf]
          %v6175 = vsel %vm6151, %v5887, %v6174
          %6176 = vst [vmem:[%s709 + $0x24] sm:$0xf] %v6175
          %6177 = vst.msk [vmem:[%s709 + $0x28] sm:$0xf] %vm202, %v5896
          %v6178 = vld [vmem:[%s709 + $0x2c] sm:$0x1]
          %v6179 = vsel %vm6156, %v5897, %v6178
          %6180 = vst [vmem:[%s709 + $0x2c] sm:$0x1] %v6179
          %v6181 = vld [vmem:[%s709 + $0x30] sm:$0xf]
          %v6182 = vsel %vm6151, %v5904, %v6181
          %6183 = vst [vmem:[%s709 + $0x30] sm:$0xf] %v6182
          %6184 = vst.msk [vmem:[%s709 + $0x34] sm:$0xf] %vm202, %v5913
          %v6185 = vld [vmem:[%s709 + $0x38] sm:$0x1]
          %v6186 = vsel %vm6156, %v5914, %v6185
          %6187 = vst [vmem:[%s709 + $0x38] sm:$0x1] %v6186
          %v6188 = vld [vmem:[%s709 + $0x3c] sm:$0xf]
          %v6189 = vsel %vm6151, %v5921, %v6188
          %6190 = vst [vmem:[%s709 + $0x3c] sm:$0xf] %v6189
          %6191 = vst.msk [vmem:[%s709 + $0x40] sm:$0xf] %vm202, %v5930
          %v6192 = vld [vmem:[%s709 + $0x44] sm:$0x1]
          %v6193 = vsel %vm6156, %v5931, %v6192
          %6194 = vst [vmem:[%s709 + $0x44] sm:$0x1] %v6193
          %v6195 = vld [vmem:[%s709 + $0x48] sm:$0xf]
          %v6196 = vsel %vm6151, %v5938, %v6195
          %6197 = vst [vmem:[%s709 + $0x48] sm:$0xf] %v6196
          %6198 = vst.msk [vmem:[%s709 + $0x4c] sm:$0xf] %vm202, %v5947
          %v6199 = vld [vmem:[%s709 + $0x50] sm:$0x1]
          %v6200 = vsel %vm6156, %v5948, %v6199
          %6201 = vst [vmem:[%s709 + $0x50] sm:$0x1] %v6200
          %v6202 = vld [vmem:[%s709 + $0x54] sm:$0xf]
          %v6203 = vsel %vm6151, %v5955, %v6202
          %6204 = vst [vmem:[%s709 + $0x54] sm:$0xf] %v6203
          %6205 = vst.msk [vmem:[%s709 + $0x58] sm:$0xf] %vm202, %v5964
          %v6206 = vld [vmem:[%s709 + $0x5c] sm:$0x1]
          %v6207 = vsel %vm6156, %v5965, %v6206
          %6208 = vst [vmem:[%s709 + $0x5c] sm:$0x1] %v6207
          %v6209 = vld [vmem:[%s709 + $0x60] sm:$0xf]
          %v6210 = vsel %vm6151, %v5972, %v6209
          %6211 = vst [vmem:[%s709 + $0x60] sm:$0xf] %v6210
          %6212 = vst.msk [vmem:[%s709 + $0x64] sm:$0xf] %vm202, %v5981
          %v6213 = vld [vmem:[%s709 + $0x68] sm:$0x1]
          %v6214 = vsel %vm6156, %v5982, %v6213
          %6215 = vst [vmem:[%s709 + $0x68] sm:$0x1] %v6214
          %v6216 = vld [vmem:[%s709 + $0x6c] sm:$0xf]
          %v6217 = vsel %vm6151, %v5989, %v6216
          %6218 = vst [vmem:[%s709 + $0x6c] sm:$0xf] %v6217
          %6219 = vst.msk [vmem:[%s709 + $0x70] sm:$0xf] %vm202, %v5998
          %v6220 = vld [vmem:[%s709 + $0x74] sm:$0x1]
          %v6221 = vsel %vm6156, %v5999, %v6220
          %6222 = vst [vmem:[%s709 + $0x74] sm:$0x1] %v6221
          %v6223 = vld [vmem:[%s709 + $0x78] sm:$0xf]
          %v6224 = vsel %vm6151, %v6006, %v6223
          %6225 = vst [vmem:[%s709 + $0x78] sm:$0xf] %v6224
          %6226 = vst.msk [vmem:[%s709 + $0x7c] sm:$0xf] %vm202, %v6015
          %v6227 = vld [vmem:[%s709 + $0x80] sm:$0x1]
          %v6228 = vsel %vm6156, %v6016, %v6227
          %6229 = vst [vmem:[%s709 + $0x80] sm:$0x1] %v6228
          %v6230 = vld [vmem:[%s709 + $0x84] sm:$0xf]
          %v6231 = vsel %vm6151, %v6023, %v6230
          %6232 = vst [vmem:[%s709 + $0x84] sm:$0xf] %v6231
          %6233 = vst.msk [vmem:[%s709 + $0x88] sm:$0xf] %vm202, %v6032
          %v6234 = vld [vmem:[%s709 + $0x8c] sm:$0x1]
          %v6235 = vsel %vm6156, %v6033, %v6234
          %6236 = vst [vmem:[%s709 + $0x8c] sm:$0x1] %v6235
          %v6237 = vld [vmem:[%s709 + $0x90] sm:$0xf]
          %v6238 = vsel %vm6151, %v6040, %v6237
          %6239 = vst [vmem:[%s709 + $0x90] sm:$0xf] %v6238
          %6240 = vst.msk [vmem:[%s709 + $0x94] sm:$0xf] %vm202, %v6049
          %v6241 = vld [vmem:[%s709 + $0x98] sm:$0x1]
          %v6242 = vsel %vm6156, %v6050, %v6241
          %6243 = vst [vmem:[%s709 + $0x98] sm:$0x1] %v6242
          %v6244 = vld [vmem:[%s709 + $0x9c] sm:$0xf]
          %v6245 = vsel %vm6151, %v6057, %v6244
          %6246 = vst [vmem:[%s709 + $0x9c] sm:$0xf] %v6245
          %6247 = vst.msk [vmem:[%s709 + $0xa0] sm:$0xf] %vm202, %v6066
          %v6248 = vld [vmem:[%s709 + $0xa4] sm:$0x1]
          %v6249 = vsel %vm6156, %v6067, %v6248
          %6250 = vst [vmem:[%s709 + $0xa4] sm:$0x1] %v6249
          %v6251 = vld [vmem:[%s709 + $0xa8] sm:$0xf]
          %v6252 = vsel %vm6151, %v6074, %v6251
          %6253 = vst [vmem:[%s709 + $0xa8] sm:$0xf] %v6252
          %6254 = vst.msk [vmem:[%s709 + $0xac] sm:$0xf] %vm202, %v6083
          %v6255 = vld [vmem:[%s709 + $0xb0] sm:$0x1]
          %v6256 = vsel %vm6156, %v6084, %v6255
          %6257 = vst [vmem:[%s709 + $0xb0] sm:$0x1] %v6256
          %v6258 = vld [vmem:[%s709 + $0xb4] sm:$0xf]
          %v6259 = vsel %vm6151, %v6091, %v6258
          %6260 = vst [vmem:[%s709 + $0xb4] sm:$0xf] %v6259
          %6261 = vst.msk [vmem:[%s709 + $0xb8] sm:$0xf] %vm202, %v6100
          %v6262 = vld [vmem:[%s709 + $0xbc] sm:$0x1]
          %v6263 = vsel %vm6156, %v6101, %v6262
          %6264 = vst [vmem:[%s709 + $0xbc] sm:$0x1] %v6263
        $region45: #{vdsr_forward.1} parent=31 // loop_footer
          %s833 = sadd.s32 1, %s829
        $region46: #{vdsr_forward.1} parent=31 // loop_footer_branch
          %828 = sbr.rel target = $region42
        $region47: #{vdsr_forward.1} parent=31 // loop_exit
          _
        %v6265 = vld [vmem:[#allocation2] sm:$0xf]
        %v6266 = vld [vmem:[#allocation2 + $0x4] sm:$0xf]
        %v6267 = vld [vmem:[#allocation2 + $0xc] sm:$0xf]
        %v6268 = vld [vmem:[#allocation2 + $0x10] sm:$0xf]
        %v6269 = vld [vmem:[#allocation2 + $0x18] sm:$0xf]
        %v6270 = vld [vmem:[#allocation2 + $0x1c] sm:$0xf]
        %v6271 = vld [vmem:[#allocation2 + $0x24] sm:$0xf]
        %v6272 = vld [vmem:[#allocation2 + $0x28] sm:$0xf]
        %v6273 = vld [vmem:[#allocation2 + $0x30] sm:$0xf]
        %v6274 = vld [vmem:[#allocation2 + $0x34] sm:$0xf]
        %v6275 = vld [vmem:[#allocation2 + $0x3c] sm:$0xf]
        %v6276 = vld [vmem:[#allocation2 + $0x40] sm:$0xf]
        %v6277 = vld [vmem:[#allocation2 + $0x48] sm:$0xf]
        %v6278 = vld [vmem:[#allocation2 + $0x4c] sm:$0xf]
        %v6279 = vld [vmem:[#allocation2 + $0x54] sm:$0xf]
        %v6280 = vld [vmem:[#allocation2 + $0x58] sm:$0xf]
        %v6281 = vld [vmem:[#allocation2 + $0x60] sm:$0xf]
        %v6282 = vld [vmem:[#allocation2 + $0x64] sm:$0xf]
        %v6283 = vld [vmem:[#allocation2 + $0x6c] sm:$0xf]
        %v6284 = vld [vmem:[#allocation2 + $0x70] sm:$0xf]
        %v6285 = vld [vmem:[#allocation2 + $0x78] sm:$0xf]
        %v6286 = vld [vmem:[#allocation2 + $0x7c] sm:$0xf]
        %v6287 = vld [vmem:[#allocation2 + $0x84] sm:$0xf]
        %v6288 = vld [vmem:[#allocation2 + $0x88] sm:$0xf]
        %v6289 = vld [vmem:[#allocation2 + $0x90] sm:$0xf]
        %v6290 = vld [vmem:[#allocation2 + $0x94] sm:$0xf]
        %v6291 = vld [vmem:[#allocation2 + $0x9c] sm:$0xf]
        %v6292 = vld [vmem:[#allocation2 + $0xa0] sm:$0xf]
        %v6293 = vld [vmem:[#allocation2 + $0xa8] sm:$0xf]
        %v6294 = vld [vmem:[#allocation2 + $0xac] sm:$0xf]
        %v6295 = vld [vmem:[#allocation2 + $0xb4] sm:$0xf]
        %v6296 = vld [vmem:[#allocation2 + $0xb8] sm:$0xf]
        %s6297 = scalar_lea.vmem [#allocation3], 5472
        %v6298 = vld [vmem:[%s6297] sm:$0xf]
        %v6299 = vld [vmem:[%s6297 + $0x4] sm:$0xf]
        %v6300 = vld [vmem:[%s6297 + $0x8] sm:$0xf]
        %v6301 = vld [vmem:[%s6297 + $0xc] sm:$0xf]
        %v6302 = vld [vmem:[%s6297 + $0x10] sm:$0xf]
        %v6303 = vld [vmem:[%s6297 + $0x14] sm:$0xf]
        %v6304 = vld [vmem:[%s6297 + $0x18] sm:$0xf]
        %v6305 = vld [vmem:[%s6297 + $0x1c] sm:$0xf]
        %v6306 = vld [vmem:[#allocation2 + $0x8] sm:$0x1]
        %v6307 = vld [vmem:[#allocation2 + $0x14] sm:$0x1]
        %v6308 = vld [vmem:[#allocation2 + $0x20] sm:$0x1]
        %v6309 = vld [vmem:[#allocation2 + $0x2c] sm:$0x1]
        %v6310 = vld [vmem:[#allocation2 + $0x38] sm:$0x1]
        %v6311 = vld [vmem:[#allocation2 + $0x44] sm:$0x1]
        %v6312 = vld [vmem:[#allocation2 + $0x50] sm:$0x1]
        %v6313 = vld [vmem:[#allocation2 + $0x5c] sm:$0x1]
        %v6314 = vld [vmem:[#allocation2 + $0x68] sm:$0x1]
        %v6315 = vld [vmem:[#allocation2 + $0x74] sm:$0x1]
        %v6316 = vld [vmem:[#allocation2 + $0x80] sm:$0x1]
        %v6317 = vld [vmem:[#allocation2 + $0x8c] sm:$0x1]
        %v6318 = vld [vmem:[#allocation2 + $0x98] sm:$0x1]
        %v6319 = vld [vmem:[#allocation2 + $0xa4] sm:$0x1]
        %v6320 = vld [vmem:[#allocation2 + $0xb0] sm:$0x1]
        %v6321 = vld [vmem:[#allocation2 + $0xbc] sm:$0x1]
        %vm6322 = vsmask.f32 3328
        %vm6323 = vsmask.f32 7440
        %vm6324 = vmor %vm6322, %vm6323
        %v6326 = vshrl.u32 %v6265, 16
        %v6328 = vrot.slane %v6326, 4
        %v6329 = vshll.u32 %v6265, 16
        %v6331 = vrot.slane %v6329, 5
        %v6332 = vor.u32 %v6328, %v6331
        %v6333 = vrot.slane %v6332, 4
        %v6335 = vshll.u32 %v6266, 16
        %v6337 = vrot.slane %v6335, 5
        %v6338 = vsel %vm6324, %v6333, %v6337
        %v6339 = vshrl.u32 %v6266, 16
        %v6341 = vrot.slane %v6339, 4
        %v6342 = vor.u32 %v6341, %v6337
        %v6343 = vrot.slane %v6342, 4
        %v6345 = vshll.u32 %v6306, 16
        %v6347 = vrot.slane %v6345, 5
        %v6348 = vsel %vm6324, %v6343, %v6347
        %v6350 = vshrl.u32 %v6267, 16
        %v6352 = vrot.slane %v6350, 4
        %v6353 = vshll.u32 %v6267, 16
        %v6355 = vrot.slane %v6353, 5
        %v6356 = vor.u32 %v6352, %v6355
        %v6357 = vrot.slane %v6356, 4
        %v6359 = vshll.u32 %v6268, 16
        %v6361 = vrot.slane %v6359, 5
        %v6362 = vsel %vm6324, %v6357, %v6361
        %v6363 = vshrl.u32 %v6268, 16
        %v6365 = vrot.slane %v6363, 4
        %v6366 = vor.u32 %v6365, %v6361
        %v6367 = vrot.slane %v6366, 4
        %v6369 = vshll.u32 %v6307, 16
        %v6371 = vrot.slane %v6369, 5
        %v6372 = vsel %vm6324, %v6367, %v6371
        %v6374 = vshrl.u32 %v6269, 16
        %v6376 = vrot.slane %v6374, 4
        %v6377 = vshll.u32 %v6269, 16
        %v6379 = vrot.slane %v6377, 5
        %v6380 = vor.u32 %v6376, %v6379
        %v6381 = vrot.slane %v6380, 4
        %v6383 = vshll.u32 %v6270, 16
        %v6385 = vrot.slane %v6383, 5
        %v6386 = vsel %vm6324, %v6381, %v6385
        %v6387 = vshrl.u32 %v6270, 16
        %v6389 = vrot.slane %v6387, 4
        %v6390 = vor.u32 %v6389, %v6385
        %v6391 = vrot.slane %v6390, 4
        %v6393 = vshll.u32 %v6308, 16
        %v6395 = vrot.slane %v6393, 5
        %v6396 = vsel %vm6324, %v6391, %v6395
        %v6398 = vshrl.u32 %v6271, 16
        %v6400 = vrot.slane %v6398, 4
        %v6401 = vshll.u32 %v6271, 16
        %v6403 = vrot.slane %v6401, 5
        %v6404 = vor.u32 %v6400, %v6403
        %v6405 = vrot.slane %v6404, 4
        %v6407 = vshll.u32 %v6272, 16
        %v6409 = vrot.slane %v6407, 5
        %v6410 = vsel %vm6324, %v6405, %v6409
        %v6411 = vshrl.u32 %v6272, 16
        %v6413 = vrot.slane %v6411, 4
        %v6414 = vor.u32 %v6413, %v6409
        %v6415 = vrot.slane %v6414, 4
        %v6417 = vshll.u32 %v6309, 16
        %v6419 = vrot.slane %v6417, 5
        %v6420 = vsel %vm6324, %v6415, %v6419
        %v6422 = vshrl.u32 %v6273, 16
        %v6424 = vrot.slane %v6422, 4
        %v6425 = vshll.u32 %v6273, 16
        %v6427 = vrot.slane %v6425, 5
        %v6428 = vor.u32 %v6424, %v6427
        %v6429 = vrot.slane %v6428, 4
        %v6431 = vshll.u32 %v6274, 16
        %v6433 = vrot.slane %v6431, 5
        %v6434 = vsel %vm6324, %v6429, %v6433
        %v6435 = vshrl.u32 %v6274, 16
        %v6437 = vrot.slane %v6435, 4
        %v6438 = vor.u32 %v6437, %v6433
        %v6439 = vrot.slane %v6438, 4
        %v6441 = vshll.u32 %v6310, 16
        %v6443 = vrot.slane %v6441, 5
        %v6444 = vsel %vm6324, %v6439, %v6443
        %v6446 = vshrl.u32 %v6275, 16
        %v6448 = vrot.slane %v6446, 4
        %v6449 = vshll.u32 %v6275, 16
        %v6451 = vrot.slane %v6449, 5
        %v6452 = vor.u32 %v6448, %v6451
        %v6453 = vrot.slane %v6452, 4
        %v6455 = vshll.u32 %v6276, 16
        %v6457 = vrot.slane %v6455, 5
        %v6458 = vsel %vm6324, %v6453, %v6457
        %v6459 = vshrl.u32 %v6276, 16
        %v6461 = vrot.slane %v6459, 4
        %v6462 = vor.u32 %v6461, %v6457
        %v6463 = vrot.slane %v6462, 4
        %v6465 = vshll.u32 %v6311, 16
        %v6467 = vrot.slane %v6465, 5
        %v6468 = vsel %vm6324, %v6463, %v6467
        %v6470 = vshrl.u32 %v6277, 16
        %v6472 = vrot.slane %v6470, 4
        %v6473 = vshll.u32 %v6277, 16
        %v6475 = vrot.slane %v6473, 5
        %v6476 = vor.u32 %v6472, %v6475
        %v6477 = vrot.slane %v6476, 4
        %v6479 = vshll.u32 %v6278, 16
        %v6481 = vrot.slane %v6479, 5
        %v6482 = vsel %vm6324, %v6477, %v6481
        %v6483 = vshrl.u32 %v6278, 16
        %v6485 = vrot.slane %v6483, 4
        %v6486 = vor.u32 %v6485, %v6481
        %v6487 = vrot.slane %v6486, 4
        %v6489 = vshll.u32 %v6312, 16
        %v6491 = vrot.slane %v6489, 5
        %v6492 = vsel %vm6324, %v6487, %v6491
        %v6494 = vshrl.u32 %v6279, 16
        %v6496 = vrot.slane %v6494, 4
        %v6497 = vshll.u32 %v6279, 16
        %v6499 = vrot.slane %v6497, 5
        %v6500 = vor.u32 %v6496, %v6499
        %v6501 = vrot.slane %v6500, 4
        %v6503 = vshll.u32 %v6280, 16
        %v6505 = vrot.slane %v6503, 5
        %v6506 = vsel %vm6324, %v6501, %v6505
        %v6507 = vshrl.u32 %v6280, 16
        %v6509 = vrot.slane %v6507, 4
        %v6510 = vor.u32 %v6509, %v6505
        %v6511 = vrot.slane %v6510, 4
        %v6513 = vshll.u32 %v6313, 16
        %v6515 = vrot.slane %v6513, 5
        %v6516 = vsel %vm6324, %v6511, %v6515
        %v6518 = vshrl.u32 %v6281, 16
        %v6520 = vrot.slane %v6518, 4
        %v6521 = vshll.u32 %v6281, 16
        %v6523 = vrot.slane %v6521, 5
        %v6524 = vor.u32 %v6520, %v6523
        %v6525 = vrot.slane %v6524, 4
        %v6527 = vshll.u32 %v6282, 16
        %v6529 = vrot.slane %v6527, 5
        %v6530 = vsel %vm6324, %v6525, %v6529
        %v6531 = vshrl.u32 %v6282, 16
        %v6533 = vrot.slane %v6531, 4
        %v6534 = vor.u32 %v6533, %v6529
        %v6535 = vrot.slane %v6534, 4
        %v6537 = vshll.u32 %v6314, 16
        %v6539 = vrot.slane %v6537, 5
        %v6540 = vsel %vm6324, %v6535, %v6539
        %v6542 = vshrl.u32 %v6283, 16
        %v6544 = vrot.slane %v6542, 4
        %v6545 = vshll.u32 %v6283, 16
        %v6547 = vrot.slane %v6545, 5
        %v6548 = vor.u32 %v6544, %v6547
        %v6549 = vrot.slane %v6548, 4
        %v6551 = vshll.u32 %v6284, 16
        %v6553 = vrot.slane %v6551, 5
        %v6554 = vsel %vm6324, %v6549, %v6553
        %v6555 = vshrl.u32 %v6284, 16
        %v6557 = vrot.slane %v6555, 4
        %v6558 = vor.u32 %v6557, %v6553
        %v6559 = vrot.slane %v6558, 4
        %v6561 = vshll.u32 %v6315, 16
        %v6563 = vrot.slane %v6561, 5
        %v6564 = vsel %vm6324, %v6559, %v6563
        %v6566 = vshrl.u32 %v6285, 16
        %v6568 = vrot.slane %v6566, 4
        %v6569 = vshll.u32 %v6285, 16
        %v6571 = vrot.slane %v6569, 5
        %v6572 = vor.u32 %v6568, %v6571
        %v6573 = vrot.slane %v6572, 4
        %v6575 = vshll.u32 %v6286, 16
        %v6577 = vrot.slane %v6575, 5
        %v6578 = vsel %vm6324, %v6573, %v6577
        %v6579 = vshrl.u32 %v6286, 16
        %v6581 = vrot.slane %v6579, 4
        %v6582 = vor.u32 %v6581, %v6577
        %v6583 = vrot.slane %v6582, 4
        %v6585 = vshll.u32 %v6316, 16
        %v6587 = vrot.slane %v6585, 5
        %v6588 = vsel %vm6324, %v6583, %v6587
        %v6590 = vshrl.u32 %v6287, 16
        %v6592 = vrot.slane %v6590, 4
        %v6593 = vshll.u32 %v6287, 16
        %v6595 = vrot.slane %v6593, 5
        %v6596 = vor.u32 %v6592, %v6595
        %v6597 = vrot.slane %v6596, 4
        %v6599 = vshll.u32 %v6288, 16
        %v6601 = vrot.slane %v6599, 5
        %v6602 = vsel %vm6324, %v6597, %v6601
        %v6603 = vshrl.u32 %v6288, 16
        %v6605 = vrot.slane %v6603, 4
        %v6606 = vor.u32 %v6605, %v6601
        %v6607 = vrot.slane %v6606, 4
        %v6609 = vshll.u32 %v6317, 16
        %v6611 = vrot.slane %v6609, 5
        %v6612 = vsel %vm6324, %v6607, %v6611
        %v6614 = vshrl.u32 %v6289, 16
        %v6616 = vrot.slane %v6614, 4
        %v6617 = vshll.u32 %v6289, 16
        %v6619 = vrot.slane %v6617, 5
        %v6620 = vor.u32 %v6616, %v6619
        %v6621 = vrot.slane %v6620, 4
        %v6623 = vshll.u32 %v6290, 16
        %v6625 = vrot.slane %v6623, 5
        %v6626 = vsel %vm6324, %v6621, %v6625
        %v6627 = vshrl.u32 %v6290, 16
        %v6629 = vrot.slane %v6627, 4
        %v6630 = vor.u32 %v6629, %v6625
        %v6631 = vrot.slane %v6630, 4
        %v6633 = vshll.u32 %v6318, 16
        %v6635 = vrot.slane %v6633, 5
        %v6636 = vsel %vm6324, %v6631, %v6635
        %v6638 = vshrl.u32 %v6291, 16
        %v6640 = vrot.slane %v6638, 4
        %v6641 = vshll.u32 %v6291, 16
        %v6643 = vrot.slane %v6641, 5
        %v6644 = vor.u32 %v6640, %v6643
        %v6645 = vrot.slane %v6644, 4
        %v6647 = vshll.u32 %v6292, 16
        %v6649 = vrot.slane %v6647, 5
        %v6650 = vsel %vm6324, %v6645, %v6649
        %v6651 = vshrl.u32 %v6292, 16
        %v6653 = vrot.slane %v6651, 4
        %v6654 = vor.u32 %v6653, %v6649
        %v6655 = vrot.slane %v6654, 4
        %v6657 = vshll.u32 %v6319, 16
        %v6659 = vrot.slane %v6657, 5
        %v6660 = vsel %vm6324, %v6655, %v6659
        %v6662 = vshrl.u32 %v6293, 16
        %v6664 = vrot.slane %v6662, 4
        %v6665 = vshll.u32 %v6293, 16
        %v6667 = vrot.slane %v6665, 5
        %v6668 = vor.u32 %v6664, %v6667
        %v6669 = vrot.slane %v6668, 4
        %v6671 = vshll.u32 %v6294, 16
        %v6673 = vrot.slane %v6671, 5
        %v6674 = vsel %vm6324, %v6669, %v6673
        %v6675 = vshrl.u32 %v6294, 16
        %v6677 = vrot.slane %v6675, 4
        %v6678 = vor.u32 %v6677, %v6673
        %v6679 = vrot.slane %v6678, 4
        %v6681 = vshll.u32 %v6320, 16
        %v6683 = vrot.slane %v6681, 5
        %v6684 = vsel %vm6324, %v6679, %v6683
        %v6686 = vshrl.u32 %v6295, 16
        %v6688 = vrot.slane %v6686, 4
        %v6689 = vshll.u32 %v6295, 16
        %v6691 = vrot.slane %v6689, 5
        %v6692 = vor.u32 %v6688, %v6691
        %v6693 = vrot.slane %v6692, 4
        %v6695 = vshll.u32 %v6296, 16
        %v6697 = vrot.slane %v6695, 5
        %v6698 = vsel %vm6324, %v6693, %v6697
        %v6699 = vshrl.u32 %v6296, 16
        %v6701 = vrot.slane %v6699, 4
        %v6702 = vor.u32 %v6701, %v6697
        %v6703 = vrot.slane %v6702, 4
        %v6705 = vshll.u32 %v6321, 16
        %v6707 = vrot.slane %v6705, 5
        %v6708 = vsel %vm6324, %v6703, %v6707
        %s6709 = scalar_lea.vmem [#allocation3], 5504
        %v6710 = vld [vmem:[%s6709] sm:$0xf]
        %v6711 = vld [vmem:[%s6709 + $0x4] sm:$0xf]
        %v6712 = vld [vmem:[%s6709 + $0x8] sm:$0xf]
        %v6713 = vld [vmem:[%s6709 + $0xc] sm:$0xf]
        %v6714 = vld [vmem:[%s6709 + $0x10] sm:$0xf]
        %v6715 = vld [vmem:[%s6709 + $0x14] sm:$0xf]
        %v6716 = vld [vmem:[%s6709 + $0x18] sm:$0xf]
        %v6717 = vld [vmem:[%s6709 + $0x1c] sm:$0xf]
        %v6718 = vunpack.c.l.b16 %v6338
        %v6719 = vunpack.c.l.b16 %v6348
        %v6720 = vunpack.c.l.b16 %v6362
        %v6721 = vunpack.c.l.b16 %v6372
        %v6722 = vunpack.c.l.b16 %v6386
        %v6723 = vunpack.c.l.b16 %v6396
        %v6724 = vunpack.c.l.b16 %v6410
        %v6725 = vunpack.c.l.b16 %v6420
        %v6726 = vunpack.c.l.b16 %v6434
        %v6727 = vunpack.c.l.b16 %v6444
        %v6728 = vunpack.c.l.b16 %v6458
        %v6729 = vunpack.c.l.b16 %v6468
        %v6730 = vunpack.c.l.b16 %v6482
        %v6731 = vunpack.c.l.b16 %v6492
        %v6732 = vunpack.c.l.b16 %v6506
        %v6733 = vunpack.c.l.b16 %v6516
        %v6734 = vunpack.c.l.b16 %v6530
        %v6735 = vunpack.c.l.b16 %v6540
        %v6736 = vunpack.c.l.b16 %v6554
        %v6737 = vunpack.c.l.b16 %v6564
        %v6738 = vunpack.c.l.b16 %v6578
        %v6739 = vunpack.c.l.b16 %v6588
        %v6740 = vunpack.c.l.b16 %v6602
        %v6741 = vunpack.c.l.b16 %v6612
        %v6742 = vunpack.c.l.b16 %v6626
        %v6743 = vunpack.c.l.b16 %v6636
        %v6744 = vunpack.c.l.b16 %v6650
        %v6745 = vunpack.c.l.b16 %v6660
        %v6746 = vunpack.c.l.b16 %v6674
        %v6747 = vunpack.c.l.b16 %v6684
        %v6748 = vunpack.c.l.b16 %v6698
        %v6749 = vunpack.c.l.b16 %v6708
        %v6750 = vpack.c.b16 %v6719, %v6718
        %v6751 = vpack.c.b16 %v6721, %v6720
        %v6752 = vpack.c.b16 %v6723, %v6722
        %v6753 = vpack.c.b16 %v6725, %v6724
        %v6754 = vpack.c.b16 %v6727, %v6726
        %v6755 = vpack.c.b16 %v6729, %v6728
        %v6756 = vpack.c.b16 %v6731, %v6730
        %v6757 = vpack.c.b16 %v6733, %v6732
        %v6758 = vpack.c.b16 %v6735, %v6734
        %v6759 = vpack.c.b16 %v6737, %v6736
        %v6760 = vpack.c.b16 %v6739, %v6738
        %v6761 = vpack.c.b16 %v6741, %v6740
        %v6762 = vpack.c.b16 %v6743, %v6742
        %v6763 = vpack.c.b16 %v6745, %v6744
        %v6764 = vpack.c.b16 %v6747, %v6746
        %v6765 = vpack.c.b16 %v6749, %v6748
        %v6774 = vunpack.c.l.b16 %v6710
        %v6775 = vunpack.c.l.b16 %v6711
        %v6776 = vunpack.c.l.b16 %v6712
        %v6777 = vunpack.c.l.b16 %v6713
        %v6778 = vunpack.c.l.b16 %v6714
        %v6779 = vunpack.c.l.b16 %v6715
        %v6780 = vunpack.c.l.b16 %v6716
        %v6781 = vunpack.c.l.b16 %v6717
        %v6782 = vpack.c.b16 %v6775, %v6774
        %v6783 = vpack.c.b16 %v6777, %v6776
        %v6784 = vpack.c.b16 %v6779, %v6778
        %v6785 = vpack.c.b16 %v6781, %v6780
        %vm6790 = vcmask 523264
        %v6792 = vsel %vm6790, %v6750, 0
        %v6795 = vsel %vm6790, %v6751, 0
        %v6798 = vsel %vm6790, %v6752, 0
        %v6801 = vsel %vm6790, %v6753, 0
        %v6804 = vsel %vm6790, %v6754, 0
        %v6807 = vsel %vm6790, %v6755, 0
        %v6810 = vsel %vm6790, %v6756, 0
        %v6813 = vsel %vm6790, %v6757, 0
        %v6816 = vsel %vm6790, %v6758, 0
        %v6819 = vsel %vm6790, %v6759, 0
        %v6822 = vsel %vm6790, %v6760, 0
        %v6825 = vsel %vm6790, %v6761, 0
        %v6828 = vsel %vm6790, %v6762, 0
        %v6831 = vsel %vm6790, %v6763, 0
        %v6834 = vsel %vm6790, %v6764, 0
        %v6837 = vsel %vm6790, %v6765, 0
        %6839 = vmatprep.subr.bf16.mxu0 0
        %6840 = vmatpush1.bf16.msra.mxu0 0
        %6841 = vmatprep.subr.bf16.mxu0 0
        %6842 = vmatpush1.bf16.msra.mxu0 0
        %6843 = vmatprep.subr.bf16.mxu0 0
        %6844 = vmatpush1.bf16.msra.mxu0 0
        %6845 = vmatprep.subr.bf16.mxu0 0
        %6846 = vmatpush1.bf16.msra.mxu0 0
        %6847 = vmatprep.subr.bf16.mxu0 0
        %6848 = vmatpush1.bf16.msra.mxu0 %v6785
        %6849 = vmatprep.subr.bf16.mxu0 0
        %6850 = vmatpush1.bf16.msra.mxu0 %v6784
        %6851 = vmatprep.subr.bf16.mxu0 0
        %6852 = vmatpush1.bf16.msra.mxu0 %v6783
        %6853 = vmatprep.subr.bf16.mxu0 0
        %6854 = vmatpush1.bf16.msra.mxu0 %v6782
        %6855 = vmatprep.subr.bf16.mxu0 0
        %6856 = vmatpush2.bf16.msra.mxu0 0
        %6857 = vmatprep.subr.bf16.mxu0 0
        %6858 = vmatpush2.bf16.msra.mxu0 0
        %6859 = vmatprep.subr.bf16.mxu0 0
        %6860 = vmatpush2.bf16.msra.mxu0 0
        %6861 = vmatprep.subr.bf16.mxu0 0
        %6862 = vmatpush2.bf16.msra.mxu0 0
        %6863 = vmatprep.subr.bf16.mxu0 0
        %6864 = vmatpush2.bf16.msra.mxu0 0
        %6865 = vmatprep.subr.bf16.mxu0 0
        %6866 = vmatpush2.bf16.msra.mxu0 0
        %6867 = vmatprep.subr.bf16.mxu0 0
        %6868 = vmatpush2.bf16.msra.mxu0 0
        %6869 = vmatprep.subr.bf16.mxu0 0
        %6870 = vmatpush2.bf16.msra.mxu0 0
        %6871 = vmatprep.mubr.bf16.mxu0 0
        %6872 = vmatmul.mubr.bf16.gmra.mxu0 %v6792
        %v6873 = vpop.f32.mrf.mxu0
        %v6874 = vadd.f32 0.0, %v6873
        %v6875 = vpop.f32.mrf.mxu0
        %v6876 = vpop.f32.mrf.mxu0
        %v6877 = vadd.f32 0.0, %v6876
        %v6878 = vpop.f32.mrf.mxu0
        %6879 = vmatprep.mubr.bf16.mxu0 0
        %6880 = vmatmul.mubr.bf16.gmra.mxu0 %v6795
        %v6881 = vpop.f32.mrf.mxu0
        %v6882 = vadd.f32 0.0, %v6881
        %v6883 = vpop.f32.mrf.mxu0
        %v6884 = vpop.f32.mrf.mxu0
        %v6885 = vadd.f32 0.0, %v6884
        %v6886 = vpop.f32.mrf.mxu0
        %6887 = vmatprep.mubr.bf16.mxu0 0
        %6888 = vmatmul.mubr.bf16.gmra.mxu0 %v6798
        %v6889 = vpop.f32.mrf.mxu0
        %v6890 = vadd.f32 0.0, %v6889
        %v6891 = vpop.f32.mrf.mxu0
        %v6892 = vpop.f32.mrf.mxu0
        %v6893 = vadd.f32 0.0, %v6892
        %v6894 = vpop.f32.mrf.mxu0
        %6895 = vmatprep.mubr.bf16.mxu0 0
        %6896 = vmatmul.mubr.bf16.gmra.mxu0 %v6801
        %v6897 = vpop.f32.mrf.mxu0
        %v6898 = vadd.f32 0.0, %v6897
        %v6899 = vpop.f32.mrf.mxu0
        %v6900 = vpop.f32.mrf.mxu0
        %v6901 = vadd.f32 0.0, %v6900
        %v6902 = vpop.f32.mrf.mxu0
        %6903 = vmatprep.mubr.bf16.mxu0 0
        %6904 = vmatmul.mubr.bf16.gmra.mxu0 %v6804
        %v6905 = vpop.f32.mrf.mxu0
        %v6906 = vadd.f32 0.0, %v6905
        %v6907 = vpop.f32.mrf.mxu0
        %v6908 = vpop.f32.mrf.mxu0
        %v6909 = vadd.f32 0.0, %v6908
        %v6910 = vpop.f32.mrf.mxu0
        %6911 = vmatprep.mubr.bf16.mxu0 0
        %6912 = vmatmul.mubr.bf16.gmra.mxu0 %v6807
        %v6913 = vpop.f32.mrf.mxu0
        %v6914 = vadd.f32 0.0, %v6913
        %v6915 = vpop.f32.mrf.mxu0
        %v6916 = vpop.f32.mrf.mxu0
        %v6917 = vadd.f32 0.0, %v6916
        %v6918 = vpop.f32.mrf.mxu0
        %6919 = vmatprep.mubr.bf16.mxu0 0
        %6920 = vmatmul.mubr.bf16.gmra.mxu0 %v6810
        %v6921 = vpop.f32.mrf.mxu0
        %v6922 = vadd.f32 0.0, %v6921
        %v6923 = vpop.f32.mrf.mxu0
        %v6924 = vpop.f32.mrf.mxu0
        %v6925 = vadd.f32 0.0, %v6924
        %v6926 = vpop.f32.mrf.mxu0
        %6927 = vmatprep.mubr.bf16.mxu0 0
        %6928 = vmatmul.mubr.bf16.gmra.mxu0 %v6813
        %v6929 = vpop.f32.mrf.mxu0
        %v6930 = vadd.f32 0.0, %v6929
        %v6931 = vpop.f32.mrf.mxu0
        %v6932 = vpop.f32.mrf.mxu0
        %v6933 = vadd.f32 0.0, %v6932
        %v6934 = vpop.f32.mrf.mxu0
        %6935 = vmatprep.mubr.bf16.mxu0 0
        %6936 = vmatmul.mubr.bf16.gmra.mxu0 %v6816
        %v6937 = vpop.f32.mrf.mxu0
        %v6938 = vadd.f32 0.0, %v6937
        %v6939 = vpop.f32.mrf.mxu0
        %v6940 = vpop.f32.mrf.mxu0
        %v6941 = vadd.f32 0.0, %v6940
        %v6942 = vpop.f32.mrf.mxu0
        %6943 = vmatprep.mubr.bf16.mxu0 0
        %6944 = vmatmul.mubr.bf16.gmra.mxu0 %v6819
        %v6945 = vpop.f32.mrf.mxu0
        %v6946 = vadd.f32 0.0, %v6945
        %v6947 = vpop.f32.mrf.mxu0
        %v6948 = vpop.f32.mrf.mxu0
        %v6949 = vadd.f32 0.0, %v6948
        %v6950 = vpop.f32.mrf.mxu0
        %6951 = vmatprep.mubr.bf16.mxu0 0
        %6952 = vmatmul.mubr.bf16.gmra.mxu0 %v6822
        %v6953 = vpop.f32.mrf.mxu0
        %v6954 = vadd.f32 0.0, %v6953
        %v6955 = vpop.f32.mrf.mxu0
        %v6956 = vpop.f32.mrf.mxu0
        %v6957 = vadd.f32 0.0, %v6956
        %v6958 = vpop.f32.mrf.mxu0
        %6959 = vmatprep.mubr.bf16.mxu0 0
        %6960 = vmatmul.mubr.bf16.gmra.mxu0 %v6825
        %v6961 = vpop.f32.mrf.mxu0
        %v6962 = vadd.f32 0.0, %v6961
        %v6963 = vpop.f32.mrf.mxu0
        %v6964 = vpop.f32.mrf.mxu0
        %v6965 = vadd.f32 0.0, %v6964
        %v6966 = vpop.f32.mrf.mxu0
        %6967 = vmatprep.mubr.bf16.mxu0 0
        %6968 = vmatmul.mubr.bf16.gmra.mxu0 %v6828
        %v6969 = vpop.f32.mrf.mxu0
        %v6970 = vadd.f32 0.0, %v6969
        %v6971 = vpop.f32.mrf.mxu0
        %v6972 = vpop.f32.mrf.mxu0
        %v6973 = vadd.f32 0.0, %v6972
        %v6974 = vpop.f32.mrf.mxu0
        %6975 = vmatprep.mubr.bf16.mxu0 0
        %6976 = vmatmul.mubr.bf16.gmra.mxu0 %v6831
        %v6977 = vpop.f32.mrf.mxu0
        %v6978 = vadd.f32 0.0, %v6977
        %v6979 = vpop.f32.mrf.mxu0
        %v6980 = vpop.f32.mrf.mxu0
        %v6981 = vadd.f32 0.0, %v6980
        %v6982 = vpop.f32.mrf.mxu0
        %6983 = vmatprep.mubr.bf16.mxu0 0
        %6984 = vmatmul.mubr.bf16.gmra.mxu0 %v6834
        %v6985 = vpop.f32.mrf.mxu0
        %v6986 = vadd.f32 0.0, %v6985
        %v6987 = vpop.f32.mrf.mxu0
        %v6988 = vpop.f32.mrf.mxu0
        %v6989 = vadd.f32 0.0, %v6988
        %v6990 = vpop.f32.mrf.mxu0
        %6991 = vmatprep.mubr.bf16.mxu0 0
        %6992 = vmatmul.mubr.bf16.gmra.mxu0 %v6837
        %v6993 = vpop.f32.mrf.mxu0
        %v6994 = vadd.f32 0.0, %v6993
        %v6995 = vpop.f32.mrf.mxu0
        %v6996 = vpop.f32.mrf.mxu0
        %v6997 = vadd.f32 0.0, %v6996
        %v6998 = vpop.f32.mrf.mxu0
        %6999 = vdwg.mxu0
        %v7032 = vunpack.c.l.b16 %v6265
        %v7033 = vunpack.c.l.b16 %v6266
        %v7034 = vunpack.c.l.b16 %v6267
        %v7035 = vunpack.c.l.b16 %v6268
        %v7036 = vunpack.c.l.b16 %v6269
        %v7037 = vunpack.c.l.b16 %v6270
        %v7038 = vunpack.c.l.b16 %v6271
        %v7039 = vunpack.c.l.b16 %v6272
        %v7040 = vunpack.c.l.b16 %v6273
        %v7041 = vunpack.c.l.b16 %v6274
        %v7042 = vunpack.c.l.b16 %v6275
        %v7043 = vunpack.c.l.b16 %v6276
        %v7044 = vunpack.c.l.b16 %v6277
        %v7045 = vunpack.c.l.b16 %v6278
        %v7046 = vunpack.c.l.b16 %v6279
        %v7047 = vunpack.c.l.b16 %v6280
        %v7048 = vunpack.c.l.b16 %v6281
        %v7049 = vunpack.c.l.b16 %v6282
        %v7050 = vunpack.c.l.b16 %v6283
        %v7051 = vunpack.c.l.b16 %v6284
        %v7052 = vunpack.c.l.b16 %v6285
        %v7053 = vunpack.c.l.b16 %v6286
        %v7054 = vunpack.c.l.b16 %v6287
        %v7055 = vunpack.c.l.b16 %v6288
        %v7056 = vunpack.c.l.b16 %v6289
        %v7057 = vunpack.c.l.b16 %v6290
        %v7058 = vunpack.c.l.b16 %v6291
        %v7059 = vunpack.c.l.b16 %v6292
        %v7060 = vunpack.c.l.b16 %v6293
        %v7061 = vunpack.c.l.b16 %v6294
        %v7062 = vunpack.c.l.b16 %v6295
        %v7063 = vunpack.c.l.b16 %v6296
        %v7064 = vpack.c.b16 %v7033, %v7032
        %v7065 = vpack.c.b16 %v7035, %v7034
        %v7066 = vpack.c.b16 %v7037, %v7036
        %v7067 = vpack.c.b16 %v7039, %v7038
        %v7068 = vpack.c.b16 %v7041, %v7040
        %v7069 = vpack.c.b16 %v7043, %v7042
        %v7070 = vpack.c.b16 %v7045, %v7044
        %v7071 = vpack.c.b16 %v7047, %v7046
        %v7072 = vpack.c.b16 %v7049, %v7048
        %v7073 = vpack.c.b16 %v7051, %v7050
        %v7074 = vpack.c.b16 %v7053, %v7052
        %v7075 = vpack.c.b16 %v7055, %v7054
        %v7076 = vpack.c.b16 %v7057, %v7056
        %v7077 = vpack.c.b16 %v7059, %v7058
        %v7078 = vpack.c.b16 %v7061, %v7060
        %v7079 = vpack.c.b16 %v7063, %v7062
        %v7088 = vunpack.c.l.b16 %v6298
        %v7089 = vunpack.c.l.b16 %v6299
        %v7090 = vunpack.c.l.b16 %v6300
        %v7091 = vunpack.c.l.b16 %v6301
        %v7092 = vunpack.c.l.b16 %v6302
        %v7093 = vunpack.c.l.b16 %v6303
        %v7094 = vunpack.c.l.b16 %v6304
        %v7095 = vunpack.c.l.b16 %v6305
        %v7096 = vpack.c.b16 %v7089, %v7088
        %v7097 = vpack.c.b16 %v7091, %v7090
        %v7098 = vpack.c.b16 %v7093, %v7092
        %v7099 = vpack.c.b16 %v7095, %v7094
        %v7105 = vsel %vm6790, %v7064, 0
        %v7108 = vsel %vm6790, %v7065, 0
        %v7111 = vsel %vm6790, %v7066, 0
        %v7114 = vsel %vm6790, %v7067, 0
        %v7117 = vsel %vm6790, %v7068, 0
        %v7120 = vsel %vm6790, %v7069, 0
        %v7123 = vsel %vm6790, %v7070, 0
        %v7126 = vsel %vm6790, %v7071, 0
        %v7129 = vsel %vm6790, %v7072, 0
        %v7132 = vsel %vm6790, %v7073, 0
        %v7135 = vsel %vm6790, %v7074, 0
        %v7138 = vsel %vm6790, %v7075, 0
        %v7141 = vsel %vm6790, %v7076, 0
        %v7144 = vsel %vm6790, %v7077, 0
        %v7147 = vsel %vm6790, %v7078, 0
        %v7150 = vsel %vm6790, %v7079, 0
        %7152 = vmatprep.subr.bf16.mxu0 0
        %7153 = vmatpush1.bf16.msra.mxu0 0
        %7154 = vmatprep.subr.bf16.mxu0 0
        %7155 = vmatpush1.bf16.msra.mxu0 0
        %7156 = vmatprep.subr.bf16.mxu0 0
        %7157 = vmatpush1.bf16.msra.mxu0 0
        %7158 = vmatprep.subr.bf16.mxu0 0
        %7159 = vmatpush1.bf16.msra.mxu0 0
        %7160 = vmatprep.subr.bf16.mxu0 0
        %7161 = vmatpush1.bf16.msra.mxu0 %v7099
        %7162 = vmatprep.subr.bf16.mxu0 0
        %7163 = vmatpush1.bf16.msra.mxu0 %v7098
        %7164 = vmatprep.subr.bf16.mxu0 0
        %7165 = vmatpush1.bf16.msra.mxu0 %v7097
        %7166 = vmatprep.subr.bf16.mxu0 0
        %7167 = vmatpush1.bf16.msra.mxu0 %v7096
        %7168 = vmatprep.subr.bf16.mxu0 0
        %7169 = vmatpush2.bf16.msra.mxu0 0
        %7170 = vmatprep.subr.bf16.mxu0 0
        %7171 = vmatpush2.bf16.msra.mxu0 0
        %7172 = vmatprep.subr.bf16.mxu0 0
        %7173 = vmatpush2.bf16.msra.mxu0 0
        %7174 = vmatprep.subr.bf16.mxu0 0
        %7175 = vmatpush2.bf16.msra.mxu0 0
        %7176 = vmatprep.subr.bf16.mxu0 0
        %7177 = vmatpush2.bf16.msra.mxu0 0
        %7178 = vmatprep.subr.bf16.mxu0 0
        %7179 = vmatpush2.bf16.msra.mxu0 0
        %7180 = vmatprep.subr.bf16.mxu0 0
        %7181 = vmatpush2.bf16.msra.mxu0 0
        %7182 = vmatprep.subr.bf16.mxu0 0
        %7183 = vmatpush2.bf16.msra.mxu0 0
        %7184 = vmatprep.mubr.bf16.mxu0 0
        %7185 = vmatmul.mubr.bf16.gmra.mxu0 %v7105
        %v7186 = vpop.f32.mrf.mxu0
        %v7187 = vadd.f32 %v6874, %v7186
        %v7188 = vpop.f32.mrf.mxu0
        %v7189 = vpop.f32.mrf.mxu0
        %v7190 = vadd.f32 %v6877, %v7189
        %v7191 = vpop.f32.mrf.mxu0
        %7192 = vmatprep.mubr.bf16.mxu0 0
        %7193 = vmatmul.mubr.bf16.gmra.mxu0 %v7108
        %v7194 = vpop.f32.mrf.mxu0
        %v7195 = vadd.f32 %v6882, %v7194
        %v7196 = vpop.f32.mrf.mxu0
        %v7197 = vpop.f32.mrf.mxu0
        %v7198 = vadd.f32 %v6885, %v7197
        %v7199 = vpop.f32.mrf.mxu0
        %7200 = vmatprep.mubr.bf16.mxu0 0
        %7201 = vmatmul.mubr.bf16.gmra.mxu0 %v7111
        %v7202 = vpop.f32.mrf.mxu0
        %v7203 = vadd.f32 %v6890, %v7202
        %v7204 = vpop.f32.mrf.mxu0
        %v7205 = vpop.f32.mrf.mxu0
        %v7206 = vadd.f32 %v6893, %v7205
        %v7207 = vpop.f32.mrf.mxu0
        %7208 = vmatprep.mubr.bf16.mxu0 0
        %7209 = vmatmul.mubr.bf16.gmra.mxu0 %v7114
        %v7210 = vpop.f32.mrf.mxu0
        %v7211 = vadd.f32 %v6898, %v7210
        %v7212 = vpop.f32.mrf.mxu0
        %v7213 = vpop.f32.mrf.mxu0
        %v7214 = vadd.f32 %v6901, %v7213
        %v7215 = vpop.f32.mrf.mxu0
        %7216 = vmatprep.mubr.bf16.mxu0 0
        %7217 = vmatmul.mubr.bf16.gmra.mxu0 %v7117
        %v7218 = vpop.f32.mrf.mxu0
        %v7219 = vadd.f32 %v6906, %v7218
        %v7220 = vpop.f32.mrf.mxu0
        %v7221 = vpop.f32.mrf.mxu0
        %v7222 = vadd.f32 %v6909, %v7221
        %v7223 = vpop.f32.mrf.mxu0
        %7224 = vmatprep.mubr.bf16.mxu0 0
        %7225 = vmatmul.mubr.bf16.gmra.mxu0 %v7120
        %v7226 = vpop.f32.mrf.mxu0
        %v7227 = vadd.f32 %v6914, %v7226
        %v7228 = vpop.f32.mrf.mxu0
        %v7229 = vpop.f32.mrf.mxu0
        %v7230 = vadd.f32 %v6917, %v7229
        %v7231 = vpop.f32.mrf.mxu0
        %7232 = vmatprep.mubr.bf16.mxu0 0
        %7233 = vmatmul.mubr.bf16.gmra.mxu0 %v7123
        %v7234 = vpop.f32.mrf.mxu0
        %v7235 = vadd.f32 %v6922, %v7234
        %v7236 = vpop.f32.mrf.mxu0
        %v7237 = vpop.f32.mrf.mxu0
        %v7238 = vadd.f32 %v6925, %v7237
        %v7239 = vpop.f32.mrf.mxu0
        %7240 = vmatprep.mubr.bf16.mxu0 0
        %7241 = vmatmul.mubr.bf16.gmra.mxu0 %v7126
        %v7242 = vpop.f32.mrf.mxu0
        %v7243 = vadd.f32 %v6930, %v7242
        %v7244 = vpop.f32.mrf.mxu0
        %v7245 = vpop.f32.mrf.mxu0
        %v7246 = vadd.f32 %v6933, %v7245
        %v7247 = vpop.f32.mrf.mxu0
        %7248 = vmatprep.mubr.bf16.mxu0 0
        %7249 = vmatmul.mubr.bf16.gmra.mxu0 %v7129
        %v7250 = vpop.f32.mrf.mxu0
        %v7251 = vadd.f32 %v6938, %v7250
        %v7252 = vpop.f32.mrf.mxu0
        %v7253 = vpop.f32.mrf.mxu0
        %v7254 = vadd.f32 %v6941, %v7253
        %v7255 = vpop.f32.mrf.mxu0
        %7256 = vmatprep.mubr.bf16.mxu0 0
        %7257 = vmatmul.mubr.bf16.gmra.mxu0 %v7132
        %v7258 = vpop.f32.mrf.mxu0
        %v7259 = vadd.f32 %v6946, %v7258
        %v7260 = vpop.f32.mrf.mxu0
        %v7261 = vpop.f32.mrf.mxu0
        %v7262 = vadd.f32 %v6949, %v7261
        %v7263 = vpop.f32.mrf.mxu0
        %7264 = vmatprep.mubr.bf16.mxu0 0
        %7265 = vmatmul.mubr.bf16.gmra.mxu0 %v7135
        %v7266 = vpop.f32.mrf.mxu0
        %v7267 = vadd.f32 %v6954, %v7266
        %v7268 = vpop.f32.mrf.mxu0
        %v7269 = vpop.f32.mrf.mxu0
        %v7270 = vadd.f32 %v6957, %v7269
        %v7271 = vpop.f32.mrf.mxu0
        %7272 = vmatprep.mubr.bf16.mxu0 0
        %7273 = vmatmul.mubr.bf16.gmra.mxu0 %v7138
        %v7274 = vpop.f32.mrf.mxu0
        %v7275 = vadd.f32 %v6962, %v7274
        %v7276 = vpop.f32.mrf.mxu0
        %v7277 = vpop.f32.mrf.mxu0
        %v7278 = vadd.f32 %v6965, %v7277
        %v7279 = vpop.f32.mrf.mxu0
        %7280 = vmatprep.mubr.bf16.mxu0 0
        %7281 = vmatmul.mubr.bf16.gmra.mxu0 %v7141
        %v7282 = vpop.f32.mrf.mxu0
        %v7283 = vadd.f32 %v6970, %v7282
        %v7284 = vpop.f32.mrf.mxu0
        %v7285 = vpop.f32.mrf.mxu0
        %v7286 = vadd.f32 %v6973, %v7285
        %v7287 = vpop.f32.mrf.mxu0
        %7288 = vmatprep.mubr.bf16.mxu0 0
        %7289 = vmatmul.mubr.bf16.gmra.mxu0 %v7144
        %v7290 = vpop.f32.mrf.mxu0
        %v7291 = vadd.f32 %v6978, %v7290
        %v7292 = vpop.f32.mrf.mxu0
        %v7293 = vpop.f32.mrf.mxu0
        %v7294 = vadd.f32 %v6981, %v7293
        %v7295 = vpop.f32.mrf.mxu0
        %7296 = vmatprep.mubr.bf16.mxu0 0
        %7297 = vmatmul.mubr.bf16.gmra.mxu0 %v7147
        %v7298 = vpop.f32.mrf.mxu0
        %v7299 = vadd.f32 %v6986, %v7298
        %v7300 = vpop.f32.mrf.mxu0
        %v7301 = vpop.f32.mrf.mxu0
        %v7302 = vadd.f32 %v6989, %v7301
        %v7303 = vpop.f32.mrf.mxu0
        %7304 = vmatprep.mubr.bf16.mxu0 0
        %7305 = vmatmul.mubr.bf16.gmra.mxu0 %v7150
        %v7306 = vpop.f32.mrf.mxu0
        %v7307 = vadd.f32 %v6994, %v7306
        %v7308 = vpop.f32.mrf.mxu0
        %v7309 = vpop.f32.mrf.mxu0
        %v7310 = vadd.f32 %v6997, %v7309
        %v7311 = vpop.f32.mrf.mxu0
        %7312 = vdwg.mxu0
        %v7313 = vld [vmem:[#allocation2] sm:$0xe]
        %v7314 = vld [vmem:[#allocation2 + $0xc] sm:$0xe]
        %v7315 = vld [vmem:[#allocation2 + $0x18] sm:$0xe]
        %v7316 = vld [vmem:[#allocation2 + $0x24] sm:$0xe]
        %v7317 = vld [vmem:[#allocation2 + $0x30] sm:$0xe]
        %v7318 = vld [vmem:[#allocation2 + $0x3c] sm:$0xe]
        %v7319 = vld [vmem:[#allocation2 + $0x48] sm:$0xe]
        %v7320 = vld [vmem:[#allocation2 + $0x54] sm:$0xe]
        %v7321 = vld [vmem:[#allocation2 + $0x60] sm:$0xe]
        %v7322 = vld [vmem:[#allocation2 + $0x6c] sm:$0xe]
        %v7323 = vld [vmem:[#allocation2 + $0x78] sm:$0xe]
        %v7324 = vld [vmem:[#allocation2 + $0x84] sm:$0xe]
        %v7325 = vld [vmem:[#allocation2 + $0x90] sm:$0xe]
        %v7326 = vld [vmem:[#allocation2 + $0x9c] sm:$0xe]
        %v7327 = vld [vmem:[#allocation2 + $0xa8] sm:$0xe]
        %v7328 = vld [vmem:[#allocation2 + $0xb4] sm:$0xe]
        %vm7361 = vcmask 1042432
        %vm7362 = vcmask 1046532
        %vm7363 = vmor %vm7361, %vm7362
        %v7364 = vrot.slane %v7313, 5
        %v7365 = vrot.slane %v7364, 4
        %v7366 = vrot.slane %v6266, 5
        %v7367 = vsel %vm7363, %v7365, %v7366
        %v7368 = vrot.slane %v7366, 4
        %v7369 = vrot.slane %v6306, 5
        %v7370 = vsel %vm7363, %v7368, %v7369
        %v7371 = vrot.slane %v7314, 5
        %v7372 = vrot.slane %v7371, 4
        %v7373 = vrot.slane %v6268, 5
        %v7374 = vsel %vm7363, %v7372, %v7373
        %v7375 = vrot.slane %v7373, 4
        %v7376 = vrot.slane %v6307, 5
        %v7377 = vsel %vm7363, %v7375, %v7376
        %v7378 = vrot.slane %v7315, 5
        %v7379 = vrot.slane %v7378, 4
        %v7380 = vrot.slane %v6270, 5
        %v7381 = vsel %vm7363, %v7379, %v7380
        %v7382 = vrot.slane %v7380, 4
        %v7383 = vrot.slane %v6308, 5
        %v7384 = vsel %vm7363, %v7382, %v7383
        %v7385 = vrot.slane %v7316, 5
        %v7386 = vrot.slane %v7385, 4
        %v7387 = vrot.slane %v6272, 5
        %v7388 = vsel %vm7363, %v7386, %v7387
        %v7389 = vrot.slane %v7387, 4
        %v7390 = vrot.slane %v6309, 5
        %v7391 = vsel %vm7363, %v7389, %v7390
        %v7392 = vrot.slane %v7317, 5
        %v7393 = vrot.slane %v7392, 4
        %v7394 = vrot.slane %v6274, 5
        %v7395 = vsel %vm7363, %v7393, %v7394
        %v7396 = vrot.slane %v7394, 4
        %v7397 = vrot.slane %v6310, 5
        %v7398 = vsel %vm7363, %v7396, %v7397
        %v7399 = vrot.slane %v7318, 5
        %v7400 = vrot.slane %v7399, 4
        %v7401 = vrot.slane %v6276, 5
        %v7402 = vsel %vm7363, %v7400, %v7401
        %v7403 = vrot.slane %v7401, 4
        %v7404 = vrot.slane %v6311, 5
        %v7405 = vsel %vm7363, %v7403, %v7404
        %v7406 = vrot.slane %v7319, 5
        %v7407 = vrot.slane %v7406, 4
        %v7408 = vrot.slane %v6278, 5
        %v7409 = vsel %vm7363, %v7407, %v7408
        %v7410 = vrot.slane %v7408, 4
        %v7411 = vrot.slane %v6312, 5
        %v7412 = vsel %vm7363, %v7410, %v7411
        %v7413 = vrot.slane %v7320, 5
        %v7414 = vrot.slane %v7413, 4
        %v7415 = vrot.slane %v6280, 5
        %v7416 = vsel %vm7363, %v7414, %v7415
        %v7417 = vrot.slane %v7415, 4
        %v7418 = vrot.slane %v6313, 5
        %v7419 = vsel %vm7363, %v7417, %v7418
        %v7420 = vrot.slane %v7321, 5
        %v7421 = vrot.slane %v7420, 4
        %v7422 = vrot.slane %v6282, 5
        %v7423 = vsel %vm7363, %v7421, %v7422
        %v7424 = vrot.slane %v7422, 4
        %v7425 = vrot.slane %v6314, 5
        %v7426 = vsel %vm7363, %v7424, %v7425
        %v7427 = vrot.slane %v7322, 5
        %v7428 = vrot.slane %v7427, 4
        %v7429 = vrot.slane %v6284, 5
        %v7430 = vsel %vm7363, %v7428, %v7429
        %v7431 = vrot.slane %v7429, 4
        %v7432 = vrot.slane %v6315, 5
        %v7433 = vsel %vm7363, %v7431, %v7432
        %v7434 = vrot.slane %v7323, 5
        %v7435 = vrot.slane %v7434, 4
        %v7436 = vrot.slane %v6286, 5
        %v7437 = vsel %vm7363, %v7435, %v7436
        %v7438 = vrot.slane %v7436, 4
        %v7439 = vrot.slane %v6316, 5
        %v7440 = vsel %vm7363, %v7438, %v7439
        %v7441 = vrot.slane %v7324, 5
        %v7442 = vrot.slane %v7441, 4
        %v7443 = vrot.slane %v6288, 5
        %v7444 = vsel %vm7363, %v7442, %v7443
        %v7445 = vrot.slane %v7443, 4
        %v7446 = vrot.slane %v6317, 5
        %v7447 = vsel %vm7363, %v7445, %v7446
        %v7448 = vrot.slane %v7325, 5
        %v7449 = vrot.slane %v7448, 4
        %v7450 = vrot.slane %v6290, 5
        %v7451 = vsel %vm7363, %v7449, %v7450
        %v7452 = vrot.slane %v7450, 4
        %v7453 = vrot.slane %v6318, 5
        %v7454 = vsel %vm7363, %v7452, %v7453
        %v7455 = vrot.slane %v7326, 5
        %v7456 = vrot.slane %v7455, 4
        %v7457 = vrot.slane %v6292, 5
        %v7458 = vsel %vm7363, %v7456, %v7457
        %v7459 = vrot.slane %v7457, 4
        %v7460 = vrot.slane %v6319, 5
        %v7461 = vsel %vm7363, %v7459, %v7460
        %v7462 = vrot.slane %v7327, 5
        %v7463 = vrot.slane %v7462, 4
        %v7464 = vrot.slane %v6294, 5
        %v7465 = vsel %vm7363, %v7463, %v7464
        %v7466 = vrot.slane %v7464, 4
        %v7467 = vrot.slane %v6320, 5
        %v7468 = vsel %vm7363, %v7466, %v7467
        %v7469 = vrot.slane %v7328, 5
        %v7470 = vrot.slane %v7469, 4
        %v7471 = vrot.slane %v6296, 5
        %v7472 = vsel %vm7363, %v7470, %v7471
        %v7473 = vrot.slane %v7471, 4
        %v7474 = vrot.slane %v6321, 5
        %v7475 = vsel %vm7363, %v7473, %v7474
        %s7476 = scalar_lea.vmem [#allocation3], 5536
        %v7477 = vld [vmem:[%s7476] sm:$0xf]
        %v7478 = vld [vmem:[%s7476 + $0x4] sm:$0xf]
        %v7479 = vld [vmem:[%s7476 + $0x8] sm:$0xf]
        %v7480 = vld [vmem:[%s7476 + $0xc] sm:$0xf]
        %v7481 = vld [vmem:[%s7476 + $0x10] sm:$0xf]
        %v7482 = vld [vmem:[%s7476 + $0x14] sm:$0xf]
        %v7483 = vld [vmem:[%s7476 + $0x18] sm:$0xf]
        %v7484 = vld [vmem:[%s7476 + $0x1c] sm:$0xf]
        %v7485 = vunpack.c.l.b16 %v7367
        %v7486 = vunpack.c.l.b16 %v7370
        %v7487 = vunpack.c.l.b16 %v7374
        %v7488 = vunpack.c.l.b16 %v7377
        %v7489 = vunpack.c.l.b16 %v7381
        %v7490 = vunpack.c.l.b16 %v7384
        %v7491 = vunpack.c.l.b16 %v7388
        %v7492 = vunpack.c.l.b16 %v7391
        %v7493 = vunpack.c.l.b16 %v7395
        %v7494 = vunpack.c.l.b16 %v7398
        %v7495 = vunpack.c.l.b16 %v7402
        %v7496 = vunpack.c.l.b16 %v7405
        %v7497 = vunpack.c.l.b16 %v7409
        %v7498 = vunpack.c.l.b16 %v7412
        %v7499 = vunpack.c.l.b16 %v7416
        %v7500 = vunpack.c.l.b16 %v7419
        %v7501 = vunpack.c.l.b16 %v7423
        %v7502 = vunpack.c.l.b16 %v7426
        %v7503 = vunpack.c.l.b16 %v7430
        %v7504 = vunpack.c.l.b16 %v7433
        %v7505 = vunpack.c.l.b16 %v7437
        %v7506 = vunpack.c.l.b16 %v7440
        %v7507 = vunpack.c.l.b16 %v7444
        %v7508 = vunpack.c.l.b16 %v7447
        %v7509 = vunpack.c.l.b16 %v7451
        %v7510 = vunpack.c.l.b16 %v7454
        %v7511 = vunpack.c.l.b16 %v7458
        %v7512 = vunpack.c.l.b16 %v7461
        %v7513 = vunpack.c.l.b16 %v7465
        %v7514 = vunpack.c.l.b16 %v7468
        %v7515 = vunpack.c.l.b16 %v7472
        %v7516 = vunpack.c.l.b16 %v7475
        %v7517 = vpack.c.b16 %v7486, %v7485
        %v7518 = vpack.c.b16 %v7488, %v7487
        %v7519 = vpack.c.b16 %v7490, %v7489
        %v7520 = vpack.c.b16 %v7492, %v7491
        %v7521 = vpack.c.b16 %v7494, %v7493
        %v7522 = vpack.c.b16 %v7496, %v7495
        %v7523 = vpack.c.b16 %v7498, %v7497
        %v7524 = vpack.c.b16 %v7500, %v7499
        %v7525 = vpack.c.b16 %v7502, %v7501
        %v7526 = vpack.c.b16 %v7504, %v7503
        %v7527 = vpack.c.b16 %v7506, %v7505
        %v7528 = vpack.c.b16 %v7508, %v7507
        %v7529 = vpack.c.b16 %v7510, %v7509
        %v7530 = vpack.c.b16 %v7512, %v7511
        %v7531 = vpack.c.b16 %v7514, %v7513
        %v7532 = vpack.c.b16 %v7516, %v7515
        %v7541 = vunpack.c.l.b16 %v7477
        %v7542 = vunpack.c.l.b16 %v7478
        %v7543 = vunpack.c.l.b16 %v7479
        %v7544 = vunpack.c.l.b16 %v7480
        %v7545 = vunpack.c.l.b16 %v7481
        %v7546 = vunpack.c.l.b16 %v7482
        %v7547 = vunpack.c.l.b16 %v7483
        %v7548 = vunpack.c.l.b16 %v7484
        %v7549 = vpack.c.b16 %v7542, %v7541
        %v7550 = vpack.c.b16 %v7544, %v7543
        %v7551 = vpack.c.b16 %v7546, %v7545
        %v7552 = vpack.c.b16 %v7548, %v7547
        %v7558 = vsel %vm6790, %v7517, 0
        %v7561 = vsel %vm6790, %v7518, 0
        %v7564 = vsel %vm6790, %v7519, 0
        %v7567 = vsel %vm6790, %v7520, 0
        %v7570 = vsel %vm6790, %v7521, 0
        %v7573 = vsel %vm6790, %v7522, 0
        %v7576 = vsel %vm6790, %v7523, 0
        %v7579 = vsel %vm6790, %v7524, 0
        %v7582 = vsel %vm6790, %v7525, 0
        %v7585 = vsel %vm6790, %v7526, 0
        %v7588 = vsel %vm6790, %v7527, 0
        %v7591 = vsel %vm6790, %v7528, 0
        %v7594 = vsel %vm6790, %v7529, 0
        %v7597 = vsel %vm6790, %v7530, 0
        %v7600 = vsel %vm6790, %v7531, 0
        %v7603 = vsel %vm6790, %v7532, 0
        %7605 = vmatprep.subr.bf16.mxu0 0
        %7606 = vmatpush1.bf16.msra.mxu0 0
        %7607 = vmatprep.subr.bf16.mxu0 0
        %7608 = vmatpush1.bf16.msra.mxu0 0
        %7609 = vmatprep.subr.bf16.mxu0 0
        %7610 = vmatpush1.bf16.msra.mxu0 0
        %7611 = vmatprep.subr.bf16.mxu0 0
        %7612 = vmatpush1.bf16.msra.mxu0 0
        %7613 = vmatprep.subr.bf16.mxu0 0
        %7614 = vmatpush1.bf16.msra.mxu0 %v7552
        %7615 = vmatprep.subr.bf16.mxu0 0
        %7616 = vmatpush1.bf16.msra.mxu0 %v7551
        %7617 = vmatprep.subr.bf16.mxu0 0
        %7618 = vmatpush1.bf16.msra.mxu0 %v7550
        %7619 = vmatprep.subr.bf16.mxu0 0
        %7620 = vmatpush1.bf16.msra.mxu0 %v7549
        %7621 = vmatprep.subr.bf16.mxu0 0
        %7622 = vmatpush2.bf16.msra.mxu0 0
        %7623 = vmatprep.subr.bf16.mxu0 0
        %7624 = vmatpush2.bf16.msra.mxu0 0
        %7625 = vmatprep.subr.bf16.mxu0 0
        %7626 = vmatpush2.bf16.msra.mxu0 0
        %7627 = vmatprep.subr.bf16.mxu0 0
        %7628 = vmatpush2.bf16.msra.mxu0 0
        %7629 = vmatprep.subr.bf16.mxu0 0
        %7630 = vmatpush2.bf16.msra.mxu0 0
        %7631 = vmatprep.subr.bf16.mxu0 0
        %7632 = vmatpush2.bf16.msra.mxu0 0
        %7633 = vmatprep.subr.bf16.mxu0 0
        %7634 = vmatpush2.bf16.msra.mxu0 0
        %7635 = vmatprep.subr.bf16.mxu0 0
        %7636 = vmatpush2.bf16.msra.mxu0 0
        %7637 = vmatprep.mubr.bf16.mxu0 0
        %7638 = vmatmul.mubr.bf16.gmra.mxu0 %v7558
        %v7639 = vpop.f32.mrf.mxu0
        %v7640 = vadd.f32 0.0, %v7639
        %v7641 = vpop.f32.mrf.mxu0
        %v7642 = vpop.f32.mrf.mxu0
        %v7643 = vadd.f32 0.0, %v7642
        %v7644 = vpop.f32.mrf.mxu0
        %7645 = vmatprep.mubr.bf16.mxu0 0
        %7646 = vmatmul.mubr.bf16.gmra.mxu0 %v7561
        %v7647 = vpop.f32.mrf.mxu0
        %v7648 = vadd.f32 0.0, %v7647
        %v7649 = vpop.f32.mrf.mxu0
        %v7650 = vpop.f32.mrf.mxu0
        %v7651 = vadd.f32 0.0, %v7650
        %v7652 = vpop.f32.mrf.mxu0
        %7653 = vmatprep.mubr.bf16.mxu0 0
        %7654 = vmatmul.mubr.bf16.gmra.mxu0 %v7564
        %v7655 = vpop.f32.mrf.mxu0
        %v7656 = vadd.f32 0.0, %v7655
        %v7657 = vpop.f32.mrf.mxu0
        %v7658 = vpop.f32.mrf.mxu0
        %v7659 = vadd.f32 0.0, %v7658
        %v7660 = vpop.f32.mrf.mxu0
        %7661 = vmatprep.mubr.bf16.mxu0 0
        %7662 = vmatmul.mubr.bf16.gmra.mxu0 %v7567
        %v7663 = vpop.f32.mrf.mxu0
        %v7664 = vadd.f32 0.0, %v7663
        %v7665 = vpop.f32.mrf.mxu0
        %v7666 = vpop.f32.mrf.mxu0
        %v7667 = vadd.f32 0.0, %v7666
        %v7668 = vpop.f32.mrf.mxu0
        %7669 = vmatprep.mubr.bf16.mxu0 0
        %7670 = vmatmul.mubr.bf16.gmra.mxu0 %v7570
        %v7671 = vpop.f32.mrf.mxu0
        %v7672 = vadd.f32 0.0, %v7671
        %v7673 = vpop.f32.mrf.mxu0
        %v7674 = vpop.f32.mrf.mxu0
        %v7675 = vadd.f32 0.0, %v7674
        %v7676 = vpop.f32.mrf.mxu0
        %7677 = vmatprep.mubr.bf16.mxu0 0
        %7678 = vmatmul.mubr.bf16.gmra.mxu0 %v7573
        %v7679 = vpop.f32.mrf.mxu0
        %v7680 = vadd.f32 0.0, %v7679
        %v7681 = vpop.f32.mrf.mxu0
        %v7682 = vpop.f32.mrf.mxu0
        %v7683 = vadd.f32 0.0, %v7682
        %v7684 = vpop.f32.mrf.mxu0
        %7685 = vmatprep.mubr.bf16.mxu0 0
        %7686 = vmatmul.mubr.bf16.gmra.mxu0 %v7576
        %v7687 = vpop.f32.mrf.mxu0
        %v7688 = vadd.f32 0.0, %v7687
        %v7689 = vpop.f32.mrf.mxu0
        %v7690 = vpop.f32.mrf.mxu0
        %v7691 = vadd.f32 0.0, %v7690
        %v7692 = vpop.f32.mrf.mxu0
        %7693 = vmatprep.mubr.bf16.mxu0 0
        %7694 = vmatmul.mubr.bf16.gmra.mxu0 %v7579
        %v7695 = vpop.f32.mrf.mxu0
        %v7696 = vadd.f32 0.0, %v7695
        %v7697 = vpop.f32.mrf.mxu0
        %v7698 = vpop.f32.mrf.mxu0
        %v7699 = vadd.f32 0.0, %v7698
        %v7700 = vpop.f32.mrf.mxu0
        %7701 = vmatprep.mubr.bf16.mxu0 0
        %7702 = vmatmul.mubr.bf16.gmra.mxu0 %v7582
        %v7703 = vpop.f32.mrf.mxu0
        %v7704 = vadd.f32 0.0, %v7703
        %v7705 = vpop.f32.mrf.mxu0
        %v7706 = vpop.f32.mrf.mxu0
        %v7707 = vadd.f32 0.0, %v7706
        %v7708 = vpop.f32.mrf.mxu0
        %7709 = vmatprep.mubr.bf16.mxu0 0
        %7710 = vmatmul.mubr.bf16.gmra.mxu0 %v7585
        %v7711 = vpop.f32.mrf.mxu0
        %v7712 = vadd.f32 0.0, %v7711
        %v7713 = vpop.f32.mrf.mxu0
        %v7714 = vpop.f32.mrf.mxu0
        %v7715 = vadd.f32 0.0, %v7714
        %v7716 = vpop.f32.mrf.mxu0
        %7717 = vmatprep.mubr.bf16.mxu0 0
        %7718 = vmatmul.mubr.bf16.gmra.mxu0 %v7588
        %v7719 = vpop.f32.mrf.mxu0
        %v7720 = vadd.f32 0.0, %v7719
        %v7721 = vpop.f32.mrf.mxu0
        %v7722 = vpop.f32.mrf.mxu0
        %v7723 = vadd.f32 0.0, %v7722
        %v7724 = vpop.f32.mrf.mxu0
        %7725 = vmatprep.mubr.bf16.mxu0 0
        %7726 = vmatmul.mubr.bf16.gmra.mxu0 %v7591
        %v7727 = vpop.f32.mrf.mxu0
        %v7728 = vadd.f32 0.0, %v7727
        %v7729 = vpop.f32.mrf.mxu0
        %v7730 = vpop.f32.mrf.mxu0
        %v7731 = vadd.f32 0.0, %v7730
        %v7732 = vpop.f32.mrf.mxu0
        %7733 = vmatprep.mubr.bf16.mxu0 0
        %7734 = vmatmul.mubr.bf16.gmra.mxu0 %v7594
        %v7735 = vpop.f32.mrf.mxu0
        %v7736 = vadd.f32 0.0, %v7735
        %v7737 = vpop.f32.mrf.mxu0
        %v7738 = vpop.f32.mrf.mxu0
        %v7739 = vadd.f32 0.0, %v7738
        %v7740 = vpop.f32.mrf.mxu0
        %7741 = vmatprep.mubr.bf16.mxu0 0
        %7742 = vmatmul.mubr.bf16.gmra.mxu0 %v7597
        %v7743 = vpop.f32.mrf.mxu0
        %v7744 = vadd.f32 0.0, %v7743
        %v7745 = vpop.f32.mrf.mxu0
        %v7746 = vpop.f32.mrf.mxu0
        %v7747 = vadd.f32 0.0, %v7746
        %v7748 = vpop.f32.mrf.mxu0
        %7749 = vmatprep.mubr.bf16.mxu0 0
        %7750 = vmatmul.mubr.bf16.gmra.mxu0 %v7600
        %v7751 = vpop.f32.mrf.mxu0
        %v7752 = vadd.f32 0.0, %v7751
        %v7753 = vpop.f32.mrf.mxu0
        %v7754 = vpop.f32.mrf.mxu0
        %v7755 = vadd.f32 0.0, %v7754
        %v7756 = vpop.f32.mrf.mxu0
        %7757 = vmatprep.mubr.bf16.mxu0 0
        %7758 = vmatmul.mubr.bf16.gmra.mxu0 %v7603
        %v7759 = vpop.f32.mrf.mxu0
        %v7760 = vadd.f32 0.0, %v7759
        %v7761 = vpop.f32.mrf.mxu0
        %v7762 = vpop.f32.mrf.mxu0
        %v7763 = vadd.f32 0.0, %v7762
        %v7764 = vpop.f32.mrf.mxu0
        %7765 = vdwg.mxu0
        %v7766 = vadd.f32 %v7187, %v7640
        %v7767 = vadd.f32 %v7190, %v7643
        %v7768 = vadd.f32 %v7195, %v7648
        %v7769 = vadd.f32 %v7198, %v7651
        %v7770 = vadd.f32 %v7203, %v7656
        %v7771 = vadd.f32 %v7206, %v7659
        %v7772 = vadd.f32 %v7211, %v7664
        %v7773 = vadd.f32 %v7214, %v7667
        %v7774 = vadd.f32 %v7219, %v7672
        %v7775 = vadd.f32 %v7222, %v7675
        %v7776 = vadd.f32 %v7227, %v7680
        %v7777 = vadd.f32 %v7230, %v7683
        %v7778 = vadd.f32 %v7235, %v7688
        %v7779 = vadd.f32 %v7238, %v7691
        %v7780 = vadd.f32 %v7243, %v7696
        %v7781 = vadd.f32 %v7246, %v7699
        %v7782 = vadd.f32 %v7251, %v7704
        %v7783 = vadd.f32 %v7254, %v7707
        %v7784 = vadd.f32 %v7259, %v7712
        %v7785 = vadd.f32 %v7262, %v7715
        %v7786 = vadd.f32 %v7267, %v7720
        %v7787 = vadd.f32 %v7270, %v7723
        %v7788 = vadd.f32 %v7275, %v7728
        %v7789 = vadd.f32 %v7278, %v7731
        %v7790 = vadd.f32 %v7283, %v7736
        %v7791 = vadd.f32 %v7286, %v7739
        %v7792 = vadd.f32 %v7291, %v7744
        %v7793 = vadd.f32 %v7294, %v7747
        %v7794 = vadd.f32 %v7299, %v7752
        %v7795 = vadd.f32 %v7302, %v7755
        %v7796 = vadd.f32 %v7307, %v7760
        %v7797 = vadd.f32 %v7310, %v7763
        %v7798 = vld [vmem:[%s709] sm:$0xf]
        %v7799 = vld [vmem:[%s709 + $0x4] sm:$0xf]
        %v7800 = vld [vmem:[%s709 + $0xc] sm:$0xf]
        %v7801 = vld [vmem:[%s709 + $0x10] sm:$0xf]
        %v7802 = vld [vmem:[%s709 + $0x18] sm:$0xf]
        %v7803 = vld [vmem:[%s709 + $0x1c] sm:$0xf]
        %v7804 = vld [vmem:[%s709 + $0x24] sm:$0xf]
        %v7805 = vld [vmem:[%s709 + $0x28] sm:$0xf]
        %v7806 = vld [vmem:[%s709 + $0x30] sm:$0xf]
        %v7807 = vld [vmem:[%s709 + $0x34] sm:$0xf]
        %v7808 = vld [vmem:[%s709 + $0x3c] sm:$0xf]
        %v7809 = vld [vmem:[%s709 + $0x40] sm:$0xf]
        %v7810 = vld [vmem:[%s709 + $0x48] sm:$0xf]
        %v7811 = vld [vmem:[%s709 + $0x4c] sm:$0xf]
        %v7812 = vld [vmem:[%s709 + $0x54] sm:$0xf]
        %v7813 = vld [vmem:[%s709 + $0x58] sm:$0xf]
        %v7814 = vld [vmem:[%s709 + $0x60] sm:$0xf]
        %v7815 = vld [vmem:[%s709 + $0x64] sm:$0xf]
        %v7816 = vld [vmem:[%s709 + $0x6c] sm:$0xf]
        %v7817 = vld [vmem:[%s709 + $0x70] sm:$0xf]
        %v7818 = vld [vmem:[%s709 + $0x78] sm:$0xf]
        %v7819 = vld [vmem:[%s709 + $0x7c] sm:$0xf]
        %v7820 = vld [vmem:[%s709 + $0x84] sm:$0xf]
        %v7821 = vld [vmem:[%s709 + $0x88] sm:$0xf]
        %v7822 = vld [vmem:[%s709 + $0x90] sm:$0xf]
        %v7823 = vld [vmem:[%s709 + $0x94] sm:$0xf]
        %v7824 = vld [vmem:[%s709 + $0x9c] sm:$0xf]
        %v7825 = vld [vmem:[%s709 + $0xa0] sm:$0xf]
        %v7826 = vld [vmem:[%s709 + $0xa8] sm:$0xf]
        %v7827 = vld [vmem:[%s709 + $0xac] sm:$0xf]
        %v7828 = vld [vmem:[%s709 + $0xb4] sm:$0xf]
        %v7829 = vld [vmem:[%s709 + $0xb8] sm:$0xf]
        %s7830 = scalar_lea.vmem [#allocation3], 5568
        %v7831 = vld [vmem:[%s7830] sm:$0xf]
        %v7832 = vld [vmem:[%s7830 + $0x4] sm:$0xf]
        %v7833 = vld [vmem:[%s7830 + $0x8] sm:$0xf]
        %v7834 = vld [vmem:[%s7830 + $0xc] sm:$0xf]
        %v7835 = vld [vmem:[%s7830 + $0x10] sm:$0xf]
        %v7836 = vld [vmem:[%s7830 + $0x14] sm:$0xf]
        %v7837 = vld [vmem:[%s7830 + $0x18] sm:$0xf]
        %v7838 = vld [vmem:[%s7830 + $0x1c] sm:$0xf]
        %v7871 = vunpack.c.l.b16 %v7798
        %v7872 = vunpack.c.l.b16 %v7799
        %v7873 = vunpack.c.l.b16 %v7800
        %v7874 = vunpack.c.l.b16 %v7801
        %v7875 = vunpack.c.l.b16 %v7802
        %v7876 = vunpack.c.l.b16 %v7803
        %v7877 = vunpack.c.l.b16 %v7804
        %v7878 = vunpack.c.l.b16 %v7805
        %v7879 = vunpack.c.l.b16 %v7806
        %v7880 = vunpack.c.l.b16 %v7807
        %v7881 = vunpack.c.l.b16 %v7808
        %v7882 = vunpack.c.l.b16 %v7809
        %v7883 = vunpack.c.l.b16 %v7810
        %v7884 = vunpack.c.l.b16 %v7811
        %v7885 = vunpack.c.l.b16 %v7812
        %v7886 = vunpack.c.l.b16 %v7813
        %v7887 = vunpack.c.l.b16 %v7814
        %v7888 = vunpack.c.l.b16 %v7815
        %v7889 = vunpack.c.l.b16 %v7816
        %v7890 = vunpack.c.l.b16 %v7817
        %v7891 = vunpack.c.l.b16 %v7818
        %v7892 = vunpack.c.l.b16 %v7819
        %v7893 = vunpack.c.l.b16 %v7820
        %v7894 = vunpack.c.l.b16 %v7821
        %v7895 = vunpack.c.l.b16 %v7822
        %v7896 = vunpack.c.l.b16 %v7823
        %v7897 = vunpack.c.l.b16 %v7824
        %v7898 = vunpack.c.l.b16 %v7825
        %v7899 = vunpack.c.l.b16 %v7826
        %v7900 = vunpack.c.l.b16 %v7827
        %v7901 = vunpack.c.l.b16 %v7828
        %v7902 = vunpack.c.l.b16 %v7829
        %v7903 = vpack.c.b16 %v7872, %v7871
        %v7904 = vpack.c.b16 %v7874, %v7873
        %v7905 = vpack.c.b16 %v7876, %v7875
        %v7906 = vpack.c.b16 %v7878, %v7877
        %v7907 = vpack.c.b16 %v7880, %v7879
        %v7908 = vpack.c.b16 %v7882, %v7881
        %v7909 = vpack.c.b16 %v7884, %v7883
        %v7910 = vpack.c.b16 %v7886, %v7885
        %v7911 = vpack.c.b16 %v7888, %v7887
        %v7912 = vpack.c.b16 %v7890, %v7889
        %v7913 = vpack.c.b16 %v7892, %v7891
        %v7914 = vpack.c.b16 %v7894, %v7893
        %v7915 = vpack.c.b16 %v7896, %v7895
        %v7916 = vpack.c.b16 %v7898, %v7897
        %v7917 = vpack.c.b16 %v7900, %v7899
        %v7918 = vpack.c.b16 %v7902, %v7901
        %v7927 = vunpack.c.l.b16 %v7831
        %v7928 = vunpack.c.l.b16 %v7832
        %v7929 = vunpack.c.l.b16 %v7833
        %v7930 = vunpack.c.l.b16 %v7834
        %v7931 = vunpack.c.l.b16 %v7835
        %v7932 = vunpack.c.l.b16 %v7836
        %v7933 = vunpack.c.l.b16 %v7837
        %v7934 = vunpack.c.l.b16 %v7838
        %v7935 = vpack.c.b16 %v7928, %v7927
        %v7936 = vpack.c.b16 %v7930, %v7929
        %v7937 = vpack.c.b16 %v7932, %v7931
        %v7938 = vpack.c.b16 %v7934, %v7933
        %v7944 = vsel %vm6790, %v7903, 0
        %v7947 = vsel %vm6790, %v7904, 0
        %v7950 = vsel %vm6790, %v7905, 0
        %v7953 = vsel %vm6790, %v7906, 0
        %v7956 = vsel %vm6790, %v7907, 0
        %v7959 = vsel %vm6790, %v7908, 0
        %v7962 = vsel %vm6790, %v7909, 0
        %v7965 = vsel %vm6790, %v7910, 0
        %v7968 = vsel %vm6790, %v7911, 0
        %v7971 = vsel %vm6790, %v7912, 0
        %v7974 = vsel %vm6790, %v7913, 0
        %v7977 = vsel %vm6790, %v7914, 0
        %v7980 = vsel %vm6790, %v7915, 0
        %v7983 = vsel %vm6790, %v7916, 0
        %v7986 = vsel %vm6790, %v7917, 0
        %v7989 = vsel %vm6790, %v7918, 0
        %7991 = vmatprep.subr.bf16.mxu0 0
        %7992 = vmatpush1.bf16.msra.mxu0 0
        %7993 = vmatprep.subr.bf16.mxu0 0
        %7994 = vmatpush1.bf16.msra.mxu0 0
        %7995 = vmatprep.subr.bf16.mxu0 0
        %7996 = vmatpush1.bf16.msra.mxu0 0
        %7997 = vmatprep.subr.bf16.mxu0 0
        %7998 = vmatpush1.bf16.msra.mxu0 0
        %7999 = vmatprep.subr.bf16.mxu0 0
        %8000 = vmatpush1.bf16.msra.mxu0 %v7938
        %8001 = vmatprep.subr.bf16.mxu0 0
        %8002 = vmatpush1.bf16.msra.mxu0 %v7937
        %8003 = vmatprep.subr.bf16.mxu0 0
        %8004 = vmatpush1.bf16.msra.mxu0 %v7936
        %8005 = vmatprep.subr.bf16.mxu0 0
        %8006 = vmatpush1.bf16.msra.mxu0 %v7935
        %8007 = vmatprep.subr.bf16.mxu0 0
        %8008 = vmatpush2.bf16.msra.mxu0 0
        %8009 = vmatprep.subr.bf16.mxu0 0
        %8010 = vmatpush2.bf16.msra.mxu0 0
        %8011 = vmatprep.subr.bf16.mxu0 0
        %8012 = vmatpush2.bf16.msra.mxu0 0
        %8013 = vmatprep.subr.bf16.mxu0 0
        %8014 = vmatpush2.bf16.msra.mxu0 0
        %8015 = vmatprep.subr.bf16.mxu0 0
        %8016 = vmatpush2.bf16.msra.mxu0 0
        %8017 = vmatprep.subr.bf16.mxu0 0
        %8018 = vmatpush2.bf16.msra.mxu0 0
        %8019 = vmatprep.subr.bf16.mxu0 0
        %8020 = vmatpush2.bf16.msra.mxu0 0
        %8021 = vmatprep.subr.bf16.mxu0 0
        %8022 = vmatpush2.bf16.msra.mxu0 0
        %8023 = vmatprep.mubr.bf16.mxu0 0
        %8024 = vmatmul.mubr.bf16.gmra.mxu0 %v7944
        %v8025 = vpop.f32.mrf.mxu0
        %v8026 = vadd.f32 0.0, %v8025
        %v8027 = vpop.f32.mrf.mxu0
        %v8028 = vpop.f32.mrf.mxu0
        %v8029 = vadd.f32 0.0, %v8028
        %v8030 = vpop.f32.mrf.mxu0
        %8031 = vmatprep.mubr.bf16.mxu0 0
        %8032 = vmatmul.mubr.bf16.gmra.mxu0 %v7947
        %v8033 = vpop.f32.mrf.mxu0
        %v8034 = vadd.f32 0.0, %v8033
        %v8035 = vpop.f32.mrf.mxu0
        %v8036 = vpop.f32.mrf.mxu0
        %v8037 = vadd.f32 0.0, %v8036
        %v8038 = vpop.f32.mrf.mxu0
        %8039 = vmatprep.mubr.bf16.mxu0 0
        %8040 = vmatmul.mubr.bf16.gmra.mxu0 %v7950
        %v8041 = vpop.f32.mrf.mxu0
        %v8042 = vadd.f32 0.0, %v8041
        %v8043 = vpop.f32.mrf.mxu0
        %v8044 = vpop.f32.mrf.mxu0
        %v8045 = vadd.f32 0.0, %v8044
        %v8046 = vpop.f32.mrf.mxu0
        %8047 = vmatprep.mubr.bf16.mxu0 0
        %8048 = vmatmul.mubr.bf16.gmra.mxu0 %v7953
        %v8049 = vpop.f32.mrf.mxu0
        %v8050 = vadd.f32 0.0, %v8049
        %v8051 = vpop.f32.mrf.mxu0
        %v8052 = vpop.f32.mrf.mxu0
        %v8053 = vadd.f32 0.0, %v8052
        %v8054 = vpop.f32.mrf.mxu0
        %8055 = vmatprep.mubr.bf16.mxu0 0
        %8056 = vmatmul.mubr.bf16.gmra.mxu0 %v7956
        %v8057 = vpop.f32.mrf.mxu0
        %v8058 = vadd.f32 0.0, %v8057
        %v8059 = vpop.f32.mrf.mxu0
        %v8060 = vpop.f32.mrf.mxu0
        %v8061 = vadd.f32 0.0, %v8060
        %v8062 = vpop.f32.mrf.mxu0
        %8063 = vmatprep.mubr.bf16.mxu0 0
        %8064 = vmatmul.mubr.bf16.gmra.mxu0 %v7959
        %v8065 = vpop.f32.mrf.mxu0
        %v8066 = vadd.f32 0.0, %v8065
        %v8067 = vpop.f32.mrf.mxu0
        %v8068 = vpop.f32.mrf.mxu0
        %v8069 = vadd.f32 0.0, %v8068
        %v8070 = vpop.f32.mrf.mxu0
        %8071 = vmatprep.mubr.bf16.mxu0 0
        %8072 = vmatmul.mubr.bf16.gmra.mxu0 %v7962
        %v8073 = vpop.f32.mrf.mxu0
        %v8074 = vadd.f32 0.0, %v8073
        %v8075 = vpop.f32.mrf.mxu0
        %v8076 = vpop.f32.mrf.mxu0
        %v8077 = vadd.f32 0.0, %v8076
        %v8078 = vpop.f32.mrf.mxu0
        %8079 = vmatprep.mubr.bf16.mxu0 0
        %8080 = vmatmul.mubr.bf16.gmra.mxu0 %v7965
        %v8081 = vpop.f32.mrf.mxu0
        %v8082 = vadd.f32 0.0, %v8081
        %v8083 = vpop.f32.mrf.mxu0
        %v8084 = vpop.f32.mrf.mxu0
        %v8085 = vadd.f32 0.0, %v8084
        %v8086 = vpop.f32.mrf.mxu0
        %8087 = vmatprep.mubr.bf16.mxu0 0
        %8088 = vmatmul.mubr.bf16.gmra.mxu0 %v7968
        %v8089 = vpop.f32.mrf.mxu0
        %v8090 = vadd.f32 0.0, %v8089
        %v8091 = vpop.f32.mrf.mxu0
        %v8092 = vpop.f32.mrf.mxu0
        %v8093 = vadd.f32 0.0, %v8092
        %v8094 = vpop.f32.mrf.mxu0
        %8095 = vmatprep.mubr.bf16.mxu0 0
        %8096 = vmatmul.mubr.bf16.gmra.mxu0 %v7971
        %v8097 = vpop.f32.mrf.mxu0
        %v8098 = vadd.f32 0.0, %v8097
        %v8099 = vpop.f32.mrf.mxu0
        %v8100 = vpop.f32.mrf.mxu0
        %v8101 = vadd.f32 0.0, %v8100
        %v8102 = vpop.f32.mrf.mxu0
        %8103 = vmatprep.mubr.bf16.mxu0 0
        %8104 = vmatmul.mubr.bf16.gmra.mxu0 %v7974
        %v8105 = vpop.f32.mrf.mxu0
        %v8106 = vadd.f32 0.0, %v8105
        %v8107 = vpop.f32.mrf.mxu0
        %v8108 = vpop.f32.mrf.mxu0
        %v8109 = vadd.f32 0.0, %v8108
        %v8110 = vpop.f32.mrf.mxu0
        %8111 = vmatprep.mubr.bf16.mxu0 0
        %8112 = vmatmul.mubr.bf16.gmra.mxu0 %v7977
        %v8113 = vpop.f32.mrf.mxu0
        %v8114 = vadd.f32 0.0, %v8113
        %v8115 = vpop.f32.mrf.mxu0
        %v8116 = vpop.f32.mrf.mxu0
        %v8117 = vadd.f32 0.0, %v8116
        %v8118 = vpop.f32.mrf.mxu0
        %8119 = vmatprep.mubr.bf16.mxu0 0
        %8120 = vmatmul.mubr.bf16.gmra.mxu0 %v7980
        %v8121 = vpop.f32.mrf.mxu0
        %v8122 = vadd.f32 0.0, %v8121
        %v8123 = vpop.f32.mrf.mxu0
        %v8124 = vpop.f32.mrf.mxu0
        %v8125 = vadd.f32 0.0, %v8124
        %v8126 = vpop.f32.mrf.mxu0
        %8127 = vmatprep.mubr.bf16.mxu0 0
        %8128 = vmatmul.mubr.bf16.gmra.mxu0 %v7983
        %v8129 = vpop.f32.mrf.mxu0
        %v8130 = vadd.f32 0.0, %v8129
        %v8131 = vpop.f32.mrf.mxu0
        %v8132 = vpop.f32.mrf.mxu0
        %v8133 = vadd.f32 0.0, %v8132
        %v8134 = vpop.f32.mrf.mxu0
        %8135 = vmatprep.mubr.bf16.mxu0 0
        %8136 = vmatmul.mubr.bf16.gmra.mxu0 %v7986
        %v8137 = vpop.f32.mrf.mxu0
        %v8138 = vadd.f32 0.0, %v8137
        %v8139 = vpop.f32.mrf.mxu0
        %v8140 = vpop.f32.mrf.mxu0
        %v8141 = vadd.f32 0.0, %v8140
        %v8142 = vpop.f32.mrf.mxu0
        %8143 = vmatprep.mubr.bf16.mxu0 0
        %8144 = vmatmul.mubr.bf16.gmra.mxu0 %v7989
        %v8145 = vpop.f32.mrf.mxu0
        %v8146 = vadd.f32 0.0, %v8145
        %v8147 = vpop.f32.mrf.mxu0
        %v8148 = vpop.f32.mrf.mxu0
        %v8149 = vadd.f32 0.0, %v8148
        %v8150 = vpop.f32.mrf.mxu0
        %8151 = vdwg.mxu0
        %v8152 = vadd.f32 %v7766, %v8026
        %v8153 = vadd.f32 %v7767, %v8029
        %v8154 = vadd.f32 %v7768, %v8034
        %v8155 = vadd.f32 %v7769, %v8037
        %v8156 = vadd.f32 %v7770, %v8042
        %v8157 = vadd.f32 %v7771, %v8045
        %v8158 = vadd.f32 %v7772, %v8050
        %v8159 = vadd.f32 %v7773, %v8053
        %v8160 = vadd.f32 %v7774, %v8058
        %v8161 = vadd.f32 %v7775, %v8061
        %v8162 = vadd.f32 %v7776, %v8066
        %v8163 = vadd.f32 %v7777, %v8069
        %v8164 = vadd.f32 %v7778, %v8074
        %v8165 = vadd.f32 %v7779, %v8077
        %v8166 = vadd.f32 %v7780, %v8082
        %v8167 = vadd.f32 %v7781, %v8085
        %v8168 = vadd.f32 %v7782, %v8090
        %v8169 = vadd.f32 %v7783, %v8093
        %v8170 = vadd.f32 %v7784, %v8098
        %v8171 = vadd.f32 %v7785, %v8101
        %v8172 = vadd.f32 %v7786, %v8106
        %v8173 = vadd.f32 %v7787, %v8109
        %v8174 = vadd.f32 %v7788, %v8114
        %v8175 = vadd.f32 %v7789, %v8117
        %v8176 = vadd.f32 %v7790, %v8122
        %v8177 = vadd.f32 %v7791, %v8125
        %v8178 = vadd.f32 %v7792, %v8130
        %v8179 = vadd.f32 %v7793, %v8133
        %v8180 = vadd.f32 %v7794, %v8138
        %v8181 = vadd.f32 %v7795, %v8141
        %v8182 = vadd.f32 %v7796, %v8146
        %v8183 = vadd.f32 %v7797, %v8149
        %v8184 = vld [vmem:[%s709] sm:$0xf]
        %v8185 = vld [vmem:[%s709 + $0x4] sm:$0xf]
        %v8186 = vld [vmem:[%s709 + $0x8] sm:$0x1]
        %v8187 = vld [vmem:[%s709 + $0xc] sm:$0xf]
        %v8188 = vld [vmem:[%s709 + $0x10] sm:$0xf]
        %v8189 = vld [vmem:[%s709 + $0x14] sm:$0x1]
        %v8190 = vld [vmem:[%s709 + $0x18] sm:$0xf]
        %v8191 = vld [vmem:[%s709 + $0x1c] sm:$0xf]
        %v8192 = vld [vmem:[%s709 + $0x20] sm:$0x1]
        %v8193 = vld [vmem:[%s709 + $0x24] sm:$0xf]
        %v8194 = vld [vmem:[%s709 + $0x28] sm:$0xf]
        %v8195 = vld [vmem:[%s709 + $0x2c] sm:$0x1]
        %v8196 = vld [vmem:[%s709 + $0x30] sm:$0xf]
        %v8197 = vld [vmem:[%s709 + $0x34] sm:$0xf]
        %v8198 = vld [vmem:[%s709 + $0x38] sm:$0x1]
        %v8199 = vld [vmem:[%s709 + $0x3c] sm:$0xf]
        %v8200 = vld [vmem:[%s709 + $0x40] sm:$0xf]
        %v8201 = vld [vmem:[%s709 + $0x44] sm:$0x1]
        %v8202 = vld [vmem:[%s709 + $0x48] sm:$0xf]
        %v8203 = vld [vmem:[%s709 + $0x4c] sm:$0xf]
        %v8204 = vld [vmem:[%s709 + $0x50] sm:$0x1]
        %v8205 = vld [vmem:[%s709 + $0x54] sm:$0xf]
        %v8206 = vld [vmem:[%s709 + $0x58] sm:$0xf]
        %v8207 = vld [vmem:[%s709 + $0x5c] sm:$0x1]
        %v8208 = vld [vmem:[%s709 + $0x60] sm:$0xf]
        %v8209 = vld [vmem:[%s709 + $0x64] sm:$0xf]
        %v8210 = vld [vmem:[%s709 + $0x68] sm:$0x1]
        %v8211 = vld [vmem:[%s709 + $0x6c] sm:$0xf]
        %v8212 = vld [vmem:[%s709 + $0x70] sm:$0xf]
        %v8213 = vld [vmem:[%s709 + $0x74] sm:$0x1]
        %v8214 = vld [vmem:[%s709 + $0x78] sm:$0xf]
        %v8215 = vld [vmem:[%s709 + $0x7c] sm:$0xf]
        %v8216 = vld [vmem:[%s709 + $0x80] sm:$0x1]
        %v8217 = vld [vmem:[%s709 + $0x84] sm:$0xf]
        %v8218 = vld [vmem:[%s709 + $0x88] sm:$0xf]
        %v8219 = vld [vmem:[%s709 + $0x8c] sm:$0x1]
        %v8220 = vld [vmem:[%s709 + $0x90] sm:$0xf]
        %v8221 = vld [vmem:[%s709 + $0x94] sm:$0xf]
        %v8222 = vld [vmem:[%s709 + $0x98] sm:$0x1]
        %v8223 = vld [vmem:[%s709 + $0x9c] sm:$0xf]
        %v8224 = vld [vmem:[%s709 + $0xa0] sm:$0xf]
        %v8225 = vld [vmem:[%s709 + $0xa4] sm:$0x1]
        %v8226 = vld [vmem:[%s709 + $0xa8] sm:$0xf]
        %v8227 = vld [vmem:[%s709 + $0xac] sm:$0xf]
        %v8228 = vld [vmem:[%s709 + $0xb0] sm:$0x1]
        %v8229 = vld [vmem:[%s709 + $0xb4] sm:$0xf]
        %v8230 = vld [vmem:[%s709 + $0xb8] sm:$0xf]
        %v8231 = vld [vmem:[%s709 + $0xbc] sm:$0x1]
        %v8233 = vshrl.u32 %v8184, 16
        %v8235 = vrot.slane %v8233, 4
        %v8236 = vshll.u32 %v8184, 16
        %v8238 = vrot.slane %v8236, 5
        %v8239 = vor.u32 %v8235, %v8238
        %v8240 = vrot.slane %v8239, 4
        %v8242 = vshll.u32 %v8185, 16
        %v8244 = vrot.slane %v8242, 5
        %v8245 = vsel %vm6324, %v8240, %v8244
        %v8246 = vshrl.u32 %v8185, 16
        %v8248 = vrot.slane %v8246, 4
        %v8249 = vor.u32 %v8248, %v8244
        %v8250 = vrot.slane %v8249, 4
        %v8252 = vshll.u32 %v8186, 16
        %v8254 = vrot.slane %v8252, 5
        %v8255 = vsel %vm6324, %v8250, %v8254
        %v8257 = vshrl.u32 %v8187, 16
        %v8259 = vrot.slane %v8257, 4
        %v8260 = vshll.u32 %v8187, 16
        %v8262 = vrot.slane %v8260, 5
        %v8263 = vor.u32 %v8259, %v8262
        %v8264 = vrot.slane %v8263, 4
        %v8266 = vshll.u32 %v8188, 16
        %v8268 = vrot.slane %v8266, 5
        %v8269 = vsel %vm6324, %v8264, %v8268
        %v8270 = vshrl.u32 %v8188, 16
        %v8272 = vrot.slane %v8270, 4
        %v8273 = vor.u32 %v8272, %v8268
        %v8274 = vrot.slane %v8273, 4
        %v8276 = vshll.u32 %v8189, 16
        %v8278 = vrot.slane %v8276, 5
        %v8279 = vsel %vm6324, %v8274, %v8278
        %v8281 = vshrl.u32 %v8190, 16
        %v8283 = vrot.slane %v8281, 4
        %v8284 = vshll.u32 %v8190, 16
        %v8286 = vrot.slane %v8284, 5
        %v8287 = vor.u32 %v8283, %v8286
        %v8288 = vrot.slane %v8287, 4
        %v8290 = vshll.u32 %v8191, 16
        %v8292 = vrot.slane %v8290, 5
        %v8293 = vsel %vm6324, %v8288, %v8292
        %v8294 = vshrl.u32 %v8191, 16
        %v8296 = vrot.slane %v8294, 4
        %v8297 = vor.u32 %v8296, %v8292
        %v8298 = vrot.slane %v8297, 4
        %v8300 = vshll.u32 %v8192, 16
        %v8302 = vrot.slane %v8300, 5
        %v8303 = vsel %vm6324, %v8298, %v8302
        %v8305 = vshrl.u32 %v8193, 16
        %v8307 = vrot.slane %v8305, 4
        %v8308 = vshll.u32 %v8193, 16
        %v8310 = vrot.slane %v8308, 5
        %v8311 = vor.u32 %v8307, %v8310
        %v8312 = vrot.slane %v8311, 4
        %v8314 = vshll.u32 %v8194, 16
        %v8316 = vrot.slane %v8314, 5
        %v8317 = vsel %vm6324, %v8312, %v8316
        %v8318 = vshrl.u32 %v8194, 16
        %v8320 = vrot.slane %v8318, 4
        %v8321 = vor.u32 %v8320, %v8316
        %v8322 = vrot.slane %v8321, 4
        %v8324 = vshll.u32 %v8195, 16
        %v8326 = vrot.slane %v8324, 5
        %v8327 = vsel %vm6324, %v8322, %v8326
        %v8329 = vshrl.u32 %v8196, 16
        %v8331 = vrot.slane %v8329, 4
        %v8332 = vshll.u32 %v8196, 16
        %v8334 = vrot.slane %v8332, 5
        %v8335 = vor.u32 %v8331, %v8334
        %v8336 = vrot.slane %v8335, 4
        %v8338 = vshll.u32 %v8197, 16
        %v8340 = vrot.slane %v8338, 5
        %v8341 = vsel %vm6324, %v8336, %v8340
        %v8342 = vshrl.u32 %v8197, 16
        %v8344 = vrot.slane %v8342, 4
        %v8345 = vor.u32 %v8344, %v8340
        %v8346 = vrot.slane %v8345, 4
        %v8348 = vshll.u32 %v8198, 16
        %v8350 = vrot.slane %v8348, 5
        %v8351 = vsel %vm6324, %v8346, %v8350
        %v8353 = vshrl.u32 %v8199, 16
        %v8355 = vrot.slane %v8353, 4
        %v8356 = vshll.u32 %v8199, 16
        %v8358 = vrot.slane %v8356, 5
        %v8359 = vor.u32 %v8355, %v8358
        %v8360 = vrot.slane %v8359, 4
        %v8362 = vshll.u32 %v8200, 16
        %v8364 = vrot.slane %v8362, 5
        %v8365 = vsel %vm6324, %v8360, %v8364
        %v8366 = vshrl.u32 %v8200, 16
        %v8368 = vrot.slane %v8366, 4
        %v8369 = vor.u32 %v8368, %v8364
        %v8370 = vrot.slane %v8369, 4
        %v8372 = vshll.u32 %v8201, 16
        %v8374 = vrot.slane %v8372, 5
        %v8375 = vsel %vm6324, %v8370, %v8374
        %v8377 = vshrl.u32 %v8202, 16
        %v8379 = vrot.slane %v8377, 4
        %v8380 = vshll.u32 %v8202, 16
        %v8382 = vrot.slane %v8380, 5
        %v8383 = vor.u32 %v8379, %v8382
        %v8384 = vrot.slane %v8383, 4
        %v8386 = vshll.u32 %v8203, 16
        %v8388 = vrot.slane %v8386, 5
        %v8389 = vsel %vm6324, %v8384, %v8388
        %v8390 = vshrl.u32 %v8203, 16
        %v8392 = vrot.slane %v8390, 4
        %v8393 = vor.u32 %v8392, %v8388
        %v8394 = vrot.slane %v8393, 4
        %v8396 = vshll.u32 %v8204, 16
        %v8398 = vrot.slane %v8396, 5
        %v8399 = vsel %vm6324, %v8394, %v8398
        %v8401 = vshrl.u32 %v8205, 16
        %v8403 = vrot.slane %v8401, 4
        %v8404 = vshll.u32 %v8205, 16
        %v8406 = vrot.slane %v8404, 5
        %v8407 = vor.u32 %v8403, %v8406
        %v8408 = vrot.slane %v8407, 4
        %v8410 = vshll.u32 %v8206, 16
        %v8412 = vrot.slane %v8410, 5
        %v8413 = vsel %vm6324, %v8408, %v8412
        %v8414 = vshrl.u32 %v8206, 16
        %v8416 = vrot.slane %v8414, 4
        %v8417 = vor.u32 %v8416, %v8412
        %v8418 = vrot.slane %v8417, 4
        %v8420 = vshll.u32 %v8207, 16
        %v8422 = vrot.slane %v8420, 5
        %v8423 = vsel %vm6324, %v8418, %v8422
        %v8425 = vshrl.u32 %v8208, 16
        %v8427 = vrot.slane %v8425, 4
        %v8428 = vshll.u32 %v8208, 16
        %v8430 = vrot.slane %v8428, 5
        %v8431 = vor.u32 %v8427, %v8430
        %v8432 = vrot.slane %v8431, 4
        %v8434 = vshll.u32 %v8209, 16
        %v8436 = vrot.slane %v8434, 5
        %v8437 = vsel %vm6324, %v8432, %v8436
        %v8438 = vshrl.u32 %v8209, 16
        %v8440 = vrot.slane %v8438, 4
        %v8441 = vor.u32 %v8440, %v8436
        %v8442 = vrot.slane %v8441, 4
        %v8444 = vshll.u32 %v8210, 16
        %v8446 = vrot.slane %v8444, 5
        %v8447 = vsel %vm6324, %v8442, %v8446
        %v8449 = vshrl.u32 %v8211, 16
        %v8451 = vrot.slane %v8449, 4
        %v8452 = vshll.u32 %v8211, 16
        %v8454 = vrot.slane %v8452, 5
        %v8455 = vor.u32 %v8451, %v8454
        %v8456 = vrot.slane %v8455, 4
        %v8458 = vshll.u32 %v8212, 16
        %v8460 = vrot.slane %v8458, 5
        %v8461 = vsel %vm6324, %v8456, %v8460
        %v8462 = vshrl.u32 %v8212, 16
        %v8464 = vrot.slane %v8462, 4
        %v8465 = vor.u32 %v8464, %v8460
        %v8466 = vrot.slane %v8465, 4
        %v8468 = vshll.u32 %v8213, 16
        %v8470 = vrot.slane %v8468, 5
        %v8471 = vsel %vm6324, %v8466, %v8470
        %v8473 = vshrl.u32 %v8214, 16
        %v8475 = vrot.slane %v8473, 4
        %v8476 = vshll.u32 %v8214, 16
        %v8478 = vrot.slane %v8476, 5
        %v8479 = vor.u32 %v8475, %v8478
        %v8480 = vrot.slane %v8479, 4
        %v8482 = vshll.u32 %v8215, 16
        %v8484 = vrot.slane %v8482, 5
        %v8485 = vsel %vm6324, %v8480, %v8484
        %v8486 = vshrl.u32 %v8215, 16
        %v8488 = vrot.slane %v8486, 4
        %v8489 = vor.u32 %v8488, %v8484
        %v8490 = vrot.slane %v8489, 4
        %v8492 = vshll.u32 %v8216, 16
        %v8494 = vrot.slane %v8492, 5
        %v8495 = vsel %vm6324, %v8490, %v8494
        %v8497 = vshrl.u32 %v8217, 16
        %v8499 = vrot.slane %v8497, 4
        %v8500 = vshll.u32 %v8217, 16
        %v8502 = vrot.slane %v8500, 5
        %v8503 = vor.u32 %v8499, %v8502
        %v8504 = vrot.slane %v8503, 4
        %v8506 = vshll.u32 %v8218, 16
        %v8508 = vrot.slane %v8506, 5
        %v8509 = vsel %vm6324, %v8504, %v8508
        %v8510 = vshrl.u32 %v8218, 16
        %v8512 = vrot.slane %v8510, 4
        %v8513 = vor.u32 %v8512, %v8508
        %v8514 = vrot.slane %v8513, 4
        %v8516 = vshll.u32 %v8219, 16
        %v8518 = vrot.slane %v8516, 5
        %v8519 = vsel %vm6324, %v8514, %v8518
        %v8521 = vshrl.u32 %v8220, 16
        %v8523 = vrot.slane %v8521, 4
        %v8524 = vshll.u32 %v8220, 16
        %v8526 = vrot.slane %v8524, 5
        %v8527 = vor.u32 %v8523, %v8526
        %v8528 = vrot.slane %v8527, 4
        %v8530 = vshll.u32 %v8221, 16
        %v8532 = vrot.slane %v8530, 5
        %v8533 = vsel %vm6324, %v8528, %v8532
        %v8534 = vshrl.u32 %v8221, 16
        %v8536 = vrot.slane %v8534, 4
        %v8537 = vor.u32 %v8536, %v8532
        %v8538 = vrot.slane %v8537, 4
        %v8540 = vshll.u32 %v8222, 16
        %v8542 = vrot.slane %v8540, 5
        %v8543 = vsel %vm6324, %v8538, %v8542
        %v8545 = vshrl.u32 %v8223, 16
        %v8547 = vrot.slane %v8545, 4
        %v8548 = vshll.u32 %v8223, 16
        %v8550 = vrot.slane %v8548, 5
        %v8551 = vor.u32 %v8547, %v8550
        %v8552 = vrot.slane %v8551, 4
        %v8554 = vshll.u32 %v8224, 16
        %v8556 = vrot.slane %v8554, 5
        %v8557 = vsel %vm6324, %v8552, %v8556
        %v8558 = vshrl.u32 %v8224, 16
        %v8560 = vrot.slane %v8558, 4
        %v8561 = vor.u32 %v8560, %v8556
        %v8562 = vrot.slane %v8561, 4
        %v8564 = vshll.u32 %v8225, 16
        %v8566 = vrot.slane %v8564, 5
        %v8567 = vsel %vm6324, %v8562, %v8566
        %v8569 = vshrl.u32 %v8226, 16
        %v8571 = vrot.slane %v8569, 4
        %v8572 = vshll.u32 %v8226, 16
        %v8574 = vrot.slane %v8572, 5
        %v8575 = vor.u32 %v8571, %v8574
        %v8576 = vrot.slane %v8575, 4
        %v8578 = vshll.u32 %v8227, 16
        %v8580 = vrot.slane %v8578, 5
        %v8581 = vsel %vm6324, %v8576, %v8580
        %v8582 = vshrl.u32 %v8227, 16
        %v8584 = vrot.slane %v8582, 4
        %v8585 = vor.u32 %v8584, %v8580
        %v8586 = vrot.slane %v8585, 4
        %v8588 = vshll.u32 %v8228, 16
        %v8590 = vrot.slane %v8588, 5
        %v8591 = vsel %vm6324, %v8586, %v8590
        %v8593 = vshrl.u32 %v8229, 16
        %v8595 = vrot.slane %v8593, 4
        %v8596 = vshll.u32 %v8229, 16
        %v8598 = vrot.slane %v8596, 5
        %v8599 = vor.u32 %v8595, %v8598
        %v8600 = vrot.slane %v8599, 4
        %v8602 = vshll.u32 %v8230, 16
        %v8604 = vrot.slane %v8602, 5
        %v8605 = vsel %vm6324, %v8600, %v8604
        %v8606 = vshrl.u32 %v8230, 16
        %v8608 = vrot.slane %v8606, 4
        %v8609 = vor.u32 %v8608, %v8604
        %v8610 = vrot.slane %v8609, 4
        %v8612 = vshll.u32 %v8231, 16
        %v8614 = vrot.slane %v8612, 5
        %v8615 = vsel %vm6324, %v8610, %v8614
        %s8616 = scalar_lea.vmem [#allocation3], 5600
        %v8617 = vld [vmem:[%s8616] sm:$0xf]
        %v8618 = vld [vmem:[%s8616 + $0x4] sm:$0xf]
        %v8619 = vld [vmem:[%s8616 + $0x8] sm:$0xf]
        %v8620 = vld [vmem:[%s8616 + $0xc] sm:$0xf]
        %v8621 = vld [vmem:[%s8616 + $0x10] sm:$0xf]
        %v8622 = vld [vmem:[%s8616 + $0x14] sm:$0xf]
        %v8623 = vld [vmem:[%s8616 + $0x18] sm:$0xf]
        %v8624 = vld [vmem:[%s8616 + $0x1c] sm:$0xf]
        %v8625 = vunpack.c.l.b16 %v8245
        %v8626 = vunpack.c.l.b16 %v8255
        %v8627 = vunpack.c.l.b16 %v8269
        %v8628 = vunpack.c.l.b16 %v8279
        %v8629 = vunpack.c.l.b16 %v8293
        %v8630 = vunpack.c.l.b16 %v8303
        %v8631 = vunpack.c.l.b16 %v8317
        %v8632 = vunpack.c.l.b16 %v8327
        %v8633 = vunpack.c.l.b16 %v8341
        %v8634 = vunpack.c.l.b16 %v8351
        %v8635 = vunpack.c.l.b16 %v8365
        %v8636 = vunpack.c.l.b16 %v8375
        %v8637 = vunpack.c.l.b16 %v8389
        %v8638 = vunpack.c.l.b16 %v8399
        %v8639 = vunpack.c.l.b16 %v8413
        %v8640 = vunpack.c.l.b16 %v8423
        %v8641 = vunpack.c.l.b16 %v8437
        %v8642 = vunpack.c.l.b16 %v8447
        %v8643 = vunpack.c.l.b16 %v8461
        %v8644 = vunpack.c.l.b16 %v8471
        %v8645 = vunpack.c.l.b16 %v8485
        %v8646 = vunpack.c.l.b16 %v8495
        %v8647 = vunpack.c.l.b16 %v8509
        %v8648 = vunpack.c.l.b16 %v8519
        %v8649 = vunpack.c.l.b16 %v8533
        %v8650 = vunpack.c.l.b16 %v8543
        %v8651 = vunpack.c.l.b16 %v8557
        %v8652 = vunpack.c.l.b16 %v8567
        %v8653 = vunpack.c.l.b16 %v8581
        %v8654 = vunpack.c.l.b16 %v8591
        %v8655 = vunpack.c.l.b16 %v8605
        %v8656 = vunpack.c.l.b16 %v8615
        %v8657 = vpack.c.b16 %v8626, %v8625
        %v8658 = vpack.c.b16 %v8628, %v8627
        %v8659 = vpack.c.b16 %v8630, %v8629
        %v8660 = vpack.c.b16 %v8632, %v8631
        %v8661 = vpack.c.b16 %v8634, %v8633
        %v8662 = vpack.c.b16 %v8636, %v8635
        %v8663 = vpack.c.b16 %v8638, %v8637
        %v8664 = vpack.c.b16 %v8640, %v8639
        %v8665 = vpack.c.b16 %v8642, %v8641
        %v8666 = vpack.c.b16 %v8644, %v8643
        %v8667 = vpack.c.b16 %v8646, %v8645
        %v8668 = vpack.c.b16 %v8648, %v8647
        %v8669 = vpack.c.b16 %v8650, %v8649
        %v8670 = vpack.c.b16 %v8652, %v8651
        %v8671 = vpack.c.b16 %v8654, %v8653
        %v8672 = vpack.c.b16 %v8656, %v8655
        %v8681 = vunpack.c.l.b16 %v8617
        %v8682 = vunpack.c.l.b16 %v8618
        %v8683 = vunpack.c.l.b16 %v8619
        %v8684 = vunpack.c.l.b16 %v8620
        %v8685 = vunpack.c.l.b16 %v8621
        %v8686 = vunpack.c.l.b16 %v8622
        %v8687 = vunpack.c.l.b16 %v8623
        %v8688 = vunpack.c.l.b16 %v8624
        %v8689 = vpack.c.b16 %v8682, %v8681
        %v8690 = vpack.c.b16 %v8684, %v8683
        %v8691 = vpack.c.b16 %v8686, %v8685
        %v8692 = vpack.c.b16 %v8688, %v8687
        %v8698 = vsel %vm6790, %v8657, 0
        %v8701 = vsel %vm6790, %v8658, 0
        %v8704 = vsel %vm6790, %v8659, 0
        %v8707 = vsel %vm6790, %v8660, 0
        %v8710 = vsel %vm6790, %v8661, 0
        %v8713 = vsel %vm6790, %v8662, 0
        %v8716 = vsel %vm6790, %v8663, 0
        %v8719 = vsel %vm6790, %v8664, 0
        %v8722 = vsel %vm6790, %v8665, 0
        %v8725 = vsel %vm6790, %v8666, 0
        %v8728 = vsel %vm6790, %v8667, 0
        %v8731 = vsel %vm6790, %v8668, 0
        %v8734 = vsel %vm6790, %v8669, 0
        %v8737 = vsel %vm6790, %v8670, 0
        %v8740 = vsel %vm6790, %v8671, 0
        %v8743 = vsel %vm6790, %v8672, 0
        %8745 = vmatprep.subr.bf16.mxu0 0
        %8746 = vmatpush1.bf16.msra.mxu0 0
        %8747 = vmatprep.subr.bf16.mxu0 0
        %8748 = vmatpush1.bf16.msra.mxu0 0
        %8749 = vmatprep.subr.bf16.mxu0 0
        %8750 = vmatpush1.bf16.msra.mxu0 0
        %8751 = vmatprep.subr.bf16.mxu0 0
        %8752 = vmatpush1.bf16.msra.mxu0 0
        %8753 = vmatprep.subr.bf16.mxu0 0
        %8754 = vmatpush1.bf16.msra.mxu0 %v8692
        %8755 = vmatprep.subr.bf16.mxu0 0
        %8756 = vmatpush1.bf16.msra.mxu0 %v8691
        %8757 = vmatprep.subr.bf16.mxu0 0
        %8758 = vmatpush1.bf16.msra.mxu0 %v8690
        %8759 = vmatprep.subr.bf16.mxu0 0
        %8760 = vmatpush1.bf16.msra.mxu0 %v8689
        %8761 = vmatprep.subr.bf16.mxu0 0
        %8762 = vmatpush2.bf16.msra.mxu0 0
        %8763 = vmatprep.subr.bf16.mxu0 0
        %8764 = vmatpush2.bf16.msra.mxu0 0
        %8765 = vmatprep.subr.bf16.mxu0 0
        %8766 = vmatpush2.bf16.msra.mxu0 0
        %8767 = vmatprep.subr.bf16.mxu0 0
        %8768 = vmatpush2.bf16.msra.mxu0 0
        %8769 = vmatprep.subr.bf16.mxu0 0
        %8770 = vmatpush2.bf16.msra.mxu0 0
        %8771 = vmatprep.subr.bf16.mxu0 0
        %8772 = vmatpush2.bf16.msra.mxu0 0
        %8773 = vmatprep.subr.bf16.mxu0 0
        %8774 = vmatpush2.bf16.msra.mxu0 0
        %8775 = vmatprep.subr.bf16.mxu0 0
        %8776 = vmatpush2.bf16.msra.mxu0 0
        %8777 = vmatprep.mubr.bf16.mxu0 0
        %8778 = vmatmul.mubr.bf16.gmra.mxu0 %v8698
        %v8779 = vpop.f32.mrf.mxu0
        %v8780 = vadd.f32 0.0, %v8779
        %v8781 = vpop.f32.mrf.mxu0
        %v8782 = vpop.f32.mrf.mxu0
        %v8783 = vadd.f32 0.0, %v8782
        %v8784 = vpop.f32.mrf.mxu0
        %8785 = vmatprep.mubr.bf16.mxu0 0
        %8786 = vmatmul.mubr.bf16.gmra.mxu0 %v8701
        %v8787 = vpop.f32.mrf.mxu0
        %v8788 = vadd.f32 0.0, %v8787
        %v8789 = vpop.f32.mrf.mxu0
        %v8790 = vpop.f32.mrf.mxu0
        %v8791 = vadd.f32 0.0, %v8790
        %v8792 = vpop.f32.mrf.mxu0
        %8793 = vmatprep.mubr.bf16.mxu0 0
        %8794 = vmatmul.mubr.bf16.gmra.mxu0 %v8704
        %v8795 = vpop.f32.mrf.mxu0
        %v8796 = vadd.f32 0.0, %v8795
        %v8797 = vpop.f32.mrf.mxu0
        %v8798 = vpop.f32.mrf.mxu0
        %v8799 = vadd.f32 0.0, %v8798
        %v8800 = vpop.f32.mrf.mxu0
        %8801 = vmatprep.mubr.bf16.mxu0 0
        %8802 = vmatmul.mubr.bf16.gmra.mxu0 %v8707
        %v8803 = vpop.f32.mrf.mxu0
        %v8804 = vadd.f32 0.0, %v8803
        %v8805 = vpop.f32.mrf.mxu0
        %v8806 = vpop.f32.mrf.mxu0
        %v8807 = vadd.f32 0.0, %v8806
        %v8808 = vpop.f32.mrf.mxu0
        %8809 = vmatprep.mubr.bf16.mxu0 0
        %8810 = vmatmul.mubr.bf16.gmra.mxu0 %v8710
        %v8811 = vpop.f32.mrf.mxu0
        %v8812 = vadd.f32 0.0, %v8811
        %v8813 = vpop.f32.mrf.mxu0
        %v8814 = vpop.f32.mrf.mxu0
        %v8815 = vadd.f32 0.0, %v8814
        %v8816 = vpop.f32.mrf.mxu0
        %8817 = vmatprep.mubr.bf16.mxu0 0
        %8818 = vmatmul.mubr.bf16.gmra.mxu0 %v8713
        %v8819 = vpop.f32.mrf.mxu0
        %v8820 = vadd.f32 0.0, %v8819
        %v8821 = vpop.f32.mrf.mxu0
        %v8822 = vpop.f32.mrf.mxu0
        %v8823 = vadd.f32 0.0, %v8822
        %v8824 = vpop.f32.mrf.mxu0
        %8825 = vmatprep.mubr.bf16.mxu0 0
        %8826 = vmatmul.mubr.bf16.gmra.mxu0 %v8716
        %v8827 = vpop.f32.mrf.mxu0
        %v8828 = vadd.f32 0.0, %v8827
        %v8829 = vpop.f32.mrf.mxu0
        %v8830 = vpop.f32.mrf.mxu0
        %v8831 = vadd.f32 0.0, %v8830
        %v8832 = vpop.f32.mrf.mxu0
        %8833 = vmatprep.mubr.bf16.mxu0 0
        %8834 = vmatmul.mubr.bf16.gmra.mxu0 %v8719
        %v8835 = vpop.f32.mrf.mxu0
        %v8836 = vadd.f32 0.0, %v8835
        %v8837 = vpop.f32.mrf.mxu0
        %v8838 = vpop.f32.mrf.mxu0
        %v8839 = vadd.f32 0.0, %v8838
        %v8840 = vpop.f32.mrf.mxu0
        %8841 = vmatprep.mubr.bf16.mxu0 0
        %8842 = vmatmul.mubr.bf16.gmra.mxu0 %v8722
        %v8843 = vpop.f32.mrf.mxu0
        %v8844 = vadd.f32 0.0, %v8843
        %v8845 = vpop.f32.mrf.mxu0
        %v8846 = vpop.f32.mrf.mxu0
        %v8847 = vadd.f32 0.0, %v8846
        %v8848 = vpop.f32.mrf.mxu0
        %8849 = vmatprep.mubr.bf16.mxu0 0
        %8850 = vmatmul.mubr.bf16.gmra.mxu0 %v8725
        %v8851 = vpop.f32.mrf.mxu0
        %v8852 = vadd.f32 0.0, %v8851
        %v8853 = vpop.f32.mrf.mxu0
        %v8854 = vpop.f32.mrf.mxu0
        %v8855 = vadd.f32 0.0, %v8854
        %v8856 = vpop.f32.mrf.mxu0
        %8857 = vmatprep.mubr.bf16.mxu0 0
        %8858 = vmatmul.mubr.bf16.gmra.mxu0 %v8728
        %v8859 = vpop.f32.mrf.mxu0
        %v8860 = vadd.f32 0.0, %v8859
        %v8861 = vpop.f32.mrf.mxu0
        %v8862 = vpop.f32.mrf.mxu0
        %v8863 = vadd.f32 0.0, %v8862
        %v8864 = vpop.f32.mrf.mxu0
        %8865 = vmatprep.mubr.bf16.mxu0 0
        %8866 = vmatmul.mubr.bf16.gmra.mxu0 %v8731
        %v8867 = vpop.f32.mrf.mxu0
        %v8868 = vadd.f32 0.0, %v8867
        %v8869 = vpop.f32.mrf.mxu0
        %v8870 = vpop.f32.mrf.mxu0
        %v8871 = vadd.f32 0.0, %v8870
        %v8872 = vpop.f32.mrf.mxu0
        %8873 = vmatprep.mubr.bf16.mxu0 0
        %8874 = vmatmul.mubr.bf16.gmra.mxu0 %v8734
        %v8875 = vpop.f32.mrf.mxu0
        %v8876 = vadd.f32 0.0, %v8875
        %v8877 = vpop.f32.mrf.mxu0
        %v8878 = vpop.f32.mrf.mxu0
        %v8879 = vadd.f32 0.0, %v8878
        %v8880 = vpop.f32.mrf.mxu0
        %8881 = vmatprep.mubr.bf16.mxu0 0
        %8882 = vmatmul.mubr.bf16.gmra.mxu0 %v8737
        %v8883 = vpop.f32.mrf.mxu0
        %v8884 = vadd.f32 0.0, %v8883
        %v8885 = vpop.f32.mrf.mxu0
        %v8886 = vpop.f32.mrf.mxu0
        %v8887 = vadd.f32 0.0, %v8886
        %v8888 = vpop.f32.mrf.mxu0
        %8889 = vmatprep.mubr.bf16.mxu0 0
        %8890 = vmatmul.mubr.bf16.gmra.mxu0 %v8740
        %v8891 = vpop.f32.mrf.mxu0
        %v8892 = vadd.f32 0.0, %v8891
        %v8893 = vpop.f32.mrf.mxu0
        %v8894 = vpop.f32.mrf.mxu0
        %v8895 = vadd.f32 0.0, %v8894
        %v8896 = vpop.f32.mrf.mxu0
        %8897 = vmatprep.mubr.bf16.mxu0 0
        %8898 = vmatmul.mubr.bf16.gmra.mxu0 %v8743
        %v8899 = vpop.f32.mrf.mxu0
        %v8900 = vadd.f32 0.0, %v8899
        %v8901 = vpop.f32.mrf.mxu0
        %v8902 = vpop.f32.mrf.mxu0
        %v8903 = vadd.f32 0.0, %v8902
        %v8904 = vpop.f32.mrf.mxu0
        %8905 = vdwg.mxu0
        %v8906 = vadd.f32 %v8152, %v8780
        %v8907 = vadd.f32 %v8153, %v8783
        %v8908 = vadd.f32 %v8154, %v8788
        %v8909 = vadd.f32 %v8155, %v8791
        %v8910 = vadd.f32 %v8156, %v8796
        %v8911 = vadd.f32 %v8157, %v8799
        %v8912 = vadd.f32 %v8158, %v8804
        %v8913 = vadd.f32 %v8159, %v8807
        %v8914 = vadd.f32 %v8160, %v8812
        %v8915 = vadd.f32 %v8161, %v8815
        %v8916 = vadd.f32 %v8162, %v8820
        %v8917 = vadd.f32 %v8163, %v8823
        %v8918 = vadd.f32 %v8164, %v8828
        %v8919 = vadd.f32 %v8165, %v8831
        %v8920 = vadd.f32 %v8166, %v8836
        %v8921 = vadd.f32 %v8167, %v8839
        %v8922 = vadd.f32 %v8168, %v8844
        %v8923 = vadd.f32 %v8169, %v8847
        %v8924 = vadd.f32 %v8170, %v8852
        %v8925 = vadd.f32 %v8171, %v8855
        %v8926 = vadd.f32 %v8172, %v8860
        %v8927 = vadd.f32 %v8173, %v8863
        %v8928 = vadd.f32 %v8174, %v8868
        %v8929 = vadd.f32 %v8175, %v8871
        %v8930 = vadd.f32 %v8176, %v8876
        %v8931 = vadd.f32 %v8177, %v8879
        %v8932 = vadd.f32 %v8178, %v8884
        %v8933 = vadd.f32 %v8179, %v8887
        %v8934 = vadd.f32 %v8180, %v8892
        %v8935 = vadd.f32 %v8181, %v8895
        %v8936 = vadd.f32 %v8182, %v8900
        %v8937 = vadd.f32 %v8183, %v8903
        %v8938 = vld [vmem:[%s709] sm:$0xe]
        %v8939 = vld [vmem:[%s709 + $0xc] sm:$0xe]
        %v8940 = vld [vmem:[%s709 + $0x18] sm:$0xe]
        %v8941 = vld [vmem:[%s709 + $0x24] sm:$0xe]
        %v8942 = vld [vmem:[%s709 + $0x30] sm:$0xe]
        %v8943 = vld [vmem:[%s709 + $0x3c] sm:$0xe]
        %v8944 = vld [vmem:[%s709 + $0x48] sm:$0xe]
        %v8945 = vld [vmem:[%s709 + $0x54] sm:$0xe]
        %v8946 = vld [vmem:[%s709 + $0x60] sm:$0xe]
        %v8947 = vld [vmem:[%s709 + $0x6c] sm:$0xe]
        %v8948 = vld [vmem:[%s709 + $0x78] sm:$0xe]
        %v8949 = vld [vmem:[%s709 + $0x84] sm:$0xe]
        %v8950 = vld [vmem:[%s709 + $0x90] sm:$0xe]
        %v8951 = vld [vmem:[%s709 + $0x9c] sm:$0xe]
        %v8952 = vld [vmem:[%s709 + $0xa8] sm:$0xe]
        %v8953 = vld [vmem:[%s709 + $0xb4] sm:$0xe]
        %v9002 = vrot.slane %v8938, 5
        %v9003 = vrot.slane %v9002, 4
        %v9004 = vrot.slane %v8185, 5
        %v9005 = vsel %vm7363, %v9003, %v9004
        %v9006 = vrot.slane %v9004, 4
        %v9007 = vrot.slane %v8186, 5
        %v9008 = vsel %vm7363, %v9006, %v9007
        %v9009 = vrot.slane %v8939, 5
        %v9010 = vrot.slane %v9009, 4
        %v9011 = vrot.slane %v8188, 5
        %v9012 = vsel %vm7363, %v9010, %v9011
        %v9013 = vrot.slane %v9011, 4
        %v9014 = vrot.slane %v8189, 5
        %v9015 = vsel %vm7363, %v9013, %v9014
        %v9016 = vrot.slane %v8940, 5
        %v9017 = vrot.slane %v9016, 4
        %v9018 = vrot.slane %v8191, 5
        %v9019 = vsel %vm7363, %v9017, %v9018
        %v9020 = vrot.slane %v9018, 4
        %v9021 = vrot.slane %v8192, 5
        %v9022 = vsel %vm7363, %v9020, %v9021
        %v9023 = vrot.slane %v8941, 5
        %v9024 = vrot.slane %v9023, 4
        %v9025 = vrot.slane %v8194, 5
        %v9026 = vsel %vm7363, %v9024, %v9025
        %v9027 = vrot.slane %v9025, 4
        %v9028 = vrot.slane %v8195, 5
        %v9029 = vsel %vm7363, %v9027, %v9028
        %v9030 = vrot.slane %v8942, 5
        %v9031 = vrot.slane %v9030, 4
        %v9032 = vrot.slane %v8197, 5
        %v9033 = vsel %vm7363, %v9031, %v9032
        %v9034 = vrot.slane %v9032, 4
        %v9035 = vrot.slane %v8198, 5
        %v9036 = vsel %vm7363, %v9034, %v9035
        %v9037 = vrot.slane %v8943, 5
        %v9038 = vrot.slane %v9037, 4
        %v9039 = vrot.slane %v8200, 5
        %v9040 = vsel %vm7363, %v9038, %v9039
        %v9041 = vrot.slane %v9039, 4
        %v9042 = vrot.slane %v8201, 5
        %v9043 = vsel %vm7363, %v9041, %v9042
        %v9044 = vrot.slane %v8944, 5
        %v9045 = vrot.slane %v9044, 4
        %v9046 = vrot.slane %v8203, 5
        %v9047 = vsel %vm7363, %v9045, %v9046
        %v9048 = vrot.slane %v9046, 4
        %v9049 = vrot.slane %v8204, 5
        %v9050 = vsel %vm7363, %v9048, %v9049
        %v9051 = vrot.slane %v8945, 5
        %v9052 = vrot.slane %v9051, 4
        %v9053 = vrot.slane %v8206, 5
        %v9054 = vsel %vm7363, %v9052, %v9053
        %v9055 = vrot.slane %v9053, 4
        %v9056 = vrot.slane %v8207, 5
        %v9057 = vsel %vm7363, %v9055, %v9056
        %v9058 = vrot.slane %v8946, 5
        %v9059 = vrot.slane %v9058, 4
        %v9060 = vrot.slane %v8209, 5
        %v9061 = vsel %vm7363, %v9059, %v9060
        %v9062 = vrot.slane %v9060, 4
        %v9063 = vrot.slane %v8210, 5
        %v9064 = vsel %vm7363, %v9062, %v9063
        %v9065 = vrot.slane %v8947, 5
        %v9066 = vrot.slane %v9065, 4
        %v9067 = vrot.slane %v8212, 5
        %v9068 = vsel %vm7363, %v9066, %v9067
        %v9069 = vrot.slane %v9067, 4
        %v9070 = vrot.slane %v8213, 5
        %v9071 = vsel %vm7363, %v9069, %v9070
        %v9072 = vrot.slane %v8948, 5
        %v9073 = vrot.slane %v9072, 4
        %v9074 = vrot.slane %v8215, 5
        %v9075 = vsel %vm7363, %v9073, %v9074
        %v9076 = vrot.slane %v9074, 4
        %v9077 = vrot.slane %v8216, 5
        %v9078 = vsel %vm7363, %v9076, %v9077
        %v9079 = vrot.slane %v8949, 5
        %v9080 = vrot.slane %v9079, 4
        %v9081 = vrot.slane %v8218, 5
        %v9082 = vsel %vm7363, %v9080, %v9081
        %v9083 = vrot.slane %v9081, 4
        %v9084 = vrot.slane %v8219, 5
        %v9085 = vsel %vm7363, %v9083, %v9084
        %v9086 = vrot.slane %v8950, 5
        %v9087 = vrot.slane %v9086, 4
        %v9088 = vrot.slane %v8221, 5
        %v9089 = vsel %vm7363, %v9087, %v9088
        %v9090 = vrot.slane %v9088, 4
        %v9091 = vrot.slane %v8222, 5
        %v9092 = vsel %vm7363, %v9090, %v9091
        %v9093 = vrot.slane %v8951, 5
        %v9094 = vrot.slane %v9093, 4
        %v9095 = vrot.slane %v8224, 5
        %v9096 = vsel %vm7363, %v9094, %v9095
        %v9097 = vrot.slane %v9095, 4
        %v9098 = vrot.slane %v8225, 5
        %v9099 = vsel %vm7363, %v9097, %v9098
        %v9100 = vrot.slane %v8952, 5
        %v9101 = vrot.slane %v9100, 4
        %v9102 = vrot.slane %v8227, 5
        %v9103 = vsel %vm7363, %v9101, %v9102
        %v9104 = vrot.slane %v9102, 4
        %v9105 = vrot.slane %v8228, 5
        %v9106 = vsel %vm7363, %v9104, %v9105
        %v9107 = vrot.slane %v8953, 5
        %v9108 = vrot.slane %v9107, 4
        %v9109 = vrot.slane %v8230, 5
        %v9110 = vsel %vm7363, %v9108, %v9109
        %v9111 = vrot.slane %v9109, 4
        %v9112 = vrot.slane %v8231, 5
        %v9113 = vsel %vm7363, %v9111, %v9112
        %s9114 = scalar_lea.vmem [#allocation3], 5632
        %v9115 = vld [vmem:[%s9114] sm:$0xf]
        %v9116 = vld [vmem:[%s9114 + $0x4] sm:$0xf]
        %v9117 = vld [vmem:[%s9114 + $0x8] sm:$0xf]
        %v9118 = vld [vmem:[%s9114 + $0xc] sm:$0xf]
        %v9119 = vld [vmem:[%s9114 + $0x10] sm:$0xf]
        %v9120 = vld [vmem:[%s9114 + $0x14] sm:$0xf]
        %v9121 = vld [vmem:[%s9114 + $0x18] sm:$0xf]
        %v9122 = vld [vmem:[%s9114 + $0x1c] sm:$0xf]
        %v9123 = vunpack.c.l.b16 %v9005
        %v9124 = vunpack.c.l.b16 %v9008
        %v9125 = vunpack.c.l.b16 %v9012
        %v9126 = vunpack.c.l.b16 %v9015
        %v9127 = vunpack.c.l.b16 %v9019
        %v9128 = vunpack.c.l.b16 %v9022
        %v9129 = vunpack.c.l.b16 %v9026
        %v9130 = vunpack.c.l.b16 %v9029
        %v9131 = vunpack.c.l.b16 %v9033
        %v9132 = vunpack.c.l.b16 %v9036
        %v9133 = vunpack.c.l.b16 %v9040
        %v9134 = vunpack.c.l.b16 %v9043
        %v9135 = vunpack.c.l.b16 %v9047
        %v9136 = vunpack.c.l.b16 %v9050
        %v9137 = vunpack.c.l.b16 %v9054
        %v9138 = vunpack.c.l.b16 %v9057
        %v9139 = vunpack.c.l.b16 %v9061
        %v9140 = vunpack.c.l.b16 %v9064
        %v9141 = vunpack.c.l.b16 %v9068
        %v9142 = vunpack.c.l.b16 %v9071
        %v9143 = vunpack.c.l.b16 %v9075
        %v9144 = vunpack.c.l.b16 %v9078
        %v9145 = vunpack.c.l.b16 %v9082
        %v9146 = vunpack.c.l.b16 %v9085
        %v9147 = vunpack.c.l.b16 %v9089
        %v9148 = vunpack.c.l.b16 %v9092
        %v9149 = vunpack.c.l.b16 %v9096
        %v9150 = vunpack.c.l.b16 %v9099
        %v9151 = vunpack.c.l.b16 %v9103
        %v9152 = vunpack.c.l.b16 %v9106
        %v9153 = vunpack.c.l.b16 %v9110
        %v9154 = vunpack.c.l.b16 %v9113
        %v9155 = vpack.c.b16 %v9124, %v9123
        %v9156 = vpack.c.b16 %v9126, %v9125
        %v9157 = vpack.c.b16 %v9128, %v9127
        %v9158 = vpack.c.b16 %v9130, %v9129
        %v9159 = vpack.c.b16 %v9132, %v9131
        %v9160 = vpack.c.b16 %v9134, %v9133
        %v9161 = vpack.c.b16 %v9136, %v9135
        %v9162 = vpack.c.b16 %v9138, %v9137
        %v9163 = vpack.c.b16 %v9140, %v9139
        %v9164 = vpack.c.b16 %v9142, %v9141
        %v9165 = vpack.c.b16 %v9144, %v9143
        %v9166 = vpack.c.b16 %v9146, %v9145
        %v9167 = vpack.c.b16 %v9148, %v9147
        %v9168 = vpack.c.b16 %v9150, %v9149
        %v9169 = vpack.c.b16 %v9152, %v9151
        %v9170 = vpack.c.b16 %v9154, %v9153
        %v9179 = vunpack.c.l.b16 %v9115
        %v9180 = vunpack.c.l.b16 %v9116
        %v9181 = vunpack.c.l.b16 %v9117
        %v9182 = vunpack.c.l.b16 %v9118
        %v9183 = vunpack.c.l.b16 %v9119
        %v9184 = vunpack.c.l.b16 %v9120
        %v9185 = vunpack.c.l.b16 %v9121
        %v9186 = vunpack.c.l.b16 %v9122
        %v9187 = vpack.c.b16 %v9180, %v9179
        %v9188 = vpack.c.b16 %v9182, %v9181
        %v9189 = vpack.c.b16 %v9184, %v9183
        %v9190 = vpack.c.b16 %v9186, %v9185
        %v9196 = vsel %vm6790, %v9155, 0
        %v9199 = vsel %vm6790, %v9156, 0
        %v9202 = vsel %vm6790, %v9157, 0
        %v9205 = vsel %vm6790, %v9158, 0
        %v9208 = vsel %vm6790, %v9159, 0
        %v9211 = vsel %vm6790, %v9160, 0
        %v9214 = vsel %vm6790, %v9161, 0
        %v9217 = vsel %vm6790, %v9162, 0
        %v9220 = vsel %vm6790, %v9163, 0
        %v9223 = vsel %vm6790, %v9164, 0
        %v9226 = vsel %vm6790, %v9165, 0
        %v9229 = vsel %vm6790, %v9166, 0
        %v9232 = vsel %vm6790, %v9167, 0
        %v9235 = vsel %vm6790, %v9168, 0
        %v9238 = vsel %vm6790, %v9169, 0
        %v9241 = vsel %vm6790, %v9170, 0
        %9243 = vmatprep.subr.bf16.mxu0 0
        %9244 = vmatpush1.bf16.msra.mxu0 0
        %9245 = vmatprep.subr.bf16.mxu0 0
        %9246 = vmatpush1.bf16.msra.mxu0 0
        %9247 = vmatprep.subr.bf16.mxu0 0
        %9248 = vmatpush1.bf16.msra.mxu0 0
        %9249 = vmatprep.subr.bf16.mxu0 0
        %9250 = vmatpush1.bf16.msra.mxu0 0
        %9251 = vmatprep.subr.bf16.mxu0 0
        %9252 = vmatpush1.bf16.msra.mxu0 %v9190
        %9253 = vmatprep.subr.bf16.mxu0 0
        %9254 = vmatpush1.bf16.msra.mxu0 %v9189
        %9255 = vmatprep.subr.bf16.mxu0 0
        %9256 = vmatpush1.bf16.msra.mxu0 %v9188
        %9257 = vmatprep.subr.bf16.mxu0 0
        %9258 = vmatpush1.bf16.msra.mxu0 %v9187
        %9259 = vmatprep.subr.bf16.mxu0 0
        %9260 = vmatpush2.bf16.msra.mxu0 0
        %9261 = vmatprep.subr.bf16.mxu0 0
        %9262 = vmatpush2.bf16.msra.mxu0 0
        %9263 = vmatprep.subr.bf16.mxu0 0
        %9264 = vmatpush2.bf16.msra.mxu0 0
        %9265 = vmatprep.subr.bf16.mxu0 0
        %9266 = vmatpush2.bf16.msra.mxu0 0
        %9267 = vmatprep.subr.bf16.mxu0 0
        %9268 = vmatpush2.bf16.msra.mxu0 0
        %9269 = vmatprep.subr.bf16.mxu0 0
        %9270 = vmatpush2.bf16.msra.mxu0 0
        %9271 = vmatprep.subr.bf16.mxu0 0
        %9272 = vmatpush2.bf16.msra.mxu0 0
        %9273 = vmatprep.subr.bf16.mxu0 0
        %9274 = vmatpush2.bf16.msra.mxu0 0
        %9275 = vmatprep.mubr.bf16.mxu0 0
        %9276 = vmatmul.mubr.bf16.gmra.mxu0 %v9196
        %v9277 = vpop.f32.mrf.mxu0
        %v9278 = vadd.f32 0.0, %v9277
        %v9279 = vpop.f32.mrf.mxu0
        %v9280 = vpop.f32.mrf.mxu0
        %v9281 = vadd.f32 0.0, %v9280
        %v9282 = vpop.f32.mrf.mxu0
        %9283 = vmatprep.mubr.bf16.mxu0 0
        %9284 = vmatmul.mubr.bf16.gmra.mxu0 %v9199
        %v9285 = vpop.f32.mrf.mxu0
        %v9286 = vadd.f32 0.0, %v9285
        %v9287 = vpop.f32.mrf.mxu0
        %v9288 = vpop.f32.mrf.mxu0
        %v9289 = vadd.f32 0.0, %v9288
        %v9290 = vpop.f32.mrf.mxu0
        %9291 = vmatprep.mubr.bf16.mxu0 0
        %9292 = vmatmul.mubr.bf16.gmra.mxu0 %v9202
        %v9293 = vpop.f32.mrf.mxu0
        %v9294 = vadd.f32 0.0, %v9293
        %v9295 = vpop.f32.mrf.mxu0
        %v9296 = vpop.f32.mrf.mxu0
        %v9297 = vadd.f32 0.0, %v9296
        %v9298 = vpop.f32.mrf.mxu0
        %9299 = vmatprep.mubr.bf16.mxu0 0
        %9300 = vmatmul.mubr.bf16.gmra.mxu0 %v9205
        %v9301 = vpop.f32.mrf.mxu0
        %v9302 = vadd.f32 0.0, %v9301
        %v9303 = vpop.f32.mrf.mxu0
        %v9304 = vpop.f32.mrf.mxu0
        %v9305 = vadd.f32 0.0, %v9304
        %v9306 = vpop.f32.mrf.mxu0
        %9307 = vmatprep.mubr.bf16.mxu0 0
        %9308 = vmatmul.mubr.bf16.gmra.mxu0 %v9208
        %v9309 = vpop.f32.mrf.mxu0
        %v9310 = vadd.f32 0.0, %v9309
        %v9311 = vpop.f32.mrf.mxu0
        %v9312 = vpop.f32.mrf.mxu0
        %v9313 = vadd.f32 0.0, %v9312
        %v9314 = vpop.f32.mrf.mxu0
        %9315 = vmatprep.mubr.bf16.mxu0 0
        %9316 = vmatmul.mubr.bf16.gmra.mxu0 %v9211
        %v9317 = vpop.f32.mrf.mxu0
        %v9318 = vadd.f32 0.0, %v9317
        %v9319 = vpop.f32.mrf.mxu0
        %v9320 = vpop.f32.mrf.mxu0
        %v9321 = vadd.f32 0.0, %v9320
        %v9322 = vpop.f32.mrf.mxu0
        %9323 = vmatprep.mubr.bf16.mxu0 0
        %9324 = vmatmul.mubr.bf16.gmra.mxu0 %v9214
        %v9325 = vpop.f32.mrf.mxu0
        %v9326 = vadd.f32 0.0, %v9325
        %v9327 = vpop.f32.mrf.mxu0
        %v9328 = vpop.f32.mrf.mxu0
        %v9329 = vadd.f32 0.0, %v9328
        %v9330 = vpop.f32.mrf.mxu0
        %9331 = vmatprep.mubr.bf16.mxu0 0
        %9332 = vmatmul.mubr.bf16.gmra.mxu0 %v9217
        %v9333 = vpop.f32.mrf.mxu0
        %v9334 = vadd.f32 0.0, %v9333
        %v9335 = vpop.f32.mrf.mxu0
        %v9336 = vpop.f32.mrf.mxu0
        %v9337 = vadd.f32 0.0, %v9336
        %v9338 = vpop.f32.mrf.mxu0
        %9339 = vmatprep.mubr.bf16.mxu0 0
        %9340 = vmatmul.mubr.bf16.gmra.mxu0 %v9220
        %v9341 = vpop.f32.mrf.mxu0
        %v9342 = vadd.f32 0.0, %v9341
        %v9343 = vpop.f32.mrf.mxu0
        %v9344 = vpop.f32.mrf.mxu0
        %v9345 = vadd.f32 0.0, %v9344
        %v9346 = vpop.f32.mrf.mxu0
        %9347 = vmatprep.mubr.bf16.mxu0 0
        %9348 = vmatmul.mubr.bf16.gmra.mxu0 %v9223
        %v9349 = vpop.f32.mrf.mxu0
        %v9350 = vadd.f32 0.0, %v9349
        %v9351 = vpop.f32.mrf.mxu0
        %v9352 = vpop.f32.mrf.mxu0
        %v9353 = vadd.f32 0.0, %v9352
        %v9354 = vpop.f32.mrf.mxu0
        %9355 = vmatprep.mubr.bf16.mxu0 0
        %9356 = vmatmul.mubr.bf16.gmra.mxu0 %v9226
        %v9357 = vpop.f32.mrf.mxu0
        %v9358 = vadd.f32 0.0, %v9357
        %v9359 = vpop.f32.mrf.mxu0
        %v9360 = vpop.f32.mrf.mxu0
        %v9361 = vadd.f32 0.0, %v9360
        %v9362 = vpop.f32.mrf.mxu0
        %9363 = vmatprep.mubr.bf16.mxu0 0
        %9364 = vmatmul.mubr.bf16.gmra.mxu0 %v9229
        %v9365 = vpop.f32.mrf.mxu0
        %v9366 = vadd.f32 0.0, %v9365
        %v9367 = vpop.f32.mrf.mxu0
        %v9368 = vpop.f32.mrf.mxu0
        %v9369 = vadd.f32 0.0, %v9368
        %v9370 = vpop.f32.mrf.mxu0
        %9371 = vmatprep.mubr.bf16.mxu0 0
        %9372 = vmatmul.mubr.bf16.gmra.mxu0 %v9232
        %v9373 = vpop.f32.mrf.mxu0
        %v9374 = vadd.f32 0.0, %v9373
        %v9375 = vpop.f32.mrf.mxu0
        %v9376 = vpop.f32.mrf.mxu0
        %v9377 = vadd.f32 0.0, %v9376
        %v9378 = vpop.f32.mrf.mxu0
        %9379 = vmatprep.mubr.bf16.mxu0 0
        %9380 = vmatmul.mubr.bf16.gmra.mxu0 %v9235
        %v9381 = vpop.f32.mrf.mxu0
        %v9382 = vadd.f32 0.0, %v9381
        %v9383 = vpop.f32.mrf.mxu0
        %v9384 = vpop.f32.mrf.mxu0
        %v9385 = vadd.f32 0.0, %v9384
        %v9386 = vpop.f32.mrf.mxu0
        %9387 = vmatprep.mubr.bf16.mxu0 0
        %9388 = vmatmul.mubr.bf16.gmra.mxu0 %v9238
        %v9389 = vpop.f32.mrf.mxu0
        %v9390 = vadd.f32 0.0, %v9389
        %v9391 = vpop.f32.mrf.mxu0
        %v9392 = vpop.f32.mrf.mxu0
        %v9393 = vadd.f32 0.0, %v9392
        %v9394 = vpop.f32.mrf.mxu0
        %9395 = vmatprep.mubr.bf16.mxu0 0
        %9396 = vmatmul.mubr.bf16.gmra.mxu0 %v9241
        %v9397 = vpop.f32.mrf.mxu0
        %v9398 = vadd.f32 0.0, %v9397
        %v9399 = vpop.f32.mrf.mxu0
        %v9400 = vpop.f32.mrf.mxu0
        %v9401 = vadd.f32 0.0, %v9400
        %v9402 = vpop.f32.mrf.mxu0
        %9403 = vdwg.mxu0
        %v9404 = vadd.f32 %v8906, %v9278
        %v9405 = vadd.f32 %v8907, %v9281
        %v9406 = vadd.f32 %v8908, %v9286
        %v9407 = vadd.f32 %v8909, %v9289
        %v9408 = vadd.f32 %v8910, %v9294
        %v9409 = vadd.f32 %v8911, %v9297
        %v9410 = vadd.f32 %v8912, %v9302
        %v9411 = vadd.f32 %v8913, %v9305
        %v9412 = vadd.f32 %v8914, %v9310
        %v9413 = vadd.f32 %v8915, %v9313
        %v9414 = vadd.f32 %v8916, %v9318
        %v9415 = vadd.f32 %v8917, %v9321
        %v9416 = vadd.f32 %v8918, %v9326
        %v9417 = vadd.f32 %v8919, %v9329
        %v9418 = vadd.f32 %v8920, %v9334
        %v9419 = vadd.f32 %v8921, %v9337
        %v9420 = vadd.f32 %v8922, %v9342
        %v9421 = vadd.f32 %v8923, %v9345
        %v9422 = vadd.f32 %v8924, %v9350
        %v9423 = vadd.f32 %v8925, %v9353
        %v9424 = vadd.f32 %v8926, %v9358
        %v9425 = vadd.f32 %v8927, %v9361
        %v9426 = vadd.f32 %v8928, %v9366
        %v9427 = vadd.f32 %v8929, %v9369
        %v9428 = vadd.f32 %v8930, %v9374
        %v9429 = vadd.f32 %v8931, %v9377
        %v9430 = vadd.f32 %v8932, %v9382
        %v9431 = vadd.f32 %v8933, %v9385
        %v9432 = vadd.f32 %v8934, %v9390
        %v9433 = vadd.f32 %v8935, %v9393
        %v9434 = vadd.f32 %v8936, %v9398
        %v9435 = vadd.f32 %v8937, %v9401
        %s9436 = scalar_lea.vmem [#allocation2], 24
        %v9437 = vld [vmem:[%s9436] sm:$0xf]
        %v9438 = vld [vmem:[%s9436 + $0x4] sm:$0xf]
        %v9439 = vld [vmem:[%s9436 + $0xc] sm:$0xf]
        %v9440 = vld [vmem:[%s9436 + $0x10] sm:$0xf]
        %v9441 = vld [vmem:[%s9436 + $0x18] sm:$0xf]
        %v9442 = vld [vmem:[%s9436 + $0x1c] sm:$0xf]
        %v9443 = vld [vmem:[%s9436 + $0x24] sm:$0xf]
        %v9444 = vld [vmem:[%s9436 + $0x28] sm:$0xf]
        %v9445 = vld [vmem:[%s9436 + $0x30] sm:$0xf]
        %v9446 = vld [vmem:[%s9436 + $0x34] sm:$0xf]
        %v9447 = vld [vmem:[%s9436 + $0x3c] sm:$0xf]
        %v9448 = vld [vmem:[%s9436 + $0x40] sm:$0xf]
        %v9449 = vld [vmem:[%s9436 + $0x48] sm:$0xf]
        %v9450 = vld [vmem:[%s9436 + $0x4c] sm:$0xf]
        %v9451 = vld [vmem:[%s9436 + $0x54] sm:$0xf]
        %v9452 = vld [vmem:[%s9436 + $0x58] sm:$0xf]
        %v9453 = vld [vmem:[%s9436 + $0x60] sm:$0xf]
        %v9454 = vld [vmem:[%s9436 + $0x64] sm:$0xf]
        %v9455 = vld [vmem:[%s9436 + $0x6c] sm:$0xf]
        %v9456 = vld [vmem:[%s9436 + $0x70] sm:$0xf]
        %v9457 = vld [vmem:[%s9436 + $0x78] sm:$0xf]
        %v9458 = vld [vmem:[%s9436 + $0x7c] sm:$0xf]
        %v9459 = vld [vmem:[%s9436 + $0x84] sm:$0xf]
        %v9460 = vld [vmem:[%s9436 + $0x88] sm:$0xf]
        %v9461 = vld [vmem:[%s9436 + $0x90] sm:$0xf]
        %v9462 = vld [vmem:[%s9436 + $0x94] sm:$0xf]
        %v9463 = vld [vmem:[%s9436 + $0x9c] sm:$0xf]
        %v9464 = vld [vmem:[%s9436 + $0xa0] sm:$0xf]
        %v9465 = vld [vmem:[%s9436 + $0xa8] sm:$0xf]
        %v9466 = vld [vmem:[%s9436 + $0xac] sm:$0xf]
        %v9467 = vld [vmem:[%s9436 + $0xb4] sm:$0xf]
        %v9468 = vld [vmem:[%s9436 + $0xb8] sm:$0xf]
        %s9469 = scalar_lea.vmem [#allocation3], 5664
        %v9470 = vld [vmem:[%s9469] sm:$0xf]
        %v9471 = vld [vmem:[%s9469 + $0x4] sm:$0xf]
        %v9472 = vld [vmem:[%s9469 + $0x8] sm:$0xf]
        %v9473 = vld [vmem:[%s9469 + $0xc] sm:$0xf]
        %v9474 = vld [vmem:[%s9469 + $0x10] sm:$0xf]
        %v9475 = vld [vmem:[%s9469 + $0x14] sm:$0xf]
        %v9476 = vld [vmem:[%s9469 + $0x18] sm:$0xf]
        %v9477 = vld [vmem:[%s9469 + $0x1c] sm:$0xf]
        %v9510 = vunpack.c.l.b16 %v9437
        %v9511 = vunpack.c.l.b16 %v9438
        %v9512 = vunpack.c.l.b16 %v9439
        %v9513 = vunpack.c.l.b16 %v9440
        %v9514 = vunpack.c.l.b16 %v9441
        %v9515 = vunpack.c.l.b16 %v9442
        %v9516 = vunpack.c.l.b16 %v9443
        %v9517 = vunpack.c.l.b16 %v9444
        %v9518 = vunpack.c.l.b16 %v9445
        %v9519 = vunpack.c.l.b16 %v9446
        %v9520 = vunpack.c.l.b16 %v9447
        %v9521 = vunpack.c.l.b16 %v9448
        %v9522 = vunpack.c.l.b16 %v9449
        %v9523 = vunpack.c.l.b16 %v9450
        %v9524 = vunpack.c.l.b16 %v9451
        %v9525 = vunpack.c.l.b16 %v9452
        %v9526 = vunpack.c.l.b16 %v9453
        %v9527 = vunpack.c.l.b16 %v9454
        %v9528 = vunpack.c.l.b16 %v9455
        %v9529 = vunpack.c.l.b16 %v9456
        %v9530 = vunpack.c.l.b16 %v9457
        %v9531 = vunpack.c.l.b16 %v9458
        %v9532 = vunpack.c.l.b16 %v9459
        %v9533 = vunpack.c.l.b16 %v9460
        %v9534 = vunpack.c.l.b16 %v9461
        %v9535 = vunpack.c.l.b16 %v9462
        %v9536 = vunpack.c.l.b16 %v9463
        %v9537 = vunpack.c.l.b16 %v9464
        %v9538 = vunpack.c.l.b16 %v9465
        %v9539 = vunpack.c.l.b16 %v9466
        %v9540 = vunpack.c.l.b16 %v9467
        %v9541 = vunpack.c.l.b16 %v9468
        %v9542 = vpack.c.b16 %v9511, %v9510
        %v9543 = vpack.c.b16 %v9513, %v9512
        %v9544 = vpack.c.b16 %v9515, %v9514
        %v9545 = vpack.c.b16 %v9517, %v9516
        %v9546 = vpack.c.b16 %v9519, %v9518
        %v9547 = vpack.c.b16 %v9521, %v9520
        %v9548 = vpack.c.b16 %v9523, %v9522
        %v9549 = vpack.c.b16 %v9525, %v9524
        %v9550 = vpack.c.b16 %v9527, %v9526
        %v9551 = vpack.c.b16 %v9529, %v9528
        %v9552 = vpack.c.b16 %v9531, %v9530
        %v9553 = vpack.c.b16 %v9533, %v9532
        %v9554 = vpack.c.b16 %v9535, %v9534
        %v9555 = vpack.c.b16 %v9537, %v9536
        %v9556 = vpack.c.b16 %v9539, %v9538
        %v9557 = vpack.c.b16 %v9541, %v9540
        %v9566 = vunpack.c.l.b16 %v9470
        %v9567 = vunpack.c.l.b16 %v9471
        %v9568 = vunpack.c.l.b16 %v9472
        %v9569 = vunpack.c.l.b16 %v9473
        %v9570 = vunpack.c.l.b16 %v9474
        %v9571 = vunpack.c.l.b16 %v9475
        %v9572 = vunpack.c.l.b16 %v9476
        %v9573 = vunpack.c.l.b16 %v9477
        %v9574 = vpack.c.b16 %v9567, %v9566
        %v9575 = vpack.c.b16 %v9569, %v9568
        %v9576 = vpack.c.b16 %v9571, %v9570
        %v9577 = vpack.c.b16 %v9573, %v9572
        %v9583 = vsel %vm6790, %v9542, 0
        %v9586 = vsel %vm6790, %v9543, 0
        %v9589 = vsel %vm6790, %v9544, 0
        %v9592 = vsel %vm6790, %v9545, 0
        %v9595 = vsel %vm6790, %v9546, 0
        %v9598 = vsel %vm6790, %v9547, 0
        %v9601 = vsel %vm6790, %v9548, 0
        %v9604 = vsel %vm6790, %v9549, 0
        %v9607 = vsel %vm6790, %v9550, 0
        %v9610 = vsel %vm6790, %v9551, 0
        %v9613 = vsel %vm6790, %v9552, 0
        %v9616 = vsel %vm6790, %v9553, 0
        %v9619 = vsel %vm6790, %v9554, 0
        %v9622 = vsel %vm6790, %v9555, 0
        %v9625 = vsel %vm6790, %v9556, 0
        %v9628 = vsel %vm6790, %v9557, 0
        %9630 = vmatprep.subr.bf16.mxu0 0
        %9631 = vmatpush1.bf16.msra.mxu0 0
        %9632 = vmatprep.subr.bf16.mxu0 0
        %9633 = vmatpush1.bf16.msra.mxu0 0
        %9634 = vmatprep.subr.bf16.mxu0 0
        %9635 = vmatpush1.bf16.msra.mxu0 0
        %9636 = vmatprep.subr.bf16.mxu0 0
        %9637 = vmatpush1.bf16.msra.mxu0 0
        %9638 = vmatprep.subr.bf16.mxu0 0
        %9639 = vmatpush1.bf16.msra.mxu0 %v9577
        %9640 = vmatprep.subr.bf16.mxu0 0
        %9641 = vmatpush1.bf16.msra.mxu0 %v9576
        %9642 = vmatprep.subr.bf16.mxu0 0
        %9643 = vmatpush1.bf16.msra.mxu0 %v9575
        %9644 = vmatprep.subr.bf16.mxu0 0
        %9645 = vmatpush1.bf16.msra.mxu0 %v9574
        %9646 = vmatprep.subr.bf16.mxu0 0
        %9647 = vmatpush2.bf16.msra.mxu0 0
        %9648 = vmatprep.subr.bf16.mxu0 0
        %9649 = vmatpush2.bf16.msra.mxu0 0
        %9650 = vmatprep.subr.bf16.mxu0 0
        %9651 = vmatpush2.bf16.msra.mxu0 0
        %9652 = vmatprep.subr.bf16.mxu0 0
        %9653 = vmatpush2.bf16.msra.mxu0 0
        %9654 = vmatprep.subr.bf16.mxu0 0
        %9655 = vmatpush2.bf16.msra.mxu0 0
        %9656 = vmatprep.subr.bf16.mxu0 0
        %9657 = vmatpush2.bf16.msra.mxu0 0
        %9658 = vmatprep.subr.bf16.mxu0 0
        %9659 = vmatpush2.bf16.msra.mxu0 0
        %9660 = vmatprep.subr.bf16.mxu0 0
        %9661 = vmatpush2.bf16.msra.mxu0 0
        %9662 = vmatprep.mubr.bf16.mxu0 0
        %9663 = vmatmul.mubr.bf16.gmra.mxu0 %v9583
        %v9664 = vpop.f32.mrf.mxu0
        %v9665 = vadd.f32 0.0, %v9664
        %v9666 = vpop.f32.mrf.mxu0
        %v9667 = vpop.f32.mrf.mxu0
        %v9668 = vadd.f32 0.0, %v9667
        %v9669 = vpop.f32.mrf.mxu0
        %9670 = vmatprep.mubr.bf16.mxu0 0
        %9671 = vmatmul.mubr.bf16.gmra.mxu0 %v9586
        %v9672 = vpop.f32.mrf.mxu0
        %v9673 = vadd.f32 0.0, %v9672
        %v9674 = vpop.f32.mrf.mxu0
        %v9675 = vpop.f32.mrf.mxu0
        %v9676 = vadd.f32 0.0, %v9675
        %v9677 = vpop.f32.mrf.mxu0
        %9678 = vmatprep.mubr.bf16.mxu0 0
        %9679 = vmatmul.mubr.bf16.gmra.mxu0 %v9589
        %v9680 = vpop.f32.mrf.mxu0
        %v9681 = vadd.f32 0.0, %v9680
        %v9682 = vpop.f32.mrf.mxu0
        %v9683 = vpop.f32.mrf.mxu0
        %v9684 = vadd.f32 0.0, %v9683
        %v9685 = vpop.f32.mrf.mxu0
        %9686 = vmatprep.mubr.bf16.mxu0 0
        %9687 = vmatmul.mubr.bf16.gmra.mxu0 %v9592
        %v9688 = vpop.f32.mrf.mxu0
        %v9689 = vadd.f32 0.0, %v9688
        %v9690 = vpop.f32.mrf.mxu0
        %v9691 = vpop.f32.mrf.mxu0
        %v9692 = vadd.f32 0.0, %v9691
        %v9693 = vpop.f32.mrf.mxu0
        %9694 = vmatprep.mubr.bf16.mxu0 0
        %9695 = vmatmul.mubr.bf16.gmra.mxu0 %v9595
        %v9696 = vpop.f32.mrf.mxu0
        %v9697 = vadd.f32 0.0, %v9696
        %v9698 = vpop.f32.mrf.mxu0
        %v9699 = vpop.f32.mrf.mxu0
        %v9700 = vadd.f32 0.0, %v9699
        %v9701 = vpop.f32.mrf.mxu0
        %9702 = vmatprep.mubr.bf16.mxu0 0
        %9703 = vmatmul.mubr.bf16.gmra.mxu0 %v9598
        %v9704 = vpop.f32.mrf.mxu0
        %v9705 = vadd.f32 0.0, %v9704
        %v9706 = vpop.f32.mrf.mxu0
        %v9707 = vpop.f32.mrf.mxu0
        %v9708 = vadd.f32 0.0, %v9707
        %v9709 = vpop.f32.mrf.mxu0
        %9710 = vmatprep.mubr.bf16.mxu0 0
        %9711 = vmatmul.mubr.bf16.gmra.mxu0 %v9601
        %v9712 = vpop.f32.mrf.mxu0
        %v9713 = vadd.f32 0.0, %v9712
        %v9714 = vpop.f32.mrf.mxu0
        %v9715 = vpop.f32.mrf.mxu0
        %v9716 = vadd.f32 0.0, %v9715
        %v9717 = vpop.f32.mrf.mxu0
        %9718 = vmatprep.mubr.bf16.mxu0 0
        %9719 = vmatmul.mubr.bf16.gmra.mxu0 %v9604
        %v9720 = vpop.f32.mrf.mxu0
        %v9721 = vadd.f32 0.0, %v9720
        %v9722 = vpop.f32.mrf.mxu0
        %v9723 = vpop.f32.mrf.mxu0
        %v9724 = vadd.f32 0.0, %v9723
        %v9725 = vpop.f32.mrf.mxu0
        %9726 = vmatprep.mubr.bf16.mxu0 0
        %9727 = vmatmul.mubr.bf16.gmra.mxu0 %v9607
        %v9728 = vpop.f32.mrf.mxu0
        %v9729 = vadd.f32 0.0, %v9728
        %v9730 = vpop.f32.mrf.mxu0
        %v9731 = vpop.f32.mrf.mxu0
        %v9732 = vadd.f32 0.0, %v9731
        %v9733 = vpop.f32.mrf.mxu0
        %9734 = vmatprep.mubr.bf16.mxu0 0
        %9735 = vmatmul.mubr.bf16.gmra.mxu0 %v9610
        %v9736 = vpop.f32.mrf.mxu0
        %v9737 = vadd.f32 0.0, %v9736
        %v9738 = vpop.f32.mrf.mxu0
        %v9739 = vpop.f32.mrf.mxu0
        %v9740 = vadd.f32 0.0, %v9739
        %v9741 = vpop.f32.mrf.mxu0
        %9742 = vmatprep.mubr.bf16.mxu0 0
        %9743 = vmatmul.mubr.bf16.gmra.mxu0 %v9613
        %v9744 = vpop.f32.mrf.mxu0
        %v9745 = vadd.f32 0.0, %v9744
        %v9746 = vpop.f32.mrf.mxu0
        %v9747 = vpop.f32.mrf.mxu0
        %v9748 = vadd.f32 0.0, %v9747
        %v9749 = vpop.f32.mrf.mxu0
        %9750 = vmatprep.mubr.bf16.mxu0 0
        %9751 = vmatmul.mubr.bf16.gmra.mxu0 %v9616
        %v9752 = vpop.f32.mrf.mxu0
        %v9753 = vadd.f32 0.0, %v9752
        %v9754 = vpop.f32.mrf.mxu0
        %v9755 = vpop.f32.mrf.mxu0
        %v9756 = vadd.f32 0.0, %v9755
        %v9757 = vpop.f32.mrf.mxu0
        %9758 = vmatprep.mubr.bf16.mxu0 0
        %9759 = vmatmul.mubr.bf16.gmra.mxu0 %v9619
        %v9760 = vpop.f32.mrf.mxu0
        %v9761 = vadd.f32 0.0, %v9760
        %v9762 = vpop.f32.mrf.mxu0
        %v9763 = vpop.f32.mrf.mxu0
        %v9764 = vadd.f32 0.0, %v9763
        %v9765 = vpop.f32.mrf.mxu0
        %9766 = vmatprep.mubr.bf16.mxu0 0
        %9767 = vmatmul.mubr.bf16.gmra.mxu0 %v9622
        %v9768 = vpop.f32.mrf.mxu0
        %v9769 = vadd.f32 0.0, %v9768
        %v9770 = vpop.f32.mrf.mxu0
        %v9771 = vpop.f32.mrf.mxu0
        %v9772 = vadd.f32 0.0, %v9771
        %v9773 = vpop.f32.mrf.mxu0
        %9774 = vmatprep.mubr.bf16.mxu0 0
        %9775 = vmatmul.mubr.bf16.gmra.mxu0 %v9625
        %v9776 = vpop.f32.mrf.mxu0
        %v9777 = vadd.f32 0.0, %v9776
        %v9778 = vpop.f32.mrf.mxu0
        %v9779 = vpop.f32.mrf.mxu0
        %v9780 = vadd.f32 0.0, %v9779
        %v9781 = vpop.f32.mrf.mxu0
        %9782 = vmatprep.mubr.bf16.mxu0 0
        %9783 = vmatmul.mubr.bf16.gmra.mxu0 %v9628
        %v9784 = vpop.f32.mrf.mxu0
        %v9785 = vadd.f32 0.0, %v9784
        %v9786 = vpop.f32.mrf.mxu0
        %v9787 = vpop.f32.mrf.mxu0
        %v9788 = vadd.f32 0.0, %v9787
        %v9789 = vpop.f32.mrf.mxu0
        %9790 = vdwg.mxu0
        %v9791 = vadd.f32 %v9404, %v9665
        %v9792 = vadd.f32 %v9405, %v9668
        %v9793 = vadd.f32 %v9406, %v9673
        %v9794 = vadd.f32 %v9407, %v9676
        %v9795 = vadd.f32 %v9408, %v9681
        %v9796 = vadd.f32 %v9409, %v9684
        %v9797 = vadd.f32 %v9410, %v9689
        %v9798 = vadd.f32 %v9411, %v9692
        %v9799 = vadd.f32 %v9412, %v9697
        %v9800 = vadd.f32 %v9413, %v9700
        %v9801 = vadd.f32 %v9414, %v9705
        %v9802 = vadd.f32 %v9415, %v9708
        %v9803 = vadd.f32 %v9416, %v9713
        %v9804 = vadd.f32 %v9417, %v9716
        %v9805 = vadd.f32 %v9418, %v9721
        %v9806 = vadd.f32 %v9419, %v9724
        %v9807 = vadd.f32 %v9420, %v9729
        %v9808 = vadd.f32 %v9421, %v9732
        %v9809 = vadd.f32 %v9422, %v9737
        %v9810 = vadd.f32 %v9423, %v9740
        %v9811 = vadd.f32 %v9424, %v9745
        %v9812 = vadd.f32 %v9425, %v9748
        %v9813 = vadd.f32 %v9426, %v9753
        %v9814 = vadd.f32 %v9427, %v9756
        %v9815 = vadd.f32 %v9428, %v9761
        %v9816 = vadd.f32 %v9429, %v9764
        %v9817 = vadd.f32 %v9430, %v9769
        %v9818 = vadd.f32 %v9431, %v9772
        %v9819 = vadd.f32 %v9432, %v9777
        %v9820 = vadd.f32 %v9433, %v9780
        %v9821 = vadd.f32 %v9434, %v9785
        %v9822 = vadd.f32 %v9435, %v9788
        %v9823 = vld [vmem:[%s9436] sm:$0xf]
        %v9824 = vld [vmem:[%s9436 + $0x4] sm:$0xf]
        %v9825 = vld [vmem:[%s9436 + $0x8] sm:$0x1]
        %v9826 = vld [vmem:[%s9436 + $0xc] sm:$0xf]
        %v9827 = vld [vmem:[%s9436 + $0x10] sm:$0xf]
        %v9828 = vld [vmem:[%s9436 + $0x14] sm:$0x1]
        %v9829 = vld [vmem:[%s9436 + $0x18] sm:$0xf]
        %v9830 = vld [vmem:[%s9436 + $0x1c] sm:$0xf]
        %v9831 = vld [vmem:[%s9436 + $0x20] sm:$0x1]
        %v9832 = vld [vmem:[%s9436 + $0x24] sm:$0xf]
        %v9833 = vld [vmem:[%s9436 + $0x28] sm:$0xf]
        %v9834 = vld [vmem:[%s9436 + $0x2c] sm:$0x1]
        %v9835 = vld [vmem:[%s9436 + $0x30] sm:$0xf]
        %v9836 = vld [vmem:[%s9436 + $0x34] sm:$0xf]
        %v9837 = vld [vmem:[%s9436 + $0x38] sm:$0x1]
        %v9838 = vld [vmem:[%s9436 + $0x3c] sm:$0xf]
        %v9839 = vld [vmem:[%s9436 + $0x40] sm:$0xf]
        %v9840 = vld [vmem:[%s9436 + $0x44] sm:$0x1]
        %v9841 = vld [vmem:[%s9436 + $0x48] sm:$0xf]
        %v9842 = vld [vmem:[%s9436 + $0x4c] sm:$0xf]
        %v9843 = vld [vmem:[%s9436 + $0x50] sm:$0x1]
        %v9844 = vld [vmem:[%s9436 + $0x54] sm:$0xf]
        %v9845 = vld [vmem:[%s9436 + $0x58] sm:$0xf]
        %v9846 = vld [vmem:[%s9436 + $0x5c] sm:$0x1]
        %v9847 = vld [vmem:[%s9436 + $0x60] sm:$0xf]
        %v9848 = vld [vmem:[%s9436 + $0x64] sm:$0xf]
        %v9849 = vld [vmem:[%s9436 + $0x68] sm:$0x1]
        %v9850 = vld [vmem:[%s9436 + $0x6c] sm:$0xf]
        %v9851 = vld [vmem:[%s9436 + $0x70] sm:$0xf]
        %v9852 = vld [vmem:[%s9436 + $0x74] sm:$0x1]
        %v9853 = vld [vmem:[%s9436 + $0x78] sm:$0xf]
        %v9854 = vld [vmem:[%s9436 + $0x7c] sm:$0xf]
        %v9855 = vld [vmem:[%s9436 + $0x80] sm:$0x1]
        %v9856 = vld [vmem:[%s9436 + $0x84] sm:$0xf]
        %v9857 = vld [vmem:[%s9436 + $0x88] sm:$0xf]
        %v9858 = vld [vmem:[%s9436 + $0x8c] sm:$0x1]
        %v9859 = vld [vmem:[%s9436 + $0x90] sm:$0xf]
        %v9860 = vld [vmem:[%s9436 + $0x94] sm:$0xf]
        %v9861 = vld [vmem:[%s9436 + $0x98] sm:$0x1]
        %v9862 = vld [vmem:[%s9436 + $0x9c] sm:$0xf]
        %v9863 = vld [vmem:[%s9436 + $0xa0] sm:$0xf]
        %v9864 = vld [vmem:[%s9436 + $0xa4] sm:$0x1]
        %v9865 = vld [vmem:[%s9436 + $0xa8] sm:$0xf]
        %v9866 = vld [vmem:[%s9436 + $0xac] sm:$0xf]
        %v9867 = vld [vmem:[%s9436 + $0xb0] sm:$0x1]
        %v9868 = vld [vmem:[%s9436 + $0xb4] sm:$0xf]
        %v9869 = vld [vmem:[%s9436 + $0xb8] sm:$0xf]
        %v9870 = vld [vmem:[%s9436 + $0xbc] sm:$0x1]
        %v9872 = vshrl.u32 %v9823, 16
        %v9874 = vrot.slane %v9872, 4
        %v9875 = vshll.u32 %v9823, 16
        %v9877 = vrot.slane %v9875, 5
        %v9878 = vor.u32 %v9874, %v9877
        %v9879 = vrot.slane %v9878, 4
        %v9881 = vshll.u32 %v9824, 16
        %v9883 = vrot.slane %v9881, 5
        %v9884 = vsel %vm6324, %v9879, %v9883
        %v9885 = vshrl.u32 %v9824, 16
        %v9887 = vrot.slane %v9885, 4
        %v9888 = vor.u32 %v9887, %v9883
        %v9889 = vrot.slane %v9888, 4
        %v9891 = vshll.u32 %v9825, 16
        %v9893 = vrot.slane %v9891, 5
        %v9894 = vsel %vm6324, %v9889, %v9893
        %v9896 = vshrl.u32 %v9826, 16
        %v9898 = vrot.slane %v9896, 4
        %v9899 = vshll.u32 %v9826, 16
        %v9901 = vrot.slane %v9899, 5
        %v9902 = vor.u32 %v9898, %v9901
        %v9903 = vrot.slane %v9902, 4
        %v9905 = vshll.u32 %v9827, 16
        %v9907 = vrot.slane %v9905, 5
        %v9908 = vsel %vm6324, %v9903, %v9907
        %v9909 = vshrl.u32 %v9827, 16
        %v9911 = vrot.slane %v9909, 4
        %v9912 = vor.u32 %v9911, %v9907
        %v9913 = vrot.slane %v9912, 4
        %v9915 = vshll.u32 %v9828, 16
        %v9917 = vrot.slane %v9915, 5
        %v9918 = vsel %vm6324, %v9913, %v9917
        %v9920 = vshrl.u32 %v9829, 16
        %v9922 = vrot.slane %v9920, 4
        %v9923 = vshll.u32 %v9829, 16
        %v9925 = vrot.slane %v9923, 5
        %v9926 = vor.u32 %v9922, %v9925
        %v9927 = vrot.slane %v9926, 4
        %v9929 = vshll.u32 %v9830, 16
        %v9931 = vrot.slane %v9929, 5
        %v9932 = vsel %vm6324, %v9927, %v9931
        %v9933 = vshrl.u32 %v9830, 16
        %v9935 = vrot.slane %v9933, 4
        %v9936 = vor.u32 %v9935, %v9931
        %v9937 = vrot.slane %v9936, 4
        %v9939 = vshll.u32 %v9831, 16
        %v9941 = vrot.slane %v9939, 5
        %v9942 = vsel %vm6324, %v9937, %v9941
        %v9944 = vshrl.u32 %v9832, 16
        %v9946 = vrot.slane %v9944, 4
        %v9947 = vshll.u32 %v9832, 16
        %v9949 = vrot.slane %v9947, 5
        %v9950 = vor.u32 %v9946, %v9949
        %v9951 = vrot.slane %v9950, 4
        %v9953 = vshll.u32 %v9833, 16
        %v9955 = vrot.slane %v9953, 5
        %v9956 = vsel %vm6324, %v9951, %v9955
        %v9957 = vshrl.u32 %v9833, 16
        %v9959 = vrot.slane %v9957, 4
        %v9960 = vor.u32 %v9959, %v9955
        %v9961 = vrot.slane %v9960, 4
        %v9963 = vshll.u32 %v9834, 16
        %v9965 = vrot.slane %v9963, 5
        %v9966 = vsel %vm6324, %v9961, %v9965
        %v9968 = vshrl.u32 %v9835, 16
        %v9970 = vrot.slane %v9968, 4
        %v9971 = vshll.u32 %v9835, 16
        %v9973 = vrot.slane %v9971, 5
        %v9974 = vor.u32 %v9970, %v9973
        %v9975 = vrot.slane %v9974, 4
        %v9977 = vshll.u32 %v9836, 16
        %v9979 = vrot.slane %v9977, 5
        %v9980 = vsel %vm6324, %v9975, %v9979
        %v9981 = vshrl.u32 %v9836, 16
        %v9983 = vrot.slane %v9981, 4
        %v9984 = vor.u32 %v9983, %v9979
        %v9985 = vrot.slane %v9984, 4
        %v9987 = vshll.u32 %v9837, 16
        %v9989 = vrot.slane %v9987, 5
        %v9990 = vsel %vm6324, %v9985, %v9989
        %v9992 = vshrl.u32 %v9838, 16
        %v9994 = vrot.slane %v9992, 4
        %v9995 = vshll.u32 %v9838, 16
        %v9997 = vrot.slane %v9995, 5
        %v9998 = vor.u32 %v9994, %v9997
        %v9999 = vrot.slane %v9998, 4
        %v10001 = vshll.u32 %v9839, 16
        %v10003 = vrot.slane %v10001, 5
        %v10004 = vsel %vm6324, %v9999, %v10003
        %v10005 = vshrl.u32 %v9839, 16
        %v10007 = vrot.slane %v10005, 4
        %v10008 = vor.u32 %v10007, %v10003
        %v10009 = vrot.slane %v10008, 4
        %v10011 = vshll.u32 %v9840, 16
        %v10013 = vrot.slane %v10011, 5
        %v10014 = vsel %vm6324, %v10009, %v10013
        %v10016 = vshrl.u32 %v9841, 16
        %v10018 = vrot.slane %v10016, 4
        %v10019 = vshll.u32 %v9841, 16
        %v10021 = vrot.slane %v10019, 5
        %v10022 = vor.u32 %v10018, %v10021
        %v10023 = vrot.slane %v10022, 4
        %v10025 = vshll.u32 %v9842, 16
        %v10027 = vrot.slane %v10025, 5
        %v10028 = vsel %vm6324, %v10023, %v10027
        %v10029 = vshrl.u32 %v9842, 16
        %v10031 = vrot.slane %v10029, 4
        %v10032 = vor.u32 %v10031, %v10027
        %v10033 = vrot.slane %v10032, 4
        %v10035 = vshll.u32 %v9843, 16
        %v10037 = vrot.slane %v10035, 5
        %v10038 = vsel %vm6324, %v10033, %v10037
        %v10040 = vshrl.u32 %v9844, 16
        %v10042 = vrot.slane %v10040, 4
        %v10043 = vshll.u32 %v9844, 16
        %v10045 = vrot.slane %v10043, 5
        %v10046 = vor.u32 %v10042, %v10045
        %v10047 = vrot.slane %v10046, 4
        %v10049 = vshll.u32 %v9845, 16
        %v10051 = vrot.slane %v10049, 5
        %v10052 = vsel %vm6324, %v10047, %v10051
        %v10053 = vshrl.u32 %v9845, 16
        %v10055 = vrot.slane %v10053, 4
        %v10056 = vor.u32 %v10055, %v10051
        %v10057 = vrot.slane %v10056, 4
        %v10059 = vshll.u32 %v9846, 16
        %v10061 = vrot.slane %v10059, 5
        %v10062 = vsel %vm6324, %v10057, %v10061
        %v10064 = vshrl.u32 %v9847, 16
        %v10066 = vrot.slane %v10064, 4
        %v10067 = vshll.u32 %v9847, 16
        %v10069 = vrot.slane %v10067, 5
        %v10070 = vor.u32 %v10066, %v10069
        %v10071 = vrot.slane %v10070, 4
        %v10073 = vshll.u32 %v9848, 16
        %v10075 = vrot.slane %v10073, 5
        %v10076 = vsel %vm6324, %v10071, %v10075
        %v10077 = vshrl.u32 %v9848, 16
        %v10079 = vrot.slane %v10077, 4
        %v10080 = vor.u32 %v10079, %v10075
        %v10081 = vrot.slane %v10080, 4
        %v10083 = vshll.u32 %v9849, 16
        %v10085 = vrot.slane %v10083, 5
        %v10086 = vsel %vm6324, %v10081, %v10085
        %v10088 = vshrl.u32 %v9850, 16
        %v10090 = vrot.slane %v10088, 4
        %v10091 = vshll.u32 %v9850, 16
        %v10093 = vrot.slane %v10091, 5
        %v10094 = vor.u32 %v10090, %v10093
        %v10095 = vrot.slane %v10094, 4
        %v10097 = vshll.u32 %v9851, 16
        %v10099 = vrot.slane %v10097, 5
        %v10100 = vsel %vm6324, %v10095, %v10099
        %v10101 = vshrl.u32 %v9851, 16
        %v10103 = vrot.slane %v10101, 4
        %v10104 = vor.u32 %v10103, %v10099
        %v10105 = vrot.slane %v10104, 4
        %v10107 = vshll.u32 %v9852, 16
        %v10109 = vrot.slane %v10107, 5
        %v10110 = vsel %vm6324, %v10105, %v10109
        %v10112 = vshrl.u32 %v9853, 16
        %v10114 = vrot.slane %v10112, 4
        %v10115 = vshll.u32 %v9853, 16
        %v10117 = vrot.slane %v10115, 5
        %v10118 = vor.u32 %v10114, %v10117
        %v10119 = vrot.slane %v10118, 4
        %v10121 = vshll.u32 %v9854, 16
        %v10123 = vrot.slane %v10121, 5
        %v10124 = vsel %vm6324, %v10119, %v10123
        %v10125 = vshrl.u32 %v9854, 16
        %v10127 = vrot.slane %v10125, 4
        %v10128 = vor.u32 %v10127, %v10123
        %v10129 = vrot.slane %v10128, 4
        %v10131 = vshll.u32 %v9855, 16
        %v10133 = vrot.slane %v10131, 5
        %v10134 = vsel %vm6324, %v10129, %v10133
        %v10136 = vshrl.u32 %v9856, 16
        %v10138 = vrot.slane %v10136, 4
        %v10139 = vshll.u32 %v9856, 16
        %v10141 = vrot.slane %v10139, 5
        %v10142 = vor.u32 %v10138, %v10141
        %v10143 = vrot.slane %v10142, 4
        %v10145 = vshll.u32 %v9857, 16
        %v10147 = vrot.slane %v10145, 5
        %v10148 = vsel %vm6324, %v10143, %v10147
        %v10149 = vshrl.u32 %v9857, 16
        %v10151 = vrot.slane %v10149, 4
        %v10152 = vor.u32 %v10151, %v10147
        %v10153 = vrot.slane %v10152, 4
        %v10155 = vshll.u32 %v9858, 16
        %v10157 = vrot.slane %v10155, 5
        %v10158 = vsel %vm6324, %v10153, %v10157
        %v10160 = vshrl.u32 %v9859, 16
        %v10162 = vrot.slane %v10160, 4
        %v10163 = vshll.u32 %v9859, 16
        %v10165 = vrot.slane %v10163, 5
        %v10166 = vor.u32 %v10162, %v10165
        %v10167 = vrot.slane %v10166, 4
        %v10169 = vshll.u32 %v9860, 16
        %v10171 = vrot.slane %v10169, 5
        %v10172 = vsel %vm6324, %v10167, %v10171
        %v10173 = vshrl.u32 %v9860, 16
        %v10175 = vrot.slane %v10173, 4
        %v10176 = vor.u32 %v10175, %v10171
        %v10177 = vrot.slane %v10176, 4
        %v10179 = vshll.u32 %v9861, 16
        %v10181 = vrot.slane %v10179, 5
        %v10182 = vsel %vm6324, %v10177, %v10181
        %v10184 = vshrl.u32 %v9862, 16
        %v10186 = vrot.slane %v10184, 4
        %v10187 = vshll.u32 %v9862, 16
        %v10189 = vrot.slane %v10187, 5
        %v10190 = vor.u32 %v10186, %v10189
        %v10191 = vrot.slane %v10190, 4
        %v10193 = vshll.u32 %v9863, 16
        %v10195 = vrot.slane %v10193, 5
        %v10196 = vsel %vm6324, %v10191, %v10195
        %v10197 = vshrl.u32 %v9863, 16
        %v10199 = vrot.slane %v10197, 4
        %v10200 = vor.u32 %v10199, %v10195
        %v10201 = vrot.slane %v10200, 4
        %v10203 = vshll.u32 %v9864, 16
        %v10205 = vrot.slane %v10203, 5
        %v10206 = vsel %vm6324, %v10201, %v10205
        %v10208 = vshrl.u32 %v9865, 16
        %v10210 = vrot.slane %v10208, 4
        %v10211 = vshll.u32 %v9865, 16
        %v10213 = vrot.slane %v10211, 5
        %v10214 = vor.u32 %v10210, %v10213
        %v10215 = vrot.slane %v10214, 4
        %v10217 = vshll.u32 %v9866, 16
        %v10219 = vrot.slane %v10217, 5
        %v10220 = vsel %vm6324, %v10215, %v10219
        %v10221 = vshrl.u32 %v9866, 16
        %v10223 = vrot.slane %v10221, 4
        %v10224 = vor.u32 %v10223, %v10219
        %v10225 = vrot.slane %v10224, 4
        %v10227 = vshll.u32 %v9867, 16
        %v10229 = vrot.slane %v10227, 5
        %v10230 = vsel %vm6324, %v10225, %v10229
        %v10232 = vshrl.u32 %v9868, 16
        %v10234 = vrot.slane %v10232, 4
        %v10235 = vshll.u32 %v9868, 16
        %v10237 = vrot.slane %v10235, 5
        %v10238 = vor.u32 %v10234, %v10237
        %v10239 = vrot.slane %v10238, 4
        %v10241 = vshll.u32 %v9869, 16
        %v10243 = vrot.slane %v10241, 5
        %v10244 = vsel %vm6324, %v10239, %v10243
        %v10245 = vshrl.u32 %v9869, 16
        %v10247 = vrot.slane %v10245, 4
        %v10248 = vor.u32 %v10247, %v10243
        %v10249 = vrot.slane %v10248, 4
        %v10251 = vshll.u32 %v9870, 16
        %v10253 = vrot.slane %v10251, 5
        %v10254 = vsel %vm6324, %v10249, %v10253
        %s10255 = scalar_lea.vmem [#allocation3], 5696
        %v10256 = vld [vmem:[%s10255] sm:$0xf]
        %v10257 = vld [vmem:[%s10255 + $0x4] sm:$0xf]
        %v10258 = vld [vmem:[%s10255 + $0x8] sm:$0xf]
        %v10259 = vld [vmem:[%s10255 + $0xc] sm:$0xf]
        %v10260 = vld [vmem:[%s10255 + $0x10] sm:$0xf]
        %v10261 = vld [vmem:[%s10255 + $0x14] sm:$0xf]
        %v10262 = vld [vmem:[%s10255 + $0x18] sm:$0xf]
        %v10263 = vld [vmem:[%s10255 + $0x1c] sm:$0xf]
        %v10264 = vunpack.c.l.b16 %v9884
        %v10265 = vunpack.c.l.b16 %v9894
        %v10266 = vunpack.c.l.b16 %v9908
        %v10267 = vunpack.c.l.b16 %v9918
        %v10268 = vunpack.c.l.b16 %v9932
        %v10269 = vunpack.c.l.b16 %v9942
        %v10270 = vunpack.c.l.b16 %v9956
        %v10271 = vunpack.c.l.b16 %v9966
        %v10272 = vunpack.c.l.b16 %v9980
        %v10273 = vunpack.c.l.b16 %v9990
        %v10274 = vunpack.c.l.b16 %v10004
        %v10275 = vunpack.c.l.b16 %v10014
        %v10276 = vunpack.c.l.b16 %v10028
        %v10277 = vunpack.c.l.b16 %v10038
        %v10278 = vunpack.c.l.b16 %v10052
        %v10279 = vunpack.c.l.b16 %v10062
        %v10280 = vunpack.c.l.b16 %v10076
        %v10281 = vunpack.c.l.b16 %v10086
        %v10282 = vunpack.c.l.b16 %v10100
        %v10283 = vunpack.c.l.b16 %v10110
        %v10284 = vunpack.c.l.b16 %v10124
        %v10285 = vunpack.c.l.b16 %v10134
        %v10286 = vunpack.c.l.b16 %v10148
        %v10287 = vunpack.c.l.b16 %v10158
        %v10288 = vunpack.c.l.b16 %v10172
        %v10289 = vunpack.c.l.b16 %v10182
        %v10290 = vunpack.c.l.b16 %v10196
        %v10291 = vunpack.c.l.b16 %v10206
        %v10292 = vunpack.c.l.b16 %v10220
        %v10293 = vunpack.c.l.b16 %v10230
        %v10294 = vunpack.c.l.b16 %v10244
        %v10295 = vunpack.c.l.b16 %v10254
        %v10296 = vpack.c.b16 %v10265, %v10264
        %v10297 = vpack.c.b16 %v10267, %v10266
        %v10298 = vpack.c.b16 %v10269, %v10268
        %v10299 = vpack.c.b16 %v10271, %v10270
        %v10300 = vpack.c.b16 %v10273, %v10272
        %v10301 = vpack.c.b16 %v10275, %v10274
        %v10302 = vpack.c.b16 %v10277, %v10276
        %v10303 = vpack.c.b16 %v10279, %v10278
        %v10304 = vpack.c.b16 %v10281, %v10280
        %v10305 = vpack.c.b16 %v10283, %v10282
        %v10306 = vpack.c.b16 %v10285, %v10284
        %v10307 = vpack.c.b16 %v10287, %v10286
        %v10308 = vpack.c.b16 %v10289, %v10288
        %v10309 = vpack.c.b16 %v10291, %v10290
        %v10310 = vpack.c.b16 %v10293, %v10292
        %v10311 = vpack.c.b16 %v10295, %v10294
        %v10320 = vunpack.c.l.b16 %v10256
        %v10321 = vunpack.c.l.b16 %v10257
        %v10322 = vunpack.c.l.b16 %v10258
        %v10323 = vunpack.c.l.b16 %v10259
        %v10324 = vunpack.c.l.b16 %v10260
        %v10325 = vunpack.c.l.b16 %v10261
        %v10326 = vunpack.c.l.b16 %v10262
        %v10327 = vunpack.c.l.b16 %v10263
        %v10328 = vpack.c.b16 %v10321, %v10320
        %v10329 = vpack.c.b16 %v10323, %v10322
        %v10330 = vpack.c.b16 %v10325, %v10324
        %v10331 = vpack.c.b16 %v10327, %v10326
        %v10337 = vsel %vm6790, %v10296, 0
        %v10340 = vsel %vm6790, %v10297, 0
        %v10343 = vsel %vm6790, %v10298, 0
        %v10346 = vsel %vm6790, %v10299, 0
        %v10349 = vsel %vm6790, %v10300, 0
        %v10352 = vsel %vm6790, %v10301, 0
        %v10355 = vsel %vm6790, %v10302, 0
        %v10358 = vsel %vm6790, %v10303, 0
        %v10361 = vsel %vm6790, %v10304, 0
        %v10364 = vsel %vm6790, %v10305, 0
        %v10367 = vsel %vm6790, %v10306, 0
        %v10370 = vsel %vm6790, %v10307, 0
        %v10373 = vsel %vm6790, %v10308, 0
        %v10376 = vsel %vm6790, %v10309, 0
        %v10379 = vsel %vm6790, %v10310, 0
        %v10382 = vsel %vm6790, %v10311, 0
        %10384 = vmatprep.subr.bf16.mxu0 0
        %10385 = vmatpush1.bf16.msra.mxu0 0
        %10386 = vmatprep.subr.bf16.mxu0 0
        %10387 = vmatpush1.bf16.msra.mxu0 0
        %10388 = vmatprep.subr.bf16.mxu0 0
        %10389 = vmatpush1.bf16.msra.mxu0 0
        %10390 = vmatprep.subr.bf16.mxu0 0
        %10391 = vmatpush1.bf16.msra.mxu0 0
        %10392 = vmatprep.subr.bf16.mxu0 0
        %10393 = vmatpush1.bf16.msra.mxu0 %v10331
        %10394 = vmatprep.subr.bf16.mxu0 0
        %10395 = vmatpush1.bf16.msra.mxu0 %v10330
        %10396 = vmatprep.subr.bf16.mxu0 0
        %10397 = vmatpush1.bf16.msra.mxu0 %v10329
        %10398 = vmatprep.subr.bf16.mxu0 0
        %10399 = vmatpush1.bf16.msra.mxu0 %v10328
        %10400 = vmatprep.subr.bf16.mxu0 0
        %10401 = vmatpush2.bf16.msra.mxu0 0
        %10402 = vmatprep.subr.bf16.mxu0 0
        %10403 = vmatpush2.bf16.msra.mxu0 0
        %10404 = vmatprep.subr.bf16.mxu0 0
        %10405 = vmatpush2.bf16.msra.mxu0 0
        %10406 = vmatprep.subr.bf16.mxu0 0
        %10407 = vmatpush2.bf16.msra.mxu0 0
        %10408 = vmatprep.subr.bf16.mxu0 0
        %10409 = vmatpush2.bf16.msra.mxu0 0
        %10410 = vmatprep.subr.bf16.mxu0 0
        %10411 = vmatpush2.bf16.msra.mxu0 0
        %10412 = vmatprep.subr.bf16.mxu0 0
        %10413 = vmatpush2.bf16.msra.mxu0 0
        %10414 = vmatprep.subr.bf16.mxu0 0
        %10415 = vmatpush2.bf16.msra.mxu0 0
        %10416 = vmatprep.mubr.bf16.mxu0 0
        %10417 = vmatmul.mubr.bf16.gmra.mxu0 %v10337
        %v10418 = vpop.f32.mrf.mxu0
        %v10419 = vadd.f32 0.0, %v10418
        %v10420 = vpop.f32.mrf.mxu0
        %v10421 = vpop.f32.mrf.mxu0
        %v10422 = vadd.f32 0.0, %v10421
        %v10423 = vpop.f32.mrf.mxu0
        %10424 = vmatprep.mubr.bf16.mxu0 0
        %10425 = vmatmul.mubr.bf16.gmra.mxu0 %v10340
        %v10426 = vpop.f32.mrf.mxu0
        %v10427 = vadd.f32 0.0, %v10426
        %v10428 = vpop.f32.mrf.mxu0
        %v10429 = vpop.f32.mrf.mxu0
        %v10430 = vadd.f32 0.0, %v10429
        %v10431 = vpop.f32.mrf.mxu0
        %10432 = vmatprep.mubr.bf16.mxu0 0
        %10433 = vmatmul.mubr.bf16.gmra.mxu0 %v10343
        %v10434 = vpop.f32.mrf.mxu0
        %v10435 = vadd.f32 0.0, %v10434
        %v10436 = vpop.f32.mrf.mxu0
        %v10437 = vpop.f32.mrf.mxu0
        %v10438 = vadd.f32 0.0, %v10437
        %v10439 = vpop.f32.mrf.mxu0
        %10440 = vmatprep.mubr.bf16.mxu0 0
        %10441 = vmatmul.mubr.bf16.gmra.mxu0 %v10346
        %v10442 = vpop.f32.mrf.mxu0
        %v10443 = vadd.f32 0.0, %v10442
        %v10444 = vpop.f32.mrf.mxu0
        %v10445 = vpop.f32.mrf.mxu0
        %v10446 = vadd.f32 0.0, %v10445
        %v10447 = vpop.f32.mrf.mxu0
        %10448 = vmatprep.mubr.bf16.mxu0 0
        %10449 = vmatmul.mubr.bf16.gmra.mxu0 %v10349
        %v10450 = vpop.f32.mrf.mxu0
        %v10451 = vadd.f32 0.0, %v10450
        %v10452 = vpop.f32.mrf.mxu0
        %v10453 = vpop.f32.mrf.mxu0
        %v10454 = vadd.f32 0.0, %v10453
        %v10455 = vpop.f32.mrf.mxu0
        %10456 = vmatprep.mubr.bf16.mxu0 0
        %10457 = vmatmul.mubr.bf16.gmra.mxu0 %v10352
        %v10458 = vpop.f32.mrf.mxu0
        %v10459 = vadd.f32 0.0, %v10458
        %v10460 = vpop.f32.mrf.mxu0
        %v10461 = vpop.f32.mrf.mxu0
        %v10462 = vadd.f32 0.0, %v10461
        %v10463 = vpop.f32.mrf.mxu0
        %10464 = vmatprep.mubr.bf16.mxu0 0
        %10465 = vmatmul.mubr.bf16.gmra.mxu0 %v10355
        %v10466 = vpop.f32.mrf.mxu0
        %v10467 = vadd.f32 0.0, %v10466
        %v10468 = vpop.f32.mrf.mxu0
        %v10469 = vpop.f32.mrf.mxu0
        %v10470 = vadd.f32 0.0, %v10469
        %v10471 = vpop.f32.mrf.mxu0
        %10472 = vmatprep.mubr.bf16.mxu0 0
        %10473 = vmatmul.mubr.bf16.gmra.mxu0 %v10358
        %v10474 = vpop.f32.mrf.mxu0
        %v10475 = vadd.f32 0.0, %v10474
        %v10476 = vpop.f32.mrf.mxu0
        %v10477 = vpop.f32.mrf.mxu0
        %v10478 = vadd.f32 0.0, %v10477
        %v10479 = vpop.f32.mrf.mxu0
        %10480 = vmatprep.mubr.bf16.mxu0 0
        %10481 = vmatmul.mubr.bf16.gmra.mxu0 %v10361
        %v10482 = vpop.f32.mrf.mxu0
        %v10483 = vadd.f32 0.0, %v10482
        %v10484 = vpop.f32.mrf.mxu0
        %v10485 = vpop.f32.mrf.mxu0
        %v10486 = vadd.f32 0.0, %v10485
        %v10487 = vpop.f32.mrf.mxu0
        %10488 = vmatprep.mubr.bf16.mxu0 0
        %10489 = vmatmul.mubr.bf16.gmra.mxu0 %v10364
        %v10490 = vpop.f32.mrf.mxu0
        %v10491 = vadd.f32 0.0, %v10490
        %v10492 = vpop.f32.mrf.mxu0
        %v10493 = vpop.f32.mrf.mxu0
        %v10494 = vadd.f32 0.0, %v10493
        %v10495 = vpop.f32.mrf.mxu0
        %10496 = vmatprep.mubr.bf16.mxu0 0
        %10497 = vmatmul.mubr.bf16.gmra.mxu0 %v10367
        %v10498 = vpop.f32.mrf.mxu0
        %v10499 = vadd.f32 0.0, %v10498
        %v10500 = vpop.f32.mrf.mxu0
        %v10501 = vpop.f32.mrf.mxu0
        %v10502 = vadd.f32 0.0, %v10501
        %v10503 = vpop.f32.mrf.mxu0
        %10504 = vmatprep.mubr.bf16.mxu0 0
        %10505 = vmatmul.mubr.bf16.gmra.mxu0 %v10370
        %v10506 = vpop.f32.mrf.mxu0
        %v10507 = vadd.f32 0.0, %v10506
        %v10508 = vpop.f32.mrf.mxu0
        %v10509 = vpop.f32.mrf.mxu0
        %v10510 = vadd.f32 0.0, %v10509
        %v10511 = vpop.f32.mrf.mxu0
        %10512 = vmatprep.mubr.bf16.mxu0 0
        %10513 = vmatmul.mubr.bf16.gmra.mxu0 %v10373
        %v10514 = vpop.f32.mrf.mxu0
        %v10515 = vadd.f32 0.0, %v10514
        %v10516 = vpop.f32.mrf.mxu0
        %v10517 = vpop.f32.mrf.mxu0
        %v10518 = vadd.f32 0.0, %v10517
        %v10519 = vpop.f32.mrf.mxu0
        %10520 = vmatprep.mubr.bf16.mxu0 0
        %10521 = vmatmul.mubr.bf16.gmra.mxu0 %v10376
        %v10522 = vpop.f32.mrf.mxu0
        %v10523 = vadd.f32 0.0, %v10522
        %v10524 = vpop.f32.mrf.mxu0
        %v10525 = vpop.f32.mrf.mxu0
        %v10526 = vadd.f32 0.0, %v10525
        %v10527 = vpop.f32.mrf.mxu0
        %10528 = vmatprep.mubr.bf16.mxu0 0
        %10529 = vmatmul.mubr.bf16.gmra.mxu0 %v10379
        %v10530 = vpop.f32.mrf.mxu0
        %v10531 = vadd.f32 0.0, %v10530
        %v10532 = vpop.f32.mrf.mxu0
        %v10533 = vpop.f32.mrf.mxu0
        %v10534 = vadd.f32 0.0, %v10533
        %v10535 = vpop.f32.mrf.mxu0
        %10536 = vmatprep.mubr.bf16.mxu0 0
        %10537 = vmatmul.mubr.bf16.gmra.mxu0 %v10382
        %v10538 = vpop.f32.mrf.mxu0
        %v10539 = vadd.f32 0.0, %v10538
        %v10540 = vpop.f32.mrf.mxu0
        %v10541 = vpop.f32.mrf.mxu0
        %v10542 = vadd.f32 0.0, %v10541
        %v10543 = vpop.f32.mrf.mxu0
        %10544 = vdwg.mxu0
        %v10545 = vadd.f32 %v9791, %v10419
        %v10546 = vadd.f32 %v9792, %v10422
        %v10547 = vadd.f32 %v9793, %v10427
        %v10548 = vadd.f32 %v9794, %v10430
        %v10549 = vadd.f32 %v9795, %v10435
        %v10550 = vadd.f32 %v9796, %v10438
        %v10551 = vadd.f32 %v9797, %v10443
        %v10552 = vadd.f32 %v9798, %v10446
        %v10553 = vadd.f32 %v9799, %v10451
        %v10554 = vadd.f32 %v9800, %v10454
        %v10555 = vadd.f32 %v9801, %v10459
        %v10556 = vadd.f32 %v9802, %v10462
        %v10557 = vadd.f32 %v9803, %v10467
        %v10558 = vadd.f32 %v9804, %v10470
        %v10559 = vadd.f32 %v9805, %v10475
        %v10560 = vadd.f32 %v9806, %v10478
        %v10561 = vadd.f32 %v9807, %v10483
        %v10562 = vadd.f32 %v9808, %v10486
        %v10563 = vadd.f32 %v9809, %v10491
        %v10564 = vadd.f32 %v9810, %v10494
        %v10565 = vadd.f32 %v9811, %v10499
        %v10566 = vadd.f32 %v9812, %v10502
        %v10567 = vadd.f32 %v9813, %v10507
        %v10568 = vadd.f32 %v9814, %v10510
        %v10569 = vadd.f32 %v9815, %v10515
        %v10570 = vadd.f32 %v9816, %v10518
        %v10571 = vadd.f32 %v9817, %v10523
        %v10572 = vadd.f32 %v9818, %v10526
        %v10573 = vadd.f32 %v9819, %v10531
        %v10574 = vadd.f32 %v9820, %v10534
        %v10575 = vadd.f32 %v9821, %v10539
        %v10576 = vadd.f32 %v9822, %v10542
        %v10577 = vld [vmem:[%s9436] sm:$0xe]
        %v10578 = vld [vmem:[%s9436 + $0xc] sm:$0xe]
        %v10579 = vld [vmem:[%s9436 + $0x18] sm:$0xe]
        %v10580 = vld [vmem:[%s9436 + $0x24] sm:$0xe]
        %v10581 = vld [vmem:[%s9436 + $0x30] sm:$0xe]
        %v10582 = vld [vmem:[%s9436 + $0x3c] sm:$0xe]
        %v10583 = vld [vmem:[%s9436 + $0x48] sm:$0xe]
        %v10584 = vld [vmem:[%s9436 + $0x54] sm:$0xe]
        %v10585 = vld [vmem:[%s9436 + $0x60] sm:$0xe]
        %v10586 = vld [vmem:[%s9436 + $0x6c] sm:$0xe]
        %v10587 = vld [vmem:[%s9436 + $0x78] sm:$0xe]
        %v10588 = vld [vmem:[%s9436 + $0x84] sm:$0xe]
        %v10589 = vld [vmem:[%s9436 + $0x90] sm:$0xe]
        %v10590 = vld [vmem:[%s9436 + $0x9c] sm:$0xe]
        %v10591 = vld [vmem:[%s9436 + $0xa8] sm:$0xe]
        %v10592 = vld [vmem:[%s9436 + $0xb4] sm:$0xe]
        %v10641 = vrot.slane %v10577, 5
        %v10642 = vrot.slane %v10641, 4
        %v10643 = vrot.slane %v9824, 5
        %v10644 = vsel %vm7363, %v10642, %v10643
        %v10645 = vrot.slane %v10643, 4
        %v10646 = vrot.slane %v9825, 5
        %v10647 = vsel %vm7363, %v10645, %v10646
        %v10648 = vrot.slane %v10578, 5
        %v10649 = vrot.slane %v10648, 4
        %v10650 = vrot.slane %v9827, 5
        %v10651 = vsel %vm7363, %v10649, %v10650
        %v10652 = vrot.slane %v10650, 4
        %v10653 = vrot.slane %v9828, 5
        %v10654 = vsel %vm7363, %v10652, %v10653
        %v10655 = vrot.slane %v10579, 5
        %v10656 = vrot.slane %v10655, 4
        %v10657 = vrot.slane %v9830, 5
        %v10658 = vsel %vm7363, %v10656, %v10657
        %v10659 = vrot.slane %v10657, 4
        %v10660 = vrot.slane %v9831, 5
        %v10661 = vsel %vm7363, %v10659, %v10660
        %v10662 = vrot.slane %v10580, 5
        %v10663 = vrot.slane %v10662, 4
        %v10664 = vrot.slane %v9833, 5
        %v10665 = vsel %vm7363, %v10663, %v10664
        %v10666 = vrot.slane %v10664, 4
        %v10667 = vrot.slane %v9834, 5
        %v10668 = vsel %vm7363, %v10666, %v10667
        %v10669 = vrot.slane %v10581, 5
        %v10670 = vrot.slane %v10669, 4
        %v10671 = vrot.slane %v9836, 5
        %v10672 = vsel %vm7363, %v10670, %v10671
        %v10673 = vrot.slane %v10671, 4
        %v10674 = vrot.slane %v9837, 5
        %v10675 = vsel %vm7363, %v10673, %v10674
        %v10676 = vrot.slane %v10582, 5
        %v10677 = vrot.slane %v10676, 4
        %v10678 = vrot.slane %v9839, 5
        %v10679 = vsel %vm7363, %v10677, %v10678
        %v10680 = vrot.slane %v10678, 4
        %v10681 = vrot.slane %v9840, 5
        %v10682 = vsel %vm7363, %v10680, %v10681
        %v10683 = vrot.slane %v10583, 5
        %v10684 = vrot.slane %v10683, 4
        %v10685 = vrot.slane %v9842, 5
        %v10686 = vsel %vm7363, %v10684, %v10685
        %v10687 = vrot.slane %v10685, 4
        %v10688 = vrot.slane %v9843, 5
        %v10689 = vsel %vm7363, %v10687, %v10688
        %v10690 = vrot.slane %v10584, 5
        %v10691 = vrot.slane %v10690, 4
        %v10692 = vrot.slane %v9845, 5
        %v10693 = vsel %vm7363, %v10691, %v10692
        %v10694 = vrot.slane %v10692, 4
        %v10695 = vrot.slane %v9846, 5
        %v10696 = vsel %vm7363, %v10694, %v10695
        %v10697 = vrot.slane %v10585, 5
        %v10698 = vrot.slane %v10697, 4
        %v10699 = vrot.slane %v9848, 5
        %v10700 = vsel %vm7363, %v10698, %v10699
        %v10701 = vrot.slane %v10699, 4
        %v10702 = vrot.slane %v9849, 5
        %v10703 = vsel %vm7363, %v10701, %v10702
        %v10704 = vrot.slane %v10586, 5
        %v10705 = vrot.slane %v10704, 4
        %v10706 = vrot.slane %v9851, 5
        %v10707 = vsel %vm7363, %v10705, %v10706
        %v10708 = vrot.slane %v10706, 4
        %v10709 = vrot.slane %v9852, 5
        %v10710 = vsel %vm7363, %v10708, %v10709
        %v10711 = vrot.slane %v10587, 5
        %v10712 = vrot.slane %v10711, 4
        %v10713 = vrot.slane %v9854, 5
        %v10714 = vsel %vm7363, %v10712, %v10713
        %v10715 = vrot.slane %v10713, 4
        %v10716 = vrot.slane %v9855, 5
        %v10717 = vsel %vm7363, %v10715, %v10716
        %v10718 = vrot.slane %v10588, 5
        %v10719 = vrot.slane %v10718, 4
        %v10720 = vrot.slane %v9857, 5
        %v10721 = vsel %vm7363, %v10719, %v10720
        %v10722 = vrot.slane %v10720, 4
        %v10723 = vrot.slane %v9858, 5
        %v10724 = vsel %vm7363, %v10722, %v10723
        %v10725 = vrot.slane %v10589, 5
        %v10726 = vrot.slane %v10725, 4
        %v10727 = vrot.slane %v9860, 5
        %v10728 = vsel %vm7363, %v10726, %v10727
        %v10729 = vrot.slane %v10727, 4
        %v10730 = vrot.slane %v9861, 5
        %v10731 = vsel %vm7363, %v10729, %v10730
        %v10732 = vrot.slane %v10590, 5
        %v10733 = vrot.slane %v10732, 4
        %v10734 = vrot.slane %v9863, 5
        %v10735 = vsel %vm7363, %v10733, %v10734
        %v10736 = vrot.slane %v10734, 4
        %v10737 = vrot.slane %v9864, 5
        %v10738 = vsel %vm7363, %v10736, %v10737
        %v10739 = vrot.slane %v10591, 5
        %v10740 = vrot.slane %v10739, 4
        %v10741 = vrot.slane %v9866, 5
        %v10742 = vsel %vm7363, %v10740, %v10741
        %v10743 = vrot.slane %v10741, 4
        %v10744 = vrot.slane %v9867, 5
        %v10745 = vsel %vm7363, %v10743, %v10744
        %v10746 = vrot.slane %v10592, 5
        %v10747 = vrot.slane %v10746, 4
        %v10748 = vrot.slane %v9869, 5
        %v10749 = vsel %vm7363, %v10747, %v10748
        %v10750 = vrot.slane %v10748, 4
        %v10751 = vrot.slane %v9870, 5
        %v10752 = vsel %vm7363, %v10750, %v10751
        %s10753 = scalar_lea.vmem [#allocation3], 5728
        %v10754 = vld [vmem:[%s10753] sm:$0xf]
        %v10755 = vld [vmem:[%s10753 + $0x4] sm:$0xf]
        %v10756 = vld [vmem:[%s10753 + $0x8] sm:$0xf]
        %v10757 = vld [vmem:[%s10753 + $0xc] sm:$0xf]
        %v10758 = vld [vmem:[%s10753 + $0x10] sm:$0xf]
        %v10759 = vld [vmem:[%s10753 + $0x14] sm:$0xf]
        %v10760 = vld [vmem:[%s10753 + $0x18] sm:$0xf]
        %v10761 = vld [vmem:[%s10753 + $0x1c] sm:$0xf]
        %v10762 = vunpack.c.l.b16 %v10644
        %v10763 = vunpack.c.l.b16 %v10647
        %v10764 = vunpack.c.l.b16 %v10651
        %v10765 = vunpack.c.l.b16 %v10654
        %v10766 = vunpack.c.l.b16 %v10658
        %v10767 = vunpack.c.l.b16 %v10661
        %v10768 = vunpack.c.l.b16 %v10665
        %v10769 = vunpack.c.l.b16 %v10668
        %v10770 = vunpack.c.l.b16 %v10672
        %v10771 = vunpack.c.l.b16 %v10675
        %v10772 = vunpack.c.l.b16 %v10679
        %v10773 = vunpack.c.l.b16 %v10682
        %v10774 = vunpack.c.l.b16 %v10686
        %v10775 = vunpack.c.l.b16 %v10689
        %v10776 = vunpack.c.l.b16 %v10693
        %v10777 = vunpack.c.l.b16 %v10696
        %v10778 = vunpack.c.l.b16 %v10700
        %v10779 = vunpack.c.l.b16 %v10703
        %v10780 = vunpack.c.l.b16 %v10707
        %v10781 = vunpack.c.l.b16 %v10710
        %v10782 = vunpack.c.l.b16 %v10714
        %v10783 = vunpack.c.l.b16 %v10717
        %v10784 = vunpack.c.l.b16 %v10721
        %v10785 = vunpack.c.l.b16 %v10724
        %v10786 = vunpack.c.l.b16 %v10728
        %v10787 = vunpack.c.l.b16 %v10731
        %v10788 = vunpack.c.l.b16 %v10735
        %v10789 = vunpack.c.l.b16 %v10738
        %v10790 = vunpack.c.l.b16 %v10742
        %v10791 = vunpack.c.l.b16 %v10745
        %v10792 = vunpack.c.l.b16 %v10749
        %v10793 = vunpack.c.l.b16 %v10752
        %v10794 = vpack.c.b16 %v10763, %v10762
        %v10795 = vpack.c.b16 %v10765, %v10764
        %v10796 = vpack.c.b16 %v10767, %v10766
        %v10797 = vpack.c.b16 %v10769, %v10768
        %v10798 = vpack.c.b16 %v10771, %v10770
        %v10799 = vpack.c.b16 %v10773, %v10772
        %v10800 = vpack.c.b16 %v10775, %v10774
        %v10801 = vpack.c.b16 %v10777, %v10776
        %v10802 = vpack.c.b16 %v10779, %v10778
        %v10803 = vpack.c.b16 %v10781, %v10780
        %v10804 = vpack.c.b16 %v10783, %v10782
        %v10805 = vpack.c.b16 %v10785, %v10784
        %v10806 = vpack.c.b16 %v10787, %v10786
        %v10807 = vpack.c.b16 %v10789, %v10788
        %v10808 = vpack.c.b16 %v10791, %v10790
        %v10809 = vpack.c.b16 %v10793, %v10792
        %v10818 = vunpack.c.l.b16 %v10754
        %v10819 = vunpack.c.l.b16 %v10755
        %v10820 = vunpack.c.l.b16 %v10756
        %v10821 = vunpack.c.l.b16 %v10757
        %v10822 = vunpack.c.l.b16 %v10758
        %v10823 = vunpack.c.l.b16 %v10759
        %v10824 = vunpack.c.l.b16 %v10760
        %v10825 = vunpack.c.l.b16 %v10761
        %v10826 = vpack.c.b16 %v10819, %v10818
        %v10827 = vpack.c.b16 %v10821, %v10820
        %v10828 = vpack.c.b16 %v10823, %v10822
        %v10829 = vpack.c.b16 %v10825, %v10824
        %v10835 = vsel %vm6790, %v10794, 0
        %v10838 = vsel %vm6790, %v10795, 0
        %v10841 = vsel %vm6790, %v10796, 0
        %v10844 = vsel %vm6790, %v10797, 0
        %v10847 = vsel %vm6790, %v10798, 0
        %v10850 = vsel %vm6790, %v10799, 0
        %v10853 = vsel %vm6790, %v10800, 0
        %v10856 = vsel %vm6790, %v10801, 0
        %v10859 = vsel %vm6790, %v10802, 0
        %v10862 = vsel %vm6790, %v10803, 0
        %v10865 = vsel %vm6790, %v10804, 0
        %v10868 = vsel %vm6790, %v10805, 0
        %v10871 = vsel %vm6790, %v10806, 0
        %v10874 = vsel %vm6790, %v10807, 0
        %v10877 = vsel %vm6790, %v10808, 0
        %v10880 = vsel %vm6790, %v10809, 0
        %10882 = vmatprep.subr.bf16.mxu0 0
        %10883 = vmatpush1.bf16.msra.mxu0 0
        %10884 = vmatprep.subr.bf16.mxu0 0
        %10885 = vmatpush1.bf16.msra.mxu0 0
        %10886 = vmatprep.subr.bf16.mxu0 0
        %10887 = vmatpush1.bf16.msra.mxu0 0
        %10888 = vmatprep.subr.bf16.mxu0 0
        %10889 = vmatpush1.bf16.msra.mxu0 0
        %10890 = vmatprep.subr.bf16.mxu0 0
        %10891 = vmatpush1.bf16.msra.mxu0 %v10829
        %10892 = vmatprep.subr.bf16.mxu0 0
        %10893 = vmatpush1.bf16.msra.mxu0 %v10828
        %10894 = vmatprep.subr.bf16.mxu0 0
        %10895 = vmatpush1.bf16.msra.mxu0 %v10827
        %10896 = vmatprep.subr.bf16.mxu0 0
        %10897 = vmatpush1.bf16.msra.mxu0 %v10826
        %10898 = vmatprep.subr.bf16.mxu0 0
        %10899 = vmatpush2.bf16.msra.mxu0 0
        %10900 = vmatprep.subr.bf16.mxu0 0
        %10901 = vmatpush2.bf16.msra.mxu0 0
        %10902 = vmatprep.subr.bf16.mxu0 0
        %10903 = vmatpush2.bf16.msra.mxu0 0
        %10904 = vmatprep.subr.bf16.mxu0 0
        %10905 = vmatpush2.bf16.msra.mxu0 0
        %10906 = vmatprep.subr.bf16.mxu0 0
        %10907 = vmatpush2.bf16.msra.mxu0 0
        %10908 = vmatprep.subr.bf16.mxu0 0
        %10909 = vmatpush2.bf16.msra.mxu0 0
        %10910 = vmatprep.subr.bf16.mxu0 0
        %10911 = vmatpush2.bf16.msra.mxu0 0
        %10912 = vmatprep.subr.bf16.mxu0 0
        %10913 = vmatpush2.bf16.msra.mxu0 0
        %10914 = vmatprep.mubr.bf16.mxu0 0
        %10915 = vmatmul.mubr.bf16.gmra.mxu0 %v10835
        %v10916 = vpop.f32.mrf.mxu0
        %v10917 = vadd.f32 0.0, %v10916
        %v10918 = vpop.f32.mrf.mxu0
        %v10919 = vpop.f32.mrf.mxu0
        %v10920 = vadd.f32 0.0, %v10919
        %v10921 = vpop.f32.mrf.mxu0
        %10922 = vmatprep.mubr.bf16.mxu0 0
        %10923 = vmatmul.mubr.bf16.gmra.mxu0 %v10838
        %v10924 = vpop.f32.mrf.mxu0
        %v10925 = vadd.f32 0.0, %v10924
        %v10926 = vpop.f32.mrf.mxu0
        %v10927 = vpop.f32.mrf.mxu0
        %v10928 = vadd.f32 0.0, %v10927
        %v10929 = vpop.f32.mrf.mxu0
        %10930 = vmatprep.mubr.bf16.mxu0 0
        %10931 = vmatmul.mubr.bf16.gmra.mxu0 %v10841
        %v10932 = vpop.f32.mrf.mxu0
        %v10933 = vadd.f32 0.0, %v10932
        %v10934 = vpop.f32.mrf.mxu0
        %v10935 = vpop.f32.mrf.mxu0
        %v10936 = vadd.f32 0.0, %v10935
        %v10937 = vpop.f32.mrf.mxu0
        %10938 = vmatprep.mubr.bf16.mxu0 0
        %10939 = vmatmul.mubr.bf16.gmra.mxu0 %v10844
        %v10940 = vpop.f32.mrf.mxu0
        %v10941 = vadd.f32 0.0, %v10940
        %v10942 = vpop.f32.mrf.mxu0
        %v10943 = vpop.f32.mrf.mxu0
        %v10944 = vadd.f32 0.0, %v10943
        %v10945 = vpop.f32.mrf.mxu0
        %10946 = vmatprep.mubr.bf16.mxu0 0
        %10947 = vmatmul.mubr.bf16.gmra.mxu0 %v10847
        %v10948 = vpop.f32.mrf.mxu0
        %v10949 = vadd.f32 0.0, %v10948
        %v10950 = vpop.f32.mrf.mxu0
        %v10951 = vpop.f32.mrf.mxu0
        %v10952 = vadd.f32 0.0, %v10951
        %v10953 = vpop.f32.mrf.mxu0
        %10954 = vmatprep.mubr.bf16.mxu0 0
        %10955 = vmatmul.mubr.bf16.gmra.mxu0 %v10850
        %v10956 = vpop.f32.mrf.mxu0
        %v10957 = vadd.f32 0.0, %v10956
        %v10958 = vpop.f32.mrf.mxu0
        %v10959 = vpop.f32.mrf.mxu0
        %v10960 = vadd.f32 0.0, %v10959
        %v10961 = vpop.f32.mrf.mxu0
        %10962 = vmatprep.mubr.bf16.mxu0 0
        %10963 = vmatmul.mubr.bf16.gmra.mxu0 %v10853
        %v10964 = vpop.f32.mrf.mxu0
        %v10965 = vadd.f32 0.0, %v10964
        %v10966 = vpop.f32.mrf.mxu0
        %v10967 = vpop.f32.mrf.mxu0
        %v10968 = vadd.f32 0.0, %v10967
        %v10969 = vpop.f32.mrf.mxu0
        %10970 = vmatprep.mubr.bf16.mxu0 0
        %10971 = vmatmul.mubr.bf16.gmra.mxu0 %v10856
        %v10972 = vpop.f32.mrf.mxu0
        %v10973 = vadd.f32 0.0, %v10972
        %v10974 = vpop.f32.mrf.mxu0
        %v10975 = vpop.f32.mrf.mxu0
        %v10976 = vadd.f32 0.0, %v10975
        %v10977 = vpop.f32.mrf.mxu0
        %10978 = vmatprep.mubr.bf16.mxu0 0
        %10979 = vmatmul.mubr.bf16.gmra.mxu0 %v10859
        %v10980 = vpop.f32.mrf.mxu0
        %v10981 = vadd.f32 0.0, %v10980
        %v10982 = vpop.f32.mrf.mxu0
        %v10983 = vpop.f32.mrf.mxu0
        %v10984 = vadd.f32 0.0, %v10983
        %v10985 = vpop.f32.mrf.mxu0
        %10986 = vmatprep.mubr.bf16.mxu0 0
        %10987 = vmatmul.mubr.bf16.gmra.mxu0 %v10862
        %v10988 = vpop.f32.mrf.mxu0
        %v10989 = vadd.f32 0.0, %v10988
        %v10990 = vpop.f32.mrf.mxu0
        %v10991 = vpop.f32.mrf.mxu0
        %v10992 = vadd.f32 0.0, %v10991
        %v10993 = vpop.f32.mrf.mxu0
        %10994 = vmatprep.mubr.bf16.mxu0 0
        %10995 = vmatmul.mubr.bf16.gmra.mxu0 %v10865
        %v10996 = vpop.f32.mrf.mxu0
        %v10997 = vadd.f32 0.0, %v10996
        %v10998 = vpop.f32.mrf.mxu0
        %v10999 = vpop.f32.mrf.mxu0
        %v11000 = vadd.f32 0.0, %v10999
        %v11001 = vpop.f32.mrf.mxu0
        %11002 = vmatprep.mubr.bf16.mxu0 0
        %11003 = vmatmul.mubr.bf16.gmra.mxu0 %v10868
        %v11004 = vpop.f32.mrf.mxu0
        %v11005 = vadd.f32 0.0, %v11004
        %v11006 = vpop.f32.mrf.mxu0
        %v11007 = vpop.f32.mrf.mxu0
        %v11008 = vadd.f32 0.0, %v11007
        %v11009 = vpop.f32.mrf.mxu0
        %11010 = vmatprep.mubr.bf16.mxu0 0
        %11011 = vmatmul.mubr.bf16.gmra.mxu0 %v10871
        %v11012 = vpop.f32.mrf.mxu0
        %v11013 = vadd.f32 0.0, %v11012
        %v11014 = vpop.f32.mrf.mxu0
        %v11015 = vpop.f32.mrf.mxu0
        %v11016 = vadd.f32 0.0, %v11015
        %v11017 = vpop.f32.mrf.mxu0
        %11018 = vmatprep.mubr.bf16.mxu0 0
        %11019 = vmatmul.mubr.bf16.gmra.mxu0 %v10874
        %v11020 = vpop.f32.mrf.mxu0
        %v11021 = vadd.f32 0.0, %v11020
        %v11022 = vpop.f32.mrf.mxu0
        %v11023 = vpop.f32.mrf.mxu0
        %v11024 = vadd.f32 0.0, %v11023
        %v11025 = vpop.f32.mrf.mxu0
        %11026 = vmatprep.mubr.bf16.mxu0 0
        %11027 = vmatmul.mubr.bf16.gmra.mxu0 %v10877
        %v11028 = vpop.f32.mrf.mxu0
        %v11029 = vadd.f32 0.0, %v11028
        %v11030 = vpop.f32.mrf.mxu0
        %v11031 = vpop.f32.mrf.mxu0
        %v11032 = vadd.f32 0.0, %v11031
        %v11033 = vpop.f32.mrf.mxu0
        %11034 = vmatprep.mubr.bf16.mxu0 0
        %11035 = vmatmul.mubr.bf16.gmra.mxu0 %v10880
        %v11036 = vpop.f32.mrf.mxu0
        %v11037 = vadd.f32 0.0, %v11036
        %v11038 = vpop.f32.mrf.mxu0
        %v11039 = vpop.f32.mrf.mxu0
        %v11040 = vadd.f32 0.0, %v11039
        %v11041 = vpop.f32.mrf.mxu0
        %11042 = vdwg.mxu0
        %v11043 = vadd.f32 %v10545, %v10917
        %v11044 = vadd.f32 %v10546, %v10920
        %v11045 = vadd.f32 %v10547, %v10925
        %v11046 = vadd.f32 %v10548, %v10928
        %v11047 = vadd.f32 %v10549, %v10933
        %v11048 = vadd.f32 %v10550, %v10936
        %v11049 = vadd.f32 %v10551, %v10941
        %v11050 = vadd.f32 %v10552, %v10944
        %v11051 = vadd.f32 %v10553, %v10949
        %v11052 = vadd.f32 %v10554, %v10952
        %v11053 = vadd.f32 %v10555, %v10957
        %v11054 = vadd.f32 %v10556, %v10960
        %v11055 = vadd.f32 %v10557, %v10965
        %v11056 = vadd.f32 %v10558, %v10968
        %v11057 = vadd.f32 %v10559, %v10973
        %v11058 = vadd.f32 %v10560, %v10976
        %v11059 = vadd.f32 %v10561, %v10981
        %v11060 = vadd.f32 %v10562, %v10984
        %v11061 = vadd.f32 %v10563, %v10989
        %v11062 = vadd.f32 %v10564, %v10992
        %v11063 = vadd.f32 %v10565, %v10997
        %v11064 = vadd.f32 %v10566, %v11000
        %v11065 = vadd.f32 %v10567, %v11005
        %v11066 = vadd.f32 %v10568, %v11008
        %v11067 = vadd.f32 %v10569, %v11013
        %v11068 = vadd.f32 %v10570, %v11016
        %v11069 = vadd.f32 %v10571, %v11021
        %v11070 = vadd.f32 %v10572, %v11024
        %v11071 = vadd.f32 %v10573, %v11029
        %v11072 = vadd.f32 %v10574, %v11032
        %v11073 = vadd.f32 %v10575, %v11037
        %v11074 = vadd.f32 %v10576, %v11040
        %s11075 = scalar_lea.vmem [#allocation5], 19
        %v11076 = vld [vmem:[%s11075] sm:$0x1]
        %v11078 = vlaneseq
        %v11079 = vshrl.u32 %v11078, 7
        %v11080 = vsub.s32 0, %v11079
        %v11081 = vrot.slane %v11076, %v11080
        %v11083 = vadd.f32 %v11043, %v11081
        %v11084 = vadd.f32 %v11044, %v11081
        %v11085 = vadd.f32 %v11045, %v11081
        %v11086 = vadd.f32 %v11046, %v11081
        %v11087 = vadd.f32 %v11047, %v11081
        %v11088 = vadd.f32 %v11048, %v11081
        %v11089 = vadd.f32 %v11049, %v11081
        %v11090 = vadd.f32 %v11050, %v11081
        %v11091 = vadd.f32 %v11051, %v11081
        %v11092 = vadd.f32 %v11052, %v11081
        %v11093 = vadd.f32 %v11053, %v11081
        %v11094 = vadd.f32 %v11054, %v11081
        %v11095 = vadd.f32 %v11055, %v11081
        %v11096 = vadd.f32 %v11056, %v11081
        %v11097 = vadd.f32 %v11057, %v11081
        %v11098 = vadd.f32 %v11058, %v11081
        %v11099 = vadd.f32 %v11059, %v11081
        %v11100 = vadd.f32 %v11060, %v11081
        %v11101 = vadd.f32 %v11061, %v11081
        %v11102 = vadd.f32 %v11062, %v11081
        %v11103 = vadd.f32 %v11063, %v11081
        %v11104 = vadd.f32 %v11064, %v11081
        %v11105 = vadd.f32 %v11065, %v11081
        %v11106 = vadd.f32 %v11066, %v11081
        %v11107 = vadd.f32 %v11067, %v11081
        %v11108 = vadd.f32 %v11068, %v11081
        %v11109 = vadd.f32 %v11069, %v11081
        %v11110 = vadd.f32 %v11070, %v11081
        %v11111 = vadd.f32 %v11071, %v11081
        %v11112 = vadd.f32 %v11072, %v11081
        %v11113 = vadd.f32 %v11073, %v11081
        %v11114 = vadd.f32 %v11074, %v11081
        %11115 = vst.msk [vmem:[%s200] sm:$0xff] %vm6790, %v11083
        %11116 = vst.msk [vmem:[%s200 + $0x8] sm:$0xff] %vm6790, %v11084
        %11117 = vst.msk [vmem:[%s200 + $0x10] sm:$0xff] %vm6790, %v11085
        %11118 = vst.msk [vmem:[%s200 + $0x18] sm:$0xff] %vm6790, %v11086
        %11119 = vst.msk [vmem:[%s200 + $0x20] sm:$0xff] %vm6790, %v11087
        %11120 = vst.msk [vmem:[%s200 + $0x28] sm:$0xff] %vm6790, %v11088
        %11121 = vst.msk [vmem:[%s200 + $0x30] sm:$0xff] %vm6790, %v11089
        %11122 = vst.msk [vmem:[%s200 + $0x38] sm:$0xff] %vm6790, %v11090
        %11123 = vst.msk [vmem:[%s200 + $0x40] sm:$0xff] %vm6790, %v11091
        %11124 = vst.msk [vmem:[%s200 + $0x48] sm:$0xff] %vm6790, %v11092
        %11125 = vst.msk [vmem:[%s200 + $0x50] sm:$0xff] %vm6790, %v11093
        %11126 = vst.msk [vmem:[%s200 + $0x58] sm:$0xff] %vm6790, %v11094
        %11127 = vst.msk [vmem:[%s200 + $0x60] sm:$0xff] %vm6790, %v11095
        %11128 = vst.msk [vmem:[%s200 + $0x68] sm:$0xff] %vm6790, %v11096
        %11129 = vst.msk [vmem:[%s200 + $0x70] sm:$0xff] %vm6790, %v11097
        %11130 = vst.msk [vmem:[%s200 + $0x78] sm:$0xff] %vm6790, %v11098
        %11131 = vst.msk [vmem:[%s200 + $0x80] sm:$0xff] %vm6790, %v11099
        %11132 = vst.msk [vmem:[%s200 + $0x88] sm:$0xff] %vm6790, %v11100
        %11133 = vst.msk [vmem:[%s200 + $0x90] sm:$0xff] %vm6790, %v11101
        %11134 = vst.msk [vmem:[%s200 + $0x98] sm:$0xff] %vm6790, %v11102
        %11135 = vst.msk [vmem:[%s200 + $0xa0] sm:$0xff] %vm6790, %v11103
        %11136 = vst.msk [vmem:[%s200 + $0xa8] sm:$0xff] %vm6790, %v11104
        %11137 = vst.msk [vmem:[%s200 + $0xb0] sm:$0xff] %vm6790, %v11105
        %11138 = vst.msk [vmem:[%s200 + $0xb8] sm:$0xff] %vm6790, %v11106
        %11139 = vst.msk [vmem:[%s200 + $0xc0] sm:$0xff] %vm6790, %v11107
        %11140 = vst.msk [vmem:[%s200 + $0xc8] sm:$0xff] %vm6790, %v11108
        %11141 = vst.msk [vmem:[%s200 + $0xd0] sm:$0xff] %vm6790, %v11109
        %11142 = vst.msk [vmem:[%s200 + $0xd8] sm:$0xff] %vm6790, %v11110
        %11143 = vst.msk [vmem:[%s200 + $0xe0] sm:$0xff] %vm6790, %v11111
        %11144 = vst.msk [vmem:[%s200 + $0xe8] sm:$0xff] %vm6790, %v11112
        %11145 = vst.msk [vmem:[%s200 + $0xf0] sm:$0xff] %vm6790, %v11113
        %11146 = vst.msk [vmem:[%s200 + $0xf8] sm:$0xff] %vm6790, %v11114
        %v11147 = vld [vmem:[%s195] sm:$0xff]
        %v11148 = vld [vmem:[%s195 + $0x8] sm:$0xff]
        %v11149 = vld [vmem:[%s195 + $0x10] sm:$0xff]
        %v11150 = vld [vmem:[%s195 + $0x18] sm:$0xff]
        %v11151 = vld [vmem:[%s195 + $0x20] sm:$0xff]
        %v11152 = vld [vmem:[%s195 + $0x28] sm:$0xff]
        %v11153 = vld [vmem:[%s195 + $0x30] sm:$0xff]
        %v11154 = vld [vmem:[%s195 + $0x38] sm:$0xff]
        %v11155 = vld [vmem:[%s195 + $0x40] sm:$0xff]
        %v11156 = vld [vmem:[%s195 + $0x48] sm:$0xff]
        %v11157 = vld [vmem:[%s195 + $0x50] sm:$0xff]
        %v11158 = vld [vmem:[%s195 + $0x58] sm:$0xff]
        %v11159 = vld [vmem:[%s195 + $0x60] sm:$0xff]
        %v11160 = vld [vmem:[%s195 + $0x68] sm:$0xff]
        %v11161 = vld [vmem:[%s195 + $0x70] sm:$0xff]
        %v11162 = vld [vmem:[%s195 + $0x78] sm:$0xff]
        %v11163 = vld [vmem:[%s195 + $0x80] sm:$0xff]
        %v11164 = vld [vmem:[%s195 + $0x88] sm:$0xff]
        %v11165 = vld [vmem:[%s195 + $0x90] sm:$0xff]
        %v11166 = vld [vmem:[%s195 + $0x98] sm:$0xff]
        %v11167 = vld [vmem:[%s195 + $0xa0] sm:$0xff]
        %v11168 = vld [vmem:[%s195 + $0xa8] sm:$0xff]
        %v11169 = vld [vmem:[%s195 + $0xb0] sm:$0xff]
        %v11170 = vld [vmem:[%s195 + $0xb8] sm:$0xff]
        %v11171 = vld [vmem:[%s195 + $0xc0] sm:$0xff]
        %v11172 = vld [vmem:[%s195 + $0xc8] sm:$0xff]
        %v11173 = vld [vmem:[%s195 + $0xd0] sm:$0xff]
        %v11174 = vld [vmem:[%s195 + $0xd8] sm:$0xff]
        %v11175 = vld [vmem:[%s195 + $0xe0] sm:$0xff]
        %v11176 = vld [vmem:[%s195 + $0xe8] sm:$0xff]
        %v11177 = vld [vmem:[%s195 + $0xf0] sm:$0xff]
        %v11178 = vld [vmem:[%s195 + $0xf8] sm:$0xff]
        %v11179 = vadd.f32 %v11083, %v11147
        %v11180 = vadd.f32 %v11084, %v11148
        %v11181 = vadd.f32 %v11085, %v11149
        %v11182 = vadd.f32 %v11086, %v11150
        %v11183 = vadd.f32 %v11087, %v11151
        %v11184 = vadd.f32 %v11088, %v11152
        %v11185 = vadd.f32 %v11089, %v11153
        %v11186 = vadd.f32 %v11090, %v11154
        %v11187 = vadd.f32 %v11091, %v11155
        %v11188 = vadd.f32 %v11092, %v11156
        %v11189 = vadd.f32 %v11093, %v11157
        %v11190 = vadd.f32 %v11094, %v11158
        %v11191 = vadd.f32 %v11095, %v11159
        %v11192 = vadd.f32 %v11096, %v11160
        %v11193 = vadd.f32 %v11097, %v11161
        %v11194 = vadd.f32 %v11098, %v11162
        %v11195 = vadd.f32 %v11099, %v11163
        %v11196 = vadd.f32 %v11100, %v11164
        %v11197 = vadd.f32 %v11101, %v11165
        %v11198 = vadd.f32 %v11102, %v11166
        %v11199 = vadd.f32 %v11103, %v11167
        %v11200 = vadd.f32 %v11104, %v11168
        %v11201 = vadd.f32 %v11105, %v11169
        %v11202 = vadd.f32 %v11106, %v11170
        %v11203 = vadd.f32 %v11107, %v11171
        %v11204 = vadd.f32 %v11108, %v11172
        %v11205 = vadd.f32 %v11109, %v11173
        %v11206 = vadd.f32 %v11110, %v11174
        %v11207 = vadd.f32 %v11111, %v11175
        %v11208 = vadd.f32 %v11112, %v11176
        %v11209 = vadd.f32 %v11113, %v11177
        %v11210 = vadd.f32 %v11114, %v11178
        %vm11211 = vcmask 23552
        %11212 = vst.msk [vmem:[%s200] sm:$0xff] %vm11211, %v11179
        %11213 = vst.msk [vmem:[%s200 + $0x8] sm:$0xff] %vm11211, %v11180
        %11214 = vst.msk [vmem:[%s200 + $0x10] sm:$0xff] %vm11211, %v11181
        %11215 = vst.msk [vmem:[%s200 + $0x18] sm:$0xff] %vm11211, %v11182
        %11216 = vst.msk [vmem:[%s200 + $0x20] sm:$0xff] %vm11211, %v11183
        %11217 = vst.msk [vmem:[%s200 + $0x28] sm:$0xff] %vm11211, %v11184
        %11218 = vst.msk [vmem:[%s200 + $0x30] sm:$0xff] %vm11211, %v11185
        %11219 = vst.msk [vmem:[%s200 + $0x38] sm:$0xff] %vm11211, %v11186
        %11220 = vst.msk [vmem:[%s200 + $0x40] sm:$0xff] %vm11211, %v11187
        %11221 = vst.msk [vmem:[%s200 + $0x48] sm:$0xff] %vm11211, %v11188
        %11222 = vst.msk [vmem:[%s200 + $0x50] sm:$0xff] %vm11211, %v11189
        %11223 = vst.msk [vmem:[%s200 + $0x58] sm:$0xff] %vm11211, %v11190
        %11224 = vst.msk [vmem:[%s200 + $0x60] sm:$0xff] %vm11211, %v11191
        %11225 = vst.msk [vmem:[%s200 + $0x68] sm:$0xff] %vm11211, %v11192
        %11226 = vst.msk [vmem:[%s200 + $0x70] sm:$0xff] %vm11211, %v11193
        %11227 = vst.msk [vmem:[%s200 + $0x78] sm:$0xff] %vm11211, %v11194
        %11228 = vst.msk [vmem:[%s200 + $0x80] sm:$0xff] %vm11211, %v11195
        %11229 = vst.msk [vmem:[%s200 + $0x88] sm:$0xff] %vm11211, %v11196
        %11230 = vst.msk [vmem:[%s200 + $0x90] sm:$0xff] %vm11211, %v11197
        %11231 = vst.msk [vmem:[%s200 + $0x98] sm:$0xff] %vm11211, %v11198
        %11232 = vst.msk [vmem:[%s200 + $0xa0] sm:$0xff] %vm11211, %v11199
        %11233 = vst.msk [vmem:[%s200 + $0xa8] sm:$0xff] %vm11211, %v11200
        %11234 = vst.msk [vmem:[%s200 + $0xb0] sm:$0xff] %vm11211, %v11201
        %11235 = vst.msk [vmem:[%s200 + $0xb8] sm:$0xff] %vm11211, %v11202
        %11236 = vst.msk [vmem:[%s200 + $0xc0] sm:$0xff] %vm11211, %v11203
        %11237 = vst.msk [vmem:[%s200 + $0xc8] sm:$0xff] %vm11211, %v11204
        %11238 = vst.msk [vmem:[%s200 + $0xd0] sm:$0xff] %vm11211, %v11205
        %11239 = vst.msk [vmem:[%s200 + $0xd8] sm:$0xff] %vm11211, %v11206
        %11240 = vst.msk [vmem:[%s200 + $0xe0] sm:$0xff] %vm11211, %v11207
        %11241 = vst.msk [vmem:[%s200 + $0xe8] sm:$0xff] %vm11211, %v11208
        %11242 = vst.msk [vmem:[%s200 + $0xf0] sm:$0xff] %vm11211, %v11209
        %11243 = vst.msk [vmem:[%s200 + $0xf8] sm:$0xff] %vm11211, %v11210
        %p11244 = scmp.lt.s32.totalorder %s16, 1
        %s11245 = scalar_select %p11244, %s16, 1
        %s11246 = smul.addr %s11245, 32
        %s11247 = smul.addr %s11246, 8
        %s11248 = scalar_lea.vmem %s3, %s11247
        // Predicated region
        $region48: #{vdsr_forward.1} parent=31 // pred_check
          %p11249 = pneg %p102
        $region49: #{vdsr_forward.1} parent=31 // pred_check_branch
          %11251 = sbr.rel (%p11249) target = $region51
        $region50: #{vdsr_forward.1} parent=31 // pred_region
          _
        $region51: #{vdsr_forward.1} parent=31 // pred_fallthru
          _
      $region32: #{vdsr_forward.1} parent=5 // pred_fallthru
        _
      %p11252 = scmp.le.s32.totalorder 2, %s11
      // Predicated region
      $region52: #{vdsr_forward.1} parent=5 // pred_check
        %p11253 = pneg %p11252
      $region53: #{vdsr_forward.1} parent=5 // pred_check_branch
        %11255 = sbr.rel (%p11253) target = $region55
      $region54: #{vdsr_forward.1} parent=5 // pred_region
        %s11256 = ssub.s32 %s11, 2
        // Predicated region
        $region56: #{vdsr_forward.1} parent=54 // pred_check
          %p11257 = pneg %p108
        $region57: #{vdsr_forward.1} parent=54 // pred_check_branch
          %11259 = sbr.rel (%p11257) target = $region59
        $region58: #{vdsr_forward.1} parent=54 // pred_region
          %p11260 = scmp.lt.s32.totalorder %s17, 1
          %s11261 = scalar_select %p11260, %s17, 1
          %s11262 = smul.addr %s11261, 32
          %s11263 = smul.addr %s11262, 8
          %s11264 = scalar_lea.vmem %s3, %s11263
        $region59: #{vdsr_forward.1} parent=54 // pred_fallthru
          _
      $region55: #{vdsr_forward.1} parent=5 // pred_fallthru
        _
    $region6: #{vdsr_forward.1} parent=1 // loop_footer
      %s15 = sadd.s32 1, %s11
    $region7: #{vdsr_forward.1} parent=1 // loop_footer_branch
      %10 = sbr.rel target = $region3
    $region8: #{vdsr_forward.1} parent=1 // loop_exit
      _
    %11265 = vsyncpa [#allocation4], 1
    %s11266 = scalar_lea.sflag [#allocation4], 1
    %11267 = vsyncpa %s11266, 1
    %11268 = vsyncpa [#allocation6], 1

</llo_original>
